<compile_context>
chip_gen: v7x
topology: tpu7x:2x2x1
jax: 0.10.0
libtpu: 0.0.40
codegen_flags: <defaults>
</compile_context>

<pallas_src>
import jax
import jax.numpy as jnp
from jax.experimental import pallas as pl
from jax.experimental.pallas import tpu as pltpu

_VMEM_LIMIT = 32 * 1024 * 1024   # explicit scoped-VMEM budget (well below v7x 64 MiB)


# ---------------------------------------------------------------------------
# Stage 1: spatial_conv1 (Conv2d 3->12, 8x8, stride 2, pad 3) fused with the
#          stride-1 part of MaxPool2d(3, 2, 1).
# ---------------------------------------------------------------------------

def conv1_pool(x, w, bias):
    """Returns the pooled spatial branch (B, Cout, (H//4)*(W//4))."""
    B, Cin, H, W = x.shape
    Cout = w.shape[0]
    H2, W2 = H // 2, W // 2
    H4, W4 = H // 4, W // 4
    Hh, Wh = H2 + 3, W2 + 3            # parity-folded, padded spatial dims
    Mout = H2 * Wh                     # flat conv output (cols >= W2 are garbage)
    Lx = Hh * Wh + 128                 # flat folded input + slack for tap shifts

    # Fold the stride-2 conv into a stride-1 4x4 conv over 4*Cin channels:
    #   x_eff[(p*2+q)*Cin + ci, i, j] = xpad[ci, 2i+p, 2j+q]
    xpad = jnp.pad(x, ((0, 0), (0, 0), (3, 3), (3, 3)))
    xf = xpad.reshape(B, Cin, Hh, 2, Wh, 2).transpose(0, 3, 5, 1, 2, 4)
    xf = xf.reshape(B, 4 * Cin, Hh * Wh)
    xf = jnp.pad(xf, ((0, 0), (0, 0), (0, Lx - Hh * Wh)))

    # weights: w_taps[a*4+b, co, (p*2+q)*Cin+ci] = w[co, ci, 2a+p, 2b+q]
    w_taps = w.reshape(Cout, Cin, 4, 2, 4, 2).transpose(2, 4, 0, 3, 5, 1)
    w_taps = w_taps.reshape(16, Cout, 4 * Cin).astype(jnp.float32)
    b2 = bias.reshape(Cout, 1).astype(jnp.float32)

    # Additive column mask: 0 where the flat column is a real output column
    # (ow < W2), -inf where it is row-stride padding.  Built once in XLA so the
    # kernel needs no integer modulo.
    valid = (jnp.arange(Mout, dtype=jnp.int32) % Wh) < W2
    colmask = jnp.where(valid, 0.0, -jnp.inf).astype(jnp.float32).reshape(1, Mout)

    def kernel(x_ref, w_ref, b_ref, m_ref, o_ref):
        # im2col is done HERE: 16 static flat-shift slab reads of the folded
        # padded input, each fed straight to the MXU.
        acc = jnp.zeros((Cout, Mout), jnp.float32)
        for a in range(4):
            for c in range(4):
                sh = a * Wh + c
                slab = x_ref[0, :, pl.ds(sh, Mout)]
                acc = acc + jnp.dot(w_ref[4 * a + c], slab,
                                    preferred_element_type=jnp.float32)
        conv = acc + b_ref[...] + m_ref[...]          # bias + (-inf on garbage cols)

        # Separable 3x3 stride-1 max with -inf borders (== MaxPool2d padding).
        ninf1 = jnp.full((Cout, 1), -jnp.inf, jnp.float32)
        left = jnp.concatenate([ninf1, conv[:, :-1]], axis=1)    # value at m-1
        right = jnp.concatenate([conv[:, 1:], ninf1], axis=1)    # value at m+1
        hm = jnp.maximum(conv, jnp.maximum(left, right))
        ninfw = jnp.full((Cout, Wh), -jnp.inf, jnp.float32)
        up = jnp.concatenate([ninfw, hm[:, :-Wh]], axis=1)       # value at m-Wh
        dn = jnp.concatenate([hm[:, Wh:], ninfw], axis=1)        # value at m+Wh
        o_ref[0] = jnp.maximum(hm, jnp.maximum(up, dn)).astype(o_ref.dtype)

    vm = pl.pallas_call(
        kernel,
        grid=(B,),
        in_specs=[pl.BlockSpec((1, 4 * Cin, Lx), lambda i: (i, 0, 0)),
                  pl.BlockSpec((16, Cout, 4 * Cin), lambda i: (0, 0, 0)),
                  pl.BlockSpec((Cout, 1), lambda i: (0, 0)),
                  pl.BlockSpec((1, Mout), lambda i: (0, 0))],
        out_specs=pl.BlockSpec((1, Cout, Mout), lambda i: (i, 0, 0)),
        out_shape=jax.ShapeDtypeStruct((B, Cout, Mout), jnp.float32),
        compiler_params=pltpu.CompilerParams(
            dimension_semantics=("parallel",),
            vmem_limit_bytes=_VMEM_LIMIT),
    )(xf, w_taps, b2, colmask)

    # One cheap XLA stride-2 subsample finishes MaxPool2d(3, 2, 1).
    vm = vm.reshape(B, Cout, H2, Wh)
    xs = vm[:, :, 0::2, 0:W2:2]
    return xs.reshape(B, Cout, H4 * W4)


# ---------------------------------------------------------------------------
# Stage 2: fused 2-level Haar DWT + channel concat + ChannelAttention + residual
# ---------------------------------------------------------------------------

def freq_attention(xs, xw16, w1, w2):
    """xs: (B, 12, S4) pooled branch; xw16: (B, 16, C, S4) stride-4 parity planes
    of the raw input.  Returns (B, 60, S4) = (sigmoid(mlp(avg)+mlp(max)) + 1) * cat.
    """
    B, Csp, S = xs.shape
    Cw = xw16.shape[2]
    Ctot = Csp + 16 * Cw
    Ch = w1.shape[0]

    def kernel(xs_ref, xw_ref, w1_ref, w2_ref, o_ref):
        pieces = [xs_ref[0]]                                   # spatial branch first
        # level-1 Haar bands (unnormalized) at the 4 level-1 positions of each
        # 4x4 block; plane p = 4*r + s of xw holds x[..., r::4, s::4].
        l1 = [[None] * 4 for _ in range(4)]
        for I in range(2):
            for J in range(2):
                a = xw_ref[0, 4 * (2 * I) + 2 * J]
                b = xw_ref[0, 4 * (2 * I) + 2 * J + 1]
                c = xw_ref[0, 4 * (2 * I + 1) + 2 * J]
                d = xw_ref[0, 4 * (2 * I + 1) + 2 * J + 1]
                pos = 2 * I + J
                l1[0][pos] = a + b + c + d                     # LL
                l1[1][pos] = a + b - c - d                     # LH
                l1[2][pos] = a - b + c - d                     # HL
                l1[3][pos] = a - b - c + d                     # HH
        for beta in range(4):                                  # level-2 over each band
            A, Bv, Cv, D = l1[beta]
            pieces.append(0.25 * (A + Bv + Cv + D))
            pieces.append(0.25 * (A + Bv - Cv - D))
            pieces.append(0.25 * (A - Bv + Cv - D))
            pieces.append(0.25 * (A - Bv - Cv + D))
        full = jnp.concatenate(pieces, axis=0)                 # (60, S), concat order
        avg = jnp.mean(full, axis=1, keepdims=True)            # AdaptiveAvgPool2d(1)
        mx = jnp.max(full, axis=1, keepdims=True)              # AdaptiveMaxPool2d(1)

        def mlp(v):
            h = jnp.maximum(jnp.dot(w1_ref[...], v,
                                    preferred_element_type=jnp.float32), 0.0)
            return jnp.dot(w2_ref[...], h, preferred_element_type=jnp.float32)

        s = jax.nn.sigmoid(mlp(avg) + mlp(mx)) + 1.0           # attention + residual
        o_ref[0] = (s * full).astype(o_ref.dtype)

    return pl.pallas_call(
        kernel,
        grid=(B,),
        in_specs=[pl.BlockSpec((1, Csp, S), lambda i: (i, 0, 0)),
                  pl.BlockSpec((1, 16, Cw, S), lambda i: (i, 0, 0, 0)),
                  pl.BlockSpec((Ch, Ctot), lambda i: (0, 0)),
                  pl.BlockSpec((Ctot, Ch), lambda i: (0, 0))],
        out_specs=pl.BlockSpec((1, Ctot, S), lambda i: (i, 0, 0)),
        out_shape=jax.ShapeDtypeStruct((B, Ctot, S), xs.dtype),
        compiler_params=pltpu.CompilerParams(
            dimension_semantics=("parallel",),
            vmem_limit_bytes=_VMEM_LIMIT),
    )(xs, xw16, w1, w2)


# ---------------------------------------------------------------------------
# Stage 3: proj = Conv2d(60, embed_dim, 5, stride=1, padding=2)
# ---------------------------------------------------------------------------

def proj_conv(y_bcs, w, bias, H4, W4):
    """y_bcs: (B, 60, H4*W4).  Returns (B, embed_dim, H4*W4)."""
    B, Cin, S = y_bcs.shape
    Cout, _, KH, KW = w.shape
    pad = KH // 2
    Hp, Wp = H4 + 2 * pad, W4 + 2 * pad
    Mout = H4 * Wp                      # flat output, garbage cols ow >= W4
    Lp = Hp * Wp + 128

    yp = jnp.pad(y_bcs.reshape(B, Cin, H4, W4),
                 ((0, 0), (0, 0), (pad, pad), (pad, pad)))
    yf = jnp.pad(yp.reshape(B, Cin, Hp * Wp), ((0, 0), (0, 0), (0, Lp - Hp * Wp)))
    w_taps = w.transpose(2, 3, 0, 1).reshape(KH * KW, Cout, Cin).astype(jnp.float32)
    b2 = bias.reshape(Cout, 1).astype(jnp.float32)

    def kernel(x_ref, w_ref, b_ref, o_ref):
        acc = jnp.zeros((Cout, Mout), jnp.float32)
        for kh in range(KH):
            for kw in range(KW):
                sh = kh * Wp + kw
                acc = acc + jnp.dot(w_ref[kh * KW + kw],
                                    x_ref[0, :, pl.ds(sh, Mout)],
                                    preferred_element_type=jnp.float32)
        o_ref[0] = (acc + b_ref[...]).astype(o_ref.dtype)

    out = pl.pallas_call(
        kernel,
        grid=(B,),
        in_specs=[pl.BlockSpec((1, Cin, Lp), lambda i: (i, 0, 0)),
                  pl.BlockSpec((KH * KW, Cout, Cin), lambda i: (0, 0, 0)),
                  pl.BlockSpec((Cout, 1), lambda i: (0, 0))],
        out_specs=pl.BlockSpec((1, Cout, Mout), lambda i: (i, 0, 0)),
        out_shape=jax.ShapeDtypeStruct((B, Cout, Mout), jnp.float32),
        compiler_params=pltpu.CompilerParams(
            dimension_semantics=("parallel",),
            vmem_limit_bytes=_VMEM_LIMIT),
    )(yf, w_taps, b2)

    out = out.reshape(B, Cout, H4, Wp)[:, :, :, :W4]
    return out.reshape(B, Cout, H4 * W4)


# ---------------------------------------------------------------------------
# Module forward
# ---------------------------------------------------------------------------

def patch_embed_forward(x, params):
    """PatchEmbed.forward with norm_layer=None (default config)."""
    B, C, H, W = x.shape
    assert H % 4 == 0 and W % 4 == 0, "PatchEmbed requires H, W divisible by 4"
    H4, W4 = H // 4, W // 4
    S4 = H4 * W4

    # ---- Frequency_attention (n_level=2) ----
    # Conv2d(3,12,8,s2,p3) + MaxPool2d(3,2,1) fused, output (B, 12, S4).
    xs = conv1_pool(x, params["spatial_conv1_w"], params["spatial_conv1_b"])

    # 16 stride-4 parity planes of the raw input feed the fused Haar kernel.
    parts = [x[:, :, r::4, s::4].reshape(B, C, S4)
             for r in range(4) for s in range(4)]
    xw16 = jnp.stack(parts, axis=1)                          # (B, 16, C, S4)

    # Fused Haar(2-level) + concat + ChannelAttention + residual -> (B, 60, S4).
    y = freq_attention(xs, xw16, params["ca_w1"], params["ca_w2"])

    # ---- proj ----
    out = proj_conv(y, params["proj_w"], params["proj_b"], H4, W4)   # (B, E, S4)

    # x.flatten(2).transpose(1, 2): one XLA transpose (E=32 minor dim would make
    # poor lane stores from the kernel).  norm_layer is None -> no LayerNorm.
    return out.transpose(0, 2, 1)


def init_params(key, embed_dim=32):
    """Deterministic synthetic parameters with the shapes implied by __init__."""
    ks = jax.random.split(key, 6)
    p = {}
    # Frequency_attention.spatial_conv1: Conv2d(3, 12, 8, stride=2, padding=3)
    p["spatial_conv1_w"] = 0.05 * jax.random.normal(ks[0], (12, 3, 8, 8), jnp.float32)
    p["spatial_conv1_b"] = 0.01 * jax.random.normal(ks[1], (12,), jnp.float32)
    # ChannelAttention(60, ratio=16): Conv2d(60,3,1,bias=False) -> ReLU -> Conv2d(3,60,1,bias=False)
    p["ca_w1"] = 0.05 * jax.random.normal(ks[2], (3, 60), jnp.float32)
    p["ca_w2"] = 0.05 * jax.random.normal(ks[3], (60, 3), jnp.float32)
    # PatchEmbed.proj: Conv2d(60, embed_dim, 5, stride=1, padding=2)
    p["proj_w"] = 0.05 * jax.random.normal(ks[4], (embed_dim, 60, 5, 5), jnp.float32)
    p["proj_b"] = 0.01 * jax.random.normal(ks[5], (embed_dim,), jnp.float32)
    return p


if __name__ == "__main__":
    key = jax.random.PRNGKey(0)
    kx, kp = jax.random.split(key)
    B, C, H, W = 2, 3, 32, 32
    embed_dim = 32
    x = jax.random.normal(kx, (B, C, H, W), jnp.float32)
    params = init_params(kp, embed_dim=embed_dim)

    fwd = jax.jit(lambda inp: patch_embed_forward(inp, params))
    out = fwd(x)
    out = jax.block_until_ready(out)
    assert out.shape == (B, (H // 4) * (W // 4), embed_dim), out.shape
    assert bool(jnp.all(jnp.isfinite(out)))
    print("KERNEL_OK")
</pallas_src>

<mosaic_0001>
module attributes {stable_mosaic.version = 11 : i64} {
  func.func @kernel(%arg0: i32, %arg1: memref<1x12x489xf32, #tpu.memory_space<vmem>>, %arg2: memref<16x12x12xf32, #tpu.memory_space<vmem>>, %arg3: memref<12x1xf32, #tpu.memory_space<vmem>>, %arg4: memref<1x304xf32, #tpu.memory_space<vmem>>, %arg5: memref<1x12x304xf32, #tpu.memory_space<vmem>>) attributes {dimension_semantics = [#tpu.dimension_semantics<parallel>], iteration_bounds = array<i64: 2>, scalar_prefetch = 0 : i64, scratch_operands = 0 : i64, tpu.core_type = #tpu.core_type<tc>, window_params = [{transform_indices = @transform_0, window_bounds = array<i64: 1, 12, 489>}, {pipeline_mode = #tpu.pipeline_mode<synchronous>, transform_indices = @transform_1, window_bounds = array<i64: 16, 12, 12>}, {pipeline_mode = #tpu.pipeline_mode<synchronous>, transform_indices = @transform_2, window_bounds = array<i64: 12, 1>}, {pipeline_mode = #tpu.pipeline_mode<synchronous>, transform_indices = @transform_3, window_bounds = array<i64: 1, 304>}, {transform_indices = @transform_4, window_bounds = array<i64: 1, 12, 304>}]} {
    %cst = arith.constant 0.000000e+00 : f32
    %0 = vector.broadcast %cst : f32 to vector<12x304xf32>
    %c0 = arith.constant 0 : index
    %c0_0 = arith.constant 0 : index
    %c0_1 = arith.constant 0 : index
    %1 = vector.load %arg1[%c0, %c0_0, %c0_1] : memref<1x12x489xf32, #tpu.memory_space<vmem>>, vector<1x12x304xf32>
    %2 = vector.shape_cast %1 : vector<1x12x304xf32> to vector<12x304xf32>
    %c0_2 = arith.constant 0 : index
    %c0_3 = arith.constant 0 : index
    %c0_4 = arith.constant 0 : index
    %3 = vector.load %arg2[%c0_2, %c0_3, %c0_4] : memref<16x12x12xf32, #tpu.memory_space<vmem>>, vector<1x12x12xf32>
    %4 = vector.shape_cast %3 : vector<1x12x12xf32> to vector<12x12xf32>
    %cst_5 = arith.constant dense<0.000000e+00> : vector<12x304xf32>
    %5 = tpu.matmul %4, %2, %cst_5 {dimension_numbers = #tpu.dot_dimension_numbers<[1], [0], [0], [1], [0, 0, 1, 1], [], []>} : vector<12x12xf32>, vector<12x304xf32>, vector<12x304xf32> -> vector<12x304xf32>
    %6 = arith.addf %0, %5 : vector<12x304xf32>
    %c0_6 = arith.constant 0 : index
    %c0_7 = arith.constant 0 : index
    %c1 = arith.constant 1 : index
    %7 = vector.load %arg1[%c0_6, %c0_7, %c1] : memref<1x12x489xf32, #tpu.memory_space<vmem>>, vector<1x12x304xf32>
    %8 = vector.shape_cast %7 : vector<1x12x304xf32> to vector<12x304xf32>
    %c1_8 = arith.constant 1 : index
    %c0_9 = arith.constant 0 : index
    %c0_10 = arith.constant 0 : index
    %9 = vector.load %arg2[%c1_8, %c0_9, %c0_10] : memref<16x12x12xf32, #tpu.memory_space<vmem>>, vector<1x12x12xf32>
    %10 = vector.shape_cast %9 : vector<1x12x12xf32> to vector<12x12xf32>
    %cst_11 = arith.constant dense<0.000000e+00> : vector<12x304xf32>
    %11 = tpu.matmul %10, %8, %cst_11 {dimension_numbers = #tpu.dot_dimension_numbers<[1], [0], [0], [1], [0, 0, 1, 1], [], []>} : vector<12x12xf32>, vector<12x304xf32>, vector<12x304xf32> -> vector<12x304xf32>
    %12 = arith.addf %6, %11 : vector<12x304xf32>
    %c0_12 = arith.constant 0 : index
    %c0_13 = arith.constant 0 : index
    %c2 = arith.constant 2 : index
    %13 = vector.load %arg1[%c0_12, %c0_13, %c2] : memref<1x12x489xf32, #tpu.memory_space<vmem>>, vector<1x12x304xf32>
    %14 = vector.shape_cast %13 : vector<1x12x304xf32> to vector<12x304xf32>
    %c2_14 = arith.constant 2 : index
    %c0_15 = arith.constant 0 : index
    %c0_16 = arith.constant 0 : index
    %15 = vector.load %arg2[%c2_14, %c0_15, %c0_16] : memref<16x12x12xf32, #tpu.memory_space<vmem>>, vector<1x12x12xf32>
    %16 = vector.shape_cast %15 : vector<1x12x12xf32> to vector<12x12xf32>
    %cst_17 = arith.constant dense<0.000000e+00> : vector<12x304xf32>
    %17 = tpu.matmul %16, %14, %cst_17 {dimension_numbers = #tpu.dot_dimension_numbers<[1], [0], [0], [1], [0, 0, 1, 1], [], []>} : vector<12x12xf32>, vector<12x304xf32>, vector<12x304xf32> -> vector<12x304xf32>
    %18 = arith.addf %12, %17 : vector<12x304xf32>
    %c0_18 = arith.constant 0 : index
    %c0_19 = arith.constant 0 : index
    %c3 = arith.constant 3 : index
    %19 = vector.load %arg1[%c0_18, %c0_19, %c3] : memref<1x12x489xf32, #tpu.memory_space<vmem>>, vector<1x12x304xf32>
    %20 = vector.shape_cast %19 : vector<1x12x304xf32> to vector<12x304xf32>
    %c3_20 = arith.constant 3 : index
    %c0_21 = arith.constant 0 : index
    %c0_22 = arith.constant 0 : index
    %21 = vector.load %arg2[%c3_20, %c0_21, %c0_22] : memref<16x12x12xf32, #tpu.memory_space<vmem>>, vector<1x12x12xf32>
    %22 = vector.shape_cast %21 : vector<1x12x12xf32> to vector<12x12xf32>
    %cst_23 = arith.constant dense<0.000000e+00> : vector<12x304xf32>
    %23 = tpu.matmul %22, %20, %cst_23 {dimension_numbers = #tpu.dot_dimension_numbers<[1], [0], [0], [1], [0, 0, 1, 1], [], []>} : vector<12x12xf32>, vector<12x304xf32>, vector<12x304xf32> -> vector<12x304xf32>
    %24 = arith.addf %18, %23 : vector<12x304xf32>
    %c0_24 = arith.constant 0 : index
    %c0_25 = arith.constant 0 : index
    %c19 = arith.constant 19 : index
    %25 = vector.load %arg1[%c0_24, %c0_25, %c19] : memref<1x12x489xf32, #tpu.memory_space<vmem>>, vector<1x12x304xf32>
    %26 = vector.shape_cast %25 : vector<1x12x304xf32> to vector<12x304xf32>
    %c4 = arith.constant 4 : index
    %c0_26 = arith.constant 0 : index
    %c0_27 = arith.constant 0 : index
    %27 = vector.load %arg2[%c4, %c0_26, %c0_27] : memref<16x12x12xf32, #tpu.memory_space<vmem>>, vector<1x12x12xf32>
    %28 = vector.shape_cast %27 : vector<1x12x12xf32> to vector<12x12xf32>
    %cst_28 = arith.constant dense<0.000000e+00> : vector<12x304xf32>
    %29 = tpu.matmul %28, %26, %cst_28 {dimension_numbers = #tpu.dot_dimension_numbers<[1], [0], [0], [1], [0, 0, 1, 1], [], []>} : vector<12x12xf32>, vector<12x304xf32>, vector<12x304xf32> -> vector<12x304xf32>
    %30 = arith.addf %24, %29 : vector<12x304xf32>
    %c0_29 = arith.constant 0 : index
    %c0_30 = arith.constant 0 : index
    %c20 = arith.constant 20 : index
    %31 = vector.load %arg1[%c0_29, %c0_30, %c20] : memref<1x12x489xf32, #tpu.memory_space<vmem>>, vector<1x12x304xf32>
    %32 = vector.shape_cast %31 : vector<1x12x304xf32> to vector<12x304xf32>
    %c5 = arith.constant 5 : index
    %c0_31 = arith.constant 0 : index
    %c0_32 = arith.constant 0 : index
    %33 = vector.load %arg2[%c5, %c0_31, %c0_32] : memref<16x12x12xf32, #tpu.memory_space<vmem>>, vector<1x12x12xf32>
    %34 = vector.shape_cast %33 : vector<1x12x12xf32> to vector<12x12xf32>
    %cst_33 = arith.constant dense<0.000000e+00> : vector<12x304xf32>
    %35 = tpu.matmul %34, %32, %cst_33 {dimension_numbers = #tpu.dot_dimension_numbers<[1], [0], [0], [1], [0, 0, 1, 1], [], []>} : vector<12x12xf32>, vector<12x304xf32>, vector<12x304xf32> -> vector<12x304xf32>
    %36 = arith.addf %30, %35 : vector<12x304xf32>
    %c0_34 = arith.constant 0 : index
    %c0_35 = arith.constant 0 : index
    %c21 = arith.constant 21 : index
    %37 = vector.load %arg1[%c0_34, %c0_35, %c21] : memref<1x12x489xf32, #tpu.memory_space<vmem>>, vector<1x12x304xf32>
    %38 = vector.shape_cast %37 : vector<1x12x304xf32> to vector<12x304xf32>
    %c6 = arith.constant 6 : index
    %c0_36 = arith.constant 0 : index
    %c0_37 = arith.constant 0 : index
    %39 = vector.load %arg2[%c6, %c0_36, %c0_37] : memref<16x12x12xf32, #tpu.memory_space<vmem>>, vector<1x12x12xf32>
    %40 = vector.shape_cast %39 : vector<1x12x12xf32> to vector<12x12xf32>
    %cst_38 = arith.constant dense<0.000000e+00> : vector<12x304xf32>
    %41 = tpu.matmul %40, %38, %cst_38 {dimension_numbers = #tpu.dot_dimension_numbers<[1], [0], [0], [1], [0, 0, 1, 1], [], []>} : vector<12x12xf32>, vector<12x304xf32>, vector<12x304xf32> -> vector<12x304xf32>
    %42 = arith.addf %36, %41 : vector<12x304xf32>
    %c0_39 = arith.constant 0 : index
    %c0_40 = arith.constant 0 : index
    %c22 = arith.constant 22 : index
    %43 = vector.load %arg1[%c0_39, %c0_40, %c22] : memref<1x12x489xf32, #tpu.memory_space<vmem>>, vector<1x12x304xf32>
    %44 = vector.shape_cast %43 : vector<1x12x304xf32> to vector<12x304xf32>
    %c7 = arith.constant 7 : index
    %c0_41 = arith.constant 0 : index
    %c0_42 = arith.constant 0 : index
    %45 = vector.load %arg2[%c7, %c0_41, %c0_42] : memref<16x12x12xf32, #tpu.memory_space<vmem>>, vector<1x12x12xf32>
    %46 = vector.shape_cast %45 : vector<1x12x12xf32> to vector<12x12xf32>
    %cst_43 = arith.constant dense<0.000000e+00> : vector<12x304xf32>
    %47 = tpu.matmul %46, %44, %cst_43 {dimension_numbers = #tpu.dot_dimension_numbers<[1], [0], [0], [1], [0, 0, 1, 1], [], []>} : vector<12x12xf32>, vector<12x304xf32>, vector<12x304xf32> -> vector<12x304xf32>
    %48 = arith.addf %42, %47 : vector<12x304xf32>
    %c0_44 = arith.constant 0 : index
    %c0_45 = arith.constant 0 : index
    %c38 = arith.constant 38 : index
    %49 = vector.load %arg1[%c0_44, %c0_45, %c38] : memref<1x12x489xf32, #tpu.memory_space<vmem>>, vector<1x12x304xf32>
    %50 = vector.shape_cast %49 : vector<1x12x304xf32> to vector<12x304xf32>
    %c8 = arith.constant 8 : index
    %c0_46 = arith.constant 0 : index
    %c0_47 = arith.constant 0 : index
    %51 = vector.load %arg2[%c8, %c0_46, %c0_47] : memref<16x12x12xf32, #tpu.memory_space<vmem>>, vector<1x12x12xf32>
    %52 = vector.shape_cast %51 : vector<1x12x12xf32> to vector<12x12xf32>
    %cst_48 = arith.constant dense<0.000000e+00> : vector<12x304xf32>
    %53 = tpu.matmul %52, %50, %cst_48 {dimension_numbers = #tpu.dot_dimension_numbers<[1], [0], [0], [1], [0, 0, 1, 1], [], []>} : vector<12x12xf32>, vector<12x304xf32>, vector<12x304xf32> -> vector<12x304xf32>
    %54 = arith.addf %48, %53 : vector<12x304xf32>
    %c0_49 = arith.constant 0 : index
    %c0_50 = arith.constant 0 : index
    %c39 = arith.constant 39 : index
    %55 = vector.load %arg1[%c0_49, %c0_50, %c39] : memref<1x12x489xf32, #tpu.memory_space<vmem>>, vector<1x12x304xf32>
    %56 = vector.shape_cast %55 : vector<1x12x304xf32> to vector<12x304xf32>
    %c9 = arith.constant 9 : index
    %c0_51 = arith.constant 0 : index
    %c0_52 = arith.constant 0 : index
    %57 = vector.load %arg2[%c9, %c0_51, %c0_52] : memref<16x12x12xf32, #tpu.memory_space<vmem>>, vector<1x12x12xf32>
    %58 = vector.shape_cast %57 : vector<1x12x12xf32> to vector<12x12xf32>
    %cst_53 = arith.constant dense<0.000000e+00> : vector<12x304xf32>
    %59 = tpu.matmul %58, %56, %cst_53 {dimension_numbers = #tpu.dot_dimension_numbers<[1], [0], [0], [1], [0, 0, 1, 1], [], []>} : vector<12x12xf32>, vector<12x304xf32>, vector<12x304xf32> -> vector<12x304xf32>
    %60 = arith.addf %54, %59 : vector<12x304xf32>
    %c0_54 = arith.constant 0 : index
    %c0_55 = arith.constant 0 : index
    %c40 = arith.constant 40 : index
    %61 = vector.load %arg1[%c0_54, %c0_55, %c40] : memref<1x12x489xf32, #tpu.memory_space<vmem>>, vector<1x12x304xf32>
    %62 = vector.shape_cast %61 : vector<1x12x304xf32> to vector<12x304xf32>
    %c10 = arith.constant 10 : index
    %c0_56 = arith.constant 0 : index
    %c0_57 = arith.constant 0 : index
    %63 = vector.load %arg2[%c10, %c0_56, %c0_57] : memref<16x12x12xf32, #tpu.memory_space<vmem>>, vector<1x12x12xf32>
    %64 = vector.shape_cast %63 : vector<1x12x12xf32> to vector<12x12xf32>
    %cst_58 = arith.constant dense<0.000000e+00> : vector<12x304xf32>
    %65 = tpu.matmul %64, %62, %cst_58 {dimension_numbers = #tpu.dot_dimension_numbers<[1], [0], [0], [1], [0, 0, 1, 1], [], []>} : vector<12x12xf32>, vector<12x304xf32>, vector<12x304xf32> -> vector<12x304xf32>
    %66 = arith.addf %60, %65 : vector<12x304xf32>
    %c0_59 = arith.constant 0 : index
    %c0_60 = arith.constant 0 : index
    %c41 = arith.constant 41 : index
    %67 = vector.load %arg1[%c0_59, %c0_60, %c41] : memref<1x12x489xf32, #tpu.memory_space<vmem>>, vector<1x12x304xf32>
    %68 = vector.shape_cast %67 : vector<1x12x304xf32> to vector<12x304xf32>
    %c11 = arith.constant 11 : index
    %c0_61 = arith.constant 0 : index
    %c0_62 = arith.constant 0 : index
    %69 = vector.load %arg2[%c11, %c0_61, %c0_62] : memref<16x12x12xf32, #tpu.memory_space<vmem>>, vector<1x12x12xf32>
    %70 = vector.shape_cast %69 : vector<1x12x12xf32> to vector<12x12xf32>
    %cst_63 = arith.constant dense<0.000000e+00> : vector<12x304xf32>
    %71 = tpu.matmul %70, %68, %cst_63 {dimension_numbers = #tpu.dot_dimension_numbers<[1], [0], [0], [1], [0, 0, 1, 1], [], []>} : vector<12x12xf32>, vector<12x304xf32>, vector<12x304xf32> -> vector<12x304xf32>
    %72 = arith.addf %66, %71 : vector<12x304xf32>
    %c0_64 = arith.constant 0 : index
    %c0_65 = arith.constant 0 : index
    %c57 = arith.constant 57 : index
    %73 = vector.load %arg1[%c0_64, %c0_65, %c57] : memref<1x12x489xf32, #tpu.memory_space<vmem>>, vector<1x12x304xf32>
    %74 = vector.shape_cast %73 : vector<1x12x304xf32> to vector<12x304xf32>
    %c12 = arith.constant 12 : index
    %c0_66 = arith.constant 0 : index
    %c0_67 = arith.constant 0 : index
    %75 = vector.load %arg2[%c12, %c0_66, %c0_67] : memref<16x12x12xf32, #tpu.memory_space<vmem>>, vector<1x12x12xf32>
    %76 = vector.shape_cast %75 : vector<1x12x12xf32> to vector<12x12xf32>
    %cst_68 = arith.constant dense<0.000000e+00> : vector<12x304xf32>
    %77 = tpu.matmul %76, %74, %cst_68 {dimension_numbers = #tpu.dot_dimension_numbers<[1], [0], [0], [1], [0, 0, 1, 1], [], []>} : vector<12x12xf32>, vector<12x304xf32>, vector<12x304xf32> -> vector<12x304xf32>
    %78 = arith.addf %72, %77 : vector<12x304xf32>
    %c0_69 = arith.constant 0 : index
    %c0_70 = arith.constant 0 : index
    %c58 = arith.constant 58 : index
    %79 = vector.load %arg1[%c0_69, %c0_70, %c58] : memref<1x12x489xf32, #tpu.memory_space<vmem>>, vector<1x12x304xf32>
    %80 = vector.shape_cast %79 : vector<1x12x304xf32> to vector<12x304xf32>
    %c13 = arith.constant 13 : index
    %c0_71 = arith.constant 0 : index
    %c0_72 = arith.constant 0 : index
    %81 = vector.load %arg2[%c13, %c0_71, %c0_72] : memref<16x12x12xf32, #tpu.memory_space<vmem>>, vector<1x12x12xf32>
    %82 = vector.shape_cast %81 : vector<1x12x12xf32> to vector<12x12xf32>
    %cst_73 = arith.constant dense<0.000000e+00> : vector<12x304xf32>
    %83 = tpu.matmul %82, %80, %cst_73 {dimension_numbers = #tpu.dot_dimension_numbers<[1], [0], [0], [1], [0, 0, 1, 1], [], []>} : vector<12x12xf32>, vector<12x304xf32>, vector<12x304xf32> -> vector<12x304xf32>
    %84 = arith.addf %78, %83 : vector<12x304xf32>
    %c0_74 = arith.constant 0 : index
    %c0_75 = arith.constant 0 : index
    %c59 = arith.constant 59 : index
    %85 = vector.load %arg1[%c0_74, %c0_75, %c59] : memref<1x12x489xf32, #tpu.memory_space<vmem>>, vector<1x12x304xf32>
    %86 = vector.shape_cast %85 : vector<1x12x304xf32> to vector<12x304xf32>
    %c14 = arith.constant 14 : index
    %c0_76 = arith.constant 0 : index
    %c0_77 = arith.constant 0 : index
    %87 = vector.load %arg2[%c14, %c0_76, %c0_77] : memref<16x12x12xf32, #tpu.memory_space<vmem>>, vector<1x12x12xf32>
    %88 = vector.shape_cast %87 : vector<1x12x12xf32> to vector<12x12xf32>
    %cst_78 = arith.constant dense<0.000000e+00> : vector<12x304xf32>
    %89 = tpu.matmul %88, %86, %cst_78 {dimension_numbers = #tpu.dot_dimension_numbers<[1], [0], [0], [1], [0, 0, 1, 1], [], []>} : vector<12x12xf32>, vector<12x304xf32>, vector<12x304xf32> -> vector<12x304xf32>
    %90 = arith.addf %84, %89 : vector<12x304xf32>
    %c0_79 = arith.constant 0 : index
    %c0_80 = arith.constant 0 : index
    %c60 = arith.constant 60 : index
    %91 = vector.load %arg1[%c0_79, %c0_80, %c60] : memref<1x12x489xf32, #tpu.memory_space<vmem>>, vector<1x12x304xf32>
    %92 = vector.shape_cast %91 : vector<1x12x304xf32> to vector<12x304xf32>
    %c15 = arith.constant 15 : index
    %c0_81 = arith.constant 0 : index
    %c0_82 = arith.constant 0 : index
    %93 = vector.load %arg2[%c15, %c0_81, %c0_82] : memref<16x12x12xf32, #tpu.memory_space<vmem>>, vector<1x12x12xf32>
    %94 = vector.shape_cast %93 : vector<1x12x12xf32> to vector<12x12xf32>
    %cst_83 = arith.constant dense<0.000000e+00> : vector<12x304xf32>
    %95 = tpu.matmul %94, %92, %cst_83 {dimension_numbers = #tpu.dot_dimension_numbers<[1], [0], [0], [1], [0, 0, 1, 1], [], []>} : vector<12x12xf32>, vector<12x304xf32>, vector<12x304xf32> -> vector<12x304xf32>
    %96 = arith.addf %90, %95 : vector<12x304xf32>
    %c0_84 = arith.constant 0 : index
    %c0_85 = arith.constant 0 : index
    %97 = vector.load %arg3[%c0_84, %c0_85] : memref<12x1xf32, #tpu.memory_space<vmem>>, vector<12x1xf32>
    %98 = vector.broadcast %97 : vector<12x1xf32> to vector<12x304xf32>
    %99 = arith.addf %96, %98 : vector<12x304xf32>
    %c0_86 = arith.constant 0 : index
    %c0_87 = arith.constant 0 : index
    %100 = vector.load %arg4[%c0_86, %c0_87] : memref<1x304xf32, #tpu.memory_space<vmem>>, vector<1x304xf32>
    %101 = vector.broadcast %100 : vector<1x304xf32> to vector<12x304xf32>
    %102 = arith.addf %99, %101 : vector<12x304xf32>
    %cst_88 = arith.constant 0xFF800000 : f32
    %103 = vector.broadcast %cst_88 : f32 to vector<12x1xf32>
    %104 = vector.extract_strided_slice %102 {offsets = [0, 0], sizes = [12, 303], strides = [1, 1]} : vector<12x304xf32> to vector<12x303xf32>
    %105 = tpu.concatenate %103, %104 in 1 : vector<12x1xf32>, vector<12x303xf32> -> vector<12x304xf32>
    %106 = vector.extract_strided_slice %102 {offsets = [0, 1], sizes = [12, 303], strides = [1, 1]} : vector<12x304xf32> to vector<12x303xf32>
    %107 = tpu.concatenate %106, %103 in 1 : vector<12x303xf32>, vector<12x1xf32> -> vector<12x304xf32>
    %108 = arith.maximumf %105, %107 : vector<12x304xf32>
    %109 = arith.maximumf %102, %108 : vector<12x304xf32>
    %cst_89 = arith.constant 0xFF800000 : f32
    %110 = vector.broadcast %cst_89 : f32 to vector<12x19xf32>
    %111 = vector.extract_strided_slice %109 {offsets = [0, 0], sizes = [12, 285], strides = [1, 1]} : vector<12x304xf32> to vector<12x285xf32>
    %112 = tpu.concatenate %110, %111 in 1 : vector<12x19xf32>, vector<12x285xf32> -> vector<12x304xf32>
    %113 = vector.extract_strided_slice %109 {offsets = [0, 19], sizes = [12, 285], strides = [1, 1]} : vector<12x304xf32> to vector<12x285xf32>
    %114 = tpu.concatenate %113, %110 in 1 : vector<12x285xf32>, vector<12x19xf32> -> vector<12x304xf32>
    %115 = arith.maximumf %112, %114 : vector<12x304xf32>
    %116 = arith.maximumf %109, %115 : vector<12x304xf32>
    %c0_90 = arith.constant 0 : index
    %c0_91 = arith.constant 0 : index
    %c0_92 = arith.constant 0 : index
    %117 = vector.load %arg5[%c0_90, %c0_91, %c0_92] : memref<1x12x304xf32, #tpu.memory_space<vmem>>, vector<1x12x304xf32>
    %118 = vector.shape_cast %117 : vector<1x12x304xf32> to vector<12x304xf32>
    %119 = vector.shape_cast %116 : vector<12x304xf32> to vector<1x12x304xf32>
    tpu.vector_store %arg5[%c0_90, %c0_91, %c0_92], %119 {strides = array<i32>} : memref<1x12x304xf32, #tpu.memory_space<vmem>>, vector<1x12x304xf32>,
    return
  }
  func.func @transform_0(%arg0: i32) -> (i32, i32, i32) {
    %c0_i32 = arith.constant 0 : i32
    %c0_i32_0 = arith.constant 0 : i32
    %c0_i32_1 = arith.constant 0 : i32
    return %arg0, %c0_i32, %c0_i32_0 : i32, i32, i32
  }
  func.func @transform_1(%arg0: i32) -> (i32, i32, i32) {
    %c0_i32 = arith.constant 0 : i32
    %c0_i32_0 = arith.constant 0 : i32
    %c0_i32_1 = arith.constant 0 : i32
    %c0_i32_2 = arith.constant 0 : i32
    return %c0_i32, %c0_i32_0, %c0_i32_1 : i32, i32, i32
  }
  func.func @transform_2(%arg0: i32) -> (i32, i32) {
    %c0_i32 = arith.constant 0 : i32
    %c0_i32_0 = arith.constant 0 : i32
    %c0_i32_1 = arith.constant 0 : i32
    return %c0_i32, %c0_i32_0 : i32, i32
  }
  func.func @transform_3(%arg0: i32) -> (i32, i32) {
    %c0_i32 = arith.constant 0 : i32
    %c0_i32_0 = arith.constant 0 : i32
    %c0_i32_1 = arith.constant 0 : i32
    return %c0_i32, %c0_i32_0 : i32, i32
  }
  func.func @transform_4(%arg0: i32) -> (i32, i32, i32) {
    %c0_i32 = arith.constant 0 : i32
    %c0_i32_0 = arith.constant 0 : i32
    %c0_i32_1 = arith.constant 0 : i32
    return %arg0, %c0_i32, %c0_i32_0 : i32, i32, i32
  }
}

module attributes {stable_mosaic.version = 11 : i64} {
  func.func @kernel(%arg0: i32, %arg1: memref<1x60x272xf32, #tpu.memory_space<vmem>>, %arg2: memref<25x32x60xf32, #tpu.memory_space<vmem>>, %arg3: memref<32x1xf32, #tpu.memory_space<vmem>>, %arg4: memref<1x32x96xf32, #tpu.memory_space<vmem>>) attributes {dimension_semantics = [#tpu.dimension_semantics<parallel>], iteration_bounds = array<i64: 2>, scalar_prefetch = 0 : i64, scratch_operands = 0 : i64, tpu.core_type = #tpu.core_type<tc>, window_params = [{transform_indices = @transform_0, window_bounds = array<i64: 1, 60, 272>}, {pipeline_mode = #tpu.pipeline_mode<synchronous>, transform_indices = @transform_1, window_bounds = array<i64: 25, 32, 60>}, {pipeline_mode = #tpu.pipeline_mode<synchronous>, transform_indices = @transform_2, window_bounds = array<i64: 32, 1>}, {transform_indices = @transform_3, window_bounds = array<i64: 1, 32, 96>}]} {
    %cst = arith.constant 0.000000e+00 : f32
    %0 = vector.broadcast %cst : f32 to vector<32x96xf32>
    %c0 = arith.constant 0 : index
    %c0_0 = arith.constant 0 : index
    %c0_1 = arith.constant 0 : index
    %1 = vector.load %arg2[%c0, %c0_0, %c0_1] : memref<25x32x60xf32, #tpu.memory_space<vmem>>, vector<1x32x60xf32>
    %2 = vector.shape_cast %1 : vector<1x32x60xf32> to vector<32x60xf32>
    %c0_2 = arith.constant 0 : index
    %c0_3 = arith.constant 0 : index
    %c0_4 = arith.constant 0 : index
    %3 = vector.load %arg1[%c0_2, %c0_3, %c0_4] : memref<1x60x272xf32, #tpu.memory_space<vmem>>, vector<1x60x96xf32>
    %4 = vector.shape_cast %3 : vector<1x60x96xf32> to vector<60x96xf32>
    %cst_5 = arith.constant dense<0.000000e+00> : vector<32x96xf32>
    %5 = tpu.matmul %2, %4, %cst_5 {dimension_numbers = #tpu.dot_dimension_numbers<[1], [0], [0], [1], [0, 0, 1, 1], [], []>} : vector<32x60xf32>, vector<60x96xf32>, vector<32x96xf32> -> vector<32x96xf32>
    %6 = arith.addf %0, %5 : vector<32x96xf32>
    %c1 = arith.constant 1 : index
    %c0_6 = arith.constant 0 : index
    %c0_7 = arith.constant 0 : index
    %7 = vector.load %arg2[%c1, %c0_6, %c0_7] : memref<25x32x60xf32, #tpu.memory_space<vmem>>, vector<1x32x60xf32>
    %8 = vector.shape_cast %7 : vector<1x32x60xf32> to vector<32x60xf32>
    %c0_8 = arith.constant 0 : index
    %c0_9 = arith.constant 0 : index
    %c1_10 = arith.constant 1 : index
    %9 = vector.load %arg1[%c0_8, %c0_9, %c1_10] : memref<1x60x272xf32, #tpu.memory_space<vmem>>, vector<1x60x96xf32>
    %10 = vector.shape_cast %9 : vector<1x60x96xf32> to vector<60x96xf32>
    %cst_11 = arith.constant dense<0.000000e+00> : vector<32x96xf32>
    %11 = tpu.matmul %8, %10, %cst_11 {dimension_numbers = #tpu.dot_dimension_numbers<[1], [0], [0], [1], [0, 0, 1, 1], [], []>} : vector<32x60xf32>, vector<60x96xf32>, vector<32x96xf32> -> vector<32x96xf32>
    %12 = arith.addf %6, %11 : vector<32x96xf32>
    %c2 = arith.constant 2 : index
    %c0_12 = arith.constant 0 : index
    %c0_13 = arith.constant 0 : index
    %13 = vector.load %arg2[%c2, %c0_12, %c0_13] : memref<25x32x60xf32, #tpu.memory_space<vmem>>, vector<1x32x60xf32>
    %14 = vector.shape_cast %13 : vector<1x32x60xf32> to vector<32x60xf32>
    %c0_14 = arith.constant 0 : index
    %c0_15 = arith.constant 0 : index
    %c2_16 = arith.constant 2 : index
    %15 = vector.load %arg1[%c0_14, %c0_15, %c2_16] : memref<1x60x272xf32, #tpu.memory_space<vmem>>, vector<1x60x96xf32>
    %16 = vector.shape_cast %15 : vector<1x60x96xf32> to vector<60x96xf32>
    %cst_17 = arith.constant dense<0.000000e+00> : vector<32x96xf32>
    %17 = tpu.matmul %14, %16, %cst_17 {dimension_numbers = #tpu.dot_dimension_numbers<[1], [0], [0], [1], [0, 0, 1, 1], [], []>} : vector<32x60xf32>, vector<60x96xf32>, vector<32x96xf32> -> vector<32x96xf32>
    %18 = arith.addf %12, %17 : vector<32x96xf32>
    %c3 = arith.constant 3 : index
    %c0_18 = arith.constant 0 : index
    %c0_19 = arith.constant 0 : index
    %19 = vector.load %arg2[%c3, %c0_18, %c0_19] : memref<25x32x60xf32, #tpu.memory_space<vmem>>, vector<1x32x60xf32>
    %20 = vector.shape_cast %19 : vector<1x32x60xf32> to vector<32x60xf32>
    %c0_20 = arith.constant 0 : index
    %c0_21 = arith.constant 0 : index
    %c3_22 = arith.constant 3 : index
    %21 = vector.load %arg1[%c0_20, %c0_21, %c3_22] : memref<1x60x272xf32, #tpu.memory_space<vmem>>, vector<1x60x96xf32>
    %22 = vector.shape_cast %21 : vector<1x60x96xf32> to vector<60x96xf32>
    %cst_23 = arith.constant dense<0.000000e+00> : vector<32x96xf32>
    %23 = tpu.matmul %20, %22, %cst_23 {dimension_numbers = #tpu.dot_dimension_numbers<[1], [0], [0], [1], [0, 0, 1, 1], [], []>} : vector<32x60xf32>, vector<60x96xf32>, vector<32x96xf32> -> vector<32x96xf32>
    %24 = arith.addf %18, %23 : vector<32x96xf32>
    %c4 = arith.constant 4 : index
    %c0_24 = arith.constant 0 : index
    %c0_25 = arith.constant 0 : index
    %25 = vector.load %arg2[%c4, %c0_24, %c0_25] : memref<25x32x60xf32, #tpu.memory_space<vmem>>, vector<1x32x60xf32>
    %26 = vector.shape_cast %25 : vector<1x32x60xf32> to vector<32x60xf32>
    %c0_26 = arith.constant 0 : index
    %c0_27 = arith.constant 0 : index
    %c4_28 = arith.constant 4 : index
    %27 = vector.load %arg1[%c0_26, %c0_27, %c4_28] : memref<1x60x272xf32, #tpu.memory_space<vmem>>, vector<1x60x96xf32>
    %28 = vector.shape_cast %27 : vector<1x60x96xf32> to vector<60x96xf32>
    %cst_29 = arith.constant dense<0.000000e+00> : vector<32x96xf32>
    %29 = tpu.matmul %26, %28, %cst_29 {dimension_numbers = #tpu.dot_dimension_numbers<[1], [0], [0], [1], [0, 0, 1, 1], [], []>} : vector<32x60xf32>, vector<60x96xf32>, vector<32x96xf32> -> vector<32x96xf32>
    %30 = arith.addf %24, %29 : vector<32x96xf32>
    %c5 = arith.constant 5 : index
    %c0_30 = arith.constant 0 : index
    %c0_31 = arith.constant 0 : index
    %31 = vector.load %arg2[%c5, %c0_30, %c0_31] : memref<25x32x60xf32, #tpu.memory_space<vmem>>, vector<1x32x60xf32>
    %32 = vector.shape_cast %31 : vector<1x32x60xf32> to vector<32x60xf32>
    %c0_32 = arith.constant 0 : index
    %c0_33 = arith.constant 0 : index
    %c12 = arith.constant 12 : index
    %33 = vector.load %arg1[%c0_32, %c0_33, %c12] : memref<1x60x272xf32, #tpu.memory_space<vmem>>, vector<1x60x96xf32>
    %34 = vector.shape_cast %33 : vector<1x60x96xf32> to vector<60x96xf32>
    %cst_34 = arith.constant dense<0.000000e+00> : vector<32x96xf32>
    %35 = tpu.matmul %32, %34, %cst_34 {dimension_numbers = #tpu.dot_dimension_numbers<[1], [0], [0], [1], [0, 0, 1, 1], [], []>} : vector<32x60xf32>, vector<60x96xf32>, vector<32x96xf32> -> vector<32x96xf32>
    %36 = arith.addf %30, %35 : vector<32x96xf32>
    %c6 = arith.constant 6 : index
    %c0_35 = arith.constant 0 : index
    %c0_36 = arith.constant 0 : index
    %37 = vector.load %arg2[%c6, %c0_35, %c0_36] : memref<25x32x60xf32, #tpu.memory_space<vmem>>, vector<1x32x60xf32>
    %38 = vector.shape_cast %37 : vector<1x32x60xf32> to vector<32x60xf32>
    %c0_37 = arith.constant 0 : index
    %c0_38 = arith.constant 0 : index
    %c13 = arith.constant 13 : index
    %39 = vector.load %arg1[%c0_37, %c0_38, %c13] : memref<1x60x272xf32, #tpu.memory_space<vmem>>, vector<1x60x96xf32>
    %40 = vector.shape_cast %39 : vector<1x60x96xf32> to vector<60x96xf32>
    %cst_39 = arith.constant dense<0.000000e+00> : vector<32x96xf32>
    %41 = tpu.matmul %38, %40, %cst_39 {dimension_numbers = #tpu.dot_dimension_numbers<[1], [0], [0], [1], [0, 0, 1, 1], [], []>} : vector<32x60xf32>, vector<60x96xf32>, vector<32x96xf32> -> vector<32x96xf32>
    %42 = arith.addf %36, %41 : vector<32x96xf32>
    %c7 = arith.constant 7 : index
    %c0_40 = arith.constant 0 : index
    %c0_41 = arith.constant 0 : index
    %43 = vector.load %arg2[%c7, %c0_40, %c0_41] : memref<25x32x60xf32, #tpu.memory_space<vmem>>, vector<1x32x60xf32>
    %44 = vector.shape_cast %43 : vector<1x32x60xf32> to vector<32x60xf32>
    %c0_42 = arith.constant 0 : index
    %c0_43 = arith.constant 0 : index
    %c14 = arith.constant 14 : index
    %45 = vector.load %arg1[%c0_42, %c0_43, %c14] : memref<1x60x272xf32, #tpu.memory_space<vmem>>, vector<1x60x96xf32>
    %46 = vector.shape_cast %45 : vector<1x60x96xf32> to vector<60x96xf32>
    %cst_44 = arith.constant dense<0.000000e+00> : vector<32x96xf32>
    %47 = tpu.matmul %44, %46, %cst_44 {dimension_numbers = #tpu.dot_dimension_numbers<[1], [0], [0], [1], [0, 0, 1, 1], [], []>} : vector<32x60xf32>, vector<60x96xf32>, vector<32x96xf32> -> vector<32x96xf32>
    %48 = arith.addf %42, %47 : vector<32x96xf32>
    %c8 = arith.constant 8 : index
    %c0_45 = arith.constant 0 : index
    %c0_46 = arith.constant 0 : index
    %49 = vector.load %arg2[%c8, %c0_45, %c0_46] : memref<25x32x60xf32, #tpu.memory_space<vmem>>, vector<1x32x60xf32>
    %50 = vector.shape_cast %49 : vector<1x32x60xf32> to vector<32x60xf32>
    %c0_47 = arith.constant 0 : index
    %c0_48 = arith.constant 0 : index
    %c15 = arith.constant 15 : index
    %51 = vector.load %arg1[%c0_47, %c0_48, %c15] : memref<1x60x272xf32, #tpu.memory_space<vmem>>, vector<1x60x96xf32>
    %52 = vector.shape_cast %51 : vector<1x60x96xf32> to vector<60x96xf32>
    %cst_49 = arith.constant dense<0.000000e+00> : vector<32x96xf32>
    %53 = tpu.matmul %50, %52, %cst_49 {dimension_numbers = #tpu.dot_dimension_numbers<[1], [0], [0], [1], [0, 0, 1, 1], [], []>} : vector<32x60xf32>, vector<60x96xf32>, vector<32x96xf32> -> vector<32x96xf32>
    %54 = arith.addf %48, %53 : vector<32x96xf32>
    %c9 = arith.constant 9 : index
    %c0_50 = arith.constant 0 : index
    %c0_51 = arith.constant 0 : index
    %55 = vector.load %arg2[%c9, %c0_50, %c0_51] : memref<25x32x60xf32, #tpu.memory_space<vmem>>, vector<1x32x60xf32>
    %56 = vector.shape_cast %55 : vector<1x32x60xf32> to vector<32x60xf32>
    %c0_52 = arith.constant 0 : index
    %c0_53 = arith.constant 0 : index
    %c16 = arith.constant 16 : index
    %57 = vector.load %arg1[%c0_52, %c0_53, %c16] : memref<1x60x272xf32, #tpu.memory_space<vmem>>, vector<1x60x96xf32>
    %58 = vector.shape_cast %57 : vector<1x60x96xf32> to vector<60x96xf32>
    %cst_54 = arith.constant dense<0.000000e+00> : vector<32x96xf32>
    %59 = tpu.matmul %56, %58, %cst_54 {dimension_numbers = #tpu.dot_dimension_numbers<[1], [0], [0], [1], [0, 0, 1, 1], [], []>} : vector<32x60xf32>, vector<60x96xf32>, vector<32x96xf32> -> vector<32x96xf32>
    %60 = arith.addf %54, %59 : vector<32x96xf32>
    %c10 = arith.constant 10 : index
    %c0_55 = arith.constant 0 : index
    %c0_56 = arith.constant 0 : index
    %61 = vector.load %arg2[%c10, %c0_55, %c0_56] : memref<25x32x60xf32, #tpu.memory_space<vmem>>, vector<1x32x60xf32>
    %62 = vector.shape_cast %61 : vector<1x32x60xf32> to vector<32x60xf32>
    %c0_57 = arith.constant 0 : index
    %c0_58 = arith.constant 0 : index
    %c24 = arith.constant 24 : index
    %63 = vector.load %arg1[%c0_57, %c0_58, %c24] : memref<1x60x272xf32, #tpu.memory_space<vmem>>, vector<1x60x96xf32>
    %64 = vector.shape_cast %63 : vector<1x60x96xf32> to vector<60x96xf32>
    %cst_59 = arith.constant dense<0.000000e+00> : vector<32x96xf32>
    %65 = tpu.matmul %62, %64, %cst_59 {dimension_numbers = #tpu.dot_dimension_numbers<[1], [0], [0], [1], [0, 0, 1, 1], [], []>} : vector<32x60xf32>, vector<60x96xf32>, vector<32x96xf32> -> vector<32x96xf32>
    %66 = arith.addf %60, %65 : vector<32x96xf32>
    %c11 = arith.constant 11 : index
    %c0_60 = arith.constant 0 : index
    %c0_61 = arith.constant 0 : index
    %67 = vector.load %arg2[%c11, %c0_60, %c0_61] : memref<25x32x60xf32, #tpu.memory_space<vmem>>, vector<1x32x60xf32>
    %68 = vector.shape_cast %67 : vector<1x32x60xf32> to vector<32x60xf32>
    %c0_62 = arith.constant 0 : index
    %c0_63 = arith.constant 0 : index
    %c25 = arith.constant 25 : index
    %69 = vector.load %arg1[%c0_62, %c0_63, %c25] : memref<1x60x272xf32, #tpu.memory_space<vmem>>, vector<1x60x96xf32>
    %70 = vector.shape_cast %69 : vector<1x60x96xf32> to vector<60x96xf32>
    %cst_64 = arith.constant dense<0.000000e+00> : vector<32x96xf32>
    %71 = tpu.matmul %68, %70, %cst_64 {dimension_numbers = #tpu.dot_dimension_numbers<[1], [0], [0], [1], [0, 0, 1, 1], [], []>} : vector<32x60xf32>, vector<60x96xf32>, vector<32x96xf32> -> vector<32x96xf32>
    %72 = arith.addf %66, %71 : vector<32x96xf32>
    %c12_65 = arith.constant 12 : index
    %c0_66 = arith.constant 0 : index
    %c0_67 = arith.constant 0 : index
    %73 = vector.load %arg2[%c12_65, %c0_66, %c0_67] : memref<25x32x60xf32, #tpu.memory_space<vmem>>, vector<1x32x60xf32>
    %74 = vector.shape_cast %73 : vector<1x32x60xf32> to vector<32x60xf32>
    %c0_68 = arith.constant 0 : index
    %c0_69 = arith.constant 0 : index
    %c26 = arith.constant 26 : index
    %75 = vector.load %arg1[%c0_68, %c0_69, %c26] : memref<1x60x272xf32, #tpu.memory_space<vmem>>, vector<1x60x96xf32>
    %76 = vector.shape_cast %75 : vector<1x60x96xf32> to vector<60x96xf32>
    %cst_70 = arith.constant dense<0.000000e+00> : vector<32x96xf32>
    %77 = tpu.matmul %74, %76, %cst_70 {dimension_numbers = #tpu.dot_dimension_numbers<[1], [0], [0], [1], [0, 0, 1, 1], [], []>} : vector<32x60xf32>, vector<60x96xf32>, vector<32x96xf32> -> vector<32x96xf32>
    %78 = arith.addf %72, %77 : vector<32x96xf32>
    %c13_71 = arith.constant 13 : index
    %c0_72 = arith.constant 0 : index
    %c0_73 = arith.constant 0 : index
    %79 = vector.load %arg2[%c13_71, %c0_72, %c0_73] : memref<25x32x60xf32, #tpu.memory_space<vmem>>, vector<1x32x60xf32>
    %80 = vector.shape_cast %79 : vector<1x32x60xf32> to vector<32x60xf32>
    %c0_74 = arith.constant 0 : index
    %c0_75 = arith.constant 0 : index
    %c27 = arith.constant 27 : index
    %81 = vector.load %arg1[%c0_74, %c0_75, %c27] : memref<1x60x272xf32, #tpu.memory_space<vmem>>, vector<1x60x96xf32>
    %82 = vector.shape_cast %81 : vector<1x60x96xf32> to vector<60x96xf32>
    %cst_76 = arith.constant dense<0.000000e+00> : vector<32x96xf32>
    %83 = tpu.matmul %80, %82, %cst_76 {dimension_numbers = #tpu.dot_dimension_numbers<[1], [0], [0], [1], [0, 0, 1, 1], [], []>} : vector<32x60xf32>, vector<60x96xf32>, vector<32x96xf32> -> vector<32x96xf32>
    %84 = arith.addf %78, %83 : vector<32x96xf32>
    %c14_77 = arith.constant 14 : index
    %c0_78 = arith.constant 0 : index
    %c0_79 = arith.constant 0 : index
    %85 = vector.load %arg2[%c14_77, %c0_78, %c0_79] : memref<25x32x60xf32, #tpu.memory_space<vmem>>, vector<1x32x60xf32>
    %86 = vector.shape_cast %85 : vector<1x32x60xf32> to vector<32x60xf32>
    %c0_80 = arith.constant 0 : index
    %c0_81 = arith.constant 0 : index
    %c28 = arith.constant 28 : index
    %87 = vector.load %arg1[%c0_80, %c0_81, %c28] : memref<1x60x272xf32, #tpu.memory_space<vmem>>, vector<1x60x96xf32>
    %88 = vector.shape_cast %87 : vector<1x60x96xf32> to vector<60x96xf32>
    %cst_82 = arith.constant dense<0.000000e+00> : vector<32x96xf32>
    %89 = tpu.matmul %86, %88, %cst_82 {dimension_numbers = #tpu.dot_dimension_numbers<[1], [0], [0], [1], [0, 0, 1, 1], [], []>} : vector<32x60xf32>, vector<60x96xf32>, vector<32x96xf32> -> vector<32x96xf32>
    %90 = arith.addf %84, %89 : vector<32x96xf32>
    %c15_83 = arith.constant 15 : index
    %c0_84 = arith.constant 0 : index
    %c0_85 = arith.constant 0 : index
    %91 = vector.load %arg2[%c15_83, %c0_84, %c0_85] : memref<25x32x60xf32, #tpu.memory_space<vmem>>, vector<1x32x60xf32>
    %92 = vector.shape_cast %91 : vector<1x32x60xf32> to vector<32x60xf32>
    %c0_86 = arith.constant 0 : index
    %c0_87 = arith.constant 0 : index
    %c36 = arith.constant 36 : index
    %93 = vector.load %arg1[%c0_86, %c0_87, %c36] : memref<1x60x272xf32, #tpu.memory_space<vmem>>, vector<1x60x96xf32>
    %94 = vector.shape_cast %93 : vector<1x60x96xf32> to vector<60x96xf32>
    %cst_88 = arith.constant dense<0.000000e+00> : vector<32x96xf32>
    %95 = tpu.matmul %92, %94, %cst_88 {dimension_numbers = #tpu.dot_dimension_numbers<[1], [0], [0], [1], [0, 0, 1, 1], [], []>} : vector<32x60xf32>, vector<60x96xf32>, vector<32x96xf32> -> vector<32x96xf32>
    %96 = arith.addf %90, %95 : vector<32x96xf32>
    %c16_89 = arith.constant 16 : index
    %c0_90 = arith.constant 0 : index
    %c0_91 = arith.constant 0 : index
    %97 = vector.load %arg2[%c16_89, %c0_90, %c0_91] : memref<25x32x60xf32, #tpu.memory_space<vmem>>, vector<1x32x60xf32>
    %98 = vector.shape_cast %97 : vector<1x32x60xf32> to vector<32x60xf32>
    %c0_92 = arith.constant 0 : index
    %c0_93 = arith.constant 0 : index
    %c37 = arith.constant 37 : index
    %99 = vector.load %arg1[%c0_92, %c0_93, %c37] : memref<1x60x272xf32, #tpu.memory_space<vmem>>, vector<1x60x96xf32>
    %100 = vector.shape_cast %99 : vector<1x60x96xf32> to vector<60x96xf32>
    %cst_94 = arith.constant dense<0.000000e+00> : vector<32x96xf32>
    %101 = tpu.matmul %98, %100, %cst_94 {dimension_numbers = #tpu.dot_dimension_numbers<[1], [0], [0], [1], [0, 0, 1, 1], [], []>} : vector<32x60xf32>, vector<60x96xf32>, vector<32x96xf32> -> vector<32x96xf32>
    %102 = arith.addf %96, %101 : vector<32x96xf32>
    %c17 = arith.constant 17 : index
    %c0_95 = arith.constant 0 : index
    %c0_96 = arith.constant 0 : index
    %103 = vector.load %arg2[%c17, %c0_95, %c0_96] : memref<25x32x60xf32, #tpu.memory_space<vmem>>, vector<1x32x60xf32>
    %104 = vector.shape_cast %103 : vector<1x32x60xf32> to vector<32x60xf32>
    %c0_97 = arith.constant 0 : index
    %c0_98 = arith.constant 0 : index
    %c38 = arith.constant 38 : index
    %105 = vector.load %arg1[%c0_97, %c0_98, %c38] : memref<1x60x272xf32, #tpu.memory_space<vmem>>, vector<1x60x96xf32>
    %106 = vector.shape_cast %105 : vector<1x60x96xf32> to vector<60x96xf32>
    %cst_99 = arith.constant dense<0.000000e+00> : vector<32x96xf32>
    %107 = tpu.matmul %104, %106, %cst_99 {dimension_numbers = #tpu.dot_dimension_numbers<[1], [0], [0], [1], [0, 0, 1, 1], [], []>} : vector<32x60xf32>, vector<60x96xf32>, vector<32x96xf32> -> vector<32x96xf32>
    %108 = arith.addf %102, %107 : vector<32x96xf32>
    %c18 = arith.constant 18 : index
    %c0_100 = arith.constant 0 : index
    %c0_101 = arith.constant 0 : index
    %109 = vector.load %arg2[%c18, %c0_100, %c0_101] : memref<25x32x60xf32, #tpu.memory_space<vmem>>, vector<1x32x60xf32>
    %110 = vector.shape_cast %109 : vector<1x32x60xf32> to vector<32x60xf32>
    %c0_102 = arith.constant 0 : index
    %c0_103 = arith.constant 0 : index
    %c39 = arith.constant 39 : index
    %111 = vector.load %arg1[%c0_102, %c0_103, %c39] : memref<1x60x272xf32, #tpu.memory_space<vmem>>, vector<1x60x96xf32>
    %112 = vector.shape_cast %111 : vector<1x60x96xf32> to vector<60x96xf32>
    %cst_104 = arith.constant dense<0.000000e+00> : vector<32x96xf32>
    %113 = tpu.matmul %110, %112, %cst_104 {dimension_numbers = #tpu.dot_dimension_numbers<[1], [0], [0], [1], [0, 0, 1, 1], [], []>} : vector<32x60xf32>, vector<60x96xf32>, vector<32x96xf32> -> vector<32x96xf32>
    %114 = arith.addf %108, %113 : vector<32x96xf32>
    %c19 = arith.constant 19 : index
    %c0_105 = arith.constant 0 : index
    %c0_106 = arith.constant 0 : index
    %115 = vector.load %arg2[%c19, %c0_105, %c0_106] : memref<25x32x60xf32, #tpu.memory_space<vmem>>, vector<1x32x60xf32>
    %116 = vector.shape_cast %115 : vector<1x32x60xf32> to vector<32x60xf32>
    %c0_107 = arith.constant 0 : index
    %c0_108 = arith.constant 0 : index
    %c40 = arith.constant 40 : index
    %117 = vector.load %arg1[%c0_107, %c0_108, %c40] : memref<1x60x272xf32, #tpu.memory_space<vmem>>, vector<1x60x96xf32>
    %118 = vector.shape_cast %117 : vector<1x60x96xf32> to vector<60x96xf32>
    %cst_109 = arith.constant dense<0.000000e+00> : vector<32x96xf32>
    %119 = tpu.matmul %116, %118, %cst_109 {dimension_numbers = #tpu.dot_dimension_numbers<[1], [0], [0], [1], [0, 0, 1, 1], [], []>} : vector<32x60xf32>, vector<60x96xf32>, vector<32x96xf32> -> vector<32x96xf32>
    %120 = arith.addf %114, %119 : vector<32x96xf32>
    %c20 = arith.constant 20 : index
    %c0_110 = arith.constant 0 : index
    %c0_111 = arith.constant 0 : index
    %121 = vector.load %arg2[%c20, %c0_110, %c0_111] : memref<25x32x60xf32, #tpu.memory_space<vmem>>, vector<1x32x60xf32>
    %122 = vector.shape_cast %121 : vector<1x32x60xf32> to vector<32x60xf32>
    %c0_112 = arith.constant 0 : index
    %c0_113 = arith.constant 0 : index
    %c48 = arith.constant 48 : index
    %123 = vector.load %arg1[%c0_112, %c0_113, %c48] : memref<1x60x272xf32, #tpu.memory_space<vmem>>, vector<1x60x96xf32>
    %124 = vector.shape_cast %123 : vector<1x60x96xf32> to vector<60x96xf32>
    %cst_114 = arith.constant dense<0.000000e+00> : vector<32x96xf32>
    %125 = tpu.matmul %122, %124, %cst_114 {dimension_numbers = #tpu.dot_dimension_numbers<[1], [0], [0], [1], [0, 0, 1, 1], [], []>} : vector<32x60xf32>, vector<60x96xf32>, vector<32x96xf32> -> vector<32x96xf32>
    %126 = arith.addf %120, %125 : vector<32x96xf32>
    %c21 = arith.constant 21 : index
    %c0_115 = arith.constant 0 : index
    %c0_116 = arith.constant 0 : index
    %127 = vector.load %arg2[%c21, %c0_115, %c0_116] : memref<25x32x60xf32, #tpu.memory_space<vmem>>, vector<1x32x60xf32>
    %128 = vector.shape_cast %127 : vector<1x32x60xf32> to vector<32x60xf32>
    %c0_117 = arith.constant 0 : index
    %c0_118 = arith.constant 0 : index
    %c49 = arith.constant 49 : index
    %129 = vector.load %arg1[%c0_117, %c0_118, %c49] : memref<1x60x272xf32, #tpu.memory_space<vmem>>, vector<1x60x96xf32>
    %130 = vector.shape_cast %129 : vector<1x60x96xf32> to vector<60x96xf32>
    %cst_119 = arith.constant dense<0.000000e+00> : vector<32x96xf32>
    %131 = tpu.matmul %128, %130, %cst_119 {dimension_numbers = #tpu.dot_dimension_numbers<[1], [0], [0], [1], [0, 0, 1, 1], [], []>} : vector<32x60xf32>, vector<60x96xf32>, vector<32x96xf32> -> vector<32x96xf32>
    %132 = arith.addf %126, %131 : vector<32x96xf32>
    %c22 = arith.constant 22 : index
    %c0_120 = arith.constant 0 : index
    %c0_121 = arith.constant 0 : index
    %133 = vector.load %arg2[%c22, %c0_120, %c0_121] : memref<25x32x60xf32, #tpu.memory_space<vmem>>, vector<1x32x60xf32>
    %134 = vector.shape_cast %133 : vector<1x32x60xf32> to vector<32x60xf32>
    %c0_122 = arith.constant 0 : index
    %c0_123 = arith.constant 0 : index
    %c50 = arith.constant 50 : index
    %135 = vector.load %arg1[%c0_122, %c0_123, %c50] : memref<1x60x272xf32, #tpu.memory_space<vmem>>, vector<1x60x96xf32>
    %136 = vector.shape_cast %135 : vector<1x60x96xf32> to vector<60x96xf32>
    %cst_124 = arith.constant dense<0.000000e+00> : vector<32x96xf32>
    %137 = tpu.matmul %134, %136, %cst_124 {dimension_numbers = #tpu.dot_dimension_numbers<[1], [0], [0], [1], [0, 0, 1, 1], [], []>} : vector<32x60xf32>, vector<60x96xf32>, vector<32x96xf32> -> vector<32x96xf32>
    %138 = arith.addf %132, %137 : vector<32x96xf32>
    %c23 = arith.constant 23 : index
    %c0_125 = arith.constant 0 : index
    %c0_126 = arith.constant 0 : index
    %139 = vector.load %arg2[%c23, %c0_125, %c0_126] : memref<25x32x60xf32, #tpu.memory_space<vmem>>, vector<1x32x60xf32>
    %140 = vector.shape_cast %139 : vector<1x32x60xf32> to vector<32x60xf32>
    %c0_127 = arith.constant 0 : index
    %c0_128 = arith.constant 0 : index
    %c51 = arith.constant 51 : index
    %141 = vector.load %arg1[%c0_127, %c0_128, %c51] : memref<1x60x272xf32, #tpu.memory_space<vmem>>, vector<1x60x96xf32>
    %142 = vector.shape_cast %141 : vector<1x60x96xf32> to vector<60x96xf32>
    %cst_129 = arith.constant dense<0.000000e+00> : vector<32x96xf32>
    %143 = tpu.matmul %140, %142, %cst_129 {dimension_numbers = #tpu.dot_dimension_numbers<[1], [0], [0], [1], [0, 0, 1, 1], [], []>} : vector<32x60xf32>, vector<60x96xf32>, vector<32x96xf32> -> vector<32x96xf32>
    %144 = arith.addf %138, %143 : vector<32x96xf32>
    %c24_130 = arith.constant 24 : index
    %c0_131 = arith.constant 0 : index
    %c0_132 = arith.constant 0 : index
    %145 = vector.load %arg2[%c24_130, %c0_131, %c0_132] : memref<25x32x60xf32, #tpu.memory_space<vmem>>, vector<1x32x60xf32>
    %146 = vector.shape_cast %145 : vector<1x32x60xf32> to vector<32x60xf32>
    %c0_133 = arith.constant 0 : index
    %c0_134 = arith.constant 0 : index
    %c52 = arith.constant 52 : index
    %147 = vector.load %arg1[%c0_133, %c0_134, %c52] : memref<1x60x272xf32, #tpu.memory_space<vmem>>, vector<1x60x96xf32>
    %148 = vector.shape_cast %147 : vector<1x60x96xf32> to vector<60x96xf32>
    %cst_135 = arith.constant dense<0.000000e+00> : vector<32x96xf32>
    %149 = tpu.matmul %146, %148, %cst_135 {dimension_numbers = #tpu.dot_dimension_numbers<[1], [0], [0], [1], [0, 0, 1, 1], [], []>} : vector<32x60xf32>, vector<60x96xf32>, vector<32x96xf32> -> vector<32x96xf32>
    %150 = arith.addf %144, %149 : vector<32x96xf32>
    %c0_136 = arith.constant 0 : index
    %c0_137 = arith.constant 0 : index
    %151 = vector.load %arg3[%c0_136, %c0_137] : memref<32x1xf32, #tpu.memory_space<vmem>>, vector<32x1xf32>
    %152 = vector.broadcast %151 : vector<32x1xf32> to vector<32x96xf32>
    %153 = arith.addf %150, %152 : vector<32x96xf32>
    %c0_138 = arith.constant 0 : index
    %c0_139 = arith.constant 0 : index
    %c0_140 = arith.constant 0 : index
    %154 = vector.load %arg4[%c0_138, %c0_139, %c0_140] : memref<1x32x96xf32, #tpu.memory_space<vmem>>, vector<1x32x96xf32>
    %155 = vector.shape_cast %154 : vector<1x32x96xf32> to vector<32x96xf32>
    %156 = vector.shape_cast %153 : vector<32x96xf32> to vector<1x32x96xf32>
    tpu.vector_store %arg4[%c0_138, %c0_139, %c0_140], %156 {strides = array<i32>} : memref<1x32x96xf32, #tpu.memory_space<vmem>>, vector<1x32x96xf32>,
    return
  }
  func.func @transform_0(%arg0: i32) -> (i32, i32, i32) {
    %c0_i32 = arith.constant 0 : i32
    %c0_i32_0 = arith.constant 0 : i32
    %c0_i32_1 = arith.constant 0 : i32
    return %arg0, %c0_i32, %c0_i32_0 : i32, i32, i32
  }
  func.func @transform_1(%arg0: i32) -> (i32, i32, i32) {
    %c0_i32 = arith.constant 0 : i32
    %c0_i32_0 = arith.constant 0 : i32
    %c0_i32_1 = arith.constant 0 : i32
    %c0_i32_2 = arith.constant 0 : i32
    return %c0_i32, %c0_i32_0, %c0_i32_1 : i32, i32, i32
  }
  func.func @transform_2(%arg0: i32) -> (i32, i32) {
    %c0_i32 = arith.constant 0 : i32
    %c0_i32_0 = arith.constant 0 : i32
    %c0_i32_1 = arith.constant 0 : i32
    return %c0_i32, %c0_i32_0 : i32, i32
  }
  func.func @transform_3(%arg0: i32) -> (i32, i32, i32) {
    %c0_i32 = arith.constant 0 : i32
    %c0_i32_0 = arith.constant 0 : i32
    %c0_i32_1 = arith.constant 0 : i32
    return %arg0, %c0_i32, %c0_i32_0 : i32, i32, i32
  }
}

module attributes {stable_mosaic.version = 11 : i64} {
  func.func @kernel(%arg0: i32, %arg1: memref<1x12x64xf32, #tpu.memory_space<vmem>>, %arg2: memref<1x16x3x64xf32, #tpu.memory_space<vmem>>, %arg3: memref<3x60xf32, #tpu.memory_space<vmem>>, %arg4: memref<60x3xf32, #tpu.memory_space<vmem>>, %arg5: memref<1x60x64xf32, #tpu.memory_space<vmem>>) attributes {dimension_semantics = [#tpu.dimension_semantics<parallel>], iteration_bounds = array<i64: 2>, scalar_prefetch = 0 : i64, scratch_operands = 0 : i64, tpu.core_type = #tpu.core_type<tc>, window_params = [{transform_indices = @transform_0, window_bounds = array<i64: 1, 12, 64>}, {transform_indices = @transform_1, window_bounds = array<i64: 1, 16, 3, 64>}, {pipeline_mode = #tpu.pipeline_mode<synchronous>, transform_indices = @transform_2, window_bounds = array<i64: 3, 60>}, {pipeline_mode = #tpu.pipeline_mode<synchronous>, transform_indices = @transform_3, window_bounds = array<i64: 60, 3>}, {transform_indices = @transform_4, window_bounds = array<i64: 1, 60, 64>}]} {
    %c0 = arith.constant 0 : index
    %c0_0 = arith.constant 0 : index
    %c0_1 = arith.constant 0 : index
    %0 = vector.load %arg1[%c0, %c0_0, %c0_1] : memref<1x12x64xf32, #tpu.memory_space<vmem>>, vector<1x12x64xf32>
    %1 = vector.shape_cast %0 : vector<1x12x64xf32> to vector<12x64xf32>
    %c0_2 = arith.constant 0 : index
    %c0_3 = arith.constant 0 : index
    %c0_4 = arith.constant 0 : index
    %c0_5 = arith.constant 0 : index
    %2 = vector.load %arg2[%c0_2, %c0_3, %c0_4, %c0_5] : memref<1x16x3x64xf32, #tpu.memory_space<vmem>>, vector<1x1x3x64xf32>
    %3 = vector.shape_cast %2 : vector<1x1x3x64xf32> to vector<3x64xf32>
    %c0_6 = arith.constant 0 : index
    %c1 = arith.constant 1 : index
    %c0_7 = arith.constant 0 : index
    %c0_8 = arith.constant 0 : index
    %4 = vector.load %arg2[%c0_6, %c1, %c0_7, %c0_8] : memref<1x16x3x64xf32, #tpu.memory_space<vmem>>, vector<1x1x3x64xf32>
    %5 = vector.shape_cast %4 : vector<1x1x3x64xf32> to vector<3x64xf32>
    %c0_9 = arith.constant 0 : index
    %c4 = arith.constant 4 : index
    %c0_10 = arith.constant 0 : index
    %c0_11 = arith.constant 0 : index
    %6 = vector.load %arg2[%c0_9, %c4, %c0_10, %c0_11] : memref<1x16x3x64xf32, #tpu.memory_space<vmem>>, vector<1x1x3x64xf32>
    %7 = vector.shape_cast %6 : vector<1x1x3x64xf32> to vector<3x64xf32>
    %c0_12 = arith.constant 0 : index
    %c5 = arith.constant 5 : index
    %c0_13 = arith.constant 0 : index
    %c0_14 = arith.constant 0 : index
    %8 = vector.load %arg2[%c0_12, %c5, %c0_13, %c0_14] : memref<1x16x3x64xf32, #tpu.memory_space<vmem>>, vector<1x1x3x64xf32>
    %9 = vector.shape_cast %8 : vector<1x1x3x64xf32> to vector<3x64xf32>
    %10 = arith.addf %3, %5 : vector<3x64xf32>
    %11 = arith.addf %10, %7 : vector<3x64xf32>
    %12 = arith.addf %11, %9 : vector<3x64xf32>
    %13 = arith.addf %3, %5 : vector<3x64xf32>
    %14 = arith.subf %13, %7 : vector<3x64xf32>
    %15 = arith.subf %14, %9 : vector<3x64xf32>
    %16 = arith.subf %3, %5 : vector<3x64xf32>
    %17 = arith.addf %16, %7 : vector<3x64xf32>
    %18 = arith.subf %17, %9 : vector<3x64xf32>
    %19 = arith.subf %3, %5 : vector<3x64xf32>
    %20 = arith.subf %19, %7 : vector<3x64xf32>
    %21 = arith.addf %20, %9 : vector<3x64xf32>
    %c0_15 = arith.constant 0 : index
    %c2 = arith.constant 2 : index
    %c0_16 = arith.constant 0 : index
    %c0_17 = arith.constant 0 : index
    %22 = vector.load %arg2[%c0_15, %c2, %c0_16, %c0_17] : memref<1x16x3x64xf32, #tpu.memory_space<vmem>>, vector<1x1x3x64xf32>
    %23 = vector.shape_cast %22 : vector<1x1x3x64xf32> to vector<3x64xf32>
    %c0_18 = arith.constant 0 : index
    %c3 = arith.constant 3 : index
    %c0_19 = arith.constant 0 : index
    %c0_20 = arith.constant 0 : index
    %24 = vector.load %arg2[%c0_18, %c3, %c0_19, %c0_20] : memref<1x16x3x64xf32, #tpu.memory_space<vmem>>, vector<1x1x3x64xf32>
    %25 = vector.shape_cast %24 : vector<1x1x3x64xf32> to vector<3x64xf32>
    %c0_21 = arith.constant 0 : index
    %c6 = arith.constant 6 : index
    %c0_22 = arith.constant 0 : index
    %c0_23 = arith.constant 0 : index
    %26 = vector.load %arg2[%c0_21, %c6, %c0_22, %c0_23] : memref<1x16x3x64xf32, #tpu.memory_space<vmem>>, vector<1x1x3x64xf32>
    %27 = vector.shape_cast %26 : vector<1x1x3x64xf32> to vector<3x64xf32>
    %c0_24 = arith.constant 0 : index
    %c7 = arith.constant 7 : index
    %c0_25 = arith.constant 0 : index
    %c0_26 = arith.constant 0 : index
    %28 = vector.load %arg2[%c0_24, %c7, %c0_25, %c0_26] : memref<1x16x3x64xf32, #tpu.memory_space<vmem>>, vector<1x1x3x64xf32>
    %29 = vector.shape_cast %28 : vector<1x1x3x64xf32> to vector<3x64xf32>
    %30 = arith.addf %23, %25 : vector<3x64xf32>
    %31 = arith.addf %30, %27 : vector<3x64xf32>
    %32 = arith.addf %31, %29 : vector<3x64xf32>
    %33 = arith.addf %23, %25 : vector<3x64xf32>
    %34 = arith.subf %33, %27 : vector<3x64xf32>
    %35 = arith.subf %34, %29 : vector<3x64xf32>
    %36 = arith.subf %23, %25 : vector<3x64xf32>
    %37 = arith.addf %36, %27 : vector<3x64xf32>
    %38 = arith.subf %37, %29 : vector<3x64xf32>
    %39 = arith.subf %23, %25 : vector<3x64xf32>
    %40 = arith.subf %39, %27 : vector<3x64xf32>
    %41 = arith.addf %40, %29 : vector<3x64xf32>
    %c0_27 = arith.constant 0 : index
    %c8 = arith.constant 8 : index
    %c0_28 = arith.constant 0 : index
    %c0_29 = arith.constant 0 : index
    %42 = vector.load %arg2[%c0_27, %c8, %c0_28, %c0_29] : memref<1x16x3x64xf32, #tpu.memory_space<vmem>>, vector<1x1x3x64xf32>
    %43 = vector.shape_cast %42 : vector<1x1x3x64xf32> to vector<3x64xf32>
    %c0_30 = arith.constant 0 : index
    %c9 = arith.constant 9 : index
    %c0_31 = arith.constant 0 : index
    %c0_32 = arith.constant 0 : index
    %44 = vector.load %arg2[%c0_30, %c9, %c0_31, %c0_32] : memref<1x16x3x64xf32, #tpu.memory_space<vmem>>, vector<1x1x3x64xf32>
    %45 = vector.shape_cast %44 : vector<1x1x3x64xf32> to vector<3x64xf32>
    %c0_33 = arith.constant 0 : index
    %c12 = arith.constant 12 : index
    %c0_34 = arith.constant 0 : index
    %c0_35 = arith.constant 0 : index
    %46 = vector.load %arg2[%c0_33, %c12, %c0_34, %c0_35] : memref<1x16x3x64xf32, #tpu.memory_space<vmem>>, vector<1x1x3x64xf32>
    %47 = vector.shape_cast %46 : vector<1x1x3x64xf32> to vector<3x64xf32>
    %c0_36 = arith.constant 0 : index
    %c13 = arith.constant 13 : index
    %c0_37 = arith.constant 0 : index
    %c0_38 = arith.constant 0 : index
    %48 = vector.load %arg2[%c0_36, %c13, %c0_37, %c0_38] : memref<1x16x3x64xf32, #tpu.memory_space<vmem>>, vector<1x1x3x64xf32>
    %49 = vector.shape_cast %48 : vector<1x1x3x64xf32> to vector<3x64xf32>
    %50 = arith.addf %43, %45 : vector<3x64xf32>
    %51 = arith.addf %50, %47 : vector<3x64xf32>
    %52 = arith.addf %51, %49 : vector<3x64xf32>
    %53 = arith.addf %43, %45 : vector<3x64xf32>
    %54 = arith.subf %53, %47 : vector<3x64xf32>
    %55 = arith.subf %54, %49 : vector<3x64xf32>
    %56 = arith.subf %43, %45 : vector<3x64xf32>
    %57 = arith.addf %56, %47 : vector<3x64xf32>
    %58 = arith.subf %57, %49 : vector<3x64xf32>
    %59 = arith.subf %43, %45 : vector<3x64xf32>
    %60 = arith.subf %59, %47 : vector<3x64xf32>
    %61 = arith.addf %60, %49 : vector<3x64xf32>
    %c0_39 = arith.constant 0 : index
    %c10 = arith.constant 10 : index
    %c0_40 = arith.constant 0 : index
    %c0_41 = arith.constant 0 : index
    %62 = vector.load %arg2[%c0_39, %c10, %c0_40, %c0_41] : memref<1x16x3x64xf32, #tpu.memory_space<vmem>>, vector<1x1x3x64xf32>
    %63 = vector.shape_cast %62 : vector<1x1x3x64xf32> to vector<3x64xf32>
    %c0_42 = arith.constant 0 : index
    %c11 = arith.constant 11 : index
    %c0_43 = arith.constant 0 : index
    %c0_44 = arith.constant 0 : index
    %64 = vector.load %arg2[%c0_42, %c11, %c0_43, %c0_44] : memref<1x16x3x64xf32, #tpu.memory_space<vmem>>, vector<1x1x3x64xf32>
    %65 = vector.shape_cast %64 : vector<1x1x3x64xf32> to vector<3x64xf32>
    %c0_45 = arith.constant 0 : index
    %c14 = arith.constant 14 : index
    %c0_46 = arith.constant 0 : index
    %c0_47 = arith.constant 0 : index
    %66 = vector.load %arg2[%c0_45, %c14, %c0_46, %c0_47] : memref<1x16x3x64xf32, #tpu.memory_space<vmem>>, vector<1x1x3x64xf32>
    %67 = vector.shape_cast %66 : vector<1x1x3x64xf32> to vector<3x64xf32>
    %c0_48 = arith.constant 0 : index
    %c15 = arith.constant 15 : index
    %c0_49 = arith.constant 0 : index
    %c0_50 = arith.constant 0 : index
    %68 = vector.load %arg2[%c0_48, %c15, %c0_49, %c0_50] : memref<1x16x3x64xf32, #tpu.memory_space<vmem>>, vector<1x1x3x64xf32>
    %69 = vector.shape_cast %68 : vector<1x1x3x64xf32> to vector<3x64xf32>
    %70 = arith.addf %63, %65 : vector<3x64xf32>
    %71 = arith.addf %70, %67 : vector<3x64xf32>
    %72 = arith.addf %71, %69 : vector<3x64xf32>
    %73 = arith.addf %63, %65 : vector<3x64xf32>
    %74 = arith.subf %73, %67 : vector<3x64xf32>
    %75 = arith.subf %74, %69 : vector<3x64xf32>
    %76 = arith.subf %63, %65 : vector<3x64xf32>
    %77 = arith.addf %76, %67 : vector<3x64xf32>
    %78 = arith.subf %77, %69 : vector<3x64xf32>
    %79 = arith.subf %63, %65 : vector<3x64xf32>
    %80 = arith.subf %79, %67 : vector<3x64xf32>
    %81 = arith.addf %80, %69 : vector<3x64xf32>
    %82 = arith.addf %12, %32 : vector<3x64xf32>
    %83 = arith.addf %82, %52 : vector<3x64xf32>
    %84 = arith.addf %83, %72 : vector<3x64xf32>
    %cst = arith.constant 2.500000e-01 : f32
    %85 = vector.broadcast %cst : f32 to vector<3x64xf32>
    %86 = arith.mulf %85, %84 : vector<3x64xf32>
    %87 = arith.addf %12, %32 : vector<3x64xf32>
    %88 = arith.subf %87, %52 : vector<3x64xf32>
    %89 = arith.subf %88, %72 : vector<3x64xf32>
    %cst_51 = arith.constant 2.500000e-01 : f32
    %90 = vector.broadcast %cst_51 : f32 to vector<3x64xf32>
    %91 = arith.mulf %90, %89 : vector<3x64xf32>
    %92 = arith.subf %12, %32 : vector<3x64xf32>
    %93 = arith.addf %92, %52 : vector<3x64xf32>
    %94 = arith.subf %93, %72 : vector<3x64xf32>
    %cst_52 = arith.constant 2.500000e-01 : f32
    %95 = vector.broadcast %cst_52 : f32 to vector<3x64xf32>
    %96 = arith.mulf %95, %94 : vector<3x64xf32>
    %97 = arith.subf %12, %32 : vector<3x64xf32>
    %98 = arith.subf %97, %52 : vector<3x64xf32>
    %99 = arith.addf %98, %72 : vector<3x64xf32>
    %cst_53 = arith.constant 2.500000e-01 : f32
    %100 = vector.broadcast %cst_53 : f32 to vector<3x64xf32>
    %101 = arith.mulf %100, %99 : vector<3x64xf32>
    %102 = arith.addf %15, %35 : vector<3x64xf32>
    %103 = arith.addf %102, %55 : vector<3x64xf32>
    %104 = arith.addf %103, %75 : vector<3x64xf32>
    %cst_54 = arith.constant 2.500000e-01 : f32
    %105 = vector.broadcast %cst_54 : f32 to vector<3x64xf32>
    %106 = arith.mulf %105, %104 : vector<3x64xf32>
    %107 = arith.addf %15, %35 : vector<3x64xf32>
    %108 = arith.subf %107, %55 : vector<3x64xf32>
    %109 = arith.subf %108, %75 : vector<3x64xf32>
    %cst_55 = arith.constant 2.500000e-01 : f32
    %110 = vector.broadcast %cst_55 : f32 to vector<3x64xf32>
    %111 = arith.mulf %110, %109 : vector<3x64xf32>
    %112 = arith.subf %15, %35 : vector<3x64xf32>
    %113 = arith.addf %112, %55 : vector<3x64xf32>
    %114 = arith.subf %113, %75 : vector<3x64xf32>
    %cst_56 = arith.constant 2.500000e-01 : f32
    %115 = vector.broadcast %cst_56 : f32 to vector<3x64xf32>
    %116 = arith.mulf %115, %114 : vector<3x64xf32>
    %117 = arith.subf %15, %35 : vector<3x64xf32>
    %118 = arith.subf %117, %55 : vector<3x64xf32>
    %119 = arith.addf %118, %75 : vector<3x64xf32>
    %cst_57 = arith.constant 2.500000e-01 : f32
    %120 = vector.broadcast %cst_57 : f32 to vector<3x64xf32>
    %121 = arith.mulf %120, %119 : vector<3x64xf32>
    %122 = arith.addf %18, %38 : vector<3x64xf32>
    %123 = arith.addf %122, %58 : vector<3x64xf32>
    %124 = arith.addf %123, %78 : vector<3x64xf32>
    %cst_58 = arith.constant 2.500000e-01 : f32
    %125 = vector.broadcast %cst_58 : f32 to vector<3x64xf32>
    %126 = arith.mulf %125, %124 : vector<3x64xf32>
    %127 = arith.addf %18, %38 : vector<3x64xf32>
    %128 = arith.subf %127, %58 : vector<3x64xf32>
    %129 = arith.subf %128, %78 : vector<3x64xf32>
    %cst_59 = arith.constant 2.500000e-01 : f32
    %130 = vector.broadcast %cst_59 : f32 to vector<3x64xf32>
    %131 = arith.mulf %130, %129 : vector<3x64xf32>
    %132 = arith.subf %18, %38 : vector<3x64xf32>
    %133 = arith.addf %132, %58 : vector<3x64xf32>
    %134 = arith.subf %133, %78 : vector<3x64xf32>
    %cst_60 = arith.constant 2.500000e-01 : f32
    %135 = vector.broadcast %cst_60 : f32 to vector<3x64xf32>
    %136 = arith.mulf %135, %134 : vector<3x64xf32>
    %137 = arith.subf %18, %38 : vector<3x64xf32>
    %138 = arith.subf %137, %58 : vector<3x64xf32>
    %139 = arith.addf %138, %78 : vector<3x64xf32>
    %cst_61 = arith.constant 2.500000e-01 : f32
    %140 = vector.broadcast %cst_61 : f32 to vector<3x64xf32>
    %141 = arith.mulf %140, %139 : vector<3x64xf32>
    %142 = arith.addf %21, %41 : vector<3x64xf32>
    %143 = arith.addf %142, %61 : vector<3x64xf32>
    %144 = arith.addf %143, %81 : vector<3x64xf32>
    %cst_62 = arith.constant 2.500000e-01 : f32
    %145 = vector.broadcast %cst_62 : f32 to vector<3x64xf32>
    %146 = arith.mulf %145, %144 : vector<3x64xf32>
    %147 = arith.addf %21, %41 : vector<3x64xf32>
    %148 = arith.subf %147, %61 : vector<3x64xf32>
    %149 = arith.subf %148, %81 : vector<3x64xf32>
    %cst_63 = arith.constant 2.500000e-01 : f32
    %150 = vector.broadcast %cst_63 : f32 to vector<3x64xf32>
    %151 = arith.mulf %150, %149 : vector<3x64xf32>
    %152 = arith.subf %21, %41 : vector<3x64xf32>
    %153 = arith.addf %152, %61 : vector<3x64xf32>
    %154 = arith.subf %153, %81 : vector<3x64xf32>
    %cst_64 = arith.constant 2.500000e-01 : f32
    %155 = vector.broadcast %cst_64 : f32 to vector<3x64xf32>
    %156 = arith.mulf %155, %154 : vector<3x64xf32>
    %157 = arith.subf %21, %41 : vector<3x64xf32>
    %158 = arith.subf %157, %61 : vector<3x64xf32>
    %159 = arith.addf %158, %81 : vector<3x64xf32>
    %cst_65 = arith.constant 2.500000e-01 : f32
    %160 = vector.broadcast %cst_65 : f32 to vector<3x64xf32>
    %161 = arith.mulf %160, %159 : vector<3x64xf32>
    %162 = tpu.concatenate %1, %86, %91, %96, %101, %106, %111, %116, %121, %126, %131, %136, %141, %146, %151, %156 in 0 : vector<12x64xf32>, vector<3x64xf32>, vector<3x64xf32>, vector<3x64xf32>, vector<3x64xf32>, vector<3x64xf32>, vector<3x64xf32>, vector<3x64xf32>, vector<3x64xf32>, vector<3x64xf32>, vector<3x64xf32>, vector<3x64xf32>, vector<3x64xf32>, vector<3x64xf32>, vector<3x64xf32>, vector<3x64xf32> -> vector<57x64xf32>
    %163 = tpu.concatenate %162, %161 in 0 : vector<57x64xf32>, vector<3x64xf32> -> vector<60x64xf32>
    %cst_66 = arith.constant dense<0.000000e+00> : vector<60xf32>
    %164 = vector.multi_reduction <add>, %163, %cst_66 [1] : vector<60x64xf32> to vector<60xf32>
    %165 = vector.shape_cast %164 : vector<60xf32> to vector<60x1xf32>
    %cst_67 = arith.constant 6.400000e+01 : f32
    %166 = vector.broadcast %cst_67 : f32 to vector<60x1xf32>
    %167 = arith.divf %165, %166 : vector<60x1xf32>
    %cst_68 = arith.constant dense<0xFF800000> : vector<60xf32>
    %168 = vector.multi_reduction <maximumf>, %163, %cst_68 [1] : vector<60x64xf32> to vector<60xf32>
    %169 = vector.shape_cast %168 : vector<60xf32> to vector<60x1xf32>
    %c0_69 = arith.constant 0 : index
    %c0_70 = arith.constant 0 : index
    %170 = vector.load %arg3[%c0_69, %c0_70] : memref<3x60xf32, #tpu.memory_space<vmem>>, vector<3x60xf32>
    %cst_71 = arith.constant dense<0.000000e+00> : vector<3x1xf32>
    %171 = tpu.matmul %170, %167, %cst_71 {dimension_numbers = #tpu.dot_dimension_numbers<[1], [0], [0], [1], [0, 0, 1, 1], [], []>} : vector<3x60xf32>, vector<60x1xf32>, vector<3x1xf32> -> vector<3x1xf32>
    %cst_72 = arith.constant 0.000000e+00 : f32
    %172 = vector.broadcast %cst_72 : f32 to vector<3x1xf32>
    %173 = arith.maximumf %171, %172 : vector<3x1xf32>
    %c0_73 = arith.constant 0 : index
    %c0_74 = arith.constant 0 : index
    %174 = vector.load %arg4[%c0_73, %c0_74] : memref<60x3xf32, #tpu.memory_space<vmem>>, vector<60x3xf32>
    %cst_75 = arith.constant dense<0.000000e+00> : vector<60x1xf32>
    %175 = tpu.matmul %174, %173, %cst_75 {dimension_numbers = #tpu.dot_dimension_numbers<[1], [0], [0], [1], [0, 0, 1, 1], [], []>} : vector<60x3xf32>, vector<3x1xf32>, vector<60x1xf32> -> vector<60x1xf32>
    %c0_76 = arith.constant 0 : index
    %c0_77 = arith.constant 0 : index
    %176 = vector.load %arg3[%c0_76, %c0_77] : memref<3x60xf32, #tpu.memory_space<vmem>>, vector<3x60xf32>
    %cst_78 = arith.constant dense<0.000000e+00> : vector<3x1xf32>
    %177 = tpu.matmul %176, %169, %cst_78 {dimension_numbers = #tpu.dot_dimension_numbers<[1], [0], [0], [1], [0, 0, 1, 1], [], []>} : vector<3x60xf32>, vector<60x1xf32>, vector<3x1xf32> -> vector<3x1xf32>
    %cst_79 = arith.constant 0.000000e+00 : f32
    %178 = vector.broadcast %cst_79 : f32 to vector<3x1xf32>
    %179 = arith.maximumf %177, %178 : vector<3x1xf32>
    %c0_80 = arith.constant 0 : index
    %c0_81 = arith.constant 0 : index
    %180 = vector.load %arg4[%c0_80, %c0_81] : memref<60x3xf32, #tpu.memory_space<vmem>>, vector<60x3xf32>
    %cst_82 = arith.constant dense<0.000000e+00> : vector<60x1xf32>
    %181 = tpu.matmul %180, %179, %cst_82 {dimension_numbers = #tpu.dot_dimension_numbers<[1], [0], [0], [1], [0, 0, 1, 1], [], []>} : vector<60x3xf32>, vector<3x1xf32>, vector<60x1xf32> -> vector<60x1xf32>
    %182 = arith.addf %175, %181 : vector<60x1xf32>
    %183 = arith.negf %182 : vector<60x1xf32>
    %184 = math.exp %183 : vector<60x1xf32>
    %cst_83 = arith.constant 1.000000e+00 : f32
    %185 = vector.broadcast %cst_83 : f32 to vector<60x1xf32>
    %186 = arith.addf %185, %184 : vector<60x1xf32>
    %187 = arith.divf %185, %186 : vector<60x1xf32>
    %cst_84 = arith.constant 1.000000e+00 : f32
    %188 = vector.broadcast %cst_84 : f32 to vector<60x1xf32>
    %189 = arith.addf %187, %188 : vector<60x1xf32>
    %190 = vector.broadcast %189 : vector<60x1xf32> to vector<60x64xf32>
    %191 = arith.mulf %190, %163 : vector<60x64xf32>
    %c0_85 = arith.constant 0 : index
    %c0_86 = arith.constant 0 : index
    %c0_87 = arith.constant 0 : index
    %192 = vector.load %arg5[%c0_85, %c0_86, %c0_87] : memref<1x60x64xf32, #tpu.memory_space<vmem>>, vector<1x60x64xf32>
    %193 = vector.shape_cast %192 : vector<1x60x64xf32> to vector<60x64xf32>
    %194 = vector.shape_cast %191 : vector<60x64xf32> to vector<1x60x64xf32>
    tpu.vector_store %arg5[%c0_85, %c0_86, %c0_87], %194 {strides = array<i32>} : memref<1x60x64xf32, #tpu.memory_space<vmem>>, vector<1x60x64xf32>,
    return
  }
  func.func @transform_0(%arg0: i32) -> (i32, i32, i32) {
    %c0_i32 = arith.constant 0 : i32
    %c0_i32_0 = arith.constant 0 : i32
    %c0_i32_1 = arith.constant 0 : i32
    return %arg0, %c0_i32, %c0_i32_0 : i32, i32, i32
  }
  func.func @transform_1(%arg0: i32) -> (i32, i32, i32, i32) {
    %c0_i32 = arith.constant 0 : i32
    %c0_i32_0 = arith.constant 0 : i32
    %c0_i32_1 = arith.constant 0 : i32
    %c0_i32_2 = arith.constant 0 : i32
    return %arg0, %c0_i32, %c0_i32_0, %c0_i32_1 : i32, i32, i32, i32
  }
  func.func @transform_2(%arg0: i32) -> (i32, i32) {
    %c0_i32 = arith.constant 0 : i32
    %c0_i32_0 = arith.constant 0 : i32
    %c0_i32_1 = arith.constant 0 : i32
    return %c0_i32, %c0_i32_0 : i32, i32
  }
  func.func @transform_3(%arg0: i32) -> (i32, i32) {
    %c0_i32 = arith.constant 0 : i32
    %c0_i32_0 = arith.constant 0 : i32
    %c0_i32_1 = arith.constant 0 : i32
    return %c0_i32, %c0_i32_0 : i32, i32
  }
  func.func @transform_4(%arg0: i32) -> (i32, i32, i32) {
    %c0_i32 = arith.constant 0 : i32
    %c0_i32_0 = arith.constant 0 : i32
    %c0_i32_1 = arith.constant 0 : i32
    return %arg0, %c0_i32, %c0_i32_0 : i32, i32, i32
  }
}

</mosaic_0001>

<llo_original>
// kernel: _lambda_.3
$region0: #{_lambda_.3}
  #allocation0 [shape = 'u32[]', space=smem, size = 0x4, offset = 0x4, fixed_abs, tag = 'smem constant byte address 0x4 - core index']
  #allocation1 [shape = 'u32[144,128]{1,0:T(1,128)}', space=vmem, size = 0x12000, scoped, tag = 'internal scratch']
  %s0 = inlined_call_operand.vmem [shape: f32[2,12,489], index: 0, kind: input, shape index: {}]
  %s1 = inlined_call_operand.vmem [shape: f32[16,12,12], index: 1, kind: input, shape index: {}]
  %s2 = inlined_call_operand.vmem [shape: f32[12,1], index: 2, kind: input, shape index: {}]
  %s3 = inlined_call_operand.vmem [shape: f32[1,304], index: 3, kind: input, shape index: {}]
  %s4 = inlined_call_operand.vmem [shape: f32[2,12,304], index: 4, kind: output, shape index: {}]
  %s5 = sld [smem:[#allocation0]]
  $region49: #{_lambda_.3} parent=0
    _
  %s7 = ssub.s32 1, %s5
  %s8 = scalar_select 0, %s7, %s5
  loop: start=0, step=1, limit=4
  $region2: #{_lambda_.3} parent=0 // loop_pre_header
    _
  $region3: #{_lambda_.3} parent=0 // loop_header
    %s10 = sphi 0, %s14
    %p11 = scmp.ge.s32.totalorder %s10, 4
    %s20 = sphi 0, %s22
    %s23 = sphi 0, %s20
    %s24 = sphi 0, %s23
    %s40 = sphi 0, %s24
    %s44 = sphi 0, %s44
    %s46 = sphi 0, %s44
    %s47 = sphi 0, %s46
    %s61 = sphi 0, %s47
    %s65 = sphi 0, %s65
    %s67 = sphi 0, %s65
    %s68 = sphi 0, %s67
    %s82 = sphi 0, %s68
    %s86 = sphi 0, %s86
    %s88 = sphi 0, %s86
    %s89 = sphi 0, %s88
    %s103 = sphi 0, %s89
    %s109 = sphi 0, %s111
    %s112 = sphi 0, %s109
    %s113 = sphi 0, %s112
    %s129 = sphi 0, %s113
  $region4: #{_lambda_.3} parent=0 // loop_header_branch
    %13 = sbr.rel (%p11) target = $region8
  $region5: #{_lambda_.3} parent=0 // loop_body
    %s15 = ssub.s32 %s10, 1
    %s16 = ssub.s32 %s10, 2
    %s17 = sadd.s32 %s10, 1
    %s18 = ssub.s32 %s10, %s17
    %p19 = scmp.eq.s32.totalorder %s18, 0
    %s21 = sadd.s32 %s20, 1
    %s22 = scalar_select %p19, %s20, %s21
    %p25 = pneg %p19
    %p26 = scmp.eq.s32.totalorder %s10, 1
    %p27 = por %p25, %p26
    %p28 = scmp.ne.s32.totalorder %s20, %s23
    %p29 = scmp.eq.s32.totalorder %s10, 0
    %p30 = por %p28, %p29
    %p31 = scmp.ne.s32.totalorder %s20, %s23
    %p32 = scmp.eq.s32.totalorder %s15, 1
    %p33 = por %p31, %p32
    %p34 = scmp.ne.s32.totalorder %s23, %s24
    %p35 = scmp.eq.s32.totalorder %s15, 0
    %p36 = por %p34, %p35
    %p37 = scmp.ne.s32.totalorder %s23, %s24
    %p38 = scmp.eq.s32.totalorder %s16, 1
    %p39 = por %p37, %p38
    %p41 = scmp.ne.s32.totalorder %s24, %s40
    %p42 = scmp.eq.s32.totalorder %s16, 0
    %p43 = por %p41, %p42
    %s45 = sadd.s32 %s44, 1
    %p48 = scmp.eq.s32.totalorder %s10, 1
    %p49 = scmp.ne.s32.totalorder %s44, %s46
    %p50 = scmp.eq.s32.totalorder %s10, 0
    %p51 = por %p49, %p50
    %p52 = scmp.ne.s32.totalorder %s44, %s46
    %p53 = scmp.eq.s32.totalorder %s15, 1
    %p54 = por %p52, %p53
    %p55 = scmp.ne.s32.totalorder %s46, %s47
    %p56 = scmp.eq.s32.totalorder %s15, 0
    %p57 = por %p55, %p56
    %p58 = scmp.ne.s32.totalorder %s46, %s47
    %p59 = scmp.eq.s32.totalorder %s16, 1
    %p60 = por %p58, %p59
    %p62 = scmp.ne.s32.totalorder %s47, %s61
    %p63 = scmp.eq.s32.totalorder %s16, 0
    %p64 = por %p62, %p63
    %s66 = sadd.s32 %s65, 1
    %p69 = scmp.eq.s32.totalorder %s10, 1
    %p70 = scmp.ne.s32.totalorder %s65, %s67
    %p71 = scmp.eq.s32.totalorder %s10, 0
    %p72 = por %p70, %p71
    %p73 = scmp.ne.s32.totalorder %s65, %s67
    %p74 = scmp.eq.s32.totalorder %s15, 1
    %p75 = por %p73, %p74
    %p76 = scmp.ne.s32.totalorder %s67, %s68
    %p77 = scmp.eq.s32.totalorder %s15, 0
    %p78 = por %p76, %p77
    %p79 = scmp.ne.s32.totalorder %s67, %s68
    %p80 = scmp.eq.s32.totalorder %s16, 1
    %p81 = por %p79, %p80
    %p83 = scmp.ne.s32.totalorder %s68, %s82
    %p84 = scmp.eq.s32.totalorder %s16, 0
    %p85 = por %p83, %p84
    %s87 = sadd.s32 %s86, 1
    %p90 = scmp.eq.s32.totalorder %s10, 1
    %p91 = scmp.ne.s32.totalorder %s86, %s88
    %p92 = scmp.eq.s32.totalorder %s10, 0
    %p93 = por %p91, %p92
    %p94 = scmp.ne.s32.totalorder %s86, %s88
    %p95 = scmp.eq.s32.totalorder %s15, 1
    %p96 = por %p94, %p95
    %p97 = scmp.ne.s32.totalorder %s88, %s89
    %p98 = scmp.eq.s32.totalorder %s15, 0
    %p99 = por %p97, %p98
    %p100 = scmp.ne.s32.totalorder %s88, %s89
    %p101 = scmp.eq.s32.totalorder %s16, 1
    %p102 = por %p100, %p101
    %p104 = scmp.ne.s32.totalorder %s89, %s103
    %p105 = scmp.eq.s32.totalorder %s16, 0
    %p106 = por %p104, %p105
    %s107 = ssub.s32 %s10, %s17
    %p108 = scmp.eq.s32.totalorder %s107, 0
    %s110 = sadd.s32 %s109, 1
    %s111 = scalar_select %p108, %s109, %s110
    %p114 = pneg %p108
    %p115 = scmp.eq.s32.totalorder %s10, 1
    %p116 = por %p114, %p115
    %p117 = scmp.ne.s32.totalorder %s109, %s112
    %p118 = scmp.eq.s32.totalorder %s10, 0
    %p119 = por %p117, %p118
    %p120 = scmp.ne.s32.totalorder %s109, %s112
    %p121 = scmp.eq.s32.totalorder %s15, 1
    %p122 = por %p120, %p121
    %p123 = scmp.ne.s32.totalorder %s112, %s113
    %p124 = scmp.eq.s32.totalorder %s15, 0
    %p125 = por %p123, %p124
    %p126 = scmp.ne.s32.totalorder %s112, %s113
    %p127 = scmp.eq.s32.totalorder %s16, 1
    %p128 = por %p126, %p127
    %p130 = scmp.ne.s32.totalorder %s113, %s129
    %p131 = scmp.eq.s32.totalorder %s16, 0
    %p132 = por %p130, %p131
    %p133 = scmp.le.s32.totalorder 1, %s10
    %p134 = scmp.lt.s32.totalorder %s10, 3
    %p135 = pnand %p133, %p134
    %p136 = pneg %p135
    // Predicated region
    $region9: #{_lambda_.3} parent=5 // pred_check
      _
    $region10: #{_lambda_.3} parent=5 // pred_check_branch
      %138 = sbr.rel (%p135) target = $region12
    $region11: #{_lambda_.3} parent=5 // pred_region
      %s139 = ssub.s32 %s10, 1
      // Predicated region
      $region13: #{_lambda_.3} parent=11 // pred_check
        %p140 = pneg %p57
      $region14: #{_lambda_.3} parent=11 // pred_check_branch
        %142 = sbr.rel (%p140) target = $region16
      $region15: #{_lambda_.3} parent=11 // pred_region
        _
      $region16: #{_lambda_.3} parent=11 // pred_fallthru
        _
      // Predicated region
      $region17: #{_lambda_.3} parent=11 // pred_check
        %p143 = pneg %p78
      $region18: #{_lambda_.3} parent=11 // pred_check_branch
        %145 = sbr.rel (%p143) target = $region20
      $region19: #{_lambda_.3} parent=11 // pred_region
        _
      $region20: #{_lambda_.3} parent=11 // pred_fallthru
        _
      // Predicated region
      $region21: #{_lambda_.3} parent=11 // pred_check
        %p146 = pneg %p99
      $region22: #{_lambda_.3} parent=11 // pred_check_branch
        %148 = sbr.rel (%p146) target = $region24
      $region23: #{_lambda_.3} parent=11 // pred_region
        _
      $region24: #{_lambda_.3} parent=11 // pred_fallthru
        _
    $region12: #{_lambda_.3} parent=5 // pred_fallthru
      _
    %p149 = scmp.lt.s32.totalorder %s10, 2
    // Predicated region
    $region25: #{_lambda_.3} parent=5 // pred_check
      %p150 = pneg %p149
    $region26: #{_lambda_.3} parent=5 // pred_check_branch
      %152 = sbr.rel (%p150) target = $region28
    $region27: #{_lambda_.3} parent=5 // pred_region
      // Predicated region
      $region29: #{_lambda_.3} parent=27 // pred_check
        %p153 = pneg %p30
      $region30: #{_lambda_.3} parent=27 // pred_check_branch
        %155 = sbr.rel (%p153) target = $region32
      $region31: #{_lambda_.3} parent=27 // pred_region
        %p156 = scmp.lt.s32.totalorder %s10, 1
        %s157 = scalar_select %p156, %s10, 1
        %s158 = smul.addr %s157, 8
        %s159 = smul.addr %s158, 8
        %s160 = scalar_lea.vmem %s0, %s159
      $region32: #{_lambda_.3} parent=27 // pred_fallthru
        _
    $region28: #{_lambda_.3} parent=5 // pred_fallthru
      _
    %p161 = scmp.le.s32.totalorder 1, %s10
    %p162 = scmp.lt.s32.totalorder %s10, 3
    %p163 = pnand %p161, %p162
    %p164 = pneg %p163
    // Predicated region
    $region33: #{_lambda_.3} parent=5 // pred_check
      _
    $region34: #{_lambda_.3} parent=5 // pred_check_branch
      %166 = sbr.rel (%p163) target = $region36
    $region35: #{_lambda_.3} parent=5 // pred_region
      %s167 = ssub.s32 %s10, 1
      %p168 = scmp.lt.s32.totalorder %s15, 1
      %s169 = scalar_select %p168, %s15, 1
      %s170 = smul.addr %s169, 8
      %s171 = smul.addr %s170, 8
      %s172 = scalar_lea.vmem %s0, %s171
      %p173 = pneg %p36
      %p174 = pneg %p33
      %p175 = pneg %p57
      %p176 = pneg %p54
      %p177 = pneg %p78
      %p178 = pneg %p75
      %p179 = pneg %p99
      %p180 = pneg %p96
      %p181 = pneg %p125
      %p182 = pneg %p122
      %p183 = scmp.lt.s32.totalorder %s15, 1
      %s184 = scalar_select %p183, %s15, 1
      %s185 = smul.addr %s184, 6
      %s186 = smul.addr %s185, 8
      %s187 = scalar_lea.vmem %s4, %s186
      %p188 = scmp.lt.s32.totalorder %s15, 1
      %s189 = scalar_select %p188, %s15, 1
      %s190 = smul.addr %s189, 8
      %s191 = smul.addr %s190, 8
      %s192 = scalar_lea.vmem %s0, %s191
      %p193 = scmp.lt.s32.totalorder %s15, 1
      %s194 = scalar_select %p193, %s15, 1
      %s195 = smul.addr %s194, 6
      %s196 = smul.addr %s195, 8
      %s197 = scalar_lea.vmem %s4, %s196
      %v198 = vld [vmem:[%s192] sm:$0xff]
      %v199 = vld [vmem:[%s192 + $0x8] sm:$0xff]
      %v200 = vld [vmem:[%s192 + $0x10] sm:$0xff]
      %v201 = vld [vmem:[%s192 + $0x20] sm:$0xf]
      %v202 = vld [vmem:[%s192 + $0x28] sm:$0xf]
      %v203 = vld [vmem:[%s192 + $0x30] sm:$0xf]
      %v204 = vld [vmem:[%s1] sm:$0xff]
      %v205 = vld [vmem:[%s1 + $0x8] sm:$0xf]
      %s206 = scalar_lea.vmem %s1, 16
      %v207 = vld [vmem:[%s206] sm:$0xff]
      %v208 = vld [vmem:[%s206 + $0x8] sm:$0xf]
      %215 = vrot.lane.b32.xlu0 %v198, 127
      %v216 = vpop.permute.xlu0 %215
      %217 = vrot.lane.b32.xlu0 %v199, 127
      %v218 = vpop.permute.xlu0 %217
      %219 = vrot.lane.b32.xlu0 %v200, 127
      %v220 = vpop.permute.xlu0 %219
      %221 = vrot.lane.b32.xlu0 %v201, 127
      %v222 = vpop.permute.xlu0 %221
      %223 = vrot.lane.b32.xlu0 %v202, 127
      %v224 = vpop.permute.xlu0 %223
      %225 = vrot.lane.b32.xlu0 %v203, 127
      %v226 = vpop.permute.xlu0 %225
      %vm227 = vcmask 1039360
      %v228 = vsel %vm227, %v216, %v218
      %v229 = vsel %vm227, %v218, %v220
      %v230 = vsel %vm227, %v222, %v224
      %v231 = vsel %vm227, %v224, %v226
      %vm235 = vcmask 97280
      %v237 = vsel %vm235, %v207, 0
      %v240 = vsel %vm235, %v208, 0
      %vm242 = vcmask 1043456
      %v243 = vsel %vm242, %v230, 0
      %v245 = vsel %vm242, %v231, 0
      %v247 = vsel %vm242, %v226, 0
      %249 = vmatprep.subr.mxu0 %v229
      %250 = vmatpush1.msra.mxu0 %v228
      %251 = vmatprep.subr.mxu0 %v245
      %252 = vmatpush1.msra.mxu0 %v243
      %253 = vmatprep.subr.mxu0 0.0
      %254 = vmatpush1.msra.mxu0 0.0
      %255 = vmatprep.subr.mxu0 0.0
      %256 = vmatpush1.msra.mxu0 0.0
      %257 = vmatprep.subr.mxu0 0.0
      %258 = vmatpush1.msra.mxu0 0.0
      %259 = vmatprep.subr.mxu0 0.0
      %260 = vmatpush1.msra.mxu0 0.0
      %261 = vmatprep.subr.mxu0 0.0
      %262 = vmatpush1.msra.mxu0 0.0
      %263 = vmatprep.subr.mxu0 0.0
      %264 = vmatpush1.msra.mxu0 0.0
      %265 = vmatprep.subr.mxu0 0.0
      %266 = vmatpush1.msra.mxu0 0.0
      %267 = vmatprep.subr.mxu0 0.0
      %268 = vmatpush1.msra.mxu0 0.0
      %269 = vmatprep.subr.mxu0 0.0
      %270 = vmatpush1.msra.mxu0 0.0
      %271 = vmatprep.subr.mxu0 0.0
      %272 = vmatpush1.msra.mxu0 0.0
      %273 = vmatprep.subr.mxu0 0.0
      %274 = vmatpush1.msra.mxu0 0.0
      %275 = vmatprep.subr.mxu0 0.0
      %276 = vmatpush1.msra.mxu0 0.0
      %277 = vmatprep.subr.mxu0 0.0
      %278 = vmatpush1.msra.mxu0 0.0
      %279 = vmatprep.subr.mxu0 0.0
      %280 = vmatpush1.msra.mxu0 0.0
      %281 = vmatprep.subr.mxu0 0.0
      %282 = vmatpush1.msra.mxu0 0.0
      %283 = vmatprep.subr.mxu0 0.0
      %284 = vmatpush1.msra.mxu0 0.0
      %285 = vmatprep.subr.mxu0 0.0
      %286 = vmatpush1.msra.mxu0 0.0
      %287 = vmatprep.subr.mxu0 0.0
      %288 = vmatpush1.msra.mxu0 0.0
      %289 = vmatprep.subr.mxu0 0.0
      %290 = vmatpush1.msra.mxu0 0.0
      %291 = vmatprep.subr.mxu0 0.0
      %292 = vmatpush1.msra.mxu0 0.0
      %293 = vmatprep.subr.mxu0 0.0
      %294 = vmatpush1.msra.mxu0 0.0
      %295 = vmatprep.subr.mxu0 0.0
      %296 = vmatpush1.msra.mxu0 0.0
      %297 = vmatprep.subr.mxu0 0.0
      %298 = vmatpush1.msra.mxu0 0.0
      %299 = vmatprep.subr.mxu0 0.0
      %300 = vmatpush1.msra.mxu0 0.0
      %301 = vmatprep.subr.mxu0 0.0
      %302 = vmatpush1.msra.mxu0 0.0
      %303 = vmatprep.subr.mxu0 0.0
      %304 = vmatpush1.msra.mxu0 0.0
      %305 = vmatprep.subr.mxu0 0.0
      %306 = vmatpush1.msra.mxu0 0.0
      %307 = vmatprep.subr.mxu0 0.0
      %308 = vmatpush1.msra.mxu0 0.0
      %309 = vmatprep.subr.mxu0 0.0
      %310 = vmatpush1.msra.mxu0 0.0
      %311 = vmatprep.subr.mxu0 0.0
      %312 = vmatpush1.msra.mxu0 0.0
      %313 = vmatprep.mubr.f32.mxu0 0.0
      %314 = vmatmul.mubr.f32.gmra.mrb[0].mxu0 %v237
      %v315 = vpop.f32.mrb[0].mxu0
      %v316 = vadd.f32 0.0, %v315
      %v317 = vpop.f32.mrb[0].mxu0
      %v318 = vadd.f32 0.0, %v317
      %319 = vmatprep.mubr.f32.mxu0 0.0
      %320 = vmatmul.mubr.f32.gmra.mrb[0].mxu0 %v240
      %v321 = vpop.f32.mrb[0].mxu0
      %v322 = vadd.f32 0.0, %v321
      %v323 = vpop.f32.mrb[0].mxu0
      %v324 = vadd.f32 0.0, %v323
      %325 = vdwg.mxu0
      %326 = vmatprep.subr.mxu0 0.0
      %327 = vmatpush1.msra.mxu0 %v220
      %328 = vmatprep.subr.mxu0 0.0
      %329 = vmatpush1.msra.mxu0 %v247
      %330 = vmatprep.subr.mxu0 0.0
      %331 = vmatpush1.msra.mxu0 0.0
      %332 = vmatprep.subr.mxu0 0.0
      %333 = vmatpush1.msra.mxu0 0.0
      %334 = vmatprep.subr.mxu0 0.0
      %335 = vmatpush1.msra.mxu0 0.0
      %336 = vmatprep.subr.mxu0 0.0
      %337 = vmatpush1.msra.mxu0 0.0
      %338 = vmatprep.subr.mxu0 0.0
      %339 = vmatpush1.msra.mxu0 0.0
      %340 = vmatprep.subr.mxu0 0.0
      %341 = vmatpush1.msra.mxu0 0.0
      %342 = vmatprep.subr.mxu0 0.0
      %343 = vmatpush1.msra.mxu0 0.0
      %344 = vmatprep.subr.mxu0 0.0
      %345 = vmatpush1.msra.mxu0 0.0
      %346 = vmatprep.subr.mxu0 0.0
      %347 = vmatpush1.msra.mxu0 0.0
      %348 = vmatprep.subr.mxu0 0.0
      %349 = vmatpush1.msra.mxu0 0.0
      %350 = vmatprep.subr.mxu0 0.0
      %351 = vmatpush1.msra.mxu0 0.0
      %352 = vmatprep.subr.mxu0 0.0
      %353 = vmatpush1.msra.mxu0 0.0
      %354 = vmatprep.subr.mxu0 0.0
      %355 = vmatpush1.msra.mxu0 0.0
      %356 = vmatprep.subr.mxu0 0.0
      %357 = vmatpush1.msra.mxu0 0.0
      %358 = vmatprep.subr.mxu0 0.0
      %359 = vmatpush1.msra.mxu0 0.0
      %360 = vmatprep.subr.mxu0 0.0
      %361 = vmatpush1.msra.mxu0 0.0
      %362 = vmatprep.subr.mxu0 0.0
      %363 = vmatpush1.msra.mxu0 0.0
      %364 = vmatprep.subr.mxu0 0.0
      %365 = vmatpush1.msra.mxu0 0.0
      %366 = vmatprep.subr.mxu0 0.0
      %367 = vmatpush1.msra.mxu0 0.0
      %368 = vmatprep.subr.mxu0 0.0
      %369 = vmatpush1.msra.mxu0 0.0
      %370 = vmatprep.subr.mxu0 0.0
      %371 = vmatpush1.msra.mxu0 0.0
      %372 = vmatprep.subr.mxu0 0.0
      %373 = vmatpush1.msra.mxu0 0.0
      %374 = vmatprep.subr.mxu0 0.0
      %375 = vmatpush1.msra.mxu0 0.0
      %376 = vmatprep.subr.mxu0 0.0
      %377 = vmatpush1.msra.mxu0 0.0
      %378 = vmatprep.subr.mxu0 0.0
      %379 = vmatpush1.msra.mxu0 0.0
      %380 = vmatprep.subr.mxu0 0.0
      %381 = vmatpush1.msra.mxu0 0.0
      %382 = vmatprep.subr.mxu0 0.0
      %383 = vmatpush1.msra.mxu0 0.0
      %384 = vmatprep.subr.mxu0 0.0
      %385 = vmatpush1.msra.mxu0 0.0
      %386 = vmatprep.subr.mxu0 0.0
      %387 = vmatpush1.msra.mxu0 0.0
      %388 = vmatprep.subr.mxu0 0.0
      %389 = vmatpush1.msra.mxu0 0.0
      %390 = vmatprep.mubr.f32.mxu0 0.0
      %391 = vmatmul.mubr.f32.gmra.mrb[0].mxu0 %v237
      %v392 = vpop.f32.mrb[0].mxu0
      %v393 = vadd.f32 0.0, %v392
      %v394 = vpop.f32.mrb[0].mxu0
      %395 = vmatprep.mubr.f32.mxu0 0.0
      %396 = vmatmul.mubr.f32.gmra.mrb[0].mxu0 %v240
      %v397 = vpop.f32.mrb[0].mxu0
      %v398 = vadd.f32 0.0, %v397
      %v399 = vpop.f32.mrb[0].mxu0
      %400 = vdwg.mxu0
      %v402 = vsel %vm235, %v204, 0
      %v405 = vsel %vm235, %v205, 0
      %v407 = vsel %vm242, %v201, 0
      %v409 = vsel %vm242, %v202, 0
      %v411 = vsel %vm242, %v203, 0
      %413 = vmatprep.subr.mxu0 %v199
      %414 = vmatpush1.msra.mxu0 %v198
      %415 = vmatprep.subr.mxu0 %v409
      %416 = vmatpush1.msra.mxu0 %v407
      %417 = vmatprep.subr.mxu0 0.0
      %418 = vmatpush1.msra.mxu0 0.0
      %419 = vmatprep.subr.mxu0 0.0
      %420 = vmatpush1.msra.mxu0 0.0
      %421 = vmatprep.subr.mxu0 0.0
      %422 = vmatpush1.msra.mxu0 0.0
      %423 = vmatprep.subr.mxu0 0.0
      %424 = vmatpush1.msra.mxu0 0.0
      %425 = vmatprep.subr.mxu0 0.0
      %426 = vmatpush1.msra.mxu0 0.0
      %427 = vmatprep.subr.mxu0 0.0
      %428 = vmatpush1.msra.mxu0 0.0
      %429 = vmatprep.subr.mxu0 0.0
      %430 = vmatpush1.msra.mxu0 0.0
      %431 = vmatprep.subr.mxu0 0.0
      %432 = vmatpush1.msra.mxu0 0.0
      %433 = vmatprep.subr.mxu0 0.0
      %434 = vmatpush1.msra.mxu0 0.0
      %435 = vmatprep.subr.mxu0 0.0
      %436 = vmatpush1.msra.mxu0 0.0
      %437 = vmatprep.subr.mxu0 0.0
      %438 = vmatpush1.msra.mxu0 0.0
      %439 = vmatprep.subr.mxu0 0.0
      %440 = vmatpush1.msra.mxu0 0.0
      %441 = vmatprep.subr.mxu0 0.0
      %442 = vmatpush1.msra.mxu0 0.0
      %443 = vmatprep.subr.mxu0 0.0
      %444 = vmatpush1.msra.mxu0 0.0
      %445 = vmatprep.subr.mxu0 0.0
      %446 = vmatpush1.msra.mxu0 0.0
      %447 = vmatprep.subr.mxu0 0.0
      %448 = vmatpush1.msra.mxu0 0.0
      %449 = vmatprep.subr.mxu0 0.0
      %450 = vmatpush1.msra.mxu0 0.0
      %451 = vmatprep.subr.mxu0 0.0
      %452 = vmatpush1.msra.mxu0 0.0
      %453 = vmatprep.subr.mxu0 0.0
      %454 = vmatpush1.msra.mxu0 0.0
      %455 = vmatprep.subr.mxu0 0.0
      %456 = vmatpush1.msra.mxu0 0.0
      %457 = vmatprep.subr.mxu0 0.0
      %458 = vmatpush1.msra.mxu0 0.0
      %459 = vmatprep.subr.mxu0 0.0
      %460 = vmatpush1.msra.mxu0 0.0
      %461 = vmatprep.subr.mxu0 0.0
      %462 = vmatpush1.msra.mxu0 0.0
      %463 = vmatprep.subr.mxu0 0.0
      %464 = vmatpush1.msra.mxu0 0.0
      %465 = vmatprep.subr.mxu0 0.0
      %466 = vmatpush1.msra.mxu0 0.0
      %467 = vmatprep.subr.mxu0 0.0
      %468 = vmatpush1.msra.mxu0 0.0
      %469 = vmatprep.subr.mxu0 0.0
      %470 = vmatpush1.msra.mxu0 0.0
      %471 = vmatprep.subr.mxu0 0.0
      %472 = vmatpush1.msra.mxu0 0.0
      %473 = vmatprep.subr.mxu0 0.0
      %474 = vmatpush1.msra.mxu0 0.0
      %475 = vmatprep.subr.mxu0 0.0
      %476 = vmatpush1.msra.mxu0 0.0
      %477 = vmatprep.mubr.f32.mxu0 0.0
      %478 = vmatmul.mubr.f32.gmra.mrb[0].mxu0 %v402
      %v479 = vpop.f32.mrb[0].mxu0
      %v480 = vadd.f32 %v316, %v479
      %v481 = vpop.f32.mrb[0].mxu0
      %v482 = vadd.f32 %v318, %v481
      %483 = vmatprep.mubr.f32.mxu0 0.0
      %484 = vmatmul.mubr.f32.gmra.mrb[0].mxu0 %v405
      %v485 = vpop.f32.mrb[0].mxu0
      %v486 = vadd.f32 %v322, %v485
      %v487 = vpop.f32.mrb[0].mxu0
      %v488 = vadd.f32 %v324, %v487
      %489 = vdwg.mxu0
      %490 = vmatprep.subr.mxu0 0.0
      %491 = vmatpush1.msra.mxu0 %v200
      %492 = vmatprep.subr.mxu0 0.0
      %493 = vmatpush1.msra.mxu0 %v411
      %494 = vmatprep.subr.mxu0 0.0
      %495 = vmatpush1.msra.mxu0 0.0
      %496 = vmatprep.subr.mxu0 0.0
      %497 = vmatpush1.msra.mxu0 0.0
      %498 = vmatprep.subr.mxu0 0.0
      %499 = vmatpush1.msra.mxu0 0.0
      %500 = vmatprep.subr.mxu0 0.0
      %501 = vmatpush1.msra.mxu0 0.0
      %502 = vmatprep.subr.mxu0 0.0
      %503 = vmatpush1.msra.mxu0 0.0
      %504 = vmatprep.subr.mxu0 0.0
      %505 = vmatpush1.msra.mxu0 0.0
      %506 = vmatprep.subr.mxu0 0.0
      %507 = vmatpush1.msra.mxu0 0.0
      %508 = vmatprep.subr.mxu0 0.0
      %509 = vmatpush1.msra.mxu0 0.0
      %510 = vmatprep.subr.mxu0 0.0
      %511 = vmatpush1.msra.mxu0 0.0
      %512 = vmatprep.subr.mxu0 0.0
      %513 = vmatpush1.msra.mxu0 0.0
      %514 = vmatprep.subr.mxu0 0.0
      %515 = vmatpush1.msra.mxu0 0.0
      %516 = vmatprep.subr.mxu0 0.0
      %517 = vmatpush1.msra.mxu0 0.0
      %518 = vmatprep.subr.mxu0 0.0
      %519 = vmatpush1.msra.mxu0 0.0
      %520 = vmatprep.subr.mxu0 0.0
      %521 = vmatpush1.msra.mxu0 0.0
      %522 = vmatprep.subr.mxu0 0.0
      %523 = vmatpush1.msra.mxu0 0.0
      %524 = vmatprep.subr.mxu0 0.0
      %525 = vmatpush1.msra.mxu0 0.0
      %526 = vmatprep.subr.mxu0 0.0
      %527 = vmatpush1.msra.mxu0 0.0
      %528 = vmatprep.subr.mxu0 0.0
      %529 = vmatpush1.msra.mxu0 0.0
      %530 = vmatprep.subr.mxu0 0.0
      %531 = vmatpush1.msra.mxu0 0.0
      %532 = vmatprep.subr.mxu0 0.0
      %533 = vmatpush1.msra.mxu0 0.0
      %534 = vmatprep.subr.mxu0 0.0
      %535 = vmatpush1.msra.mxu0 0.0
      %536 = vmatprep.subr.mxu0 0.0
      %537 = vmatpush1.msra.mxu0 0.0
      %538 = vmatprep.subr.mxu0 0.0
      %539 = vmatpush1.msra.mxu0 0.0
      %540 = vmatprep.subr.mxu0 0.0
      %541 = vmatpush1.msra.mxu0 0.0
      %542 = vmatprep.subr.mxu0 0.0
      %543 = vmatpush1.msra.mxu0 0.0
      %544 = vmatprep.subr.mxu0 0.0
      %545 = vmatpush1.msra.mxu0 0.0
      %546 = vmatprep.subr.mxu0 0.0
      %547 = vmatpush1.msra.mxu0 0.0
      %548 = vmatprep.subr.mxu0 0.0
      %549 = vmatpush1.msra.mxu0 0.0
      %550 = vmatprep.subr.mxu0 0.0
      %551 = vmatpush1.msra.mxu0 0.0
      %552 = vmatprep.subr.mxu0 0.0
      %553 = vmatpush1.msra.mxu0 0.0
      %554 = vmatprep.mubr.f32.mxu0 0.0
      %555 = vmatmul.mubr.f32.gmra.mrb[0].mxu0 %v402
      %v556 = vpop.f32.mrb[0].mxu0
      %v557 = vadd.f32 %v393, %v556
      %v558 = vpop.f32.mrb[0].mxu0
      %559 = vmatprep.mubr.f32.mxu0 0.0
      %560 = vmatmul.mubr.f32.gmra.mrb[0].mxu0 %v405
      %v561 = vpop.f32.mrb[0].mxu0
      %v562 = vadd.f32 %v398, %v561
      %v563 = vpop.f32.mrb[0].mxu0
      %564 = vdwg.mxu0
      %s565 = scalar_lea.vmem %s1, 32
      %v566 = vld [vmem:[%s565] sm:$0xff]
      %v567 = vld [vmem:[%s565 + $0x8] sm:$0xf]
      %568 = vrot.lane.b32.xlu0 %v198, 126
      %v569 = vpop.permute.xlu0 %568
      %570 = vrot.lane.b32.xlu0 %v199, 126
      %v571 = vpop.permute.xlu0 %570
      %572 = vrot.lane.b32.xlu0 %v200, 126
      %v573 = vpop.permute.xlu0 %572
      %574 = vrot.lane.b32.xlu0 %v201, 126
      %v575 = vpop.permute.xlu0 %574
      %576 = vrot.lane.b32.xlu0 %v202, 126
      %v577 = vpop.permute.xlu0 %576
      %578 = vrot.lane.b32.xlu0 %v203, 126
      %v579 = vpop.permute.xlu0 %578
      %vm580 = vcmask 1031168
      %v581 = vsel %vm580, %v569, %v571
      %v582 = vsel %vm580, %v571, %v573
      %v583 = vsel %vm580, %v575, %v577
      %v584 = vsel %vm580, %v577, %v579
      %v589 = vsel %vm235, %v566, 0
      %v592 = vsel %vm235, %v567, 0
      %v594 = vsel %vm242, %v583, 0
      %v596 = vsel %vm242, %v584, 0
      %v598 = vsel %vm242, %v579, 0
      %600 = vmatprep.subr.mxu0 %v582
      %601 = vmatpush1.msra.mxu0 %v581
      %602 = vmatprep.subr.mxu0 %v596
      %603 = vmatpush1.msra.mxu0 %v594
      %604 = vmatprep.subr.mxu0 0.0
      %605 = vmatpush1.msra.mxu0 0.0
      %606 = vmatprep.subr.mxu0 0.0
      %607 = vmatpush1.msra.mxu0 0.0
      %608 = vmatprep.subr.mxu0 0.0
      %609 = vmatpush1.msra.mxu0 0.0
      %610 = vmatprep.subr.mxu0 0.0
      %611 = vmatpush1.msra.mxu0 0.0
      %612 = vmatprep.subr.mxu0 0.0
      %613 = vmatpush1.msra.mxu0 0.0
      %614 = vmatprep.subr.mxu0 0.0
      %615 = vmatpush1.msra.mxu0 0.0
      %616 = vmatprep.subr.mxu0 0.0
      %617 = vmatpush1.msra.mxu0 0.0
      %618 = vmatprep.subr.mxu0 0.0
      %619 = vmatpush1.msra.mxu0 0.0
      %620 = vmatprep.subr.mxu0 0.0
      %621 = vmatpush1.msra.mxu0 0.0
      %622 = vmatprep.subr.mxu0 0.0
      %623 = vmatpush1.msra.mxu0 0.0
      %624 = vmatprep.subr.mxu0 0.0
      %625 = vmatpush1.msra.mxu0 0.0
      %626 = vmatprep.subr.mxu0 0.0
      %627 = vmatpush1.msra.mxu0 0.0
      %628 = vmatprep.subr.mxu0 0.0
      %629 = vmatpush1.msra.mxu0 0.0
      %630 = vmatprep.subr.mxu0 0.0
      %631 = vmatpush1.msra.mxu0 0.0
      %632 = vmatprep.subr.mxu0 0.0
      %633 = vmatpush1.msra.mxu0 0.0
      %634 = vmatprep.subr.mxu0 0.0
      %635 = vmatpush1.msra.mxu0 0.0
      %636 = vmatprep.subr.mxu0 0.0
      %637 = vmatpush1.msra.mxu0 0.0
      %638 = vmatprep.subr.mxu0 0.0
      %639 = vmatpush1.msra.mxu0 0.0
      %640 = vmatprep.subr.mxu0 0.0
      %641 = vmatpush1.msra.mxu0 0.0
      %642 = vmatprep.subr.mxu0 0.0
      %643 = vmatpush1.msra.mxu0 0.0
      %644 = vmatprep.subr.mxu0 0.0
      %645 = vmatpush1.msra.mxu0 0.0
      %646 = vmatprep.subr.mxu0 0.0
      %647 = vmatpush1.msra.mxu0 0.0
      %648 = vmatprep.subr.mxu0 0.0
      %649 = vmatpush1.msra.mxu0 0.0
      %650 = vmatprep.subr.mxu0 0.0
      %651 = vmatpush1.msra.mxu0 0.0
      %652 = vmatprep.subr.mxu0 0.0
      %653 = vmatpush1.msra.mxu0 0.0
      %654 = vmatprep.subr.mxu0 0.0
      %655 = vmatpush1.msra.mxu0 0.0
      %656 = vmatprep.subr.mxu0 0.0
      %657 = vmatpush1.msra.mxu0 0.0
      %658 = vmatprep.subr.mxu0 0.0
      %659 = vmatpush1.msra.mxu0 0.0
      %660 = vmatprep.subr.mxu0 0.0
      %661 = vmatpush1.msra.mxu0 0.0
      %662 = vmatprep.subr.mxu0 0.0
      %663 = vmatpush1.msra.mxu0 0.0
      %664 = vmatprep.mubr.f32.mxu0 0.0
      %665 = vmatmul.mubr.f32.gmra.mrb[0].mxu0 %v589
      %v666 = vpop.f32.mrb[0].mxu0
      %v667 = vadd.f32 0.0, %v666
      %v668 = vpop.f32.mrb[0].mxu0
      %v669 = vadd.f32 0.0, %v668
      %670 = vmatprep.mubr.f32.mxu0 0.0
      %671 = vmatmul.mubr.f32.gmra.mrb[0].mxu0 %v592
      %v672 = vpop.f32.mrb[0].mxu0
      %v673 = vadd.f32 0.0, %v672
      %v674 = vpop.f32.mrb[0].mxu0
      %v675 = vadd.f32 0.0, %v674
      %676 = vdwg.mxu0
      %677 = vmatprep.subr.mxu0 0.0
      %678 = vmatpush1.msra.mxu0 %v573
      %679 = vmatprep.subr.mxu0 0.0
      %680 = vmatpush1.msra.mxu0 %v598
      %681 = vmatprep.subr.mxu0 0.0
      %682 = vmatpush1.msra.mxu0 0.0
      %683 = vmatprep.subr.mxu0 0.0
      %684 = vmatpush1.msra.mxu0 0.0
      %685 = vmatprep.subr.mxu0 0.0
      %686 = vmatpush1.msra.mxu0 0.0
      %687 = vmatprep.subr.mxu0 0.0
      %688 = vmatpush1.msra.mxu0 0.0
      %689 = vmatprep.subr.mxu0 0.0
      %690 = vmatpush1.msra.mxu0 0.0
      %691 = vmatprep.subr.mxu0 0.0
      %692 = vmatpush1.msra.mxu0 0.0
      %693 = vmatprep.subr.mxu0 0.0
      %694 = vmatpush1.msra.mxu0 0.0
      %695 = vmatprep.subr.mxu0 0.0
      %696 = vmatpush1.msra.mxu0 0.0
      %697 = vmatprep.subr.mxu0 0.0
      %698 = vmatpush1.msra.mxu0 0.0
      %699 = vmatprep.subr.mxu0 0.0
      %700 = vmatpush1.msra.mxu0 0.0
      %701 = vmatprep.subr.mxu0 0.0
      %702 = vmatpush1.msra.mxu0 0.0
      %703 = vmatprep.subr.mxu0 0.0
      %704 = vmatpush1.msra.mxu0 0.0
      %705 = vmatprep.subr.mxu0 0.0
      %706 = vmatpush1.msra.mxu0 0.0
      %707 = vmatprep.subr.mxu0 0.0
      %708 = vmatpush1.msra.mxu0 0.0
      %709 = vmatprep.subr.mxu0 0.0
      %710 = vmatpush1.msra.mxu0 0.0
      %711 = vmatprep.subr.mxu0 0.0
      %712 = vmatpush1.msra.mxu0 0.0
      %713 = vmatprep.subr.mxu0 0.0
      %714 = vmatpush1.msra.mxu0 0.0
      %715 = vmatprep.subr.mxu0 0.0
      %716 = vmatpush1.msra.mxu0 0.0
      %717 = vmatprep.subr.mxu0 0.0
      %718 = vmatpush1.msra.mxu0 0.0
      %719 = vmatprep.subr.mxu0 0.0
      %720 = vmatpush1.msra.mxu0 0.0
      %721 = vmatprep.subr.mxu0 0.0
      %722 = vmatpush1.msra.mxu0 0.0
      %723 = vmatprep.subr.mxu0 0.0
      %724 = vmatpush1.msra.mxu0 0.0
      %725 = vmatprep.subr.mxu0 0.0
      %726 = vmatpush1.msra.mxu0 0.0
      %727 = vmatprep.subr.mxu0 0.0
      %728 = vmatpush1.msra.mxu0 0.0
      %729 = vmatprep.subr.mxu0 0.0
      %730 = vmatpush1.msra.mxu0 0.0
      %731 = vmatprep.subr.mxu0 0.0
      %732 = vmatpush1.msra.mxu0 0.0
      %733 = vmatprep.subr.mxu0 0.0
      %734 = vmatpush1.msra.mxu0 0.0
      %735 = vmatprep.subr.mxu0 0.0
      %736 = vmatpush1.msra.mxu0 0.0
      %737 = vmatprep.subr.mxu0 0.0
      %738 = vmatpush1.msra.mxu0 0.0
      %739 = vmatprep.subr.mxu0 0.0
      %740 = vmatpush1.msra.mxu0 0.0
      %741 = vmatprep.mubr.f32.mxu0 0.0
      %742 = vmatmul.mubr.f32.gmra.mrb[0].mxu0 %v589
      %v743 = vpop.f32.mrb[0].mxu0
      %v744 = vadd.f32 0.0, %v743
      %v745 = vpop.f32.mrb[0].mxu0
      %746 = vmatprep.mubr.f32.mxu0 0.0
      %747 = vmatmul.mubr.f32.gmra.mrb[0].mxu0 %v592
      %v748 = vpop.f32.mrb[0].mxu0
      %v749 = vadd.f32 0.0, %v748
      %v750 = vpop.f32.mrb[0].mxu0
      %751 = vdwg.mxu0
      %v752 = vadd.f32 %v480, %v667
      %v753 = vadd.f32 %v482, %v669
      %v754 = vadd.f32 %v557, %v744
      %v755 = vadd.f32 %v486, %v673
      %v756 = vadd.f32 %v488, %v675
      %v757 = vadd.f32 %v562, %v749
      %s758 = scalar_lea.vmem %s1, 48
      %v759 = vld [vmem:[%s758] sm:$0xff]
      %v760 = vld [vmem:[%s758 + $0x8] sm:$0xf]
      %761 = vrot.lane.b32.xlu0 %v198, 125
      %v762 = vpop.permute.xlu0 %761
      %763 = vrot.lane.b32.xlu0 %v199, 125
      %v764 = vpop.permute.xlu0 %763
      %765 = vrot.lane.b32.xlu0 %v200, 125
      %v766 = vpop.permute.xlu0 %765
      %767 = vrot.lane.b32.xlu0 %v201, 125
      %v768 = vpop.permute.xlu0 %767
      %769 = vrot.lane.b32.xlu0 %v202, 125
      %v770 = vpop.permute.xlu0 %769
      %771 = vrot.lane.b32.xlu0 %v203, 125
      %v772 = vpop.permute.xlu0 %771
      %vm773 = vcmask 1022976
      %v774 = vsel %vm773, %v762, %v764
      %v775 = vsel %vm773, %v764, %v766
      %v776 = vsel %vm773, %v768, %v770
      %v777 = vsel %vm773, %v770, %v772
      %v782 = vsel %vm235, %v759, 0
      %v785 = vsel %vm235, %v760, 0
      %v787 = vsel %vm242, %v776, 0
      %v789 = vsel %vm242, %v777, 0
      %v791 = vsel %vm242, %v772, 0
      %793 = vmatprep.subr.mxu0 %v775
      %794 = vmatpush1.msra.mxu0 %v774
      %795 = vmatprep.subr.mxu0 %v789
      %796 = vmatpush1.msra.mxu0 %v787
      %797 = vmatprep.subr.mxu0 0.0
      %798 = vmatpush1.msra.mxu0 0.0
      %799 = vmatprep.subr.mxu0 0.0
      %800 = vmatpush1.msra.mxu0 0.0
      %801 = vmatprep.subr.mxu0 0.0
      %802 = vmatpush1.msra.mxu0 0.0
      %803 = vmatprep.subr.mxu0 0.0
      %804 = vmatpush1.msra.mxu0 0.0
      %805 = vmatprep.subr.mxu0 0.0
      %806 = vmatpush1.msra.mxu0 0.0
      %807 = vmatprep.subr.mxu0 0.0
      %808 = vmatpush1.msra.mxu0 0.0
      %809 = vmatprep.subr.mxu0 0.0
      %810 = vmatpush1.msra.mxu0 0.0
      %811 = vmatprep.subr.mxu0 0.0
      %812 = vmatpush1.msra.mxu0 0.0
      %813 = vmatprep.subr.mxu0 0.0
      %814 = vmatpush1.msra.mxu0 0.0
      %815 = vmatprep.subr.mxu0 0.0
      %816 = vmatpush1.msra.mxu0 0.0
      %817 = vmatprep.subr.mxu0 0.0
      %818 = vmatpush1.msra.mxu0 0.0
      %819 = vmatprep.subr.mxu0 0.0
      %820 = vmatpush1.msra.mxu0 0.0
      %821 = vmatprep.subr.mxu0 0.0
      %822 = vmatpush1.msra.mxu0 0.0
      %823 = vmatprep.subr.mxu0 0.0
      %824 = vmatpush1.msra.mxu0 0.0
      %825 = vmatprep.subr.mxu0 0.0
      %826 = vmatpush1.msra.mxu0 0.0
      %827 = vmatprep.subr.mxu0 0.0
      %828 = vmatpush1.msra.mxu0 0.0
      %829 = vmatprep.subr.mxu0 0.0
      %830 = vmatpush1.msra.mxu0 0.0
      %831 = vmatprep.subr.mxu0 0.0
      %832 = vmatpush1.msra.mxu0 0.0
      %833 = vmatprep.subr.mxu0 0.0
      %834 = vmatpush1.msra.mxu0 0.0
      %835 = vmatprep.subr.mxu0 0.0
      %836 = vmatpush1.msra.mxu0 0.0
      %837 = vmatprep.subr.mxu0 0.0
      %838 = vmatpush1.msra.mxu0 0.0
      %839 = vmatprep.subr.mxu0 0.0
      %840 = vmatpush1.msra.mxu0 0.0
      %841 = vmatprep.subr.mxu0 0.0
      %842 = vmatpush1.msra.mxu0 0.0
      %843 = vmatprep.subr.mxu0 0.0
      %844 = vmatpush1.msra.mxu0 0.0
      %845 = vmatprep.subr.mxu0 0.0
      %846 = vmatpush1.msra.mxu0 0.0
      %847 = vmatprep.subr.mxu0 0.0
      %848 = vmatpush1.msra.mxu0 0.0
      %849 = vmatprep.subr.mxu0 0.0
      %850 = vmatpush1.msra.mxu0 0.0
      %851 = vmatprep.subr.mxu0 0.0
      %852 = vmatpush1.msra.mxu0 0.0
      %853 = vmatprep.subr.mxu0 0.0
      %854 = vmatpush1.msra.mxu0 0.0
      %855 = vmatprep.subr.mxu0 0.0
      %856 = vmatpush1.msra.mxu0 0.0
      %857 = vmatprep.mubr.f32.mxu0 0.0
      %858 = vmatmul.mubr.f32.gmra.mrb[0].mxu0 %v782
      %v859 = vpop.f32.mrb[0].mxu0
      %v860 = vadd.f32 0.0, %v859
      %v861 = vpop.f32.mrb[0].mxu0
      %v862 = vadd.f32 0.0, %v861
      %863 = vmatprep.mubr.f32.mxu0 0.0
      %864 = vmatmul.mubr.f32.gmra.mrb[0].mxu0 %v785
      %v865 = vpop.f32.mrb[0].mxu0
      %v866 = vadd.f32 0.0, %v865
      %v867 = vpop.f32.mrb[0].mxu0
      %v868 = vadd.f32 0.0, %v867
      %869 = vdwg.mxu0
      %870 = vmatprep.subr.mxu0 0.0
      %871 = vmatpush1.msra.mxu0 %v766
      %872 = vmatprep.subr.mxu0 0.0
      %873 = vmatpush1.msra.mxu0 %v791
      %874 = vmatprep.subr.mxu0 0.0
      %875 = vmatpush1.msra.mxu0 0.0
      %876 = vmatprep.subr.mxu0 0.0
      %877 = vmatpush1.msra.mxu0 0.0
      %878 = vmatprep.subr.mxu0 0.0
      %879 = vmatpush1.msra.mxu0 0.0
      %880 = vmatprep.subr.mxu0 0.0
      %881 = vmatpush1.msra.mxu0 0.0
      %882 = vmatprep.subr.mxu0 0.0
      %883 = vmatpush1.msra.mxu0 0.0
      %884 = vmatprep.subr.mxu0 0.0
      %885 = vmatpush1.msra.mxu0 0.0
      %886 = vmatprep.subr.mxu0 0.0
      %887 = vmatpush1.msra.mxu0 0.0
      %888 = vmatprep.subr.mxu0 0.0
      %889 = vmatpush1.msra.mxu0 0.0
      %890 = vmatprep.subr.mxu0 0.0
      %891 = vmatpush1.msra.mxu0 0.0
      %892 = vmatprep.subr.mxu0 0.0
      %893 = vmatpush1.msra.mxu0 0.0
      %894 = vmatprep.subr.mxu0 0.0
      %895 = vmatpush1.msra.mxu0 0.0
      %896 = vmatprep.subr.mxu0 0.0
      %897 = vmatpush1.msra.mxu0 0.0
      %898 = vmatprep.subr.mxu0 0.0
      %899 = vmatpush1.msra.mxu0 0.0
      %900 = vmatprep.subr.mxu0 0.0
      %901 = vmatpush1.msra.mxu0 0.0
      %902 = vmatprep.subr.mxu0 0.0
      %903 = vmatpush1.msra.mxu0 0.0
      %904 = vmatprep.subr.mxu0 0.0
      %905 = vmatpush1.msra.mxu0 0.0
      %906 = vmatprep.subr.mxu0 0.0
      %907 = vmatpush1.msra.mxu0 0.0
      %908 = vmatprep.subr.mxu0 0.0
      %909 = vmatpush1.msra.mxu0 0.0
      %910 = vmatprep.subr.mxu0 0.0
      %911 = vmatpush1.msra.mxu0 0.0
      %912 = vmatprep.subr.mxu0 0.0
      %913 = vmatpush1.msra.mxu0 0.0
      %914 = vmatprep.subr.mxu0 0.0
      %915 = vmatpush1.msra.mxu0 0.0
      %916 = vmatprep.subr.mxu0 0.0
      %917 = vmatpush1.msra.mxu0 0.0
      %918 = vmatprep.subr.mxu0 0.0
      %919 = vmatpush1.msra.mxu0 0.0
      %920 = vmatprep.subr.mxu0 0.0
      %921 = vmatpush1.msra.mxu0 0.0
      %922 = vmatprep.subr.mxu0 0.0
      %923 = vmatpush1.msra.mxu0 0.0
      %924 = vmatprep.subr.mxu0 0.0
      %925 = vmatpush1.msra.mxu0 0.0
      %926 = vmatprep.subr.mxu0 0.0
      %927 = vmatpush1.msra.mxu0 0.0
      %928 = vmatprep.subr.mxu0 0.0
      %929 = vmatpush1.msra.mxu0 0.0
      %930 = vmatprep.subr.mxu0 0.0
      %931 = vmatpush1.msra.mxu0 0.0
      %932 = vmatprep.subr.mxu0 0.0
      %933 = vmatpush1.msra.mxu0 0.0
      %934 = vmatprep.mubr.f32.mxu0 0.0
      %935 = vmatmul.mubr.f32.gmra.mrb[0].mxu0 %v782
      %v936 = vpop.f32.mrb[0].mxu0
      %v937 = vadd.f32 0.0, %v936
      %v938 = vpop.f32.mrb[0].mxu0
      %939 = vmatprep.mubr.f32.mxu0 0.0
      %940 = vmatmul.mubr.f32.gmra.mrb[0].mxu0 %v785
      %v941 = vpop.f32.mrb[0].mxu0
      %v942 = vadd.f32 0.0, %v941
      %v943 = vpop.f32.mrb[0].mxu0
      %944 = vdwg.mxu0
      %v945 = vadd.f32 %v752, %v860
      %v946 = vadd.f32 %v753, %v862
      %v947 = vadd.f32 %v754, %v937
      %v948 = vadd.f32 %v755, %v866
      %v949 = vadd.f32 %v756, %v868
      %v950 = vadd.f32 %v757, %v942
      %s951 = scalar_lea.vmem %s1, 64
      %v952 = vld [vmem:[%s951] sm:$0xff]
      %v953 = vld [vmem:[%s951 + $0x8] sm:$0xf]
      %954 = vrot.lane.b32.xlu0 %v198, 109
      %v955 = vpop.permute.xlu0 %954
      %956 = vrot.lane.b32.xlu0 %v199, 109
      %v957 = vpop.permute.xlu0 %956
      %958 = vrot.lane.b32.xlu0 %v200, 109
      %v959 = vpop.permute.xlu0 %958
      %960 = vrot.lane.b32.xlu0 %v201, 109
      %v961 = vpop.permute.xlu0 %960
      %962 = vrot.lane.b32.xlu0 %v202, 109
      %v963 = vpop.permute.xlu0 %962
      %964 = vrot.lane.b32.xlu0 %v203, 109
      %v965 = vpop.permute.xlu0 %964
      %vm966 = vcmask 891904
      %v967 = vsel %vm966, %v955, %v957
      %v968 = vsel %vm966, %v957, %v959
      %v969 = vsel %vm966, %v961, %v963
      %v970 = vsel %vm966, %v963, %v965
      %v975 = vsel %vm235, %v952, 0
      %v978 = vsel %vm235, %v953, 0
      %v980 = vsel %vm242, %v969, 0
      %v982 = vsel %vm242, %v970, 0
      %v984 = vsel %vm242, %v965, 0
      %986 = vmatprep.subr.mxu0 %v968
      %987 = vmatpush1.msra.mxu0 %v967
      %988 = vmatprep.subr.mxu0 %v982
      %989 = vmatpush1.msra.mxu0 %v980
      %990 = vmatprep.subr.mxu0 0.0
      %991 = vmatpush1.msra.mxu0 0.0
      %992 = vmatprep.subr.mxu0 0.0
      %993 = vmatpush1.msra.mxu0 0.0
      %994 = vmatprep.subr.mxu0 0.0
      %995 = vmatpush1.msra.mxu0 0.0
      %996 = vmatprep.subr.mxu0 0.0
      %997 = vmatpush1.msra.mxu0 0.0
      %998 = vmatprep.subr.mxu0 0.0
      %999 = vmatpush1.msra.mxu0 0.0
      %1000 = vmatprep.subr.mxu0 0.0
      %1001 = vmatpush1.msra.mxu0 0.0
      %1002 = vmatprep.subr.mxu0 0.0
      %1003 = vmatpush1.msra.mxu0 0.0
      %1004 = vmatprep.subr.mxu0 0.0
      %1005 = vmatpush1.msra.mxu0 0.0
      %1006 = vmatprep.subr.mxu0 0.0
      %1007 = vmatpush1.msra.mxu0 0.0
      %1008 = vmatprep.subr.mxu0 0.0
      %1009 = vmatpush1.msra.mxu0 0.0
      %1010 = vmatprep.subr.mxu0 0.0
      %1011 = vmatpush1.msra.mxu0 0.0
      %1012 = vmatprep.subr.mxu0 0.0
      %1013 = vmatpush1.msra.mxu0 0.0
      %1014 = vmatprep.subr.mxu0 0.0
      %1015 = vmatpush1.msra.mxu0 0.0
      %1016 = vmatprep.subr.mxu0 0.0
      %1017 = vmatpush1.msra.mxu0 0.0
      %1018 = vmatprep.subr.mxu0 0.0
      %1019 = vmatpush1.msra.mxu0 0.0
      %1020 = vmatprep.subr.mxu0 0.0
      %1021 = vmatpush1.msra.mxu0 0.0
      %1022 = vmatprep.subr.mxu0 0.0
      %1023 = vmatpush1.msra.mxu0 0.0
      %1024 = vmatprep.subr.mxu0 0.0
      %1025 = vmatpush1.msra.mxu0 0.0
      %1026 = vmatprep.subr.mxu0 0.0
      %1027 = vmatpush1.msra.mxu0 0.0
      %1028 = vmatprep.subr.mxu0 0.0
      %1029 = vmatpush1.msra.mxu0 0.0
      %1030 = vmatprep.subr.mxu0 0.0
      %1031 = vmatpush1.msra.mxu0 0.0
      %1032 = vmatprep.subr.mxu0 0.0
      %1033 = vmatpush1.msra.mxu0 0.0
      %1034 = vmatprep.subr.mxu0 0.0
      %1035 = vmatpush1.msra.mxu0 0.0
      %1036 = vmatprep.subr.mxu0 0.0
      %1037 = vmatpush1.msra.mxu0 0.0
      %1038 = vmatprep.subr.mxu0 0.0
      %1039 = vmatpush1.msra.mxu0 0.0
      %1040 = vmatprep.subr.mxu0 0.0
      %1041 = vmatpush1.msra.mxu0 0.0
      %1042 = vmatprep.subr.mxu0 0.0
      %1043 = vmatpush1.msra.mxu0 0.0
      %1044 = vmatprep.subr.mxu0 0.0
      %1045 = vmatpush1.msra.mxu0 0.0
      %1046 = vmatprep.subr.mxu0 0.0
      %1047 = vmatpush1.msra.mxu0 0.0
      %1048 = vmatprep.subr.mxu0 0.0
      %1049 = vmatpush1.msra.mxu0 0.0
      %1050 = vmatprep.mubr.f32.mxu0 0.0
      %1051 = vmatmul.mubr.f32.gmra.mrb[0].mxu0 %v975
      %v1052 = vpop.f32.mrb[0].mxu0
      %v1053 = vadd.f32 0.0, %v1052
      %v1054 = vpop.f32.mrb[0].mxu0
      %v1055 = vadd.f32 0.0, %v1054
      %1056 = vmatprep.mubr.f32.mxu0 0.0
      %1057 = vmatmul.mubr.f32.gmra.mrb[0].mxu0 %v978
      %v1058 = vpop.f32.mrb[0].mxu0
      %v1059 = vadd.f32 0.0, %v1058
      %v1060 = vpop.f32.mrb[0].mxu0
      %v1061 = vadd.f32 0.0, %v1060
      %1062 = vdwg.mxu0
      %1063 = vmatprep.subr.mxu0 0.0
      %1064 = vmatpush1.msra.mxu0 %v959
      %1065 = vmatprep.subr.mxu0 0.0
      %1066 = vmatpush1.msra.mxu0 %v984
      %1067 = vmatprep.subr.mxu0 0.0
      %1068 = vmatpush1.msra.mxu0 0.0
      %1069 = vmatprep.subr.mxu0 0.0
      %1070 = vmatpush1.msra.mxu0 0.0
      %1071 = vmatprep.subr.mxu0 0.0
      %1072 = vmatpush1.msra.mxu0 0.0
      %1073 = vmatprep.subr.mxu0 0.0
      %1074 = vmatpush1.msra.mxu0 0.0
      %1075 = vmatprep.subr.mxu0 0.0
      %1076 = vmatpush1.msra.mxu0 0.0
      %1077 = vmatprep.subr.mxu0 0.0
      %1078 = vmatpush1.msra.mxu0 0.0
      %1079 = vmatprep.subr.mxu0 0.0
      %1080 = vmatpush1.msra.mxu0 0.0
      %1081 = vmatprep.subr.mxu0 0.0
      %1082 = vmatpush1.msra.mxu0 0.0
      %1083 = vmatprep.subr.mxu0 0.0
      %1084 = vmatpush1.msra.mxu0 0.0
      %1085 = vmatprep.subr.mxu0 0.0
      %1086 = vmatpush1.msra.mxu0 0.0
      %1087 = vmatprep.subr.mxu0 0.0
      %1088 = vmatpush1.msra.mxu0 0.0
      %1089 = vmatprep.subr.mxu0 0.0
      %1090 = vmatpush1.msra.mxu0 0.0
      %1091 = vmatprep.subr.mxu0 0.0
      %1092 = vmatpush1.msra.mxu0 0.0
      %1093 = vmatprep.subr.mxu0 0.0
      %1094 = vmatpush1.msra.mxu0 0.0
      %1095 = vmatprep.subr.mxu0 0.0
      %1096 = vmatpush1.msra.mxu0 0.0
      %1097 = vmatprep.subr.mxu0 0.0
      %1098 = vmatpush1.msra.mxu0 0.0
      %1099 = vmatprep.subr.mxu0 0.0
      %1100 = vmatpush1.msra.mxu0 0.0
      %1101 = vmatprep.subr.mxu0 0.0
      %1102 = vmatpush1.msra.mxu0 0.0
      %1103 = vmatprep.subr.mxu0 0.0
      %1104 = vmatpush1.msra.mxu0 0.0
      %1105 = vmatprep.subr.mxu0 0.0
      %1106 = vmatpush1.msra.mxu0 0.0
      %1107 = vmatprep.subr.mxu0 0.0
      %1108 = vmatpush1.msra.mxu0 0.0
      %1109 = vmatprep.subr.mxu0 0.0
      %1110 = vmatpush1.msra.mxu0 0.0
      %1111 = vmatprep.subr.mxu0 0.0
      %1112 = vmatpush1.msra.mxu0 0.0
      %1113 = vmatprep.subr.mxu0 0.0
      %1114 = vmatpush1.msra.mxu0 0.0
      %1115 = vmatprep.subr.mxu0 0.0
      %1116 = vmatpush1.msra.mxu0 0.0
      %1117 = vmatprep.subr.mxu0 0.0
      %1118 = vmatpush1.msra.mxu0 0.0
      %1119 = vmatprep.subr.mxu0 0.0
      %1120 = vmatpush1.msra.mxu0 0.0
      %1121 = vmatprep.subr.mxu0 0.0
      %1122 = vmatpush1.msra.mxu0 0.0
      %1123 = vmatprep.subr.mxu0 0.0
      %1124 = vmatpush1.msra.mxu0 0.0
      %1125 = vmatprep.subr.mxu0 0.0
      %1126 = vmatpush1.msra.mxu0 0.0
      %1127 = vmatprep.mubr.f32.mxu0 0.0
      %1128 = vmatmul.mubr.f32.gmra.mrb[0].mxu0 %v975
      %v1129 = vpop.f32.mrb[0].mxu0
      %v1130 = vadd.f32 0.0, %v1129
      %v1131 = vpop.f32.mrb[0].mxu0
      %1132 = vmatprep.mubr.f32.mxu0 0.0
      %1133 = vmatmul.mubr.f32.gmra.mrb[0].mxu0 %v978
      %v1134 = vpop.f32.mrb[0].mxu0
      %v1135 = vadd.f32 0.0, %v1134
      %v1136 = vpop.f32.mrb[0].mxu0
      %1137 = vdwg.mxu0
      %v1138 = vadd.f32 %v945, %v1053
      %v1139 = vadd.f32 %v946, %v1055
      %v1140 = vadd.f32 %v947, %v1130
      %v1141 = vadd.f32 %v948, %v1059
      %v1142 = vadd.f32 %v949, %v1061
      %v1143 = vadd.f32 %v950, %v1135
      %s1144 = scalar_lea.vmem %s1, 80
      %v1145 = vld [vmem:[%s1144] sm:$0xff]
      %v1146 = vld [vmem:[%s1144 + $0x8] sm:$0xf]
      %1147 = vrot.lane.b32.xlu0 %v198, 108
      %v1148 = vpop.permute.xlu0 %1147
      %1149 = vrot.lane.b32.xlu0 %v199, 108
      %v1150 = vpop.permute.xlu0 %1149
      %1151 = vrot.lane.b32.xlu0 %v200, 108
      %v1152 = vpop.permute.xlu0 %1151
      %1153 = vrot.lane.b32.xlu0 %v201, 108
      %v1154 = vpop.permute.xlu0 %1153
      %1155 = vrot.lane.b32.xlu0 %v202, 108
      %v1156 = vpop.permute.xlu0 %1155
      %1157 = vrot.lane.b32.xlu0 %v203, 108
      %v1158 = vpop.permute.xlu0 %1157
      %vm1159 = vcmask 883712
      %v1160 = vsel %vm1159, %v1148, %v1150
      %v1161 = vsel %vm1159, %v1150, %v1152
      %v1162 = vsel %vm1159, %v1154, %v1156
      %v1163 = vsel %vm1159, %v1156, %v1158
      %v1168 = vsel %vm235, %v1145, 0
      %v1171 = vsel %vm235, %v1146, 0
      %v1173 = vsel %vm242, %v1162, 0
      %v1175 = vsel %vm242, %v1163, 0
      %v1177 = vsel %vm242, %v1158, 0
      %1179 = vmatprep.subr.mxu0 %v1161
      %1180 = vmatpush1.msra.mxu0 %v1160
      %1181 = vmatprep.subr.mxu0 %v1175
      %1182 = vmatpush1.msra.mxu0 %v1173
      %1183 = vmatprep.subr.mxu0 0.0
      %1184 = vmatpush1.msra.mxu0 0.0
      %1185 = vmatprep.subr.mxu0 0.0
      %1186 = vmatpush1.msra.mxu0 0.0
      %1187 = vmatprep.subr.mxu0 0.0
      %1188 = vmatpush1.msra.mxu0 0.0
      %1189 = vmatprep.subr.mxu0 0.0
      %1190 = vmatpush1.msra.mxu0 0.0
      %1191 = vmatprep.subr.mxu0 0.0
      %1192 = vmatpush1.msra.mxu0 0.0
      %1193 = vmatprep.subr.mxu0 0.0
      %1194 = vmatpush1.msra.mxu0 0.0
      %1195 = vmatprep.subr.mxu0 0.0
      %1196 = vmatpush1.msra.mxu0 0.0
      %1197 = vmatprep.subr.mxu0 0.0
      %1198 = vmatpush1.msra.mxu0 0.0
      %1199 = vmatprep.subr.mxu0 0.0
      %1200 = vmatpush1.msra.mxu0 0.0
      %1201 = vmatprep.subr.mxu0 0.0
      %1202 = vmatpush1.msra.mxu0 0.0
      %1203 = vmatprep.subr.mxu0 0.0
      %1204 = vmatpush1.msra.mxu0 0.0
      %1205 = vmatprep.subr.mxu0 0.0
      %1206 = vmatpush1.msra.mxu0 0.0
      %1207 = vmatprep.subr.mxu0 0.0
      %1208 = vmatpush1.msra.mxu0 0.0
      %1209 = vmatprep.subr.mxu0 0.0
      %1210 = vmatpush1.msra.mxu0 0.0
      %1211 = vmatprep.subr.mxu0 0.0
      %1212 = vmatpush1.msra.mxu0 0.0
      %1213 = vmatprep.subr.mxu0 0.0
      %1214 = vmatpush1.msra.mxu0 0.0
      %1215 = vmatprep.subr.mxu0 0.0
      %1216 = vmatpush1.msra.mxu0 0.0
      %1217 = vmatprep.subr.mxu0 0.0
      %1218 = vmatpush1.msra.mxu0 0.0
      %1219 = vmatprep.subr.mxu0 0.0
      %1220 = vmatpush1.msra.mxu0 0.0
      %1221 = vmatprep.subr.mxu0 0.0
      %1222 = vmatpush1.msra.mxu0 0.0
      %1223 = vmatprep.subr.mxu0 0.0
      %1224 = vmatpush1.msra.mxu0 0.0
      %1225 = vmatprep.subr.mxu0 0.0
      %1226 = vmatpush1.msra.mxu0 0.0
      %1227 = vmatprep.subr.mxu0 0.0
      %1228 = vmatpush1.msra.mxu0 0.0
      %1229 = vmatprep.subr.mxu0 0.0
      %1230 = vmatpush1.msra.mxu0 0.0
      %1231 = vmatprep.subr.mxu0 0.0
      %1232 = vmatpush1.msra.mxu0 0.0
      %1233 = vmatprep.subr.mxu0 0.0
      %1234 = vmatpush1.msra.mxu0 0.0
      %1235 = vmatprep.subr.mxu0 0.0
      %1236 = vmatpush1.msra.mxu0 0.0
      %1237 = vmatprep.subr.mxu0 0.0
      %1238 = vmatpush1.msra.mxu0 0.0
      %1239 = vmatprep.subr.mxu0 0.0
      %1240 = vmatpush1.msra.mxu0 0.0
      %1241 = vmatprep.subr.mxu0 0.0
      %1242 = vmatpush1.msra.mxu0 0.0
      %1243 = vmatprep.mubr.f32.mxu0 0.0
      %1244 = vmatmul.mubr.f32.gmra.mrb[0].mxu0 %v1168
      %v1245 = vpop.f32.mrb[0].mxu0
      %v1246 = vadd.f32 0.0, %v1245
      %v1247 = vpop.f32.mrb[0].mxu0
      %v1248 = vadd.f32 0.0, %v1247
      %1249 = vmatprep.mubr.f32.mxu0 0.0
      %1250 = vmatmul.mubr.f32.gmra.mrb[0].mxu0 %v1171
      %v1251 = vpop.f32.mrb[0].mxu0
      %v1252 = vadd.f32 0.0, %v1251
      %v1253 = vpop.f32.mrb[0].mxu0
      %v1254 = vadd.f32 0.0, %v1253
      %1255 = vdwg.mxu0
      %1256 = vmatprep.subr.mxu0 0.0
      %1257 = vmatpush1.msra.mxu0 %v1152
      %1258 = vmatprep.subr.mxu0 0.0
      %1259 = vmatpush1.msra.mxu0 %v1177
      %1260 = vmatprep.subr.mxu0 0.0
      %1261 = vmatpush1.msra.mxu0 0.0
      %1262 = vmatprep.subr.mxu0 0.0
      %1263 = vmatpush1.msra.mxu0 0.0
      %1264 = vmatprep.subr.mxu0 0.0
      %1265 = vmatpush1.msra.mxu0 0.0
      %1266 = vmatprep.subr.mxu0 0.0
      %1267 = vmatpush1.msra.mxu0 0.0
      %1268 = vmatprep.subr.mxu0 0.0
      %1269 = vmatpush1.msra.mxu0 0.0
      %1270 = vmatprep.subr.mxu0 0.0
      %1271 = vmatpush1.msra.mxu0 0.0
      %1272 = vmatprep.subr.mxu0 0.0
      %1273 = vmatpush1.msra.mxu0 0.0
      %1274 = vmatprep.subr.mxu0 0.0
      %1275 = vmatpush1.msra.mxu0 0.0
      %1276 = vmatprep.subr.mxu0 0.0
      %1277 = vmatpush1.msra.mxu0 0.0
      %1278 = vmatprep.subr.mxu0 0.0
      %1279 = vmatpush1.msra.mxu0 0.0
      %1280 = vmatprep.subr.mxu0 0.0
      %1281 = vmatpush1.msra.mxu0 0.0
      %1282 = vmatprep.subr.mxu0 0.0
      %1283 = vmatpush1.msra.mxu0 0.0
      %1284 = vmatprep.subr.mxu0 0.0
      %1285 = vmatpush1.msra.mxu0 0.0
      %1286 = vmatprep.subr.mxu0 0.0
      %1287 = vmatpush1.msra.mxu0 0.0
      %1288 = vmatprep.subr.mxu0 0.0
      %1289 = vmatpush1.msra.mxu0 0.0
      %1290 = vmatprep.subr.mxu0 0.0
      %1291 = vmatpush1.msra.mxu0 0.0
      %1292 = vmatprep.subr.mxu0 0.0
      %1293 = vmatpush1.msra.mxu0 0.0
      %1294 = vmatprep.subr.mxu0 0.0
      %1295 = vmatpush1.msra.mxu0 0.0
      %1296 = vmatprep.subr.mxu0 0.0
      %1297 = vmatpush1.msra.mxu0 0.0
      %1298 = vmatprep.subr.mxu0 0.0
      %1299 = vmatpush1.msra.mxu0 0.0
      %1300 = vmatprep.subr.mxu0 0.0
      %1301 = vmatpush1.msra.mxu0 0.0
      %1302 = vmatprep.subr.mxu0 0.0
      %1303 = vmatpush1.msra.mxu0 0.0
      %1304 = vmatprep.subr.mxu0 0.0
      %1305 = vmatpush1.msra.mxu0 0.0
      %1306 = vmatprep.subr.mxu0 0.0
      %1307 = vmatpush1.msra.mxu0 0.0
      %1308 = vmatprep.subr.mxu0 0.0
      %1309 = vmatpush1.msra.mxu0 0.0
      %1310 = vmatprep.subr.mxu0 0.0
      %1311 = vmatpush1.msra.mxu0 0.0
      %1312 = vmatprep.subr.mxu0 0.0
      %1313 = vmatpush1.msra.mxu0 0.0
      %1314 = vmatprep.subr.mxu0 0.0
      %1315 = vmatpush1.msra.mxu0 0.0
      %1316 = vmatprep.subr.mxu0 0.0
      %1317 = vmatpush1.msra.mxu0 0.0
      %1318 = vmatprep.subr.mxu0 0.0
      %1319 = vmatpush1.msra.mxu0 0.0
      %1320 = vmatprep.mubr.f32.mxu0 0.0
      %1321 = vmatmul.mubr.f32.gmra.mrb[0].mxu0 %v1168
      %v1322 = vpop.f32.mrb[0].mxu0
      %v1323 = vadd.f32 0.0, %v1322
      %v1324 = vpop.f32.mrb[0].mxu0
      %1325 = vmatprep.mubr.f32.mxu0 0.0
      %1326 = vmatmul.mubr.f32.gmra.mrb[0].mxu0 %v1171
      %v1327 = vpop.f32.mrb[0].mxu0
      %v1328 = vadd.f32 0.0, %v1327
      %v1329 = vpop.f32.mrb[0].mxu0
      %1330 = vdwg.mxu0
      %v1331 = vadd.f32 %v1138, %v1246
      %v1332 = vadd.f32 %v1139, %v1248
      %v1333 = vadd.f32 %v1140, %v1323
      %v1334 = vadd.f32 %v1141, %v1252
      %v1335 = vadd.f32 %v1142, %v1254
      %v1336 = vadd.f32 %v1143, %v1328
      %s1337 = scalar_lea.vmem %s1, 96
      %v1338 = vld [vmem:[%s1337] sm:$0xff]
      %v1339 = vld [vmem:[%s1337 + $0x8] sm:$0xf]
      %1340 = vrot.lane.b32.xlu0 %v198, 107
      %v1341 = vpop.permute.xlu0 %1340
      %1342 = vrot.lane.b32.xlu0 %v199, 107
      %v1343 = vpop.permute.xlu0 %1342
      %1344 = vrot.lane.b32.xlu0 %v200, 107
      %v1345 = vpop.permute.xlu0 %1344
      %1346 = vrot.lane.b32.xlu0 %v201, 107
      %v1347 = vpop.permute.xlu0 %1346
      %1348 = vrot.lane.b32.xlu0 %v202, 107
      %v1349 = vpop.permute.xlu0 %1348
      %1350 = vrot.lane.b32.xlu0 %v203, 107
      %v1351 = vpop.permute.xlu0 %1350
      %vm1352 = vcmask 875520
      %v1353 = vsel %vm1352, %v1341, %v1343
      %v1354 = vsel %vm1352, %v1343, %v1345
      %v1355 = vsel %vm1352, %v1347, %v1349
      %v1356 = vsel %vm1352, %v1349, %v1351
      %v1361 = vsel %vm235, %v1338, 0
      %v1364 = vsel %vm235, %v1339, 0
      %v1366 = vsel %vm242, %v1355, 0
      %v1368 = vsel %vm242, %v1356, 0
      %v1370 = vsel %vm242, %v1351, 0
      %1372 = vmatprep.subr.mxu0 %v1354
      %1373 = vmatpush1.msra.mxu0 %v1353
      %1374 = vmatprep.subr.mxu0 %v1368
      %1375 = vmatpush1.msra.mxu0 %v1366
      %1376 = vmatprep.subr.mxu0 0.0
      %1377 = vmatpush1.msra.mxu0 0.0
      %1378 = vmatprep.subr.mxu0 0.0
      %1379 = vmatpush1.msra.mxu0 0.0
      %1380 = vmatprep.subr.mxu0 0.0
      %1381 = vmatpush1.msra.mxu0 0.0
      %1382 = vmatprep.subr.mxu0 0.0
      %1383 = vmatpush1.msra.mxu0 0.0
      %1384 = vmatprep.subr.mxu0 0.0
      %1385 = vmatpush1.msra.mxu0 0.0
      %1386 = vmatprep.subr.mxu0 0.0
      %1387 = vmatpush1.msra.mxu0 0.0
      %1388 = vmatprep.subr.mxu0 0.0
      %1389 = vmatpush1.msra.mxu0 0.0
      %1390 = vmatprep.subr.mxu0 0.0
      %1391 = vmatpush1.msra.mxu0 0.0
      %1392 = vmatprep.subr.mxu0 0.0
      %1393 = vmatpush1.msra.mxu0 0.0
      %1394 = vmatprep.subr.mxu0 0.0
      %1395 = vmatpush1.msra.mxu0 0.0
      %1396 = vmatprep.subr.mxu0 0.0
      %1397 = vmatpush1.msra.mxu0 0.0
      %1398 = vmatprep.subr.mxu0 0.0
      %1399 = vmatpush1.msra.mxu0 0.0
      %1400 = vmatprep.subr.mxu0 0.0
      %1401 = vmatpush1.msra.mxu0 0.0
      %1402 = vmatprep.subr.mxu0 0.0
      %1403 = vmatpush1.msra.mxu0 0.0
      %1404 = vmatprep.subr.mxu0 0.0
      %1405 = vmatpush1.msra.mxu0 0.0
      %1406 = vmatprep.subr.mxu0 0.0
      %1407 = vmatpush1.msra.mxu0 0.0
      %1408 = vmatprep.subr.mxu0 0.0
      %1409 = vmatpush1.msra.mxu0 0.0
      %1410 = vmatprep.subr.mxu0 0.0
      %1411 = vmatpush1.msra.mxu0 0.0
      %1412 = vmatprep.subr.mxu0 0.0
      %1413 = vmatpush1.msra.mxu0 0.0
      %1414 = vmatprep.subr.mxu0 0.0
      %1415 = vmatpush1.msra.mxu0 0.0
      %1416 = vmatprep.subr.mxu0 0.0
      %1417 = vmatpush1.msra.mxu0 0.0
      %1418 = vmatprep.subr.mxu0 0.0
      %1419 = vmatpush1.msra.mxu0 0.0
      %1420 = vmatprep.subr.mxu0 0.0
      %1421 = vmatpush1.msra.mxu0 0.0
      %1422 = vmatprep.subr.mxu0 0.0
      %1423 = vmatpush1.msra.mxu0 0.0
      %1424 = vmatprep.subr.mxu0 0.0
      %1425 = vmatpush1.msra.mxu0 0.0
      %1426 = vmatprep.subr.mxu0 0.0
      %1427 = vmatpush1.msra.mxu0 0.0
      %1428 = vmatprep.subr.mxu0 0.0
      %1429 = vmatpush1.msra.mxu0 0.0
      %1430 = vmatprep.subr.mxu0 0.0
      %1431 = vmatpush1.msra.mxu0 0.0
      %1432 = vmatprep.subr.mxu0 0.0
      %1433 = vmatpush1.msra.mxu0 0.0
      %1434 = vmatprep.subr.mxu0 0.0
      %1435 = vmatpush1.msra.mxu0 0.0
      %1436 = vmatprep.mubr.f32.mxu0 0.0
      %1437 = vmatmul.mubr.f32.gmra.mrb[0].mxu0 %v1361
      %v1438 = vpop.f32.mrb[0].mxu0
      %v1439 = vadd.f32 0.0, %v1438
      %v1440 = vpop.f32.mrb[0].mxu0
      %v1441 = vadd.f32 0.0, %v1440
      %1442 = vmatprep.mubr.f32.mxu0 0.0
      %1443 = vmatmul.mubr.f32.gmra.mrb[0].mxu0 %v1364
      %v1444 = vpop.f32.mrb[0].mxu0
      %v1445 = vadd.f32 0.0, %v1444
      %v1446 = vpop.f32.mrb[0].mxu0
      %v1447 = vadd.f32 0.0, %v1446
      %1448 = vdwg.mxu0
      %1449 = vmatprep.subr.mxu0 0.0
      %1450 = vmatpush1.msra.mxu0 %v1345
      %1451 = vmatprep.subr.mxu0 0.0
      %1452 = vmatpush1.msra.mxu0 %v1370
      %1453 = vmatprep.subr.mxu0 0.0
      %1454 = vmatpush1.msra.mxu0 0.0
      %1455 = vmatprep.subr.mxu0 0.0
      %1456 = vmatpush1.msra.mxu0 0.0
      %1457 = vmatprep.subr.mxu0 0.0
      %1458 = vmatpush1.msra.mxu0 0.0
      %1459 = vmatprep.subr.mxu0 0.0
      %1460 = vmatpush1.msra.mxu0 0.0
      %1461 = vmatprep.subr.mxu0 0.0
      %1462 = vmatpush1.msra.mxu0 0.0
      %1463 = vmatprep.subr.mxu0 0.0
      %1464 = vmatpush1.msra.mxu0 0.0
      %1465 = vmatprep.subr.mxu0 0.0
      %1466 = vmatpush1.msra.mxu0 0.0
      %1467 = vmatprep.subr.mxu0 0.0
      %1468 = vmatpush1.msra.mxu0 0.0
      %1469 = vmatprep.subr.mxu0 0.0
      %1470 = vmatpush1.msra.mxu0 0.0
      %1471 = vmatprep.subr.mxu0 0.0
      %1472 = vmatpush1.msra.mxu0 0.0
      %1473 = vmatprep.subr.mxu0 0.0
      %1474 = vmatpush1.msra.mxu0 0.0
      %1475 = vmatprep.subr.mxu0 0.0
      %1476 = vmatpush1.msra.mxu0 0.0
      %1477 = vmatprep.subr.mxu0 0.0
      %1478 = vmatpush1.msra.mxu0 0.0
      %1479 = vmatprep.subr.mxu0 0.0
      %1480 = vmatpush1.msra.mxu0 0.0
      %1481 = vmatprep.subr.mxu0 0.0
      %1482 = vmatpush1.msra.mxu0 0.0
      %1483 = vmatprep.subr.mxu0 0.0
      %1484 = vmatpush1.msra.mxu0 0.0
      %1485 = vmatprep.subr.mxu0 0.0
      %1486 = vmatpush1.msra.mxu0 0.0
      %1487 = vmatprep.subr.mxu0 0.0
      %1488 = vmatpush1.msra.mxu0 0.0
      %1489 = vmatprep.subr.mxu0 0.0
      %1490 = vmatpush1.msra.mxu0 0.0
      %1491 = vmatprep.subr.mxu0 0.0
      %1492 = vmatpush1.msra.mxu0 0.0
      %1493 = vmatprep.subr.mxu0 0.0
      %1494 = vmatpush1.msra.mxu0 0.0
      %1495 = vmatprep.subr.mxu0 0.0
      %1496 = vmatpush1.msra.mxu0 0.0
      %1497 = vmatprep.subr.mxu0 0.0
      %1498 = vmatpush1.msra.mxu0 0.0
      %1499 = vmatprep.subr.mxu0 0.0
      %1500 = vmatpush1.msra.mxu0 0.0
      %1501 = vmatprep.subr.mxu0 0.0
      %1502 = vmatpush1.msra.mxu0 0.0
      %1503 = vmatprep.subr.mxu0 0.0
      %1504 = vmatpush1.msra.mxu0 0.0
      %1505 = vmatprep.subr.mxu0 0.0
      %1506 = vmatpush1.msra.mxu0 0.0
      %1507 = vmatprep.subr.mxu0 0.0
      %1508 = vmatpush1.msra.mxu0 0.0
      %1509 = vmatprep.subr.mxu0 0.0
      %1510 = vmatpush1.msra.mxu0 0.0
      %1511 = vmatprep.subr.mxu0 0.0
      %1512 = vmatpush1.msra.mxu0 0.0
      %1513 = vmatprep.mubr.f32.mxu0 0.0
      %1514 = vmatmul.mubr.f32.gmra.mrb[0].mxu0 %v1361
      %v1515 = vpop.f32.mrb[0].mxu0
      %v1516 = vadd.f32 0.0, %v1515
      %v1517 = vpop.f32.mrb[0].mxu0
      %1518 = vmatprep.mubr.f32.mxu0 0.0
      %1519 = vmatmul.mubr.f32.gmra.mrb[0].mxu0 %v1364
      %v1520 = vpop.f32.mrb[0].mxu0
      %v1521 = vadd.f32 0.0, %v1520
      %v1522 = vpop.f32.mrb[0].mxu0
      %1523 = vdwg.mxu0
      %v1524 = vadd.f32 %v1331, %v1439
      %v1525 = vadd.f32 %v1332, %v1441
      %v1526 = vadd.f32 %v1333, %v1516
      %v1527 = vadd.f32 %v1334, %v1445
      %v1528 = vadd.f32 %v1335, %v1447
      %v1529 = vadd.f32 %v1336, %v1521
      %s1530 = scalar_lea.vmem %s1, 112
      %v1531 = vld [vmem:[%s1530] sm:$0xff]
      %v1532 = vld [vmem:[%s1530 + $0x8] sm:$0xf]
      %1533 = vrot.lane.b32.xlu0 %v198, 106
      %v1534 = vpop.permute.xlu0 %1533
      %1535 = vrot.lane.b32.xlu0 %v199, 106
      %v1536 = vpop.permute.xlu0 %1535
      %1537 = vrot.lane.b32.xlu0 %v200, 106
      %v1538 = vpop.permute.xlu0 %1537
      %1539 = vrot.lane.b32.xlu0 %v201, 106
      %v1540 = vpop.permute.xlu0 %1539
      %1541 = vrot.lane.b32.xlu0 %v202, 106
      %v1542 = vpop.permute.xlu0 %1541
      %1543 = vrot.lane.b32.xlu0 %v203, 106
      %v1544 = vpop.permute.xlu0 %1543
      %vm1545 = vcmask 867328
      %v1546 = vsel %vm1545, %v1534, %v1536
      %v1547 = vsel %vm1545, %v1536, %v1538
      %v1548 = vsel %vm1545, %v1540, %v1542
      %v1549 = vsel %vm1545, %v1542, %v1544
      %v1554 = vsel %vm235, %v1531, 0
      %v1557 = vsel %vm235, %v1532, 0
      %v1559 = vsel %vm242, %v1548, 0
      %v1561 = vsel %vm242, %v1549, 0
      %v1563 = vsel %vm242, %v1544, 0
      %1565 = vmatprep.subr.mxu0 %v1547
      %1566 = vmatpush1.msra.mxu0 %v1546
      %1567 = vmatprep.subr.mxu0 %v1561
      %1568 = vmatpush1.msra.mxu0 %v1559
      %1569 = vmatprep.subr.mxu0 0.0
      %1570 = vmatpush1.msra.mxu0 0.0
      %1571 = vmatprep.subr.mxu0 0.0
      %1572 = vmatpush1.msra.mxu0 0.0
      %1573 = vmatprep.subr.mxu0 0.0
      %1574 = vmatpush1.msra.mxu0 0.0
      %1575 = vmatprep.subr.mxu0 0.0
      %1576 = vmatpush1.msra.mxu0 0.0
      %1577 = vmatprep.subr.mxu0 0.0
      %1578 = vmatpush1.msra.mxu0 0.0
      %1579 = vmatprep.subr.mxu0 0.0
      %1580 = vmatpush1.msra.mxu0 0.0
      %1581 = vmatprep.subr.mxu0 0.0
      %1582 = vmatpush1.msra.mxu0 0.0
      %1583 = vmatprep.subr.mxu0 0.0
      %1584 = vmatpush1.msra.mxu0 0.0
      %1585 = vmatprep.subr.mxu0 0.0
      %1586 = vmatpush1.msra.mxu0 0.0
      %1587 = vmatprep.subr.mxu0 0.0
      %1588 = vmatpush1.msra.mxu0 0.0
      %1589 = vmatprep.subr.mxu0 0.0
      %1590 = vmatpush1.msra.mxu0 0.0
      %1591 = vmatprep.subr.mxu0 0.0
      %1592 = vmatpush1.msra.mxu0 0.0
      %1593 = vmatprep.subr.mxu0 0.0
      %1594 = vmatpush1.msra.mxu0 0.0
      %1595 = vmatprep.subr.mxu0 0.0
      %1596 = vmatpush1.msra.mxu0 0.0
      %1597 = vmatprep.subr.mxu0 0.0
      %1598 = vmatpush1.msra.mxu0 0.0
      %1599 = vmatprep.subr.mxu0 0.0
      %1600 = vmatpush1.msra.mxu0 0.0
      %1601 = vmatprep.subr.mxu0 0.0
      %1602 = vmatpush1.msra.mxu0 0.0
      %1603 = vmatprep.subr.mxu0 0.0
      %1604 = vmatpush1.msra.mxu0 0.0
      %1605 = vmatprep.subr.mxu0 0.0
      %1606 = vmatpush1.msra.mxu0 0.0
      %1607 = vmatprep.subr.mxu0 0.0
      %1608 = vmatpush1.msra.mxu0 0.0
      %1609 = vmatprep.subr.mxu0 0.0
      %1610 = vmatpush1.msra.mxu0 0.0
      %1611 = vmatprep.subr.mxu0 0.0
      %1612 = vmatpush1.msra.mxu0 0.0
      %1613 = vmatprep.subr.mxu0 0.0
      %1614 = vmatpush1.msra.mxu0 0.0
      %1615 = vmatprep.subr.mxu0 0.0
      %1616 = vmatpush1.msra.mxu0 0.0
      %1617 = vmatprep.subr.mxu0 0.0
      %1618 = vmatpush1.msra.mxu0 0.0
      %1619 = vmatprep.subr.mxu0 0.0
      %1620 = vmatpush1.msra.mxu0 0.0
      %1621 = vmatprep.subr.mxu0 0.0
      %1622 = vmatpush1.msra.mxu0 0.0
      %1623 = vmatprep.subr.mxu0 0.0
      %1624 = vmatpush1.msra.mxu0 0.0
      %1625 = vmatprep.subr.mxu0 0.0
      %1626 = vmatpush1.msra.mxu0 0.0
      %1627 = vmatprep.subr.mxu0 0.0
      %1628 = vmatpush1.msra.mxu0 0.0
      %1629 = vmatprep.mubr.f32.mxu0 0.0
      %1630 = vmatmul.mubr.f32.gmra.mrb[0].mxu0 %v1554
      %v1631 = vpop.f32.mrb[0].mxu0
      %v1632 = vadd.f32 0.0, %v1631
      %v1633 = vpop.f32.mrb[0].mxu0
      %v1634 = vadd.f32 0.0, %v1633
      %1635 = vmatprep.mubr.f32.mxu0 0.0
      %1636 = vmatmul.mubr.f32.gmra.mrb[0].mxu0 %v1557
      %v1637 = vpop.f32.mrb[0].mxu0
      %v1638 = vadd.f32 0.0, %v1637
      %v1639 = vpop.f32.mrb[0].mxu0
      %v1640 = vadd.f32 0.0, %v1639
      %1641 = vdwg.mxu0
      %1642 = vmatprep.subr.mxu0 0.0
      %1643 = vmatpush1.msra.mxu0 %v1538
      %1644 = vmatprep.subr.mxu0 0.0
      %1645 = vmatpush1.msra.mxu0 %v1563
      %1646 = vmatprep.subr.mxu0 0.0
      %1647 = vmatpush1.msra.mxu0 0.0
      %1648 = vmatprep.subr.mxu0 0.0
      %1649 = vmatpush1.msra.mxu0 0.0
      %1650 = vmatprep.subr.mxu0 0.0
      %1651 = vmatpush1.msra.mxu0 0.0
      %1652 = vmatprep.subr.mxu0 0.0
      %1653 = vmatpush1.msra.mxu0 0.0
      %1654 = vmatprep.subr.mxu0 0.0
      %1655 = vmatpush1.msra.mxu0 0.0
      %1656 = vmatprep.subr.mxu0 0.0
      %1657 = vmatpush1.msra.mxu0 0.0
      %1658 = vmatprep.subr.mxu0 0.0
      %1659 = vmatpush1.msra.mxu0 0.0
      %1660 = vmatprep.subr.mxu0 0.0
      %1661 = vmatpush1.msra.mxu0 0.0
      %1662 = vmatprep.subr.mxu0 0.0
      %1663 = vmatpush1.msra.mxu0 0.0
      %1664 = vmatprep.subr.mxu0 0.0
      %1665 = vmatpush1.msra.mxu0 0.0
      %1666 = vmatprep.subr.mxu0 0.0
      %1667 = vmatpush1.msra.mxu0 0.0
      %1668 = vmatprep.subr.mxu0 0.0
      %1669 = vmatpush1.msra.mxu0 0.0
      %1670 = vmatprep.subr.mxu0 0.0
      %1671 = vmatpush1.msra.mxu0 0.0
      %1672 = vmatprep.subr.mxu0 0.0
      %1673 = vmatpush1.msra.mxu0 0.0
      %1674 = vmatprep.subr.mxu0 0.0
      %1675 = vmatpush1.msra.mxu0 0.0
      %1676 = vmatprep.subr.mxu0 0.0
      %1677 = vmatpush1.msra.mxu0 0.0
      %1678 = vmatprep.subr.mxu0 0.0
      %1679 = vmatpush1.msra.mxu0 0.0
      %1680 = vmatprep.subr.mxu0 0.0
      %1681 = vmatpush1.msra.mxu0 0.0
      %1682 = vmatprep.subr.mxu0 0.0
      %1683 = vmatpush1.msra.mxu0 0.0
      %1684 = vmatprep.subr.mxu0 0.0
      %1685 = vmatpush1.msra.mxu0 0.0
      %1686 = vmatprep.subr.mxu0 0.0
      %1687 = vmatpush1.msra.mxu0 0.0
      %1688 = vmatprep.subr.mxu0 0.0
      %1689 = vmatpush1.msra.mxu0 0.0
      %1690 = vmatprep.subr.mxu0 0.0
      %1691 = vmatpush1.msra.mxu0 0.0
      %1692 = vmatprep.subr.mxu0 0.0
      %1693 = vmatpush1.msra.mxu0 0.0
      %1694 = vmatprep.subr.mxu0 0.0
      %1695 = vmatpush1.msra.mxu0 0.0
      %1696 = vmatprep.subr.mxu0 0.0
      %1697 = vmatpush1.msra.mxu0 0.0
      %1698 = vmatprep.subr.mxu0 0.0
      %1699 = vmatpush1.msra.mxu0 0.0
      %1700 = vmatprep.subr.mxu0 0.0
      %1701 = vmatpush1.msra.mxu0 0.0
      %1702 = vmatprep.subr.mxu0 0.0
      %1703 = vmatpush1.msra.mxu0 0.0
      %1704 = vmatprep.subr.mxu0 0.0
      %1705 = vmatpush1.msra.mxu0 0.0
      %1706 = vmatprep.mubr.f32.mxu0 0.0
      %1707 = vmatmul.mubr.f32.gmra.mrb[0].mxu0 %v1554
      %v1708 = vpop.f32.mrb[0].mxu0
      %v1709 = vadd.f32 0.0, %v1708
      %v1710 = vpop.f32.mrb[0].mxu0
      %1711 = vmatprep.mubr.f32.mxu0 0.0
      %1712 = vmatmul.mubr.f32.gmra.mrb[0].mxu0 %v1557
      %v1713 = vpop.f32.mrb[0].mxu0
      %v1714 = vadd.f32 0.0, %v1713
      %v1715 = vpop.f32.mrb[0].mxu0
      %1716 = vdwg.mxu0
      %v1717 = vadd.f32 %v1524, %v1632
      %v1718 = vadd.f32 %v1525, %v1634
      %v1719 = vadd.f32 %v1526, %v1709
      %v1720 = vadd.f32 %v1527, %v1638
      %v1721 = vadd.f32 %v1528, %v1640
      %v1722 = vadd.f32 %v1529, %v1714
      %s1723 = scalar_lea.vmem %s1, 128
      %v1724 = vld [vmem:[%s1723] sm:$0xff]
      %v1725 = vld [vmem:[%s1723 + $0x8] sm:$0xf]
      %1726 = vrot.lane.b32.xlu0 %v198, 90
      %v1727 = vpop.permute.xlu0 %1726
      %1728 = vrot.lane.b32.xlu0 %v199, 90
      %v1729 = vpop.permute.xlu0 %1728
      %1730 = vrot.lane.b32.xlu0 %v200, 90
      %v1731 = vpop.permute.xlu0 %1730
      %1732 = vrot.lane.b32.xlu0 %v201, 90
      %v1733 = vpop.permute.xlu0 %1732
      %1734 = vrot.lane.b32.xlu0 %v202, 90
      %v1735 = vpop.permute.xlu0 %1734
      %1736 = vrot.lane.b32.xlu0 %v203, 90
      %v1737 = vpop.permute.xlu0 %1736
      %vm1738 = vcmask 736256
      %v1739 = vsel %vm1738, %v1727, %v1729
      %v1740 = vsel %vm1738, %v1729, %v1731
      %v1741 = vsel %vm1738, %v1733, %v1735
      %v1742 = vsel %vm1738, %v1735, %v1737
      %v1747 = vsel %vm235, %v1724, 0
      %v1750 = vsel %vm235, %v1725, 0
      %v1752 = vsel %vm242, %v1741, 0
      %v1754 = vsel %vm242, %v1742, 0
      %v1756 = vsel %vm242, %v1737, 0
      %1758 = vmatprep.subr.mxu0 %v1740
      %1759 = vmatpush1.msra.mxu0 %v1739
      %1760 = vmatprep.subr.mxu0 %v1754
      %1761 = vmatpush1.msra.mxu0 %v1752
      %1762 = vmatprep.subr.mxu0 0.0
      %1763 = vmatpush1.msra.mxu0 0.0
      %1764 = vmatprep.subr.mxu0 0.0
      %1765 = vmatpush1.msra.mxu0 0.0
      %1766 = vmatprep.subr.mxu0 0.0
      %1767 = vmatpush1.msra.mxu0 0.0
      %1768 = vmatprep.subr.mxu0 0.0
      %1769 = vmatpush1.msra.mxu0 0.0
      %1770 = vmatprep.subr.mxu0 0.0
      %1771 = vmatpush1.msra.mxu0 0.0
      %1772 = vmatprep.subr.mxu0 0.0
      %1773 = vmatpush1.msra.mxu0 0.0
      %1774 = vmatprep.subr.mxu0 0.0
      %1775 = vmatpush1.msra.mxu0 0.0
      %1776 = vmatprep.subr.mxu0 0.0
      %1777 = vmatpush1.msra.mxu0 0.0
      %1778 = vmatprep.subr.mxu0 0.0
      %1779 = vmatpush1.msra.mxu0 0.0
      %1780 = vmatprep.subr.mxu0 0.0
      %1781 = vmatpush1.msra.mxu0 0.0
      %1782 = vmatprep.subr.mxu0 0.0
      %1783 = vmatpush1.msra.mxu0 0.0
      %1784 = vmatprep.subr.mxu0 0.0
      %1785 = vmatpush1.msra.mxu0 0.0
      %1786 = vmatprep.subr.mxu0 0.0
      %1787 = vmatpush1.msra.mxu0 0.0
      %1788 = vmatprep.subr.mxu0 0.0
      %1789 = vmatpush1.msra.mxu0 0.0
      %1790 = vmatprep.subr.mxu0 0.0
      %1791 = vmatpush1.msra.mxu0 0.0
      %1792 = vmatprep.subr.mxu0 0.0
      %1793 = vmatpush1.msra.mxu0 0.0
      %1794 = vmatprep.subr.mxu0 0.0
      %1795 = vmatpush1.msra.mxu0 0.0
      %1796 = vmatprep.subr.mxu0 0.0
      %1797 = vmatpush1.msra.mxu0 0.0
      %1798 = vmatprep.subr.mxu0 0.0
      %1799 = vmatpush1.msra.mxu0 0.0
      %1800 = vmatprep.subr.mxu0 0.0
      %1801 = vmatpush1.msra.mxu0 0.0
      %1802 = vmatprep.subr.mxu0 0.0
      %1803 = vmatpush1.msra.mxu0 0.0
      %1804 = vmatprep.subr.mxu0 0.0
      %1805 = vmatpush1.msra.mxu0 0.0
      %1806 = vmatprep.subr.mxu0 0.0
      %1807 = vmatpush1.msra.mxu0 0.0
      %1808 = vmatprep.subr.mxu0 0.0
      %1809 = vmatpush1.msra.mxu0 0.0
      %1810 = vmatprep.subr.mxu0 0.0
      %1811 = vmatpush1.msra.mxu0 0.0
      %1812 = vmatprep.subr.mxu0 0.0
      %1813 = vmatpush1.msra.mxu0 0.0
      %1814 = vmatprep.subr.mxu0 0.0
      %1815 = vmatpush1.msra.mxu0 0.0
      %1816 = vmatprep.subr.mxu0 0.0
      %1817 = vmatpush1.msra.mxu0 0.0
      %1818 = vmatprep.subr.mxu0 0.0
      %1819 = vmatpush1.msra.mxu0 0.0
      %1820 = vmatprep.subr.mxu0 0.0
      %1821 = vmatpush1.msra.mxu0 0.0
      %1822 = vmatprep.mubr.f32.mxu0 0.0
      %1823 = vmatmul.mubr.f32.gmra.mrb[0].mxu0 %v1747
      %v1824 = vpop.f32.mrb[0].mxu0
      %v1825 = vadd.f32 0.0, %v1824
      %v1826 = vpop.f32.mrb[0].mxu0
      %v1827 = vadd.f32 0.0, %v1826
      %1828 = vmatprep.mubr.f32.mxu0 0.0
      %1829 = vmatmul.mubr.f32.gmra.mrb[0].mxu0 %v1750
      %v1830 = vpop.f32.mrb[0].mxu0
      %v1831 = vadd.f32 0.0, %v1830
      %v1832 = vpop.f32.mrb[0].mxu0
      %v1833 = vadd.f32 0.0, %v1832
      %1834 = vdwg.mxu0
      %1835 = vmatprep.subr.mxu0 0.0
      %1836 = vmatpush1.msra.mxu0 %v1731
      %1837 = vmatprep.subr.mxu0 0.0
      %1838 = vmatpush1.msra.mxu0 %v1756
      %1839 = vmatprep.subr.mxu0 0.0
      %1840 = vmatpush1.msra.mxu0 0.0
      %1841 = vmatprep.subr.mxu0 0.0
      %1842 = vmatpush1.msra.mxu0 0.0
      %1843 = vmatprep.subr.mxu0 0.0
      %1844 = vmatpush1.msra.mxu0 0.0
      %1845 = vmatprep.subr.mxu0 0.0
      %1846 = vmatpush1.msra.mxu0 0.0
      %1847 = vmatprep.subr.mxu0 0.0
      %1848 = vmatpush1.msra.mxu0 0.0
      %1849 = vmatprep.subr.mxu0 0.0
      %1850 = vmatpush1.msra.mxu0 0.0
      %1851 = vmatprep.subr.mxu0 0.0
      %1852 = vmatpush1.msra.mxu0 0.0
      %1853 = vmatprep.subr.mxu0 0.0
      %1854 = vmatpush1.msra.mxu0 0.0
      %1855 = vmatprep.subr.mxu0 0.0
      %1856 = vmatpush1.msra.mxu0 0.0
      %1857 = vmatprep.subr.mxu0 0.0
      %1858 = vmatpush1.msra.mxu0 0.0
      %1859 = vmatprep.subr.mxu0 0.0
      %1860 = vmatpush1.msra.mxu0 0.0
      %1861 = vmatprep.subr.mxu0 0.0
      %1862 = vmatpush1.msra.mxu0 0.0
      %1863 = vmatprep.subr.mxu0 0.0
      %1864 = vmatpush1.msra.mxu0 0.0
      %1865 = vmatprep.subr.mxu0 0.0
      %1866 = vmatpush1.msra.mxu0 0.0
      %1867 = vmatprep.subr.mxu0 0.0
      %1868 = vmatpush1.msra.mxu0 0.0
      %1869 = vmatprep.subr.mxu0 0.0
      %1870 = vmatpush1.msra.mxu0 0.0
      %1871 = vmatprep.subr.mxu0 0.0
      %1872 = vmatpush1.msra.mxu0 0.0
      %1873 = vmatprep.subr.mxu0 0.0
      %1874 = vmatpush1.msra.mxu0 0.0
      %1875 = vmatprep.subr.mxu0 0.0
      %1876 = vmatpush1.msra.mxu0 0.0
      %1877 = vmatprep.subr.mxu0 0.0
      %1878 = vmatpush1.msra.mxu0 0.0
      %1879 = vmatprep.subr.mxu0 0.0
      %1880 = vmatpush1.msra.mxu0 0.0
      %1881 = vmatprep.subr.mxu0 0.0
      %1882 = vmatpush1.msra.mxu0 0.0
      %1883 = vmatprep.subr.mxu0 0.0
      %1884 = vmatpush1.msra.mxu0 0.0
      %1885 = vmatprep.subr.mxu0 0.0
      %1886 = vmatpush1.msra.mxu0 0.0
      %1887 = vmatprep.subr.mxu0 0.0
      %1888 = vmatpush1.msra.mxu0 0.0
      %1889 = vmatprep.subr.mxu0 0.0
      %1890 = vmatpush1.msra.mxu0 0.0
      %1891 = vmatprep.subr.mxu0 0.0
      %1892 = vmatpush1.msra.mxu0 0.0
      %1893 = vmatprep.subr.mxu0 0.0
      %1894 = vmatpush1.msra.mxu0 0.0
      %1895 = vmatprep.subr.mxu0 0.0
      %1896 = vmatpush1.msra.mxu0 0.0
      %1897 = vmatprep.subr.mxu0 0.0
      %1898 = vmatpush1.msra.mxu0 0.0
      %1899 = vmatprep.mubr.f32.mxu0 0.0
      %1900 = vmatmul.mubr.f32.gmra.mrb[0].mxu0 %v1747
      %v1901 = vpop.f32.mrb[0].mxu0
      %v1902 = vadd.f32 0.0, %v1901
      %v1903 = vpop.f32.mrb[0].mxu0
      %1904 = vmatprep.mubr.f32.mxu0 0.0
      %1905 = vmatmul.mubr.f32.gmra.mrb[0].mxu0 %v1750
      %v1906 = vpop.f32.mrb[0].mxu0
      %v1907 = vadd.f32 0.0, %v1906
      %v1908 = vpop.f32.mrb[0].mxu0
      %1909 = vdwg.mxu0
      %v1910 = vadd.f32 %v1717, %v1825
      %v1911 = vadd.f32 %v1718, %v1827
      %v1912 = vadd.f32 %v1719, %v1902
      %v1913 = vadd.f32 %v1720, %v1831
      %v1914 = vadd.f32 %v1721, %v1833
      %v1915 = vadd.f32 %v1722, %v1907
      %s1916 = scalar_lea.vmem %s1, 144
      %v1917 = vld [vmem:[%s1916] sm:$0xff]
      %v1918 = vld [vmem:[%s1916 + $0x8] sm:$0xf]
      %1919 = vrot.lane.b32.xlu0 %v198, 89
      %v1920 = vpop.permute.xlu0 %1919
      %1921 = vrot.lane.b32.xlu0 %v199, 89
      %v1922 = vpop.permute.xlu0 %1921
      %1923 = vrot.lane.b32.xlu0 %v200, 89
      %v1924 = vpop.permute.xlu0 %1923
      %1925 = vrot.lane.b32.xlu0 %v201, 89
      %v1926 = vpop.permute.xlu0 %1925
      %1927 = vrot.lane.b32.xlu0 %v202, 89
      %v1928 = vpop.permute.xlu0 %1927
      %1929 = vrot.lane.b32.xlu0 %v203, 89
      %v1930 = vpop.permute.xlu0 %1929
      %vm1931 = vcmask 728064
      %v1932 = vsel %vm1931, %v1920, %v1922
      %v1933 = vsel %vm1931, %v1922, %v1924
      %v1934 = vsel %vm1931, %v1926, %v1928
      %v1935 = vsel %vm1931, %v1928, %v1930
      %v1940 = vsel %vm235, %v1917, 0
      %v1943 = vsel %vm235, %v1918, 0
      %v1945 = vsel %vm242, %v1934, 0
      %v1947 = vsel %vm242, %v1935, 0
      %v1949 = vsel %vm242, %v1930, 0
      %1951 = vmatprep.subr.mxu0 %v1933
      %1952 = vmatpush1.msra.mxu0 %v1932
      %1953 = vmatprep.subr.mxu0 %v1947
      %1954 = vmatpush1.msra.mxu0 %v1945
      %1955 = vmatprep.subr.mxu0 0.0
      %1956 = vmatpush1.msra.mxu0 0.0
      %1957 = vmatprep.subr.mxu0 0.0
      %1958 = vmatpush1.msra.mxu0 0.0
      %1959 = vmatprep.subr.mxu0 0.0
      %1960 = vmatpush1.msra.mxu0 0.0
      %1961 = vmatprep.subr.mxu0 0.0
      %1962 = vmatpush1.msra.mxu0 0.0
      %1963 = vmatprep.subr.mxu0 0.0
      %1964 = vmatpush1.msra.mxu0 0.0
      %1965 = vmatprep.subr.mxu0 0.0
      %1966 = vmatpush1.msra.mxu0 0.0
      %1967 = vmatprep.subr.mxu0 0.0
      %1968 = vmatpush1.msra.mxu0 0.0
      %1969 = vmatprep.subr.mxu0 0.0
      %1970 = vmatpush1.msra.mxu0 0.0
      %1971 = vmatprep.subr.mxu0 0.0
      %1972 = vmatpush1.msra.mxu0 0.0
      %1973 = vmatprep.subr.mxu0 0.0
      %1974 = vmatpush1.msra.mxu0 0.0
      %1975 = vmatprep.subr.mxu0 0.0
      %1976 = vmatpush1.msra.mxu0 0.0
      %1977 = vmatprep.subr.mxu0 0.0
      %1978 = vmatpush1.msra.mxu0 0.0
      %1979 = vmatprep.subr.mxu0 0.0
      %1980 = vmatpush1.msra.mxu0 0.0
      %1981 = vmatprep.subr.mxu0 0.0
      %1982 = vmatpush1.msra.mxu0 0.0
      %1983 = vmatprep.subr.mxu0 0.0
      %1984 = vmatpush1.msra.mxu0 0.0
      %1985 = vmatprep.subr.mxu0 0.0
      %1986 = vmatpush1.msra.mxu0 0.0
      %1987 = vmatprep.subr.mxu0 0.0
      %1988 = vmatpush1.msra.mxu0 0.0
      %1989 = vmatprep.subr.mxu0 0.0
      %1990 = vmatpush1.msra.mxu0 0.0
      %1991 = vmatprep.subr.mxu0 0.0
      %1992 = vmatpush1.msra.mxu0 0.0
      %1993 = vmatprep.subr.mxu0 0.0
      %1994 = vmatpush1.msra.mxu0 0.0
      %1995 = vmatprep.subr.mxu0 0.0
      %1996 = vmatpush1.msra.mxu0 0.0
      %1997 = vmatprep.subr.mxu0 0.0
      %1998 = vmatpush1.msra.mxu0 0.0
      %1999 = vmatprep.subr.mxu0 0.0
      %2000 = vmatpush1.msra.mxu0 0.0
      %2001 = vmatprep.subr.mxu0 0.0
      %2002 = vmatpush1.msra.mxu0 0.0
      %2003 = vmatprep.subr.mxu0 0.0
      %2004 = vmatpush1.msra.mxu0 0.0
      %2005 = vmatprep.subr.mxu0 0.0
      %2006 = vmatpush1.msra.mxu0 0.0
      %2007 = vmatprep.subr.mxu0 0.0
      %2008 = vmatpush1.msra.mxu0 0.0
      %2009 = vmatprep.subr.mxu0 0.0
      %2010 = vmatpush1.msra.mxu0 0.0
      %2011 = vmatprep.subr.mxu0 0.0
      %2012 = vmatpush1.msra.mxu0 0.0
      %2013 = vmatprep.subr.mxu0 0.0
      %2014 = vmatpush1.msra.mxu0 0.0
      %2015 = vmatprep.mubr.f32.mxu0 0.0
      %2016 = vmatmul.mubr.f32.gmra.mrb[0].mxu0 %v1940
      %v2017 = vpop.f32.mrb[0].mxu0
      %v2018 = vadd.f32 0.0, %v2017
      %v2019 = vpop.f32.mrb[0].mxu0
      %v2020 = vadd.f32 0.0, %v2019
      %2021 = vmatprep.mubr.f32.mxu0 0.0
      %2022 = vmatmul.mubr.f32.gmra.mrb[0].mxu0 %v1943
      %v2023 = vpop.f32.mrb[0].mxu0
      %v2024 = vadd.f32 0.0, %v2023
      %v2025 = vpop.f32.mrb[0].mxu0
      %v2026 = vadd.f32 0.0, %v2025
      %2027 = vdwg.mxu0
      %2028 = vmatprep.subr.mxu0 0.0
      %2029 = vmatpush1.msra.mxu0 %v1924
      %2030 = vmatprep.subr.mxu0 0.0
      %2031 = vmatpush1.msra.mxu0 %v1949
      %2032 = vmatprep.subr.mxu0 0.0
      %2033 = vmatpush1.msra.mxu0 0.0
      %2034 = vmatprep.subr.mxu0 0.0
      %2035 = vmatpush1.msra.mxu0 0.0
      %2036 = vmatprep.subr.mxu0 0.0
      %2037 = vmatpush1.msra.mxu0 0.0
      %2038 = vmatprep.subr.mxu0 0.0
      %2039 = vmatpush1.msra.mxu0 0.0
      %2040 = vmatprep.subr.mxu0 0.0
      %2041 = vmatpush1.msra.mxu0 0.0
      %2042 = vmatprep.subr.mxu0 0.0
      %2043 = vmatpush1.msra.mxu0 0.0
      %2044 = vmatprep.subr.mxu0 0.0
      %2045 = vmatpush1.msra.mxu0 0.0
      %2046 = vmatprep.subr.mxu0 0.0
      %2047 = vmatpush1.msra.mxu0 0.0
      %2048 = vmatprep.subr.mxu0 0.0
      %2049 = vmatpush1.msra.mxu0 0.0
      %2050 = vmatprep.subr.mxu0 0.0
      %2051 = vmatpush1.msra.mxu0 0.0
      %2052 = vmatprep.subr.mxu0 0.0
      %2053 = vmatpush1.msra.mxu0 0.0
      %2054 = vmatprep.subr.mxu0 0.0
      %2055 = vmatpush1.msra.mxu0 0.0
      %2056 = vmatprep.subr.mxu0 0.0
      %2057 = vmatpush1.msra.mxu0 0.0
      %2058 = vmatprep.subr.mxu0 0.0
      %2059 = vmatpush1.msra.mxu0 0.0
      %2060 = vmatprep.subr.mxu0 0.0
      %2061 = vmatpush1.msra.mxu0 0.0
      %2062 = vmatprep.subr.mxu0 0.0
      %2063 = vmatpush1.msra.mxu0 0.0
      %2064 = vmatprep.subr.mxu0 0.0
      %2065 = vmatpush1.msra.mxu0 0.0
      %2066 = vmatprep.subr.mxu0 0.0
      %2067 = vmatpush1.msra.mxu0 0.0
      %2068 = vmatprep.subr.mxu0 0.0
      %2069 = vmatpush1.msra.mxu0 0.0
      %2070 = vmatprep.subr.mxu0 0.0
      %2071 = vmatpush1.msra.mxu0 0.0
      %2072 = vmatprep.subr.mxu0 0.0
      %2073 = vmatpush1.msra.mxu0 0.0
      %2074 = vmatprep.subr.mxu0 0.0
      %2075 = vmatpush1.msra.mxu0 0.0
      %2076 = vmatprep.subr.mxu0 0.0
      %2077 = vmatpush1.msra.mxu0 0.0
      %2078 = vmatprep.subr.mxu0 0.0
      %2079 = vmatpush1.msra.mxu0 0.0
      %2080 = vmatprep.subr.mxu0 0.0
      %2081 = vmatpush1.msra.mxu0 0.0
      %2082 = vmatprep.subr.mxu0 0.0
      %2083 = vmatpush1.msra.mxu0 0.0
      %2084 = vmatprep.subr.mxu0 0.0
      %2085 = vmatpush1.msra.mxu0 0.0
      %2086 = vmatprep.subr.mxu0 0.0
      %2087 = vmatpush1.msra.mxu0 0.0
      %2088 = vmatprep.subr.mxu0 0.0
      %2089 = vmatpush1.msra.mxu0 0.0
      %2090 = vmatprep.subr.mxu0 0.0
      %2091 = vmatpush1.msra.mxu0 0.0
      %2092 = vmatprep.mubr.f32.mxu0 0.0
      %2093 = vmatmul.mubr.f32.gmra.mrb[0].mxu0 %v1940
      %v2094 = vpop.f32.mrb[0].mxu0
      %v2095 = vadd.f32 0.0, %v2094
      %v2096 = vpop.f32.mrb[0].mxu0
      %2097 = vmatprep.mubr.f32.mxu0 0.0
      %2098 = vmatmul.mubr.f32.gmra.mrb[0].mxu0 %v1943
      %v2099 = vpop.f32.mrb[0].mxu0
      %v2100 = vadd.f32 0.0, %v2099
      %v2101 = vpop.f32.mrb[0].mxu0
      %2102 = vdwg.mxu0
      %v2103 = vadd.f32 %v1910, %v2018
      %v2104 = vadd.f32 %v1911, %v2020
      %v2105 = vadd.f32 %v1912, %v2095
      %v2106 = vadd.f32 %v1913, %v2024
      %v2107 = vadd.f32 %v1914, %v2026
      %v2108 = vadd.f32 %v1915, %v2100
      %s2109 = scalar_lea.vmem %s1, 160
      %v2110 = vld [vmem:[%s2109] sm:$0xff]
      %v2111 = vld [vmem:[%s2109 + $0x8] sm:$0xf]
      %2112 = vrot.lane.b32.xlu0 %v198, 88
      %v2113 = vpop.permute.xlu0 %2112
      %2114 = vrot.lane.b32.xlu0 %v199, 88
      %v2115 = vpop.permute.xlu0 %2114
      %2116 = vrot.lane.b32.xlu0 %v200, 88
      %v2117 = vpop.permute.xlu0 %2116
      %2118 = vrot.lane.b32.xlu0 %v201, 88
      %v2119 = vpop.permute.xlu0 %2118
      %2120 = vrot.lane.b32.xlu0 %v202, 88
      %v2121 = vpop.permute.xlu0 %2120
      %2122 = vrot.lane.b32.xlu0 %v203, 88
      %v2123 = vpop.permute.xlu0 %2122
      %vm2124 = vcmask 719872
      %v2125 = vsel %vm2124, %v2113, %v2115
      %v2126 = vsel %vm2124, %v2115, %v2117
      %v2127 = vsel %vm2124, %v2119, %v2121
      %v2128 = vsel %vm2124, %v2121, %v2123
      %v2133 = vsel %vm235, %v2110, 0
      %v2136 = vsel %vm235, %v2111, 0
      %v2138 = vsel %vm242, %v2127, 0
      %v2140 = vsel %vm242, %v2128, 0
      %v2142 = vsel %vm242, %v2123, 0
      %2144 = vmatprep.subr.mxu0 %v2126
      %2145 = vmatpush1.msra.mxu0 %v2125
      %2146 = vmatprep.subr.mxu0 %v2140
      %2147 = vmatpush1.msra.mxu0 %v2138
      %2148 = vmatprep.subr.mxu0 0.0
      %2149 = vmatpush1.msra.mxu0 0.0
      %2150 = vmatprep.subr.mxu0 0.0
      %2151 = vmatpush1.msra.mxu0 0.0
      %2152 = vmatprep.subr.mxu0 0.0
      %2153 = vmatpush1.msra.mxu0 0.0
      %2154 = vmatprep.subr.mxu0 0.0
      %2155 = vmatpush1.msra.mxu0 0.0
      %2156 = vmatprep.subr.mxu0 0.0
      %2157 = vmatpush1.msra.mxu0 0.0
      %2158 = vmatprep.subr.mxu0 0.0
      %2159 = vmatpush1.msra.mxu0 0.0
      %2160 = vmatprep.subr.mxu0 0.0
      %2161 = vmatpush1.msra.mxu0 0.0
      %2162 = vmatprep.subr.mxu0 0.0
      %2163 = vmatpush1.msra.mxu0 0.0
      %2164 = vmatprep.subr.mxu0 0.0
      %2165 = vmatpush1.msra.mxu0 0.0
      %2166 = vmatprep.subr.mxu0 0.0
      %2167 = vmatpush1.msra.mxu0 0.0
      %2168 = vmatprep.subr.mxu0 0.0
      %2169 = vmatpush1.msra.mxu0 0.0
      %2170 = vmatprep.subr.mxu0 0.0
      %2171 = vmatpush1.msra.mxu0 0.0
      %2172 = vmatprep.subr.mxu0 0.0
      %2173 = vmatpush1.msra.mxu0 0.0
      %2174 = vmatprep.subr.mxu0 0.0
      %2175 = vmatpush1.msra.mxu0 0.0
      %2176 = vmatprep.subr.mxu0 0.0
      %2177 = vmatpush1.msra.mxu0 0.0
      %2178 = vmatprep.subr.mxu0 0.0
      %2179 = vmatpush1.msra.mxu0 0.0
      %2180 = vmatprep.subr.mxu0 0.0
      %2181 = vmatpush1.msra.mxu0 0.0
      %2182 = vmatprep.subr.mxu0 0.0
      %2183 = vmatpush1.msra.mxu0 0.0
      %2184 = vmatprep.subr.mxu0 0.0
      %2185 = vmatpush1.msra.mxu0 0.0
      %2186 = vmatprep.subr.mxu0 0.0
      %2187 = vmatpush1.msra.mxu0 0.0
      %2188 = vmatprep.subr.mxu0 0.0
      %2189 = vmatpush1.msra.mxu0 0.0
      %2190 = vmatprep.subr.mxu0 0.0
      %2191 = vmatpush1.msra.mxu0 0.0
      %2192 = vmatprep.subr.mxu0 0.0
      %2193 = vmatpush1.msra.mxu0 0.0
      %2194 = vmatprep.subr.mxu0 0.0
      %2195 = vmatpush1.msra.mxu0 0.0
      %2196 = vmatprep.subr.mxu0 0.0
      %2197 = vmatpush1.msra.mxu0 0.0
      %2198 = vmatprep.subr.mxu0 0.0
      %2199 = vmatpush1.msra.mxu0 0.0
      %2200 = vmatprep.subr.mxu0 0.0
      %2201 = vmatpush1.msra.mxu0 0.0
      %2202 = vmatprep.subr.mxu0 0.0
      %2203 = vmatpush1.msra.mxu0 0.0
      %2204 = vmatprep.subr.mxu0 0.0
      %2205 = vmatpush1.msra.mxu0 0.0
      %2206 = vmatprep.subr.mxu0 0.0
      %2207 = vmatpush1.msra.mxu0 0.0
      %2208 = vmatprep.mubr.f32.mxu0 0.0
      %2209 = vmatmul.mubr.f32.gmra.mrb[0].mxu0 %v2133
      %v2210 = vpop.f32.mrb[0].mxu0
      %v2211 = vadd.f32 0.0, %v2210
      %v2212 = vpop.f32.mrb[0].mxu0
      %v2213 = vadd.f32 0.0, %v2212
      %2214 = vmatprep.mubr.f32.mxu0 0.0
      %2215 = vmatmul.mubr.f32.gmra.mrb[0].mxu0 %v2136
      %v2216 = vpop.f32.mrb[0].mxu0
      %v2217 = vadd.f32 0.0, %v2216
      %v2218 = vpop.f32.mrb[0].mxu0
      %v2219 = vadd.f32 0.0, %v2218
      %2220 = vdwg.mxu0
      %2221 = vmatprep.subr.mxu0 0.0
      %2222 = vmatpush1.msra.mxu0 %v2117
      %2223 = vmatprep.subr.mxu0 0.0
      %2224 = vmatpush1.msra.mxu0 %v2142
      %2225 = vmatprep.subr.mxu0 0.0
      %2226 = vmatpush1.msra.mxu0 0.0
      %2227 = vmatprep.subr.mxu0 0.0
      %2228 = vmatpush1.msra.mxu0 0.0
      %2229 = vmatprep.subr.mxu0 0.0
      %2230 = vmatpush1.msra.mxu0 0.0
      %2231 = vmatprep.subr.mxu0 0.0
      %2232 = vmatpush1.msra.mxu0 0.0
      %2233 = vmatprep.subr.mxu0 0.0
      %2234 = vmatpush1.msra.mxu0 0.0
      %2235 = vmatprep.subr.mxu0 0.0
      %2236 = vmatpush1.msra.mxu0 0.0
      %2237 = vmatprep.subr.mxu0 0.0
      %2238 = vmatpush1.msra.mxu0 0.0
      %2239 = vmatprep.subr.mxu0 0.0
      %2240 = vmatpush1.msra.mxu0 0.0
      %2241 = vmatprep.subr.mxu0 0.0
      %2242 = vmatpush1.msra.mxu0 0.0
      %2243 = vmatprep.subr.mxu0 0.0
      %2244 = vmatpush1.msra.mxu0 0.0
      %2245 = vmatprep.subr.mxu0 0.0
      %2246 = vmatpush1.msra.mxu0 0.0
      %2247 = vmatprep.subr.mxu0 0.0
      %2248 = vmatpush1.msra.mxu0 0.0
      %2249 = vmatprep.subr.mxu0 0.0
      %2250 = vmatpush1.msra.mxu0 0.0
      %2251 = vmatprep.subr.mxu0 0.0
      %2252 = vmatpush1.msra.mxu0 0.0
      %2253 = vmatprep.subr.mxu0 0.0
      %2254 = vmatpush1.msra.mxu0 0.0
      %2255 = vmatprep.subr.mxu0 0.0
      %2256 = vmatpush1.msra.mxu0 0.0
      %2257 = vmatprep.subr.mxu0 0.0
      %2258 = vmatpush1.msra.mxu0 0.0
      %2259 = vmatprep.subr.mxu0 0.0
      %2260 = vmatpush1.msra.mxu0 0.0
      %2261 = vmatprep.subr.mxu0 0.0
      %2262 = vmatpush1.msra.mxu0 0.0
      %2263 = vmatprep.subr.mxu0 0.0
      %2264 = vmatpush1.msra.mxu0 0.0
      %2265 = vmatprep.subr.mxu0 0.0
      %2266 = vmatpush1.msra.mxu0 0.0
      %2267 = vmatprep.subr.mxu0 0.0
      %2268 = vmatpush1.msra.mxu0 0.0
      %2269 = vmatprep.subr.mxu0 0.0
      %2270 = vmatpush1.msra.mxu0 0.0
      %2271 = vmatprep.subr.mxu0 0.0
      %2272 = vmatpush1.msra.mxu0 0.0
      %2273 = vmatprep.subr.mxu0 0.0
      %2274 = vmatpush1.msra.mxu0 0.0
      %2275 = vmatprep.subr.mxu0 0.0
      %2276 = vmatpush1.msra.mxu0 0.0
      %2277 = vmatprep.subr.mxu0 0.0
      %2278 = vmatpush1.msra.mxu0 0.0
      %2279 = vmatprep.subr.mxu0 0.0
      %2280 = vmatpush1.msra.mxu0 0.0
      %2281 = vmatprep.subr.mxu0 0.0
      %2282 = vmatpush1.msra.mxu0 0.0
      %2283 = vmatprep.subr.mxu0 0.0
      %2284 = vmatpush1.msra.mxu0 0.0
      %2285 = vmatprep.mubr.f32.mxu0 0.0
      %2286 = vmatmul.mubr.f32.gmra.mrb[0].mxu0 %v2133
      %v2287 = vpop.f32.mrb[0].mxu0
      %v2288 = vadd.f32 0.0, %v2287
      %v2289 = vpop.f32.mrb[0].mxu0
      %2290 = vmatprep.mubr.f32.mxu0 0.0
      %2291 = vmatmul.mubr.f32.gmra.mrb[0].mxu0 %v2136
      %v2292 = vpop.f32.mrb[0].mxu0
      %v2293 = vadd.f32 0.0, %v2292
      %v2294 = vpop.f32.mrb[0].mxu0
      %2295 = vdwg.mxu0
      %v2296 = vadd.f32 %v2103, %v2211
      %v2297 = vadd.f32 %v2104, %v2213
      %v2298 = vadd.f32 %v2105, %v2288
      %v2299 = vadd.f32 %v2106, %v2217
      %v2300 = vadd.f32 %v2107, %v2219
      %v2301 = vadd.f32 %v2108, %v2293
      %s2302 = scalar_lea.vmem %s1, 176
      %v2303 = vld [vmem:[%s2302] sm:$0xff]
      %v2304 = vld [vmem:[%s2302 + $0x8] sm:$0xf]
      %2305 = vrot.lane.b32.xlu0 %v198, 87
      %v2306 = vpop.permute.xlu0 %2305
      %2307 = vrot.lane.b32.xlu0 %v199, 87
      %v2308 = vpop.permute.xlu0 %2307
      %2309 = vrot.lane.b32.xlu0 %v200, 87
      %v2310 = vpop.permute.xlu0 %2309
      %2311 = vrot.lane.b32.xlu0 %v201, 87
      %v2312 = vpop.permute.xlu0 %2311
      %2313 = vrot.lane.b32.xlu0 %v202, 87
      %v2314 = vpop.permute.xlu0 %2313
      %2315 = vrot.lane.b32.xlu0 %v203, 87
      %v2316 = vpop.permute.xlu0 %2315
      %vm2317 = vcmask 711680
      %v2318 = vsel %vm2317, %v2306, %v2308
      %v2319 = vsel %vm2317, %v2308, %v2310
      %v2320 = vsel %vm2317, %v2312, %v2314
      %v2321 = vsel %vm2317, %v2314, %v2316
      %v2326 = vsel %vm235, %v2303, 0
      %v2329 = vsel %vm235, %v2304, 0
      %v2331 = vsel %vm242, %v2320, 0
      %v2333 = vsel %vm242, %v2321, 0
      %v2335 = vsel %vm242, %v2316, 0
      %2337 = vmatprep.subr.mxu0 %v2319
      %2338 = vmatpush1.msra.mxu0 %v2318
      %2339 = vmatprep.subr.mxu0 %v2333
      %2340 = vmatpush1.msra.mxu0 %v2331
      %2341 = vmatprep.subr.mxu0 0.0
      %2342 = vmatpush1.msra.mxu0 0.0
      %2343 = vmatprep.subr.mxu0 0.0
      %2344 = vmatpush1.msra.mxu0 0.0
      %2345 = vmatprep.subr.mxu0 0.0
      %2346 = vmatpush1.msra.mxu0 0.0
      %2347 = vmatprep.subr.mxu0 0.0
      %2348 = vmatpush1.msra.mxu0 0.0
      %2349 = vmatprep.subr.mxu0 0.0
      %2350 = vmatpush1.msra.mxu0 0.0
      %2351 = vmatprep.subr.mxu0 0.0
      %2352 = vmatpush1.msra.mxu0 0.0
      %2353 = vmatprep.subr.mxu0 0.0
      %2354 = vmatpush1.msra.mxu0 0.0
      %2355 = vmatprep.subr.mxu0 0.0
      %2356 = vmatpush1.msra.mxu0 0.0
      %2357 = vmatprep.subr.mxu0 0.0
      %2358 = vmatpush1.msra.mxu0 0.0
      %2359 = vmatprep.subr.mxu0 0.0
      %2360 = vmatpush1.msra.mxu0 0.0
      %2361 = vmatprep.subr.mxu0 0.0
      %2362 = vmatpush1.msra.mxu0 0.0
      %2363 = vmatprep.subr.mxu0 0.0
      %2364 = vmatpush1.msra.mxu0 0.0
      %2365 = vmatprep.subr.mxu0 0.0
      %2366 = vmatpush1.msra.mxu0 0.0
      %2367 = vmatprep.subr.mxu0 0.0
      %2368 = vmatpush1.msra.mxu0 0.0
      %2369 = vmatprep.subr.mxu0 0.0
      %2370 = vmatpush1.msra.mxu0 0.0
      %2371 = vmatprep.subr.mxu0 0.0
      %2372 = vmatpush1.msra.mxu0 0.0
      %2373 = vmatprep.subr.mxu0 0.0
      %2374 = vmatpush1.msra.mxu0 0.0
      %2375 = vmatprep.subr.mxu0 0.0
      %2376 = vmatpush1.msra.mxu0 0.0
      %2377 = vmatprep.subr.mxu0 0.0
      %2378 = vmatpush1.msra.mxu0 0.0
      %2379 = vmatprep.subr.mxu0 0.0
      %2380 = vmatpush1.msra.mxu0 0.0
      %2381 = vmatprep.subr.mxu0 0.0
      %2382 = vmatpush1.msra.mxu0 0.0
      %2383 = vmatprep.subr.mxu0 0.0
      %2384 = vmatpush1.msra.mxu0 0.0
      %2385 = vmatprep.subr.mxu0 0.0
      %2386 = vmatpush1.msra.mxu0 0.0
      %2387 = vmatprep.subr.mxu0 0.0
      %2388 = vmatpush1.msra.mxu0 0.0
      %2389 = vmatprep.subr.mxu0 0.0
      %2390 = vmatpush1.msra.mxu0 0.0
      %2391 = vmatprep.subr.mxu0 0.0
      %2392 = vmatpush1.msra.mxu0 0.0
      %2393 = vmatprep.subr.mxu0 0.0
      %2394 = vmatpush1.msra.mxu0 0.0
      %2395 = vmatprep.subr.mxu0 0.0
      %2396 = vmatpush1.msra.mxu0 0.0
      %2397 = vmatprep.subr.mxu0 0.0
      %2398 = vmatpush1.msra.mxu0 0.0
      %2399 = vmatprep.subr.mxu0 0.0
      %2400 = vmatpush1.msra.mxu0 0.0
      %2401 = vmatprep.mubr.f32.mxu0 0.0
      %2402 = vmatmul.mubr.f32.gmra.mrb[0].mxu0 %v2326
      %v2403 = vpop.f32.mrb[0].mxu0
      %v2404 = vadd.f32 0.0, %v2403
      %v2405 = vpop.f32.mrb[0].mxu0
      %v2406 = vadd.f32 0.0, %v2405
      %2407 = vmatprep.mubr.f32.mxu0 0.0
      %2408 = vmatmul.mubr.f32.gmra.mrb[0].mxu0 %v2329
      %v2409 = vpop.f32.mrb[0].mxu0
      %v2410 = vadd.f32 0.0, %v2409
      %v2411 = vpop.f32.mrb[0].mxu0
      %v2412 = vadd.f32 0.0, %v2411
      %2413 = vdwg.mxu0
      %2414 = vmatprep.subr.mxu0 0.0
      %2415 = vmatpush1.msra.mxu0 %v2310
      %2416 = vmatprep.subr.mxu0 0.0
      %2417 = vmatpush1.msra.mxu0 %v2335
      %2418 = vmatprep.subr.mxu0 0.0
      %2419 = vmatpush1.msra.mxu0 0.0
      %2420 = vmatprep.subr.mxu0 0.0
      %2421 = vmatpush1.msra.mxu0 0.0
      %2422 = vmatprep.subr.mxu0 0.0
      %2423 = vmatpush1.msra.mxu0 0.0
      %2424 = vmatprep.subr.mxu0 0.0
      %2425 = vmatpush1.msra.mxu0 0.0
      %2426 = vmatprep.subr.mxu0 0.0
      %2427 = vmatpush1.msra.mxu0 0.0
      %2428 = vmatprep.subr.mxu0 0.0
      %2429 = vmatpush1.msra.mxu0 0.0
      %2430 = vmatprep.subr.mxu0 0.0
      %2431 = vmatpush1.msra.mxu0 0.0
      %2432 = vmatprep.subr.mxu0 0.0
      %2433 = vmatpush1.msra.mxu0 0.0
      %2434 = vmatprep.subr.mxu0 0.0
      %2435 = vmatpush1.msra.mxu0 0.0
      %2436 = vmatprep.subr.mxu0 0.0
      %2437 = vmatpush1.msra.mxu0 0.0
      %2438 = vmatprep.subr.mxu0 0.0
      %2439 = vmatpush1.msra.mxu0 0.0
      %2440 = vmatprep.subr.mxu0 0.0
      %2441 = vmatpush1.msra.mxu0 0.0
      %2442 = vmatprep.subr.mxu0 0.0
      %2443 = vmatpush1.msra.mxu0 0.0
      %2444 = vmatprep.subr.mxu0 0.0
      %2445 = vmatpush1.msra.mxu0 0.0
      %2446 = vmatprep.subr.mxu0 0.0
      %2447 = vmatpush1.msra.mxu0 0.0
      %2448 = vmatprep.subr.mxu0 0.0
      %2449 = vmatpush1.msra.mxu0 0.0
      %2450 = vmatprep.subr.mxu0 0.0
      %2451 = vmatpush1.msra.mxu0 0.0
      %2452 = vmatprep.subr.mxu0 0.0
      %2453 = vmatpush1.msra.mxu0 0.0
      %2454 = vmatprep.subr.mxu0 0.0
      %2455 = vmatpush1.msra.mxu0 0.0
      %2456 = vmatprep.subr.mxu0 0.0
      %2457 = vmatpush1.msra.mxu0 0.0
      %2458 = vmatprep.subr.mxu0 0.0
      %2459 = vmatpush1.msra.mxu0 0.0
      %2460 = vmatprep.subr.mxu0 0.0
      %2461 = vmatpush1.msra.mxu0 0.0
      %2462 = vmatprep.subr.mxu0 0.0
      %2463 = vmatpush1.msra.mxu0 0.0
      %2464 = vmatprep.subr.mxu0 0.0
      %2465 = vmatpush1.msra.mxu0 0.0
      %2466 = vmatprep.subr.mxu0 0.0
      %2467 = vmatpush1.msra.mxu0 0.0
      %2468 = vmatprep.subr.mxu0 0.0
      %2469 = vmatpush1.msra.mxu0 0.0
      %2470 = vmatprep.subr.mxu0 0.0
      %2471 = vmatpush1.msra.mxu0 0.0
      %2472 = vmatprep.subr.mxu0 0.0
      %2473 = vmatpush1.msra.mxu0 0.0
      %2474 = vmatprep.subr.mxu0 0.0
      %2475 = vmatpush1.msra.mxu0 0.0
      %2476 = vmatprep.subr.mxu0 0.0
      %2477 = vmatpush1.msra.mxu0 0.0
      %2478 = vmatprep.mubr.f32.mxu0 0.0
      %2479 = vmatmul.mubr.f32.gmra.mrb[0].mxu0 %v2326
      %v2480 = vpop.f32.mrb[0].mxu0
      %v2481 = vadd.f32 0.0, %v2480
      %v2482 = vpop.f32.mrb[0].mxu0
      %2483 = vmatprep.mubr.f32.mxu0 0.0
      %2484 = vmatmul.mubr.f32.gmra.mrb[0].mxu0 %v2329
      %v2485 = vpop.f32.mrb[0].mxu0
      %v2486 = vadd.f32 0.0, %v2485
      %v2487 = vpop.f32.mrb[0].mxu0
      %2488 = vdwg.mxu0
      %v2489 = vadd.f32 %v2296, %v2404
      %v2490 = vadd.f32 %v2297, %v2406
      %v2491 = vadd.f32 %v2298, %v2481
      %v2492 = vadd.f32 %v2299, %v2410
      %v2493 = vadd.f32 %v2300, %v2412
      %v2494 = vadd.f32 %v2301, %v2486
      %s2495 = scalar_lea.vmem %s1, 192
      %v2496 = vld [vmem:[%s2495] sm:$0xff]
      %v2497 = vld [vmem:[%s2495 + $0x8] sm:$0xf]
      %2498 = vrot.lane.b32.xlu0 %v198, 71
      %v2499 = vpop.permute.xlu0 %2498
      %2500 = vrot.lane.b32.xlu0 %v199, 71
      %v2501 = vpop.permute.xlu0 %2500
      %2502 = vrot.lane.b32.xlu0 %v200, 71
      %v2503 = vpop.permute.xlu0 %2502
      %2504 = vrot.lane.b32.xlu0 %v201, 71
      %v2505 = vpop.permute.xlu0 %2504
      %2506 = vrot.lane.b32.xlu0 %v202, 71
      %v2507 = vpop.permute.xlu0 %2506
      %2508 = vrot.lane.b32.xlu0 %v203, 71
      %v2509 = vpop.permute.xlu0 %2508
      %vm2510 = vcmask 580608
      %v2511 = vsel %vm2510, %v2499, %v2501
      %v2512 = vsel %vm2510, %v2501, %v2503
      %v2513 = vsel %vm2510, %v2505, %v2507
      %v2514 = vsel %vm2510, %v2507, %v2509
      %v2519 = vsel %vm235, %v2496, 0
      %v2522 = vsel %vm235, %v2497, 0
      %v2524 = vsel %vm242, %v2513, 0
      %v2526 = vsel %vm242, %v2514, 0
      %v2528 = vsel %vm242, %v2509, 0
      %2530 = vmatprep.subr.mxu0 %v2512
      %2531 = vmatpush1.msra.mxu0 %v2511
      %2532 = vmatprep.subr.mxu0 %v2526
      %2533 = vmatpush1.msra.mxu0 %v2524
      %2534 = vmatprep.subr.mxu0 0.0
      %2535 = vmatpush1.msra.mxu0 0.0
      %2536 = vmatprep.subr.mxu0 0.0
      %2537 = vmatpush1.msra.mxu0 0.0
      %2538 = vmatprep.subr.mxu0 0.0
      %2539 = vmatpush1.msra.mxu0 0.0
      %2540 = vmatprep.subr.mxu0 0.0
      %2541 = vmatpush1.msra.mxu0 0.0
      %2542 = vmatprep.subr.mxu0 0.0
      %2543 = vmatpush1.msra.mxu0 0.0
      %2544 = vmatprep.subr.mxu0 0.0
      %2545 = vmatpush1.msra.mxu0 0.0
      %2546 = vmatprep.subr.mxu0 0.0
      %2547 = vmatpush1.msra.mxu0 0.0
      %2548 = vmatprep.subr.mxu0 0.0
      %2549 = vmatpush1.msra.mxu0 0.0
      %2550 = vmatprep.subr.mxu0 0.0
      %2551 = vmatpush1.msra.mxu0 0.0
      %2552 = vmatprep.subr.mxu0 0.0
      %2553 = vmatpush1.msra.mxu0 0.0
      %2554 = vmatprep.subr.mxu0 0.0
      %2555 = vmatpush1.msra.mxu0 0.0
      %2556 = vmatprep.subr.mxu0 0.0
      %2557 = vmatpush1.msra.mxu0 0.0
      %2558 = vmatprep.subr.mxu0 0.0
      %2559 = vmatpush1.msra.mxu0 0.0
      %2560 = vmatprep.subr.mxu0 0.0
      %2561 = vmatpush1.msra.mxu0 0.0
      %2562 = vmatprep.subr.mxu0 0.0
      %2563 = vmatpush1.msra.mxu0 0.0
      %2564 = vmatprep.subr.mxu0 0.0
      %2565 = vmatpush1.msra.mxu0 0.0
      %2566 = vmatprep.subr.mxu0 0.0
      %2567 = vmatpush1.msra.mxu0 0.0
      %2568 = vmatprep.subr.mxu0 0.0
      %2569 = vmatpush1.msra.mxu0 0.0
      %2570 = vmatprep.subr.mxu0 0.0
      %2571 = vmatpush1.msra.mxu0 0.0
      %2572 = vmatprep.subr.mxu0 0.0
      %2573 = vmatpush1.msra.mxu0 0.0
      %2574 = vmatprep.subr.mxu0 0.0
      %2575 = vmatpush1.msra.mxu0 0.0
      %2576 = vmatprep.subr.mxu0 0.0
      %2577 = vmatpush1.msra.mxu0 0.0
      %2578 = vmatprep.subr.mxu0 0.0
      %2579 = vmatpush1.msra.mxu0 0.0
      %2580 = vmatprep.subr.mxu0 0.0
      %2581 = vmatpush1.msra.mxu0 0.0
      %2582 = vmatprep.subr.mxu0 0.0
      %2583 = vmatpush1.msra.mxu0 0.0
      %2584 = vmatprep.subr.mxu0 0.0
      %2585 = vmatpush1.msra.mxu0 0.0
      %2586 = vmatprep.subr.mxu0 0.0
      %2587 = vmatpush1.msra.mxu0 0.0
      %2588 = vmatprep.subr.mxu0 0.0
      %2589 = vmatpush1.msra.mxu0 0.0
      %2590 = vmatprep.subr.mxu0 0.0
      %2591 = vmatpush1.msra.mxu0 0.0
      %2592 = vmatprep.subr.mxu0 0.0
      %2593 = vmatpush1.msra.mxu0 0.0
      %2594 = vmatprep.mubr.f32.mxu0 0.0
      %2595 = vmatmul.mubr.f32.gmra.mrb[0].mxu0 %v2519
      %v2596 = vpop.f32.mrb[0].mxu0
      %v2597 = vadd.f32 0.0, %v2596
      %v2598 = vpop.f32.mrb[0].mxu0
      %v2599 = vadd.f32 0.0, %v2598
      %2600 = vmatprep.mubr.f32.mxu0 0.0
      %2601 = vmatmul.mubr.f32.gmra.mrb[0].mxu0 %v2522
      %v2602 = vpop.f32.mrb[0].mxu0
      %v2603 = vadd.f32 0.0, %v2602
      %v2604 = vpop.f32.mrb[0].mxu0
      %v2605 = vadd.f32 0.0, %v2604
      %2606 = vdwg.mxu0
      %2607 = vmatprep.subr.mxu0 0.0
      %2608 = vmatpush1.msra.mxu0 %v2503
      %2609 = vmatprep.subr.mxu0 0.0
      %2610 = vmatpush1.msra.mxu0 %v2528
      %2611 = vmatprep.subr.mxu0 0.0
      %2612 = vmatpush1.msra.mxu0 0.0
      %2613 = vmatprep.subr.mxu0 0.0
      %2614 = vmatpush1.msra.mxu0 0.0
      %2615 = vmatprep.subr.mxu0 0.0
      %2616 = vmatpush1.msra.mxu0 0.0
      %2617 = vmatprep.subr.mxu0 0.0
      %2618 = vmatpush1.msra.mxu0 0.0
      %2619 = vmatprep.subr.mxu0 0.0
      %2620 = vmatpush1.msra.mxu0 0.0
      %2621 = vmatprep.subr.mxu0 0.0
      %2622 = vmatpush1.msra.mxu0 0.0
      %2623 = vmatprep.subr.mxu0 0.0
      %2624 = vmatpush1.msra.mxu0 0.0
      %2625 = vmatprep.subr.mxu0 0.0
      %2626 = vmatpush1.msra.mxu0 0.0
      %2627 = vmatprep.subr.mxu0 0.0
      %2628 = vmatpush1.msra.mxu0 0.0
      %2629 = vmatprep.subr.mxu0 0.0
      %2630 = vmatpush1.msra.mxu0 0.0
      %2631 = vmatprep.subr.mxu0 0.0
      %2632 = vmatpush1.msra.mxu0 0.0
      %2633 = vmatprep.subr.mxu0 0.0
      %2634 = vmatpush1.msra.mxu0 0.0
      %2635 = vmatprep.subr.mxu0 0.0
      %2636 = vmatpush1.msra.mxu0 0.0
      %2637 = vmatprep.subr.mxu0 0.0
      %2638 = vmatpush1.msra.mxu0 0.0
      %2639 = vmatprep.subr.mxu0 0.0
      %2640 = vmatpush1.msra.mxu0 0.0
      %2641 = vmatprep.subr.mxu0 0.0
      %2642 = vmatpush1.msra.mxu0 0.0
      %2643 = vmatprep.subr.mxu0 0.0
      %2644 = vmatpush1.msra.mxu0 0.0
      %2645 = vmatprep.subr.mxu0 0.0
      %2646 = vmatpush1.msra.mxu0 0.0
      %2647 = vmatprep.subr.mxu0 0.0
      %2648 = vmatpush1.msra.mxu0 0.0
      %2649 = vmatprep.subr.mxu0 0.0
      %2650 = vmatpush1.msra.mxu0 0.0
      %2651 = vmatprep.subr.mxu0 0.0
      %2652 = vmatpush1.msra.mxu0 0.0
      %2653 = vmatprep.subr.mxu0 0.0
      %2654 = vmatpush1.msra.mxu0 0.0
      %2655 = vmatprep.subr.mxu0 0.0
      %2656 = vmatpush1.msra.mxu0 0.0
      %2657 = vmatprep.subr.mxu0 0.0
      %2658 = vmatpush1.msra.mxu0 0.0
      %2659 = vmatprep.subr.mxu0 0.0
      %2660 = vmatpush1.msra.mxu0 0.0
      %2661 = vmatprep.subr.mxu0 0.0
      %2662 = vmatpush1.msra.mxu0 0.0
      %2663 = vmatprep.subr.mxu0 0.0
      %2664 = vmatpush1.msra.mxu0 0.0
      %2665 = vmatprep.subr.mxu0 0.0
      %2666 = vmatpush1.msra.mxu0 0.0
      %2667 = vmatprep.subr.mxu0 0.0
      %2668 = vmatpush1.msra.mxu0 0.0
      %2669 = vmatprep.subr.mxu0 0.0
      %2670 = vmatpush1.msra.mxu0 0.0
      %2671 = vmatprep.mubr.f32.mxu0 0.0
      %2672 = vmatmul.mubr.f32.gmra.mrb[0].mxu0 %v2519
      %v2673 = vpop.f32.mrb[0].mxu0
      %v2674 = vadd.f32 0.0, %v2673
      %v2675 = vpop.f32.mrb[0].mxu0
      %2676 = vmatprep.mubr.f32.mxu0 0.0
      %2677 = vmatmul.mubr.f32.gmra.mrb[0].mxu0 %v2522
      %v2678 = vpop.f32.mrb[0].mxu0
      %v2679 = vadd.f32 0.0, %v2678
      %v2680 = vpop.f32.mrb[0].mxu0
      %2681 = vdwg.mxu0
      %v2682 = vadd.f32 %v2489, %v2597
      %v2683 = vadd.f32 %v2490, %v2599
      %v2684 = vadd.f32 %v2491, %v2674
      %v2685 = vadd.f32 %v2492, %v2603
      %v2686 = vadd.f32 %v2493, %v2605
      %v2687 = vadd.f32 %v2494, %v2679
      %s2688 = scalar_lea.vmem %s1, 208
      %v2689 = vld [vmem:[%s2688] sm:$0xff]
      %v2690 = vld [vmem:[%s2688 + $0x8] sm:$0xf]
      %2691 = vrot.lane.b32.xlu0 %v198, 70
      %v2692 = vpop.permute.xlu0 %2691
      %2693 = vrot.lane.b32.xlu0 %v199, 70
      %v2694 = vpop.permute.xlu0 %2693
      %2695 = vrot.lane.b32.xlu0 %v200, 70
      %v2696 = vpop.permute.xlu0 %2695
      %2697 = vrot.lane.b32.xlu0 %v201, 70
      %v2698 = vpop.permute.xlu0 %2697
      %2699 = vrot.lane.b32.xlu0 %v202, 70
      %v2700 = vpop.permute.xlu0 %2699
      %2701 = vrot.lane.b32.xlu0 %v203, 70
      %v2702 = vpop.permute.xlu0 %2701
      %vm2703 = vcmask 572416
      %v2704 = vsel %vm2703, %v2692, %v2694
      %v2705 = vsel %vm2703, %v2694, %v2696
      %v2706 = vsel %vm2703, %v2698, %v2700
      %v2707 = vsel %vm2703, %v2700, %v2702
      %v2712 = vsel %vm235, %v2689, 0
      %v2715 = vsel %vm235, %v2690, 0
      %v2717 = vsel %vm242, %v2706, 0
      %v2719 = vsel %vm242, %v2707, 0
      %v2721 = vsel %vm242, %v2702, 0
      %2723 = vmatprep.subr.mxu0 %v2705
      %2724 = vmatpush1.msra.mxu0 %v2704
      %2725 = vmatprep.subr.mxu0 %v2719
      %2726 = vmatpush1.msra.mxu0 %v2717
      %2727 = vmatprep.subr.mxu0 0.0
      %2728 = vmatpush1.msra.mxu0 0.0
      %2729 = vmatprep.subr.mxu0 0.0
      %2730 = vmatpush1.msra.mxu0 0.0
      %2731 = vmatprep.subr.mxu0 0.0
      %2732 = vmatpush1.msra.mxu0 0.0
      %2733 = vmatprep.subr.mxu0 0.0
      %2734 = vmatpush1.msra.mxu0 0.0
      %2735 = vmatprep.subr.mxu0 0.0
      %2736 = vmatpush1.msra.mxu0 0.0
      %2737 = vmatprep.subr.mxu0 0.0
      %2738 = vmatpush1.msra.mxu0 0.0
      %2739 = vmatprep.subr.mxu0 0.0
      %2740 = vmatpush1.msra.mxu0 0.0
      %2741 = vmatprep.subr.mxu0 0.0
      %2742 = vmatpush1.msra.mxu0 0.0
      %2743 = vmatprep.subr.mxu0 0.0
      %2744 = vmatpush1.msra.mxu0 0.0
      %2745 = vmatprep.subr.mxu0 0.0
      %2746 = vmatpush1.msra.mxu0 0.0
      %2747 = vmatprep.subr.mxu0 0.0
      %2748 = vmatpush1.msra.mxu0 0.0
      %2749 = vmatprep.subr.mxu0 0.0
      %2750 = vmatpush1.msra.mxu0 0.0
      %2751 = vmatprep.subr.mxu0 0.0
      %2752 = vmatpush1.msra.mxu0 0.0
      %2753 = vmatprep.subr.mxu0 0.0
      %2754 = vmatpush1.msra.mxu0 0.0
      %2755 = vmatprep.subr.mxu0 0.0
      %2756 = vmatpush1.msra.mxu0 0.0
      %2757 = vmatprep.subr.mxu0 0.0
      %2758 = vmatpush1.msra.mxu0 0.0
      %2759 = vmatprep.subr.mxu0 0.0
      %2760 = vmatpush1.msra.mxu0 0.0
      %2761 = vmatprep.subr.mxu0 0.0
      %2762 = vmatpush1.msra.mxu0 0.0
      %2763 = vmatprep.subr.mxu0 0.0
      %2764 = vmatpush1.msra.mxu0 0.0
      %2765 = vmatprep.subr.mxu0 0.0
      %2766 = vmatpush1.msra.mxu0 0.0
      %2767 = vmatprep.subr.mxu0 0.0
      %2768 = vmatpush1.msra.mxu0 0.0
      %2769 = vmatprep.subr.mxu0 0.0
      %2770 = vmatpush1.msra.mxu0 0.0
      %2771 = vmatprep.subr.mxu0 0.0
      %2772 = vmatpush1.msra.mxu0 0.0
      %2773 = vmatprep.subr.mxu0 0.0
      %2774 = vmatpush1.msra.mxu0 0.0
      %2775 = vmatprep.subr.mxu0 0.0
      %2776 = vmatpush1.msra.mxu0 0.0
      %2777 = vmatprep.subr.mxu0 0.0
      %2778 = vmatpush1.msra.mxu0 0.0
      %2779 = vmatprep.subr.mxu0 0.0
      %2780 = vmatpush1.msra.mxu0 0.0
      %2781 = vmatprep.subr.mxu0 0.0
      %2782 = vmatpush1.msra.mxu0 0.0
      %2783 = vmatprep.subr.mxu0 0.0
      %2784 = vmatpush1.msra.mxu0 0.0
      %2785 = vmatprep.subr.mxu0 0.0
      %2786 = vmatpush1.msra.mxu0 0.0
      %2787 = vmatprep.mubr.f32.mxu0 0.0
      %2788 = vmatmul.mubr.f32.gmra.mrb[0].mxu0 %v2712
      %v2789 = vpop.f32.mrb[0].mxu0
      %v2790 = vadd.f32 0.0, %v2789
      %v2791 = vpop.f32.mrb[0].mxu0
      %v2792 = vadd.f32 0.0, %v2791
      %2793 = vmatprep.mubr.f32.mxu0 0.0
      %2794 = vmatmul.mubr.f32.gmra.mrb[0].mxu0 %v2715
      %v2795 = vpop.f32.mrb[0].mxu0
      %v2796 = vadd.f32 0.0, %v2795
      %v2797 = vpop.f32.mrb[0].mxu0
      %v2798 = vadd.f32 0.0, %v2797
      %2799 = vdwg.mxu0
      %2800 = vmatprep.subr.mxu0 0.0
      %2801 = vmatpush1.msra.mxu0 %v2696
      %2802 = vmatprep.subr.mxu0 0.0
      %2803 = vmatpush1.msra.mxu0 %v2721
      %2804 = vmatprep.subr.mxu0 0.0
      %2805 = vmatpush1.msra.mxu0 0.0
      %2806 = vmatprep.subr.mxu0 0.0
      %2807 = vmatpush1.msra.mxu0 0.0
      %2808 = vmatprep.subr.mxu0 0.0
      %2809 = vmatpush1.msra.mxu0 0.0
      %2810 = vmatprep.subr.mxu0 0.0
      %2811 = vmatpush1.msra.mxu0 0.0
      %2812 = vmatprep.subr.mxu0 0.0
      %2813 = vmatpush1.msra.mxu0 0.0
      %2814 = vmatprep.subr.mxu0 0.0
      %2815 = vmatpush1.msra.mxu0 0.0
      %2816 = vmatprep.subr.mxu0 0.0
      %2817 = vmatpush1.msra.mxu0 0.0
      %2818 = vmatprep.subr.mxu0 0.0
      %2819 = vmatpush1.msra.mxu0 0.0
      %2820 = vmatprep.subr.mxu0 0.0
      %2821 = vmatpush1.msra.mxu0 0.0
      %2822 = vmatprep.subr.mxu0 0.0
      %2823 = vmatpush1.msra.mxu0 0.0
      %2824 = vmatprep.subr.mxu0 0.0
      %2825 = vmatpush1.msra.mxu0 0.0
      %2826 = vmatprep.subr.mxu0 0.0
      %2827 = vmatpush1.msra.mxu0 0.0
      %2828 = vmatprep.subr.mxu0 0.0
      %2829 = vmatpush1.msra.mxu0 0.0
      %2830 = vmatprep.subr.mxu0 0.0
      %2831 = vmatpush1.msra.mxu0 0.0
      %2832 = vmatprep.subr.mxu0 0.0
      %2833 = vmatpush1.msra.mxu0 0.0
      %2834 = vmatprep.subr.mxu0 0.0
      %2835 = vmatpush1.msra.mxu0 0.0
      %2836 = vmatprep.subr.mxu0 0.0
      %2837 = vmatpush1.msra.mxu0 0.0
      %2838 = vmatprep.subr.mxu0 0.0
      %2839 = vmatpush1.msra.mxu0 0.0
      %2840 = vmatprep.subr.mxu0 0.0
      %2841 = vmatpush1.msra.mxu0 0.0
      %2842 = vmatprep.subr.mxu0 0.0
      %2843 = vmatpush1.msra.mxu0 0.0
      %2844 = vmatprep.subr.mxu0 0.0
      %2845 = vmatpush1.msra.mxu0 0.0
      %2846 = vmatprep.subr.mxu0 0.0
      %2847 = vmatpush1.msra.mxu0 0.0
      %2848 = vmatprep.subr.mxu0 0.0
      %2849 = vmatpush1.msra.mxu0 0.0
      %2850 = vmatprep.subr.mxu0 0.0
      %2851 = vmatpush1.msra.mxu0 0.0
      %2852 = vmatprep.subr.mxu0 0.0
      %2853 = vmatpush1.msra.mxu0 0.0
      %2854 = vmatprep.subr.mxu0 0.0
      %2855 = vmatpush1.msra.mxu0 0.0
      %2856 = vmatprep.subr.mxu0 0.0
      %2857 = vmatpush1.msra.mxu0 0.0
      %2858 = vmatprep.subr.mxu0 0.0
      %2859 = vmatpush1.msra.mxu0 0.0
      %2860 = vmatprep.subr.mxu0 0.0
      %2861 = vmatpush1.msra.mxu0 0.0
      %2862 = vmatprep.subr.mxu0 0.0
      %2863 = vmatpush1.msra.mxu0 0.0
      %2864 = vmatprep.mubr.f32.mxu0 0.0
      %2865 = vmatmul.mubr.f32.gmra.mrb[0].mxu0 %v2712
      %v2866 = vpop.f32.mrb[0].mxu0
      %v2867 = vadd.f32 0.0, %v2866
      %v2868 = vpop.f32.mrb[0].mxu0
      %2869 = vmatprep.mubr.f32.mxu0 0.0
      %2870 = vmatmul.mubr.f32.gmra.mrb[0].mxu0 %v2715
      %v2871 = vpop.f32.mrb[0].mxu0
      %v2872 = vadd.f32 0.0, %v2871
      %v2873 = vpop.f32.mrb[0].mxu0
      %2874 = vdwg.mxu0
      %v2875 = vadd.f32 %v2682, %v2790
      %v2876 = vadd.f32 %v2683, %v2792
      %v2877 = vadd.f32 %v2684, %v2867
      %v2878 = vadd.f32 %v2685, %v2796
      %v2879 = vadd.f32 %v2686, %v2798
      %v2880 = vadd.f32 %v2687, %v2872
      %s2881 = scalar_lea.vmem %s1, 224
      %v2882 = vld [vmem:[%s2881] sm:$0xff]
      %v2883 = vld [vmem:[%s2881 + $0x8] sm:$0xf]
      %2884 = vrot.lane.b32.xlu0 %v198, 69
      %v2885 = vpop.permute.xlu0 %2884
      %2886 = vrot.lane.b32.xlu0 %v199, 69
      %v2887 = vpop.permute.xlu0 %2886
      %2888 = vrot.lane.b32.xlu0 %v200, 69
      %v2889 = vpop.permute.xlu0 %2888
      %2890 = vrot.lane.b32.xlu0 %v201, 69
      %v2891 = vpop.permute.xlu0 %2890
      %2892 = vrot.lane.b32.xlu0 %v202, 69
      %v2893 = vpop.permute.xlu0 %2892
      %2894 = vrot.lane.b32.xlu0 %v203, 69
      %v2895 = vpop.permute.xlu0 %2894
      %vm2896 = vcmask 564224
      %v2897 = vsel %vm2896, %v2885, %v2887
      %v2898 = vsel %vm2896, %v2887, %v2889
      %v2899 = vsel %vm2896, %v2891, %v2893
      %v2900 = vsel %vm2896, %v2893, %v2895
      %v2905 = vsel %vm235, %v2882, 0
      %v2908 = vsel %vm235, %v2883, 0
      %v2910 = vsel %vm242, %v2899, 0
      %v2912 = vsel %vm242, %v2900, 0
      %v2914 = vsel %vm242, %v2895, 0
      %2916 = vmatprep.subr.mxu0 %v2898
      %2917 = vmatpush1.msra.mxu0 %v2897
      %2918 = vmatprep.subr.mxu0 %v2912
      %2919 = vmatpush1.msra.mxu0 %v2910
      %2920 = vmatprep.subr.mxu0 0.0
      %2921 = vmatpush1.msra.mxu0 0.0
      %2922 = vmatprep.subr.mxu0 0.0
      %2923 = vmatpush1.msra.mxu0 0.0
      %2924 = vmatprep.subr.mxu0 0.0
      %2925 = vmatpush1.msra.mxu0 0.0
      %2926 = vmatprep.subr.mxu0 0.0
      %2927 = vmatpush1.msra.mxu0 0.0
      %2928 = vmatprep.subr.mxu0 0.0
      %2929 = vmatpush1.msra.mxu0 0.0
      %2930 = vmatprep.subr.mxu0 0.0
      %2931 = vmatpush1.msra.mxu0 0.0
      %2932 = vmatprep.subr.mxu0 0.0
      %2933 = vmatpush1.msra.mxu0 0.0
      %2934 = vmatprep.subr.mxu0 0.0
      %2935 = vmatpush1.msra.mxu0 0.0
      %2936 = vmatprep.subr.mxu0 0.0
      %2937 = vmatpush1.msra.mxu0 0.0
      %2938 = vmatprep.subr.mxu0 0.0
      %2939 = vmatpush1.msra.mxu0 0.0
      %2940 = vmatprep.subr.mxu0 0.0
      %2941 = vmatpush1.msra.mxu0 0.0
      %2942 = vmatprep.subr.mxu0 0.0
      %2943 = vmatpush1.msra.mxu0 0.0
      %2944 = vmatprep.subr.mxu0 0.0
      %2945 = vmatpush1.msra.mxu0 0.0
      %2946 = vmatprep.subr.mxu0 0.0
      %2947 = vmatpush1.msra.mxu0 0.0
      %2948 = vmatprep.subr.mxu0 0.0
      %2949 = vmatpush1.msra.mxu0 0.0
      %2950 = vmatprep.subr.mxu0 0.0
      %2951 = vmatpush1.msra.mxu0 0.0
      %2952 = vmatprep.subr.mxu0 0.0
      %2953 = vmatpush1.msra.mxu0 0.0
      %2954 = vmatprep.subr.mxu0 0.0
      %2955 = vmatpush1.msra.mxu0 0.0
      %2956 = vmatprep.subr.mxu0 0.0
      %2957 = vmatpush1.msra.mxu0 0.0
      %2958 = vmatprep.subr.mxu0 0.0
      %2959 = vmatpush1.msra.mxu0 0.0
      %2960 = vmatprep.subr.mxu0 0.0
      %2961 = vmatpush1.msra.mxu0 0.0
      %2962 = vmatprep.subr.mxu0 0.0
      %2963 = vmatpush1.msra.mxu0 0.0
      %2964 = vmatprep.subr.mxu0 0.0
      %2965 = vmatpush1.msra.mxu0 0.0
      %2966 = vmatprep.subr.mxu0 0.0
      %2967 = vmatpush1.msra.mxu0 0.0
      %2968 = vmatprep.subr.mxu0 0.0
      %2969 = vmatpush1.msra.mxu0 0.0
      %2970 = vmatprep.subr.mxu0 0.0
      %2971 = vmatpush1.msra.mxu0 0.0
      %2972 = vmatprep.subr.mxu0 0.0
      %2973 = vmatpush1.msra.mxu0 0.0
      %2974 = vmatprep.subr.mxu0 0.0
      %2975 = vmatpush1.msra.mxu0 0.0
      %2976 = vmatprep.subr.mxu0 0.0
      %2977 = vmatpush1.msra.mxu0 0.0
      %2978 = vmatprep.subr.mxu0 0.0
      %2979 = vmatpush1.msra.mxu0 0.0
      %2980 = vmatprep.mubr.f32.mxu0 0.0
      %2981 = vmatmul.mubr.f32.gmra.mrb[0].mxu0 %v2905
      %v2982 = vpop.f32.mrb[0].mxu0
      %v2983 = vadd.f32 0.0, %v2982
      %v2984 = vpop.f32.mrb[0].mxu0
      %v2985 = vadd.f32 0.0, %v2984
      %2986 = vmatprep.mubr.f32.mxu0 0.0
      %2987 = vmatmul.mubr.f32.gmra.mrb[0].mxu0 %v2908
      %v2988 = vpop.f32.mrb[0].mxu0
      %v2989 = vadd.f32 0.0, %v2988
      %v2990 = vpop.f32.mrb[0].mxu0
      %v2991 = vadd.f32 0.0, %v2990
      %2992 = vdwg.mxu0
      %2993 = vmatprep.subr.mxu0 0.0
      %2994 = vmatpush1.msra.mxu0 %v2889
      %2995 = vmatprep.subr.mxu0 0.0
      %2996 = vmatpush1.msra.mxu0 %v2914
      %2997 = vmatprep.subr.mxu0 0.0
      %2998 = vmatpush1.msra.mxu0 0.0
      %2999 = vmatprep.subr.mxu0 0.0
      %3000 = vmatpush1.msra.mxu0 0.0
      %3001 = vmatprep.subr.mxu0 0.0
      %3002 = vmatpush1.msra.mxu0 0.0
      %3003 = vmatprep.subr.mxu0 0.0
      %3004 = vmatpush1.msra.mxu0 0.0
      %3005 = vmatprep.subr.mxu0 0.0
      %3006 = vmatpush1.msra.mxu0 0.0
      %3007 = vmatprep.subr.mxu0 0.0
      %3008 = vmatpush1.msra.mxu0 0.0
      %3009 = vmatprep.subr.mxu0 0.0
      %3010 = vmatpush1.msra.mxu0 0.0
      %3011 = vmatprep.subr.mxu0 0.0
      %3012 = vmatpush1.msra.mxu0 0.0
      %3013 = vmatprep.subr.mxu0 0.0
      %3014 = vmatpush1.msra.mxu0 0.0
      %3015 = vmatprep.subr.mxu0 0.0
      %3016 = vmatpush1.msra.mxu0 0.0
      %3017 = vmatprep.subr.mxu0 0.0
      %3018 = vmatpush1.msra.mxu0 0.0
      %3019 = vmatprep.subr.mxu0 0.0
      %3020 = vmatpush1.msra.mxu0 0.0
      %3021 = vmatprep.subr.mxu0 0.0
      %3022 = vmatpush1.msra.mxu0 0.0
      %3023 = vmatprep.subr.mxu0 0.0
      %3024 = vmatpush1.msra.mxu0 0.0
      %3025 = vmatprep.subr.mxu0 0.0
      %3026 = vmatpush1.msra.mxu0 0.0
      %3027 = vmatprep.subr.mxu0 0.0
      %3028 = vmatpush1.msra.mxu0 0.0
      %3029 = vmatprep.subr.mxu0 0.0
      %3030 = vmatpush1.msra.mxu0 0.0
      %3031 = vmatprep.subr.mxu0 0.0
      %3032 = vmatpush1.msra.mxu0 0.0
      %3033 = vmatprep.subr.mxu0 0.0
      %3034 = vmatpush1.msra.mxu0 0.0
      %3035 = vmatprep.subr.mxu0 0.0
      %3036 = vmatpush1.msra.mxu0 0.0
      %3037 = vmatprep.subr.mxu0 0.0
      %3038 = vmatpush1.msra.mxu0 0.0
      %3039 = vmatprep.subr.mxu0 0.0
      %3040 = vmatpush1.msra.mxu0 0.0
      %3041 = vmatprep.subr.mxu0 0.0
      %3042 = vmatpush1.msra.mxu0 0.0
      %3043 = vmatprep.subr.mxu0 0.0
      %3044 = vmatpush1.msra.mxu0 0.0
      %3045 = vmatprep.subr.mxu0 0.0
      %3046 = vmatpush1.msra.mxu0 0.0
      %3047 = vmatprep.subr.mxu0 0.0
      %3048 = vmatpush1.msra.mxu0 0.0
      %3049 = vmatprep.subr.mxu0 0.0
      %3050 = vmatpush1.msra.mxu0 0.0
      %3051 = vmatprep.subr.mxu0 0.0
      %3052 = vmatpush1.msra.mxu0 0.0
      %3053 = vmatprep.subr.mxu0 0.0
      %3054 = vmatpush1.msra.mxu0 0.0
      %3055 = vmatprep.subr.mxu0 0.0
      %3056 = vmatpush1.msra.mxu0 0.0
      %3057 = vmatprep.mubr.f32.mxu0 0.0
      %3058 = vmatmul.mubr.f32.gmra.mrb[0].mxu0 %v2905
      %v3059 = vpop.f32.mrb[0].mxu0
      %v3060 = vadd.f32 0.0, %v3059
      %v3061 = vpop.f32.mrb[0].mxu0
      %3062 = vmatprep.mubr.f32.mxu0 0.0
      %3063 = vmatmul.mubr.f32.gmra.mrb[0].mxu0 %v2908
      %v3064 = vpop.f32.mrb[0].mxu0
      %v3065 = vadd.f32 0.0, %v3064
      %v3066 = vpop.f32.mrb[0].mxu0
      %3067 = vdwg.mxu0
      %v3068 = vadd.f32 %v2875, %v2983
      %v3069 = vadd.f32 %v2876, %v2985
      %v3070 = vadd.f32 %v2877, %v3060
      %v3071 = vadd.f32 %v2878, %v2989
      %v3072 = vadd.f32 %v2879, %v2991
      %v3073 = vadd.f32 %v2880, %v3065
      %s3074 = scalar_lea.vmem %s1, 240
      %v3075 = vld [vmem:[%s3074] sm:$0xff]
      %v3076 = vld [vmem:[%s3074 + $0x8] sm:$0xf]
      %3077 = vrot.lane.b32.xlu0 %v198, 68
      %v3078 = vpop.permute.xlu0 %3077
      %3079 = vrot.lane.b32.xlu0 %v199, 68
      %v3080 = vpop.permute.xlu0 %3079
      %3081 = vrot.lane.b32.xlu0 %v200, 68
      %v3082 = vpop.permute.xlu0 %3081
      %3083 = vrot.lane.b32.xlu0 %v201, 68
      %v3084 = vpop.permute.xlu0 %3083
      %3085 = vrot.lane.b32.xlu0 %v202, 68
      %v3086 = vpop.permute.xlu0 %3085
      %3087 = vrot.lane.b32.xlu0 %v203, 68
      %v3088 = vpop.permute.xlu0 %3087
      %vm3089 = vcmask 556032
      %v3090 = vsel %vm3089, %v3078, %v3080
      %v3091 = vsel %vm3089, %v3080, %v3082
      %v3092 = vsel %vm3089, %v3084, %v3086
      %v3093 = vsel %vm3089, %v3086, %v3088
      %v3098 = vsel %vm235, %v3075, 0
      %v3101 = vsel %vm235, %v3076, 0
      %v3103 = vsel %vm242, %v3092, 0
      %v3105 = vsel %vm242, %v3093, 0
      %v3107 = vsel %vm242, %v3088, 0
      %3109 = vmatprep.subr.mxu0 %v3091
      %3110 = vmatpush1.msra.mxu0 %v3090
      %3111 = vmatprep.subr.mxu0 %v3105
      %3112 = vmatpush1.msra.mxu0 %v3103
      %3113 = vmatprep.subr.mxu0 0.0
      %3114 = vmatpush1.msra.mxu0 0.0
      %3115 = vmatprep.subr.mxu0 0.0
      %3116 = vmatpush1.msra.mxu0 0.0
      %3117 = vmatprep.subr.mxu0 0.0
      %3118 = vmatpush1.msra.mxu0 0.0
      %3119 = vmatprep.subr.mxu0 0.0
      %3120 = vmatpush1.msra.mxu0 0.0
      %3121 = vmatprep.subr.mxu0 0.0
      %3122 = vmatpush1.msra.mxu0 0.0
      %3123 = vmatprep.subr.mxu0 0.0
      %3124 = vmatpush1.msra.mxu0 0.0
      %3125 = vmatprep.subr.mxu0 0.0
      %3126 = vmatpush1.msra.mxu0 0.0
      %3127 = vmatprep.subr.mxu0 0.0
      %3128 = vmatpush1.msra.mxu0 0.0
      %3129 = vmatprep.subr.mxu0 0.0
      %3130 = vmatpush1.msra.mxu0 0.0
      %3131 = vmatprep.subr.mxu0 0.0
      %3132 = vmatpush1.msra.mxu0 0.0
      %3133 = vmatprep.subr.mxu0 0.0
      %3134 = vmatpush1.msra.mxu0 0.0
      %3135 = vmatprep.subr.mxu0 0.0
      %3136 = vmatpush1.msra.mxu0 0.0
      %3137 = vmatprep.subr.mxu0 0.0
      %3138 = vmatpush1.msra.mxu0 0.0
      %3139 = vmatprep.subr.mxu0 0.0
      %3140 = vmatpush1.msra.mxu0 0.0
      %3141 = vmatprep.subr.mxu0 0.0
      %3142 = vmatpush1.msra.mxu0 0.0
      %3143 = vmatprep.subr.mxu0 0.0
      %3144 = vmatpush1.msra.mxu0 0.0
      %3145 = vmatprep.subr.mxu0 0.0
      %3146 = vmatpush1.msra.mxu0 0.0
      %3147 = vmatprep.subr.mxu0 0.0
      %3148 = vmatpush1.msra.mxu0 0.0
      %3149 = vmatprep.subr.mxu0 0.0
      %3150 = vmatpush1.msra.mxu0 0.0
      %3151 = vmatprep.subr.mxu0 0.0
      %3152 = vmatpush1.msra.mxu0 0.0
      %3153 = vmatprep.subr.mxu0 0.0
      %3154 = vmatpush1.msra.mxu0 0.0
      %3155 = vmatprep.subr.mxu0 0.0
      %3156 = vmatpush1.msra.mxu0 0.0
      %3157 = vmatprep.subr.mxu0 0.0
      %3158 = vmatpush1.msra.mxu0 0.0
      %3159 = vmatprep.subr.mxu0 0.0
      %3160 = vmatpush1.msra.mxu0 0.0
      %3161 = vmatprep.subr.mxu0 0.0
      %3162 = vmatpush1.msra.mxu0 0.0
      %3163 = vmatprep.subr.mxu0 0.0
      %3164 = vmatpush1.msra.mxu0 0.0
      %3165 = vmatprep.subr.mxu0 0.0
      %3166 = vmatpush1.msra.mxu0 0.0
      %3167 = vmatprep.subr.mxu0 0.0
      %3168 = vmatpush1.msra.mxu0 0.0
      %3169 = vmatprep.subr.mxu0 0.0
      %3170 = vmatpush1.msra.mxu0 0.0
      %3171 = vmatprep.subr.mxu0 0.0
      %3172 = vmatpush1.msra.mxu0 0.0
      %3173 = vmatprep.mubr.f32.mxu0 0.0
      %3174 = vmatmul.mubr.f32.gmra.mrb[0].mxu0 %v3098
      %v3175 = vpop.f32.mrb[0].mxu0
      %v3176 = vadd.f32 0.0, %v3175
      %v3177 = vpop.f32.mrb[0].mxu0
      %v3178 = vadd.f32 0.0, %v3177
      %3179 = vmatprep.mubr.f32.mxu0 0.0
      %3180 = vmatmul.mubr.f32.gmra.mrb[0].mxu0 %v3101
      %v3181 = vpop.f32.mrb[0].mxu0
      %v3182 = vadd.f32 0.0, %v3181
      %v3183 = vpop.f32.mrb[0].mxu0
      %v3184 = vadd.f32 0.0, %v3183
      %3185 = vdwg.mxu0
      %3186 = vmatprep.subr.mxu0 0.0
      %3187 = vmatpush1.msra.mxu0 %v3082
      %3188 = vmatprep.subr.mxu0 0.0
      %3189 = vmatpush1.msra.mxu0 %v3107
      %3190 = vmatprep.subr.mxu0 0.0
      %3191 = vmatpush1.msra.mxu0 0.0
      %3192 = vmatprep.subr.mxu0 0.0
      %3193 = vmatpush1.msra.mxu0 0.0
      %3194 = vmatprep.subr.mxu0 0.0
      %3195 = vmatpush1.msra.mxu0 0.0
      %3196 = vmatprep.subr.mxu0 0.0
      %3197 = vmatpush1.msra.mxu0 0.0
      %3198 = vmatprep.subr.mxu0 0.0
      %3199 = vmatpush1.msra.mxu0 0.0
      %3200 = vmatprep.subr.mxu0 0.0
      %3201 = vmatpush1.msra.mxu0 0.0
      %3202 = vmatprep.subr.mxu0 0.0
      %3203 = vmatpush1.msra.mxu0 0.0
      %3204 = vmatprep.subr.mxu0 0.0
      %3205 = vmatpush1.msra.mxu0 0.0
      %3206 = vmatprep.subr.mxu0 0.0
      %3207 = vmatpush1.msra.mxu0 0.0
      %3208 = vmatprep.subr.mxu0 0.0
      %3209 = vmatpush1.msra.mxu0 0.0
      %3210 = vmatprep.subr.mxu0 0.0
      %3211 = vmatpush1.msra.mxu0 0.0
      %3212 = vmatprep.subr.mxu0 0.0
      %3213 = vmatpush1.msra.mxu0 0.0
      %3214 = vmatprep.subr.mxu0 0.0
      %3215 = vmatpush1.msra.mxu0 0.0
      %3216 = vmatprep.subr.mxu0 0.0
      %3217 = vmatpush1.msra.mxu0 0.0
      %3218 = vmatprep.subr.mxu0 0.0
      %3219 = vmatpush1.msra.mxu0 0.0
      %3220 = vmatprep.subr.mxu0 0.0
      %3221 = vmatpush1.msra.mxu0 0.0
      %3222 = vmatprep.subr.mxu0 0.0
      %3223 = vmatpush1.msra.mxu0 0.0
      %3224 = vmatprep.subr.mxu0 0.0
      %3225 = vmatpush1.msra.mxu0 0.0
      %3226 = vmatprep.subr.mxu0 0.0
      %3227 = vmatpush1.msra.mxu0 0.0
      %3228 = vmatprep.subr.mxu0 0.0
      %3229 = vmatpush1.msra.mxu0 0.0
      %3230 = vmatprep.subr.mxu0 0.0
      %3231 = vmatpush1.msra.mxu0 0.0
      %3232 = vmatprep.subr.mxu0 0.0
      %3233 = vmatpush1.msra.mxu0 0.0
      %3234 = vmatprep.subr.mxu0 0.0
      %3235 = vmatpush1.msra.mxu0 0.0
      %3236 = vmatprep.subr.mxu0 0.0
      %3237 = vmatpush1.msra.mxu0 0.0
      %3238 = vmatprep.subr.mxu0 0.0
      %3239 = vmatpush1.msra.mxu0 0.0
      %3240 = vmatprep.subr.mxu0 0.0
      %3241 = vmatpush1.msra.mxu0 0.0
      %3242 = vmatprep.subr.mxu0 0.0
      %3243 = vmatpush1.msra.mxu0 0.0
      %3244 = vmatprep.subr.mxu0 0.0
      %3245 = vmatpush1.msra.mxu0 0.0
      %3246 = vmatprep.subr.mxu0 0.0
      %3247 = vmatpush1.msra.mxu0 0.0
      %3248 = vmatprep.subr.mxu0 0.0
      %3249 = vmatpush1.msra.mxu0 0.0
      %3250 = vmatprep.mubr.f32.mxu0 0.0
      %3251 = vmatmul.mubr.f32.gmra.mrb[0].mxu0 %v3098
      %v3252 = vpop.f32.mrb[0].mxu0
      %v3253 = vadd.f32 0.0, %v3252
      %v3254 = vpop.f32.mrb[0].mxu0
      %3255 = vmatprep.mubr.f32.mxu0 0.0
      %3256 = vmatmul.mubr.f32.gmra.mrb[0].mxu0 %v3101
      %v3257 = vpop.f32.mrb[0].mxu0
      %v3258 = vadd.f32 0.0, %v3257
      %v3259 = vpop.f32.mrb[0].mxu0
      %3260 = vdwg.mxu0
      %v3261 = vadd.f32 %v3068, %v3176
      %v3262 = vadd.f32 %v3069, %v3178
      %v3263 = vadd.f32 %v3070, %v3253
      %v3264 = vadd.f32 %v3071, %v3182
      %v3265 = vadd.f32 %v3072, %v3184
      %v3266 = vadd.f32 %v3073, %v3258
      %v3267 = vld [vmem:[%s2] sm:$0xff]
      %v3268 = vld [vmem:[%s2 + $0x8] sm:$0xf]
      %3270 = vset.pattern.permute.xlu0 0
      %3271 = vperm.xlu0 %3270, %v3267
      %v3272 = vpop.permute.xlu0 %3271
      %3275 = vset.pattern.permute.xlu0 0
      %3276 = vperm.xlu0 %3275, %v3268
      %v3277 = vpop.permute.xlu0 %3276
      %v3279 = vadd.f32 %v3261, %v3272
      %v3280 = vadd.f32 %v3262, %v3272
      %v3281 = vadd.f32 %v3263, %v3272
      %v3282 = vadd.f32 %v3264, %v3277
      %v3283 = vadd.f32 %v3265, %v3277
      %v3284 = vadd.f32 %v3266, %v3277
      %v3285 = vld [vmem:[%s3] sm:$0x7]
      %v3287 = vlaneseq
      %v3288 = vshrl.u32 %v3287, 7
      %v3289 = vsub.s32 0, %v3288
      %v3290 = vrot.slane %v3285, %v3289
      %v3291 = vlaneseq
      %v3292 = vshrl.u32 %v3291, 7
      %v3293 = vsub.s32 1, %v3292
      %v3294 = vrot.slane %v3285, %v3293
      %v3295 = vlaneseq
      %v3296 = vshrl.u32 %v3295, 7
      %v3297 = vsub.s32 2, %v3296
      %v3298 = vrot.slane %v3285, %v3297
      %v3302 = vadd.f32 %v3279, %v3290
      %v3303 = vadd.f32 %v3280, %v3294
      %v3304 = vadd.f32 %v3281, %v3298
      %v3305 = vadd.f32 %v3282, %v3290
      %v3306 = vadd.f32 %v3283, %v3294
      %v3307 = vadd.f32 %v3284, %v3298
      %3314 = vrot.lane.b32.xlu0 %v3302, 1
      %v3315 = vpop.permute.xlu0 %3314
      %3316 = vrot.lane.b32.xlu0 %v3303, 1
      %v3317 = vpop.permute.xlu0 %3316
      %3318 = vrot.lane.b32.xlu0 %v3304, 1
      %v3319 = vpop.permute.xlu0 %3318
      %3320 = vrot.lane.b32.xlu0 %v3305, 1
      %v3321 = vpop.permute.xlu0 %3320
      %3322 = vrot.lane.b32.xlu0 %v3306, 1
      %v3323 = vpop.permute.xlu0 %3322
      %3324 = vrot.lane.b32.xlu0 %v3307, 1
      %v3325 = vpop.permute.xlu0 %3324
      %vm3326 = vcmask 7168
      %v3327 = vsel %vm3326, %v3315, %v3317
      %v3328 = vsel %vm3326, %v3317, %v3319
      %v3329 = vsel %vm3326, %v3321, %v3323
      %v3330 = vsel %vm3326, %v3323, %v3325
      %v3337 = vsel %vm3326, -inf, %v3315
      %v3338 = vsel %vm3326, -inf, %v3321
      %3339 = vrot.lane.b32.xlu0 %v3302, 127
      %v3340 = vpop.permute.xlu0 %3339
      %3341 = vrot.lane.b32.xlu0 %v3303, 127
      %v3342 = vpop.permute.xlu0 %3341
      %3343 = vrot.lane.b32.xlu0 %v3304, 127
      %v3344 = vpop.permute.xlu0 %3343
      %3345 = vrot.lane.b32.xlu0 %v3305, 127
      %v3346 = vpop.permute.xlu0 %3345
      %3347 = vrot.lane.b32.xlu0 %v3306, 127
      %v3348 = vpop.permute.xlu0 %3347
      %3349 = vrot.lane.b32.xlu0 %v3307, 127
      %v3350 = vpop.permute.xlu0 %3349
      %v3351 = vsel %vm227, %v3340, %v3342
      %v3352 = vsel %vm227, %v3342, %v3344
      %v3353 = vsel %vm227, %v3346, %v3348
      %v3354 = vsel %vm227, %v3348, %v3350
      %vm3361 = vcmask 384000
      %v3362 = vsel %vm3361, %v3344, -inf
      %v3363 = vsel %vm3361, %v3350, -inf
      %v3364 = vmax.f32 %v3337, %v3351
      %v3365 = vmax.f32 %v3327, %v3352
      %v3366 = vmax.f32 %v3328, %v3362
      %v3367 = vmax.f32 %v3338, %v3353
      %v3368 = vmax.f32 %v3329, %v3354
      %v3369 = vmax.f32 %v3330, %v3363
      %v3370 = vmax.f32 %v3302, %v3364
      %v3371 = vmax.f32 %v3303, %v3365
      %v3372 = vmax.f32 %v3304, %v3366
      %v3373 = vmax.f32 %v3305, %v3367
      %v3374 = vmax.f32 %v3306, %v3368
      %v3375 = vmax.f32 %v3307, %v3369
      %3382 = vrot.lane.b32.xlu0 %v3370, 19
      %v3383 = vpop.permute.xlu0 %3382
      %3384 = vrot.lane.b32.xlu0 %v3371, 19
      %v3385 = vpop.permute.xlu0 %3384
      %3386 = vrot.lane.b32.xlu0 %v3372, 19
      %v3387 = vpop.permute.xlu0 %3386
      %3388 = vrot.lane.b32.xlu0 %v3373, 19
      %v3389 = vpop.permute.xlu0 %3388
      %3390 = vrot.lane.b32.xlu0 %v3374, 19
      %v3391 = vpop.permute.xlu0 %3390
      %3392 = vrot.lane.b32.xlu0 %v3375, 19
      %v3393 = vpop.permute.xlu0 %3392
      %vm3394 = vcmask 154624
      %v3395 = vsel %vm3394, %v3383, %v3385
      %v3396 = vsel %vm3394, %v3385, %v3387
      %v3397 = vsel %vm3394, %v3389, %v3391
      %v3398 = vsel %vm3394, %v3391, %v3393
      %v3405 = vsel %vm3394, -inf, %v3383
      %v3406 = vsel %vm3394, -inf, %v3389
      %3407 = vrot.lane.b32.xlu0 %v3370, 109
      %v3408 = vpop.permute.xlu0 %3407
      %3409 = vrot.lane.b32.xlu0 %v3371, 109
      %v3410 = vpop.permute.xlu0 %3409
      %3411 = vrot.lane.b32.xlu0 %v3372, 109
      %v3412 = vpop.permute.xlu0 %3411
      %3413 = vrot.lane.b32.xlu0 %v3373, 109
      %v3414 = vpop.permute.xlu0 %3413
      %3415 = vrot.lane.b32.xlu0 %v3374, 109
      %v3416 = vpop.permute.xlu0 %3415
      %3417 = vrot.lane.b32.xlu0 %v3375, 109
      %v3418 = vpop.permute.xlu0 %3417
      %v3419 = vsel %vm966, %v3408, %v3410
      %v3420 = vsel %vm966, %v3410, %v3412
      %v3421 = vsel %vm966, %v3414, %v3416
      %v3422 = vsel %vm966, %v3416, %v3418
      %vm3429 = vcmask 236544
      %v3430 = vsel %vm3429, %v3412, -inf
      %v3431 = vsel %vm3429, %v3418, -inf
      %v3432 = vmax.f32 %v3405, %v3419
      %v3433 = vmax.f32 %v3395, %v3420
      %v3434 = vmax.f32 %v3396, %v3430
      %v3435 = vmax.f32 %v3406, %v3421
      %v3436 = vmax.f32 %v3397, %v3422
      %v3437 = vmax.f32 %v3398, %v3431
      %v3438 = vmax.f32 %v3370, %v3432
      %v3439 = vmax.f32 %v3371, %v3433
      %v3440 = vmax.f32 %v3372, %v3434
      %v3441 = vmax.f32 %v3373, %v3435
      %v3442 = vmax.f32 %v3374, %v3436
      %v3443 = vmax.f32 %v3375, %v3437
      %3444 = vst [vmem:[%s197] sm:$0xff] %v3438
      %3445 = vst [vmem:[%s197 + $0x8] sm:$0xff] %v3439
      %vm3446 = vcmask 392192
      %3447 = vst.msk [vmem:[%s197 + $0x10] sm:$0xff] %vm3446, %v3440
      %3448 = vst [vmem:[%s197 + $0x18] sm:$0xf] %v3441
      %3449 = vst [vmem:[%s197 + $0x20] sm:$0xf] %v3442
      %vm3450 = vcmask 388096
      %3451 = vst.msk [vmem:[%s197 + $0x28] sm:$0xf] %vm3450, %v3443
      %p3452 = scmp.lt.s32.totalorder %s15, 1
      %s3453 = scalar_select %p3452, %s15, 1
      %s3454 = smul.addr %s3453, 6
      %s3455 = smul.addr %s3454, 8
      %s3456 = scalar_lea.vmem %s4, %s3455
      // Predicated region
      $region37: #{_lambda_.3} parent=35 // pred_check
        %p3457 = pneg %p122
      $region38: #{_lambda_.3} parent=35 // pred_check_branch
        %3459 = sbr.rel (%p3457) target = $region40
      $region39: #{_lambda_.3} parent=35 // pred_region
        _
      $region40: #{_lambda_.3} parent=35 // pred_fallthru
        _
    $region36: #{_lambda_.3} parent=5 // pred_fallthru
      _
    %p3460 = scmp.le.s32.totalorder 2, %s10
    // Predicated region
    $region41: #{_lambda_.3} parent=5 // pred_check
      %p3461 = pneg %p3460
    $region42: #{_lambda_.3} parent=5 // pred_check_branch
      %3463 = sbr.rel (%p3461) target = $region44
    $region43: #{_lambda_.3} parent=5 // pred_region
      %s3464 = ssub.s32 %s10, 2
      // Predicated region
      $region45: #{_lambda_.3} parent=43 // pred_check
        %p3465 = pneg %p128
      $region46: #{_lambda_.3} parent=43 // pred_check_branch
        %3467 = sbr.rel (%p3465) target = $region48
      $region47: #{_lambda_.3} parent=43 // pred_region
        %p3468 = scmp.lt.s32.totalorder %s16, 1
        %s3469 = scalar_select %p3468, %s16, 1
        %s3470 = smul.addr %s3469, 6
        %s3471 = smul.addr %s3470, 8
        %s3472 = scalar_lea.vmem %s4, %s3471
      $region48: #{_lambda_.3} parent=43 // pred_fallthru
        _
    $region44: #{_lambda_.3} parent=5 // pred_fallthru
      _
  $region6: #{_lambda_.3} parent=0 // loop_footer
    %s14 = sadd.s32 1, %s10
  $region7: #{_lambda_.3} parent=0 // loop_footer_branch
    %9 = sbr.rel target = $region3
  $region8: #{_lambda_.3} parent=0 // loop_exit
    _

// kernel: _lambda_.4
$region0: #{_lambda_.4}
  #allocation0 [shape = 'u32[]', space=smem, size = 0x4, offset = 0x4, fixed_abs, tag = 'smem constant byte address 0x4 - core index']
  #allocation1 [shape = 'u32[144,128]{1,0:T(1,128)}', space=vmem, size = 0x12000, scoped, tag = 'internal scratch']
  %s0 = inlined_call_operand.vmem [shape: f32[2,12,64], index: 0, kind: input, shape index: {}]
  %s1 = inlined_call_operand.vmem [shape: f32[2,16,3,64], index: 1, kind: input, shape index: {}]
  %s2 = inlined_call_operand.vmem [shape: f32[3,60], index: 2, kind: input, shape index: {}]
  %s3 = inlined_call_operand.vmem [shape: f32[60,3], index: 3, kind: input, shape index: {}]
  %s4 = inlined_call_operand.vmem [shape: f32[2,60,64], index: 4, kind: output, shape index: {}]
  %s5 = sld [smem:[#allocation0]]
  $region49: #{_lambda_.4} parent=0
    _
  %s7 = ssub.s32 1, %s5
  %s8 = scalar_select 0, %s7, %s5
  loop: start=0, step=1, limit=4
  $region2: #{_lambda_.4} parent=0 // loop_pre_header
    _
  $region3: #{_lambda_.4} parent=0 // loop_header
    %s10 = sphi 0, %s14
    %p11 = scmp.ge.s32.totalorder %s10, 4
    %s20 = sphi 0, %s22
    %s23 = sphi 0, %s20
    %s24 = sphi 0, %s23
    %s40 = sphi 0, %s24
    %s46 = sphi 0, %s48
    %s49 = sphi 0, %s46
    %s50 = sphi 0, %s49
    %s66 = sphi 0, %s50
    %s70 = sphi 0, %s70
    %s72 = sphi 0, %s70
    %s73 = sphi 0, %s72
    %s87 = sphi 0, %s73
    %s91 = sphi 0, %s91
    %s93 = sphi 0, %s91
    %s94 = sphi 0, %s93
    %s108 = sphi 0, %s94
    %s114 = sphi 0, %s116
    %s117 = sphi 0, %s114
    %s118 = sphi 0, %s117
    %s134 = sphi 0, %s118
  $region4: #{_lambda_.4} parent=0 // loop_header_branch
    %13 = sbr.rel (%p11) target = $region8
  $region5: #{_lambda_.4} parent=0 // loop_body
    %s15 = ssub.s32 %s10, 1
    %s16 = ssub.s32 %s10, 2
    %s17 = sadd.s32 %s10, 1
    %s18 = ssub.s32 %s10, %s17
    %p19 = scmp.eq.s32.totalorder %s18, 0
    %s21 = sadd.s32 %s20, 1
    %s22 = scalar_select %p19, %s20, %s21
    %p25 = pneg %p19
    %p26 = scmp.eq.s32.totalorder %s10, 1
    %p27 = por %p25, %p26
    %p28 = scmp.ne.s32.totalorder %s20, %s23
    %p29 = scmp.eq.s32.totalorder %s10, 0
    %p30 = por %p28, %p29
    %p31 = scmp.ne.s32.totalorder %s20, %s23
    %p32 = scmp.eq.s32.totalorder %s15, 1
    %p33 = por %p31, %p32
    %p34 = scmp.ne.s32.totalorder %s23, %s24
    %p35 = scmp.eq.s32.totalorder %s15, 0
    %p36 = por %p34, %p35
    %p37 = scmp.ne.s32.totalorder %s23, %s24
    %p38 = scmp.eq.s32.totalorder %s16, 1
    %p39 = por %p37, %p38
    %p41 = scmp.ne.s32.totalorder %s24, %s40
    %p42 = scmp.eq.s32.totalorder %s16, 0
    %p43 = por %p41, %p42
    %s44 = ssub.s32 %s10, %s17
    %p45 = scmp.eq.s32.totalorder %s44, 0
    %s47 = sadd.s32 %s46, 1
    %s48 = scalar_select %p45, %s46, %s47
    %p51 = pneg %p45
    %p52 = scmp.eq.s32.totalorder %s10, 1
    %p53 = por %p51, %p52
    %p54 = scmp.ne.s32.totalorder %s46, %s49
    %p55 = scmp.eq.s32.totalorder %s10, 0
    %p56 = por %p54, %p55
    %p57 = scmp.ne.s32.totalorder %s46, %s49
    %p58 = scmp.eq.s32.totalorder %s15, 1
    %p59 = por %p57, %p58
    %p60 = scmp.ne.s32.totalorder %s49, %s50
    %p61 = scmp.eq.s32.totalorder %s15, 0
    %p62 = por %p60, %p61
    %p63 = scmp.ne.s32.totalorder %s49, %s50
    %p64 = scmp.eq.s32.totalorder %s16, 1
    %p65 = por %p63, %p64
    %p67 = scmp.ne.s32.totalorder %s50, %s66
    %p68 = scmp.eq.s32.totalorder %s16, 0
    %p69 = por %p67, %p68
    %s71 = sadd.s32 %s70, 1
    %p74 = scmp.eq.s32.totalorder %s10, 1
    %p75 = scmp.ne.s32.totalorder %s70, %s72
    %p76 = scmp.eq.s32.totalorder %s10, 0
    %p77 = por %p75, %p76
    %p78 = scmp.ne.s32.totalorder %s70, %s72
    %p79 = scmp.eq.s32.totalorder %s15, 1
    %p80 = por %p78, %p79
    %p81 = scmp.ne.s32.totalorder %s72, %s73
    %p82 = scmp.eq.s32.totalorder %s15, 0
    %p83 = por %p81, %p82
    %p84 = scmp.ne.s32.totalorder %s72, %s73
    %p85 = scmp.eq.s32.totalorder %s16, 1
    %p86 = por %p84, %p85
    %p88 = scmp.ne.s32.totalorder %s73, %s87
    %p89 = scmp.eq.s32.totalorder %s16, 0
    %p90 = por %p88, %p89
    %s92 = sadd.s32 %s91, 1
    %p95 = scmp.eq.s32.totalorder %s10, 1
    %p96 = scmp.ne.s32.totalorder %s91, %s93
    %p97 = scmp.eq.s32.totalorder %s10, 0
    %p98 = por %p96, %p97
    %p99 = scmp.ne.s32.totalorder %s91, %s93
    %p100 = scmp.eq.s32.totalorder %s15, 1
    %p101 = por %p99, %p100
    %p102 = scmp.ne.s32.totalorder %s93, %s94
    %p103 = scmp.eq.s32.totalorder %s15, 0
    %p104 = por %p102, %p103
    %p105 = scmp.ne.s32.totalorder %s93, %s94
    %p106 = scmp.eq.s32.totalorder %s16, 1
    %p107 = por %p105, %p106
    %p109 = scmp.ne.s32.totalorder %s94, %s108
    %p110 = scmp.eq.s32.totalorder %s16, 0
    %p111 = por %p109, %p110
    %s112 = ssub.s32 %s10, %s17
    %p113 = scmp.eq.s32.totalorder %s112, 0
    %s115 = sadd.s32 %s114, 1
    %s116 = scalar_select %p113, %s114, %s115
    %p119 = pneg %p113
    %p120 = scmp.eq.s32.totalorder %s10, 1
    %p121 = por %p119, %p120
    %p122 = scmp.ne.s32.totalorder %s114, %s117
    %p123 = scmp.eq.s32.totalorder %s10, 0
    %p124 = por %p122, %p123
    %p125 = scmp.ne.s32.totalorder %s114, %s117
    %p126 = scmp.eq.s32.totalorder %s15, 1
    %p127 = por %p125, %p126
    %p128 = scmp.ne.s32.totalorder %s117, %s118
    %p129 = scmp.eq.s32.totalorder %s15, 0
    %p130 = por %p128, %p129
    %p131 = scmp.ne.s32.totalorder %s117, %s118
    %p132 = scmp.eq.s32.totalorder %s16, 1
    %p133 = por %p131, %p132
    %p135 = scmp.ne.s32.totalorder %s118, %s134
    %p136 = scmp.eq.s32.totalorder %s16, 0
    %p137 = por %p135, %p136
    %p138 = scmp.le.s32.totalorder 1, %s10
    %p139 = scmp.lt.s32.totalorder %s10, 3
    %p140 = pnand %p138, %p139
    %p141 = pneg %p140
    // Predicated region
    $region9: #{_lambda_.4} parent=5 // pred_check
      _
    $region10: #{_lambda_.4} parent=5 // pred_check_branch
      %143 = sbr.rel (%p140) target = $region12
    $region11: #{_lambda_.4} parent=5 // pred_region
      %s144 = ssub.s32 %s10, 1
      // Predicated region
      $region13: #{_lambda_.4} parent=11 // pred_check
        %p145 = pneg %p83
      $region14: #{_lambda_.4} parent=11 // pred_check_branch
        %147 = sbr.rel (%p145) target = $region16
      $region15: #{_lambda_.4} parent=11 // pred_region
        _
      $region16: #{_lambda_.4} parent=11 // pred_fallthru
        _
      // Predicated region
      $region17: #{_lambda_.4} parent=11 // pred_check
        %p148 = pneg %p104
      $region18: #{_lambda_.4} parent=11 // pred_check_branch
        %150 = sbr.rel (%p148) target = $region20
      $region19: #{_lambda_.4} parent=11 // pred_region
        _
      $region20: #{_lambda_.4} parent=11 // pred_fallthru
        _
    $region12: #{_lambda_.4} parent=5 // pred_fallthru
      _
    %p151 = scmp.lt.s32.totalorder %s10, 2
    // Predicated region
    $region21: #{_lambda_.4} parent=5 // pred_check
      %p152 = pneg %p151
    $region22: #{_lambda_.4} parent=5 // pred_check_branch
      %154 = sbr.rel (%p152) target = $region24
    $region23: #{_lambda_.4} parent=5 // pred_region
      // Predicated region
      $region25: #{_lambda_.4} parent=23 // pred_check
        %p155 = pneg %p30
      $region26: #{_lambda_.4} parent=23 // pred_check_branch
        %157 = sbr.rel (%p155) target = $region28
      $region27: #{_lambda_.4} parent=23 // pred_region
        %p158 = scmp.lt.s32.totalorder %s10, 1
        %s159 = scalar_select %p158, %s10, 1
        %s160 = smul.addr %s159, 2
        %s161 = smul.addr %s160, 8
        %s162 = scalar_lea.vmem %s0, %s161
      $region28: #{_lambda_.4} parent=23 // pred_fallthru
        _
      // Predicated region
      $region29: #{_lambda_.4} parent=23 // pred_check
        %p163 = pneg %p56
      $region30: #{_lambda_.4} parent=23 // pred_check_branch
        %165 = sbr.rel (%p163) target = $region32
      $region31: #{_lambda_.4} parent=23 // pred_region
        %p166 = scmp.lt.s32.totalorder %s10, 1
        %s167 = scalar_select %p166, %s10, 1
        %s168 = smul.addr %s167, 16
        %s169 = smul.addr %s168, 4
        %s170 = scalar_lea.vmem %s1, %s169
      $region32: #{_lambda_.4} parent=23 // pred_fallthru
        _
    $region24: #{_lambda_.4} parent=5 // pred_fallthru
      _
    %p171 = scmp.le.s32.totalorder 1, %s10
    %p172 = scmp.lt.s32.totalorder %s10, 3
    %p173 = pnand %p171, %p172
    %p174 = pneg %p173
    // Predicated region
    $region33: #{_lambda_.4} parent=5 // pred_check
      _
    $region34: #{_lambda_.4} parent=5 // pred_check_branch
      %176 = sbr.rel (%p173) target = $region36
    $region35: #{_lambda_.4} parent=5 // pred_region
      %s177 = ssub.s32 %s10, 1
      %p178 = scmp.lt.s32.totalorder %s15, 1
      %s179 = scalar_select %p178, %s15, 1
      %s180 = smul.addr %s179, 2
      %s181 = smul.addr %s180, 8
      %s182 = scalar_lea.vmem %s0, %s181
      %p183 = pneg %p36
      %p184 = pneg %p33
      %p185 = scmp.lt.s32.totalorder %s15, 1
      %s186 = scalar_select %p185, %s15, 1
      %s187 = smul.addr %s186, 16
      %s188 = smul.addr %s187, 4
      %s189 = scalar_lea.vmem %s1, %s188
      %p190 = pneg %p62
      %p191 = pneg %p59
      %p192 = pneg %p83
      %p193 = pneg %p80
      %p194 = pneg %p104
      %p195 = pneg %p101
      %p196 = pneg %p130
      %p197 = pneg %p127
      %p198 = scmp.lt.s32.totalorder %s15, 1
      %s199 = scalar_select %p198, %s15, 1
      %s200 = smul.addr %s199, 8
      %s201 = smul.addr %s200, 8
      %s202 = scalar_lea.vmem %s4, %s201
      %p203 = scmp.lt.s32.totalorder %s15, 1
      %s204 = scalar_select %p203, %s15, 1
      %s205 = smul.addr %s204, 2
      %s206 = smul.addr %s205, 8
      %s207 = scalar_lea.vmem %s0, %s206
      %p208 = scmp.lt.s32.totalorder %s15, 1
      %s209 = scalar_select %p208, %s15, 1
      %s210 = smul.addr %s209, 16
      %s211 = smul.addr %s210, 4
      %s212 = scalar_lea.vmem %s1, %s211
      %p213 = scmp.lt.s32.totalorder %s15, 1
      %s214 = scalar_select %p213, %s15, 1
      %s215 = smul.addr %s214, 8
      %s216 = smul.addr %s215, 8
      %s217 = scalar_lea.vmem %s4, %s216
      %v218 = vld [vmem:[%s207] sm:$0xff]
      %v219 = vld [vmem:[%s207 + $0x8] sm:$0xf]
      %v220 = vld [vmem:[%s212] sm:$0x7]
      %s221 = scalar_lea.vmem %s212, 4
      %v222 = vld [vmem:[%s221] sm:$0x7]
      %s223 = scalar_lea.vmem %s212, 16
      %v224 = vld [vmem:[%s223] sm:$0x7]
      %s225 = scalar_lea.vmem %s212, 20
      %v226 = vld [vmem:[%s225] sm:$0x7]
      %v227 = vadd.f32 %v220, %v222
      %v228 = vadd.f32 %v227, %v224
      %v229 = vadd.f32 %v228, %v226
      %v230 = vsub.f32 %v227, %v224
      %v231 = vsub.f32 %v230, %v226
      %v232 = vsub.f32 %v220, %v222
      %v233 = vadd.f32 %v232, %v224
      %v234 = vsub.f32 %v233, %v226
      %v235 = vsub.f32 %v232, %v224
      %v236 = vadd.f32 %v235, %v226
      %s237 = scalar_lea.vmem %s212, 8
      %v238 = vld [vmem:[%s237] sm:$0x7]
      %s239 = scalar_lea.vmem %s212, 12
      %v240 = vld [vmem:[%s239] sm:$0x7]
      %s241 = scalar_lea.vmem %s212, 24
      %v242 = vld [vmem:[%s241] sm:$0x7]
      %s243 = scalar_lea.vmem %s212, 28
      %v244 = vld [vmem:[%s243] sm:$0x7]
      %v245 = vadd.f32 %v238, %v240
      %v246 = vadd.f32 %v245, %v242
      %v247 = vadd.f32 %v246, %v244
      %v248 = vsub.f32 %v245, %v242
      %v249 = vsub.f32 %v248, %v244
      %v250 = vsub.f32 %v238, %v240
      %v251 = vadd.f32 %v250, %v242
      %v252 = vsub.f32 %v251, %v244
      %v253 = vsub.f32 %v250, %v242
      %v254 = vadd.f32 %v253, %v244
      %s255 = scalar_lea.vmem %s212, 32
      %v256 = vld [vmem:[%s255] sm:$0x7]
      %s257 = scalar_lea.vmem %s212, 36
      %v258 = vld [vmem:[%s257] sm:$0x7]
      %s259 = scalar_lea.vmem %s212, 48
      %v260 = vld [vmem:[%s259] sm:$0x7]
      %s261 = scalar_lea.vmem %s212, 52
      %v262 = vld [vmem:[%s261] sm:$0x7]
      %v263 = vadd.f32 %v256, %v258
      %v264 = vadd.f32 %v263, %v260
      %v265 = vadd.f32 %v264, %v262
      %v266 = vsub.f32 %v263, %v260
      %v267 = vsub.f32 %v266, %v262
      %v268 = vsub.f32 %v256, %v258
      %v269 = vadd.f32 %v268, %v260
      %v270 = vsub.f32 %v269, %v262
      %v271 = vsub.f32 %v268, %v260
      %v272 = vadd.f32 %v271, %v262
      %s273 = scalar_lea.vmem %s212, 40
      %v274 = vld [vmem:[%s273] sm:$0x7]
      %s275 = scalar_lea.vmem %s212, 44
      %v276 = vld [vmem:[%s275] sm:$0x7]
      %s277 = scalar_lea.vmem %s212, 56
      %v278 = vld [vmem:[%s277] sm:$0x7]
      %s279 = scalar_lea.vmem %s212, 60
      %v280 = vld [vmem:[%s279] sm:$0x7]
      %v281 = vadd.f32 %v274, %v276
      %v282 = vadd.f32 %v281, %v278
      %v283 = vadd.f32 %v282, %v280
      %v284 = vsub.f32 %v281, %v278
      %v285 = vsub.f32 %v284, %v280
      %v286 = vsub.f32 %v274, %v276
      %v287 = vadd.f32 %v286, %v278
      %v288 = vsub.f32 %v287, %v280
      %v289 = vsub.f32 %v286, %v278
      %v290 = vadd.f32 %v289, %v280
      %v291 = vadd.f32 %v229, %v247
      %v292 = vadd.f32 %v291, %v265
      %v293 = vadd.f32 %v292, %v283
      %v294 = vmul.f32 %v293, 0.25
      %v295 = vsub.f32 %v291, %v265
      %v296 = vsub.f32 %v295, %v283
      %v297 = vmul.f32 %v296, 0.25
      %v298 = vsub.f32 %v229, %v247
      %v299 = vadd.f32 %v298, %v265
      %v300 = vsub.f32 %v299, %v283
      %v301 = vmul.f32 %v300, 0.25
      %v302 = vsub.f32 %v298, %v265
      %v303 = vadd.f32 %v302, %v283
      %v304 = vmul.f32 %v303, 0.25
      %v305 = vadd.f32 %v231, %v249
      %v306 = vadd.f32 %v305, %v267
      %v307 = vadd.f32 %v306, %v285
      %v308 = vmul.f32 %v307, 0.25
      %v309 = vsub.f32 %v305, %v267
      %v310 = vsub.f32 %v309, %v285
      %v311 = vmul.f32 %v310, 0.25
      %v312 = vsub.f32 %v231, %v249
      %v313 = vadd.f32 %v312, %v267
      %v314 = vsub.f32 %v313, %v285
      %v315 = vmul.f32 %v314, 0.25
      %v316 = vsub.f32 %v312, %v267
      %v317 = vadd.f32 %v316, %v285
      %v318 = vmul.f32 %v317, 0.25
      %v319 = vadd.f32 %v234, %v252
      %v320 = vadd.f32 %v319, %v270
      %v321 = vadd.f32 %v320, %v288
      %v322 = vmul.f32 %v321, 0.25
      %v323 = vsub.f32 %v319, %v270
      %v324 = vsub.f32 %v323, %v288
      %v325 = vmul.f32 %v324, 0.25
      %v326 = vsub.f32 %v234, %v252
      %v327 = vadd.f32 %v326, %v270
      %v328 = vsub.f32 %v327, %v288
      %v329 = vmul.f32 %v328, 0.25
      %v330 = vsub.f32 %v326, %v270
      %v331 = vadd.f32 %v330, %v288
      %v332 = vmul.f32 %v331, 0.25
      %v333 = vadd.f32 %v236, %v254
      %v334 = vadd.f32 %v333, %v272
      %v335 = vadd.f32 %v334, %v290
      %v336 = vmul.f32 %v335, 0.25
      %v337 = vsub.f32 %v333, %v272
      %v338 = vsub.f32 %v337, %v290
      %v339 = vmul.f32 %v338, 0.25
      %v340 = vsub.f32 %v236, %v254
      %v341 = vadd.f32 %v340, %v272
      %v342 = vsub.f32 %v341, %v290
      %v343 = vmul.f32 %v342, 0.25
      %v344 = vsub.f32 %v340, %v272
      %v345 = vadd.f32 %v344, %v290
      %v346 = vmul.f32 %v345, 0.25
      %v348 = vrot.slane %v294, 4
      %v351 = vrot.slane %v297, 1
      %v354 = vrot.slane %v301, 6
      %v357 = vrot.slane %v304, 3
      %v360 = vrot.slane %v311, 5
      %v363 = vrot.slane %v315, 2
      %v366 = vrot.slane %v318, 7
      %v369 = vrot.slane %v322, 4
      %v372 = vrot.slane %v325, 1
      %v375 = vrot.slane %v329, 6
      %v378 = vrot.slane %v332, 3
      %v381 = vrot.slane %v339, 5
      %v384 = vrot.slane %v343, 2
      %vm386 = vcmask 1043456
      %v387 = vsel %vm386, %v219, %v348
      %vm388 = vcmask 1046528
      %v389 = vsel %vm388, %v387, %v351
      %vm390 = vcmask 1041408
      %v391 = vsel %vm390, %v351, %v354
      %vm392 = vcmask 1044480
      %v393 = vsel %vm392, %v391, %v357
      %vm394 = vcmask 1042432
      %v395 = vsel %vm394, %v308, %v360
      %vm396 = vcmask 1045504
      %v397 = vsel %vm396, %v395, %v363
      %vm398 = vcmask 1040384
      %v399 = vsel %vm398, %v363, %v366
      %v400 = vsel %vm386, %v399, %v369
      %v401 = vsel %vm388, %v400, %v372
      %v402 = vsel %vm390, %v372, %v375
      %v403 = vsel %vm392, %v402, %v378
      %v404 = vsel %vm394, %v336, %v381
      %v405 = vsel %vm396, %v404, %v384
      %v407 = vrot.slane %v346, 7
      %v409 = vsel %vm398, %v384, %v407
      %vm410 = vcmask 523264
      %v411 = vsel %vm410, %v218, 0.0
      %412 = vadd.xlane.f32.xlu0 %v411
      %v413 = vpop.xlane.xlu0 %412
      %v414 = vsel %vm410, %v389, 0.0
      %415 = vadd.xlane.f32.xlu0 %v414
      %v416 = vpop.xlane.xlu0 %415
      %v417 = vsel %vm410, %v393, 0.0
      %418 = vadd.xlane.f32.xlu0 %v417
      %v419 = vpop.xlane.xlu0 %418
      %v420 = vsel %vm410, %v397, 0.0
      %421 = vadd.xlane.f32.xlu0 %v420
      %v422 = vpop.xlane.xlu0 %421
      %v423 = vsel %vm410, %v401, 0.0
      %424 = vadd.xlane.f32.xlu0 %v423
      %v425 = vpop.xlane.xlu0 %424
      %v426 = vsel %vm410, %v403, 0.0
      %427 = vadd.xlane.f32.xlu0 %v426
      %v428 = vpop.xlane.xlu0 %427
      %v429 = vsel %vm410, %v405, 0.0
      %430 = vadd.xlane.f32.xlu0 %v429
      %v431 = vpop.xlane.xlu0 %430
      %vm432 = vcmask 519168
      %v433 = vsel %vm432, %v409, 0.0
      %434 = vadd.xlane.f32.xlu0 %v433
      %v435 = vpop.xlane.xlu0 %434
      %v436 = vrcp.pop 64.0
      %v437 = vmul.f32 %v413, %v436
      %v438 = vmul.f32 %v416, %v436
      %v439 = vmul.f32 %v419, %v436
      %v440 = vmul.f32 %v422, %v436
      %v441 = vmul.f32 %v425, %v436
      %v442 = vmul.f32 %v428, %v436
      %v443 = vmul.f32 %v431, %v436
      %v444 = vmul.f32 %v435, %v436
      %v445 = vsel %vm410, %v218, -inf
      %446 = vmax.xlane.f32.xlu0 %v445
      %v447 = vpop.xlane.xlu0 %446
      %v448 = vsel %vm410, %v389, -inf
      %449 = vmax.xlane.f32.xlu0 %v448
      %v450 = vpop.xlane.xlu0 %449
      %v451 = vsel %vm410, %v393, -inf
      %452 = vmax.xlane.f32.xlu0 %v451
      %v453 = vpop.xlane.xlu0 %452
      %v454 = vsel %vm410, %v397, -inf
      %455 = vmax.xlane.f32.xlu0 %v454
      %v456 = vpop.xlane.xlu0 %455
      %v457 = vsel %vm410, %v401, -inf
      %458 = vmax.xlane.f32.xlu0 %v457
      %v459 = vpop.xlane.xlu0 %458
      %v460 = vsel %vm410, %v403, -inf
      %461 = vmax.xlane.f32.xlu0 %v460
      %v462 = vpop.xlane.xlu0 %461
      %v463 = vsel %vm410, %v405, -inf
      %464 = vmax.xlane.f32.xlu0 %v463
      %v465 = vpop.xlane.xlu0 %464
      %v466 = vsel %vm432, %v409, -inf
      %467 = vmax.xlane.f32.xlu0 %v466
      %v468 = vpop.xlane.xlu0 %467
      %v469 = vld [vmem:[%s2] sm:$0x7]
      %vm470 = vcmask 490496
      %v472 = vsel %vm470, %v469, 0
      %v475 = vsel %vm386, %v444, 0
      %477 = vmatprep.subr.mxu0 0.0
      %478 = vmatpush1.msra.mxu0 %v437
      %479 = vmatprep.subr.mxu0 0.0
      %480 = vmatpush1.msra.mxu0 %v438
      %481 = vmatprep.subr.mxu0 0.0
      %482 = vmatpush1.msra.mxu0 %v439
      %483 = vmatprep.subr.mxu0 0.0
      %484 = vmatpush1.msra.mxu0 %v440
      %485 = vmatprep.subr.mxu0 0.0
      %486 = vmatpush1.msra.mxu0 %v441
      %487 = vmatprep.subr.mxu0 0.0
      %488 = vmatpush1.msra.mxu0 %v442
      %489 = vmatprep.subr.mxu0 0.0
      %490 = vmatpush1.msra.mxu0 %v443
      %491 = vmatprep.subr.mxu0 0.0
      %492 = vmatpush1.msra.mxu0 %v475
      %493 = vmatprep.subr.mxu0 0.0
      %494 = vmatpush1.msra.mxu0 0.0
      %495 = vmatprep.subr.mxu0 0.0
      %496 = vmatpush1.msra.mxu0 0.0
      %497 = vmatprep.subr.mxu0 0.0
      %498 = vmatpush1.msra.mxu0 0.0
      %499 = vmatprep.subr.mxu0 0.0
      %500 = vmatpush1.msra.mxu0 0.0
      %501 = vmatprep.subr.mxu0 0.0
      %502 = vmatpush1.msra.mxu0 0.0
      %503 = vmatprep.subr.mxu0 0.0
      %504 = vmatpush1.msra.mxu0 0.0
      %505 = vmatprep.subr.mxu0 0.0
      %506 = vmatpush1.msra.mxu0 0.0
      %507 = vmatprep.subr.mxu0 0.0
      %508 = vmatpush1.msra.mxu0 0.0
      %509 = vmatprep.subr.mxu0 0.0
      %510 = vmatpush1.msra.mxu0 0.0
      %511 = vmatprep.subr.mxu0 0.0
      %512 = vmatpush1.msra.mxu0 0.0
      %513 = vmatprep.subr.mxu0 0.0
      %514 = vmatpush1.msra.mxu0 0.0
      %515 = vmatprep.subr.mxu0 0.0
      %516 = vmatpush1.msra.mxu0 0.0
      %517 = vmatprep.subr.mxu0 0.0
      %518 = vmatpush1.msra.mxu0 0.0
      %519 = vmatprep.subr.mxu0 0.0
      %520 = vmatpush1.msra.mxu0 0.0
      %521 = vmatprep.subr.mxu0 0.0
      %522 = vmatpush1.msra.mxu0 0.0
      %523 = vmatprep.subr.mxu0 0.0
      %524 = vmatpush1.msra.mxu0 0.0
      %525 = vmatprep.subr.mxu0 0.0
      %526 = vmatpush1.msra.mxu0 0.0
      %527 = vmatprep.subr.mxu0 0.0
      %528 = vmatpush1.msra.mxu0 0.0
      %529 = vmatprep.subr.mxu0 0.0
      %530 = vmatpush1.msra.mxu0 0.0
      %531 = vmatprep.subr.mxu0 0.0
      %532 = vmatpush1.msra.mxu0 0.0
      %533 = vmatprep.subr.mxu0 0.0
      %534 = vmatpush1.msra.mxu0 0.0
      %535 = vmatprep.subr.mxu0 0.0
      %536 = vmatpush1.msra.mxu0 0.0
      %537 = vmatprep.subr.mxu0 0.0
      %538 = vmatpush1.msra.mxu0 0.0
      %539 = vmatprep.subr.mxu0 0.0
      %540 = vmatpush1.msra.mxu0 0.0
      %541 = vmatprep.mubr.f32.mxu0 0.0
      %542 = vmatmul.mubr.f32.gmra.mrb[0].mxu0 %v472
      %v543 = vpop.f32.mrb[0].mxu0
      %v544 = vadd.f32 0.0, %v543
      %v545 = vpop.f32.mrb[0].mxu0
      %546 = vdwg.mxu0
      %v547 = vmax.f32 %v544, 0.0
      %v548 = vld [vmem:[%s3] sm:$0xff]
      %v549 = vld [vmem:[%s3 + $0x8] sm:$0xff]
      %v550 = vld [vmem:[%s3 + $0x10] sm:$0xff]
      %v551 = vld [vmem:[%s3 + $0x18] sm:$0xff]
      %v552 = vld [vmem:[%s3 + $0x20] sm:$0xff]
      %v553 = vld [vmem:[%s3 + $0x28] sm:$0xff]
      %v554 = vld [vmem:[%s3 + $0x30] sm:$0xff]
      %v555 = vld [vmem:[%s3 + $0x38] sm:$0xf]
      %v557 = vsel %vm386, %v468, 0
      %559 = vmatprep.subr.mxu0 0.0
      %560 = vmatpush1.msra.mxu0 %v447
      %561 = vmatprep.subr.mxu0 0.0
      %562 = vmatpush1.msra.mxu0 %v450
      %563 = vmatprep.subr.mxu0 0.0
      %564 = vmatpush1.msra.mxu0 %v453
      %565 = vmatprep.subr.mxu0 0.0
      %566 = vmatpush1.msra.mxu0 %v456
      %567 = vmatprep.subr.mxu0 0.0
      %568 = vmatpush1.msra.mxu0 %v459
      %569 = vmatprep.subr.mxu0 0.0
      %570 = vmatpush1.msra.mxu0 %v462
      %571 = vmatprep.subr.mxu0 0.0
      %572 = vmatpush1.msra.mxu0 %v465
      %573 = vmatprep.subr.mxu0 0.0
      %574 = vmatpush1.msra.mxu0 %v557
      %575 = vmatprep.subr.mxu0 0.0
      %576 = vmatpush1.msra.mxu0 0.0
      %577 = vmatprep.subr.mxu0 0.0
      %578 = vmatpush1.msra.mxu0 0.0
      %579 = vmatprep.subr.mxu0 0.0
      %580 = vmatpush1.msra.mxu0 0.0
      %581 = vmatprep.subr.mxu0 0.0
      %582 = vmatpush1.msra.mxu0 0.0
      %583 = vmatprep.subr.mxu0 0.0
      %584 = vmatpush1.msra.mxu0 0.0
      %585 = vmatprep.subr.mxu0 0.0
      %586 = vmatpush1.msra.mxu0 0.0
      %587 = vmatprep.subr.mxu0 0.0
      %588 = vmatpush1.msra.mxu0 0.0
      %589 = vmatprep.subr.mxu0 0.0
      %590 = vmatpush1.msra.mxu0 0.0
      %591 = vmatprep.subr.mxu0 0.0
      %592 = vmatpush1.msra.mxu0 0.0
      %593 = vmatprep.subr.mxu0 0.0
      %594 = vmatpush1.msra.mxu0 0.0
      %595 = vmatprep.subr.mxu0 0.0
      %596 = vmatpush1.msra.mxu0 0.0
      %597 = vmatprep.subr.mxu0 0.0
      %598 = vmatpush1.msra.mxu0 0.0
      %599 = vmatprep.subr.mxu0 0.0
      %600 = vmatpush1.msra.mxu0 0.0
      %601 = vmatprep.subr.mxu0 0.0
      %602 = vmatpush1.msra.mxu0 0.0
      %603 = vmatprep.subr.mxu0 0.0
      %604 = vmatpush1.msra.mxu0 0.0
      %605 = vmatprep.subr.mxu0 0.0
      %606 = vmatpush1.msra.mxu0 0.0
      %607 = vmatprep.subr.mxu0 0.0
      %608 = vmatpush1.msra.mxu0 0.0
      %609 = vmatprep.subr.mxu0 0.0
      %610 = vmatpush1.msra.mxu0 0.0
      %611 = vmatprep.subr.mxu0 0.0
      %612 = vmatpush1.msra.mxu0 0.0
      %613 = vmatprep.subr.mxu0 0.0
      %614 = vmatpush1.msra.mxu0 0.0
      %615 = vmatprep.subr.mxu0 0.0
      %616 = vmatpush1.msra.mxu0 0.0
      %617 = vmatprep.subr.mxu0 0.0
      %618 = vmatpush1.msra.mxu0 0.0
      %619 = vmatprep.subr.mxu0 0.0
      %620 = vmatpush1.msra.mxu0 0.0
      %621 = vmatprep.subr.mxu0 0.0
      %622 = vmatpush1.msra.mxu0 0.0
      %623 = vmatprep.mubr.f32.mxu0 0.0
      %624 = vmatmul.mubr.f32.gmra.mrb[0].mxu0 %v472
      %v625 = vpop.f32.mrb[0].mxu0
      %v626 = vadd.f32 0.0, %v625
      %v627 = vpop.f32.mrb[0].mxu0
      %628 = vdwg.mxu0
      %v629 = vmax.f32 %v626, 0.0
      %vm630 = vcmask 23552
      %v632 = vsel %vm630, %v548, 0
      %v635 = vsel %vm630, %v549, 0
      %v638 = vsel %vm630, %v550, 0
      %v641 = vsel %vm630, %v551, 0
      %v644 = vsel %vm630, %v552, 0
      %v647 = vsel %vm630, %v553, 0
      %v650 = vsel %vm630, %v554, 0
      %v653 = vsel %vm630, %v555, 0
      %v656 = vsel %vm394, %v629, 0
      %658 = vmatprep.subr.mxu0 0.0
      %659 = vmatpush1.msra.mxu0 %v656
      %660 = vmatprep.subr.mxu0 0.0
      %661 = vmatpush1.msra.mxu0 0.0
      %662 = vmatprep.subr.mxu0 0.0
      %663 = vmatpush1.msra.mxu0 0.0
      %664 = vmatprep.subr.mxu0 0.0
      %665 = vmatpush1.msra.mxu0 0.0
      %666 = vmatprep.subr.mxu0 0.0
      %667 = vmatpush1.msra.mxu0 0.0
      %668 = vmatprep.subr.mxu0 0.0
      %669 = vmatpush1.msra.mxu0 0.0
      %670 = vmatprep.subr.mxu0 0.0
      %671 = vmatpush1.msra.mxu0 0.0
      %672 = vmatprep.subr.mxu0 0.0
      %673 = vmatpush1.msra.mxu0 0.0
      %674 = vmatprep.subr.mxu0 0.0
      %675 = vmatpush1.msra.mxu0 0.0
      %676 = vmatprep.subr.mxu0 0.0
      %677 = vmatpush1.msra.mxu0 0.0
      %678 = vmatprep.subr.mxu0 0.0
      %679 = vmatpush1.msra.mxu0 0.0
      %680 = vmatprep.subr.mxu0 0.0
      %681 = vmatpush1.msra.mxu0 0.0
      %682 = vmatprep.subr.mxu0 0.0
      %683 = vmatpush1.msra.mxu0 0.0
      %684 = vmatprep.subr.mxu0 0.0
      %685 = vmatpush1.msra.mxu0 0.0
      %686 = vmatprep.subr.mxu0 0.0
      %687 = vmatpush1.msra.mxu0 0.0
      %688 = vmatprep.subr.mxu0 0.0
      %689 = vmatpush1.msra.mxu0 0.0
      %690 = vmatprep.subr.mxu0 0.0
      %691 = vmatpush1.msra.mxu0 0.0
      %692 = vmatprep.subr.mxu0 0.0
      %693 = vmatpush1.msra.mxu0 0.0
      %694 = vmatprep.subr.mxu0 0.0
      %695 = vmatpush1.msra.mxu0 0.0
      %696 = vmatprep.subr.mxu0 0.0
      %697 = vmatpush1.msra.mxu0 0.0
      %698 = vmatprep.subr.mxu0 0.0
      %699 = vmatpush1.msra.mxu0 0.0
      %700 = vmatprep.subr.mxu0 0.0
      %701 = vmatpush1.msra.mxu0 0.0
      %702 = vmatprep.subr.mxu0 0.0
      %703 = vmatpush1.msra.mxu0 0.0
      %704 = vmatprep.subr.mxu0 0.0
      %705 = vmatpush1.msra.mxu0 0.0
      %706 = vmatprep.subr.mxu0 0.0
      %707 = vmatpush1.msra.mxu0 0.0
      %708 = vmatprep.subr.mxu0 0.0
      %709 = vmatpush1.msra.mxu0 0.0
      %710 = vmatprep.subr.mxu0 0.0
      %711 = vmatpush1.msra.mxu0 0.0
      %712 = vmatprep.subr.mxu0 0.0
      %713 = vmatpush1.msra.mxu0 0.0
      %714 = vmatprep.subr.mxu0 0.0
      %715 = vmatpush1.msra.mxu0 0.0
      %716 = vmatprep.subr.mxu0 0.0
      %717 = vmatpush1.msra.mxu0 0.0
      %718 = vmatprep.subr.mxu0 0.0
      %719 = vmatpush1.msra.mxu0 0.0
      %720 = vmatprep.subr.mxu0 0.0
      %721 = vmatpush1.msra.mxu0 0.0
      %722 = vmatprep.mubr.f32.mxu0 0.0
      %723 = vmatmul.mubr.f32.gmra.mrb[0].mxu0 %v632
      %v724 = vpop.f32.mrb[0].mxu0
      %v725 = vadd.f32 0.0, %v724
      %v726 = vpop.f32.mrb[0].mxu0
      %727 = vmatprep.mubr.f32.mxu0 0.0
      %728 = vmatmul.mubr.f32.gmra.mrb[0].mxu0 %v635
      %v729 = vpop.f32.mrb[0].mxu0
      %v730 = vadd.f32 0.0, %v729
      %v731 = vpop.f32.mrb[0].mxu0
      %732 = vmatprep.mubr.f32.mxu0 0.0
      %733 = vmatmul.mubr.f32.gmra.mrb[0].mxu0 %v638
      %v734 = vpop.f32.mrb[0].mxu0
      %v735 = vadd.f32 0.0, %v734
      %v736 = vpop.f32.mrb[0].mxu0
      %737 = vmatprep.mubr.f32.mxu0 0.0
      %738 = vmatmul.mubr.f32.gmra.mrb[0].mxu0 %v641
      %v739 = vpop.f32.mrb[0].mxu0
      %v740 = vadd.f32 0.0, %v739
      %v741 = vpop.f32.mrb[0].mxu0
      %742 = vmatprep.mubr.f32.mxu0 0.0
      %743 = vmatmul.mubr.f32.gmra.mrb[0].mxu0 %v644
      %v744 = vpop.f32.mrb[0].mxu0
      %v745 = vadd.f32 0.0, %v744
      %v746 = vpop.f32.mrb[0].mxu0
      %747 = vmatprep.mubr.f32.mxu0 0.0
      %748 = vmatmul.mubr.f32.gmra.mrb[0].mxu0 %v647
      %v749 = vpop.f32.mrb[0].mxu0
      %v750 = vadd.f32 0.0, %v749
      %v751 = vpop.f32.mrb[0].mxu0
      %752 = vmatprep.mubr.f32.mxu0 0.0
      %753 = vmatmul.mubr.f32.gmra.mrb[0].mxu0 %v650
      %v754 = vpop.f32.mrb[0].mxu0
      %v755 = vadd.f32 0.0, %v754
      %v756 = vpop.f32.mrb[0].mxu0
      %757 = vmatprep.mubr.f32.mxu0 0.0
      %758 = vmatmul.mubr.f32.gmra.mrb[0].mxu0 %v653
      %v759 = vpop.f32.mrb[0].mxu0
      %v760 = vadd.f32 0.0, %v759
      %v761 = vpop.f32.mrb[0].mxu0
      %762 = vdwg.mxu0
      %v764 = vsel %vm394, %v547, 0
      %766 = vmatprep.subr.mxu0 0.0
      %767 = vmatpush1.msra.mxu0 %v764
      %768 = vmatprep.subr.mxu0 0.0
      %769 = vmatpush1.msra.mxu0 0.0
      %770 = vmatprep.subr.mxu0 0.0
      %771 = vmatpush1.msra.mxu0 0.0
      %772 = vmatprep.subr.mxu0 0.0
      %773 = vmatpush1.msra.mxu0 0.0
      %774 = vmatprep.subr.mxu0 0.0
      %775 = vmatpush1.msra.mxu0 0.0
      %776 = vmatprep.subr.mxu0 0.0
      %777 = vmatpush1.msra.mxu0 0.0
      %778 = vmatprep.subr.mxu0 0.0
      %779 = vmatpush1.msra.mxu0 0.0
      %780 = vmatprep.subr.mxu0 0.0
      %781 = vmatpush1.msra.mxu0 0.0
      %782 = vmatprep.subr.mxu0 0.0
      %783 = vmatpush1.msra.mxu0 0.0
      %784 = vmatprep.subr.mxu0 0.0
      %785 = vmatpush1.msra.mxu0 0.0
      %786 = vmatprep.subr.mxu0 0.0
      %787 = vmatpush1.msra.mxu0 0.0
      %788 = vmatprep.subr.mxu0 0.0
      %789 = vmatpush1.msra.mxu0 0.0
      %790 = vmatprep.subr.mxu0 0.0
      %791 = vmatpush1.msra.mxu0 0.0
      %792 = vmatprep.subr.mxu0 0.0
      %793 = vmatpush1.msra.mxu0 0.0
      %794 = vmatprep.subr.mxu0 0.0
      %795 = vmatpush1.msra.mxu0 0.0
      %796 = vmatprep.subr.mxu0 0.0
      %797 = vmatpush1.msra.mxu0 0.0
      %798 = vmatprep.subr.mxu0 0.0
      %799 = vmatpush1.msra.mxu0 0.0
      %800 = vmatprep.subr.mxu0 0.0
      %801 = vmatpush1.msra.mxu0 0.0
      %802 = vmatprep.subr.mxu0 0.0
      %803 = vmatpush1.msra.mxu0 0.0
      %804 = vmatprep.subr.mxu0 0.0
      %805 = vmatpush1.msra.mxu0 0.0
      %806 = vmatprep.subr.mxu0 0.0
      %807 = vmatpush1.msra.mxu0 0.0
      %808 = vmatprep.subr.mxu0 0.0
      %809 = vmatpush1.msra.mxu0 0.0
      %810 = vmatprep.subr.mxu0 0.0
      %811 = vmatpush1.msra.mxu0 0.0
      %812 = vmatprep.subr.mxu0 0.0
      %813 = vmatpush1.msra.mxu0 0.0
      %814 = vmatprep.subr.mxu0 0.0
      %815 = vmatpush1.msra.mxu0 0.0
      %816 = vmatprep.subr.mxu0 0.0
      %817 = vmatpush1.msra.mxu0 0.0
      %818 = vmatprep.subr.mxu0 0.0
      %819 = vmatpush1.msra.mxu0 0.0
      %820 = vmatprep.subr.mxu0 0.0
      %821 = vmatpush1.msra.mxu0 0.0
      %822 = vmatprep.subr.mxu0 0.0
      %823 = vmatpush1.msra.mxu0 0.0
      %824 = vmatprep.subr.mxu0 0.0
      %825 = vmatpush1.msra.mxu0 0.0
      %826 = vmatprep.subr.mxu0 0.0
      %827 = vmatpush1.msra.mxu0 0.0
      %828 = vmatprep.subr.mxu0 0.0
      %829 = vmatpush1.msra.mxu0 0.0
      %830 = vmatprep.mubr.f32.mxu0 0.0
      %831 = vmatmul.mubr.f32.gmra.mrb[0].mxu0 %v632
      %v832 = vpop.f32.mrb[0].mxu0
      %v833 = vadd.f32 %v725, %v832
      %v834 = vpop.f32.mrb[0].mxu0
      %835 = vmatprep.mubr.f32.mxu0 0.0
      %836 = vmatmul.mubr.f32.gmra.mrb[0].mxu0 %v635
      %v837 = vpop.f32.mrb[0].mxu0
      %v838 = vadd.f32 %v730, %v837
      %v839 = vpop.f32.mrb[0].mxu0
      %840 = vmatprep.mubr.f32.mxu0 0.0
      %841 = vmatmul.mubr.f32.gmra.mrb[0].mxu0 %v638
      %v842 = vpop.f32.mrb[0].mxu0
      %v843 = vadd.f32 %v735, %v842
      %v844 = vpop.f32.mrb[0].mxu0
      %845 = vmatprep.mubr.f32.mxu0 0.0
      %846 = vmatmul.mubr.f32.gmra.mrb[0].mxu0 %v641
      %v847 = vpop.f32.mrb[0].mxu0
      %v848 = vadd.f32 %v740, %v847
      %v849 = vpop.f32.mrb[0].mxu0
      %850 = vmatprep.mubr.f32.mxu0 0.0
      %851 = vmatmul.mubr.f32.gmra.mrb[0].mxu0 %v644
      %v852 = vpop.f32.mrb[0].mxu0
      %v853 = vadd.f32 %v745, %v852
      %v854 = vpop.f32.mrb[0].mxu0
      %855 = vmatprep.mubr.f32.mxu0 0.0
      %856 = vmatmul.mubr.f32.gmra.mrb[0].mxu0 %v647
      %v857 = vpop.f32.mrb[0].mxu0
      %v858 = vadd.f32 %v750, %v857
      %v859 = vpop.f32.mrb[0].mxu0
      %860 = vmatprep.mubr.f32.mxu0 0.0
      %861 = vmatmul.mubr.f32.gmra.mrb[0].mxu0 %v650
      %v862 = vpop.f32.mrb[0].mxu0
      %v863 = vadd.f32 %v755, %v862
      %v864 = vpop.f32.mrb[0].mxu0
      %865 = vmatprep.mubr.f32.mxu0 0.0
      %866 = vmatmul.mubr.f32.gmra.mrb[0].mxu0 %v653
      %v867 = vpop.f32.mrb[0].mxu0
      %v868 = vadd.f32 %v760, %v867
      %v869 = vpop.f32.mrb[0].mxu0
      %870 = vdwg.mxu0
      %v871 = vxor.u32 %v833, 2147483648
      %v872 = vxor.u32 %v838, 2147483648
      %v873 = vxor.u32 %v843, 2147483648
      %v874 = vxor.u32 %v848, 2147483648
      %v875 = vxor.u32 %v853, 2147483648
      %v876 = vxor.u32 %v858, 2147483648
      %v877 = vxor.u32 %v863, 2147483648
      %v878 = vxor.u32 %v868, 2147483648
      %v879 = vmul.f32 %v871, 1.442695
      %v880 = vpow.pop %v879
      %v881 = vmul.f32 %v872, 1.442695
      %v882 = vpow.pop %v881
      %v883 = vmul.f32 %v873, 1.442695
      %v884 = vpow.pop %v883
      %v885 = vmul.f32 %v874, 1.442695
      %v886 = vpow.pop %v885
      %v887 = vmul.f32 %v875, 1.442695
      %v888 = vpow.pop %v887
      %v889 = vmul.f32 %v876, 1.442695
      %v890 = vpow.pop %v889
      %v891 = vmul.f32 %v877, 1.442695
      %v892 = vpow.pop %v891
      %v893 = vmul.f32 %v878, 1.442695
      %v894 = vpow.pop %v893
      %v895 = vadd.f32 %v880, 1.0
      %v896 = vadd.f32 %v882, 1.0
      %v897 = vadd.f32 %v884, 1.0
      %v898 = vadd.f32 %v886, 1.0
      %v899 = vadd.f32 %v888, 1.0
      %v900 = vadd.f32 %v890, 1.0
      %v901 = vadd.f32 %v892, 1.0
      %v902 = vadd.f32 %v894, 1.0
      %v903 = vrcp.pop %v895
      %v904 = vmul.f32 1.0, %v903
      %v905 = vrcp.pop %v896
      %v906 = vmul.f32 1.0, %v905
      %v907 = vrcp.pop %v897
      %v908 = vmul.f32 1.0, %v907
      %v909 = vrcp.pop %v898
      %v910 = vmul.f32 1.0, %v909
      %v911 = vrcp.pop %v899
      %v912 = vmul.f32 1.0, %v911
      %v913 = vrcp.pop %v900
      %v914 = vmul.f32 1.0, %v913
      %v915 = vrcp.pop %v901
      %v916 = vmul.f32 1.0, %v915
      %v917 = vrcp.pop %v902
      %v918 = vmul.f32 1.0, %v917
      %v919 = vadd.f32 %v904, 1.0
      %v920 = vadd.f32 %v906, 1.0
      %v921 = vadd.f32 %v908, 1.0
      %v922 = vadd.f32 %v910, 1.0
      %v923 = vadd.f32 %v912, 1.0
      %v924 = vadd.f32 %v914, 1.0
      %v925 = vadd.f32 %v916, 1.0
      %v926 = vadd.f32 %v918, 1.0
      %928 = vset.pattern.permute.xlu0 0
      %929 = vperm.xlu0 %928, %v919
      %v930 = vpop.permute.xlu0 %929
      %933 = vset.pattern.permute.xlu0 0
      %934 = vperm.xlu0 %933, %v920
      %v935 = vpop.permute.xlu0 %934
      %938 = vset.pattern.permute.xlu0 0
      %939 = vperm.xlu0 %938, %v921
      %v940 = vpop.permute.xlu0 %939
      %943 = vset.pattern.permute.xlu0 0
      %944 = vperm.xlu0 %943, %v922
      %v945 = vpop.permute.xlu0 %944
      %948 = vset.pattern.permute.xlu0 0
      %949 = vperm.xlu0 %948, %v923
      %v950 = vpop.permute.xlu0 %949
      %953 = vset.pattern.permute.xlu0 0
      %954 = vperm.xlu0 %953, %v924
      %v955 = vpop.permute.xlu0 %954
      %958 = vset.pattern.permute.xlu0 0
      %959 = vperm.xlu0 %958, %v925
      %v960 = vpop.permute.xlu0 %959
      %963 = vset.pattern.permute.xlu0 0
      %964 = vperm.xlu0 %963, %v926
      %v965 = vpop.permute.xlu0 %964
      %v967 = vmul.f32 %v930, %v218
      %v968 = vmul.f32 %v935, %v389
      %v969 = vmul.f32 %v940, %v393
      %v970 = vmul.f32 %v945, %v397
      %v971 = vmul.f32 %v950, %v401
      %v972 = vmul.f32 %v955, %v403
      %v973 = vmul.f32 %v960, %v405
      %v974 = vmul.f32 %v965, %v409
      %975 = vst.msk [vmem:[%s217] sm:$0xff] %vm410, %v967
      %976 = vst.msk [vmem:[%s217 + $0x8] sm:$0xff] %vm410, %v968
      %977 = vst.msk [vmem:[%s217 + $0x10] sm:$0xff] %vm410, %v969
      %978 = vst.msk [vmem:[%s217 + $0x18] sm:$0xff] %vm410, %v970
      %979 = vst.msk [vmem:[%s217 + $0x20] sm:$0xff] %vm410, %v971
      %980 = vst.msk [vmem:[%s217 + $0x28] sm:$0xff] %vm410, %v972
      %981 = vst.msk [vmem:[%s217 + $0x30] sm:$0xff] %vm410, %v973
      %982 = vst.msk [vmem:[%s217 + $0x38] sm:$0xf] %vm432, %v974
      %p983 = scmp.lt.s32.totalorder %s15, 1
      %s984 = scalar_select %p983, %s15, 1
      %s985 = smul.addr %s984, 8
      %s986 = smul.addr %s985, 8
      %s987 = scalar_lea.vmem %s4, %s986
      // Predicated region
      $region37: #{_lambda_.4} parent=35 // pred_check
        %p988 = pneg %p127
      $region38: #{_lambda_.4} parent=35 // pred_check_branch
        %990 = sbr.rel (%p988) target = $region40
      $region39: #{_lambda_.4} parent=35 // pred_region
        _
      $region40: #{_lambda_.4} parent=35 // pred_fallthru
        _
    $region36: #{_lambda_.4} parent=5 // pred_fallthru
      _
    %p991 = scmp.le.s32.totalorder 2, %s10
    // Predicated region
    $region41: #{_lambda_.4} parent=5 // pred_check
      %p992 = pneg %p991
    $region42: #{_lambda_.4} parent=5 // pred_check_branch
      %994 = sbr.rel (%p992) target = $region44
    $region43: #{_lambda_.4} parent=5 // pred_region
      %s995 = ssub.s32 %s10, 2
      // Predicated region
      $region45: #{_lambda_.4} parent=43 // pred_check
        %p996 = pneg %p133
      $region46: #{_lambda_.4} parent=43 // pred_check_branch
        %998 = sbr.rel (%p996) target = $region48
      $region47: #{_lambda_.4} parent=43 // pred_region
        %p999 = scmp.lt.s32.totalorder %s16, 1
        %s1000 = scalar_select %p999, %s16, 1
        %s1001 = smul.addr %s1000, 8
        %s1002 = smul.addr %s1001, 8
        %s1003 = scalar_lea.vmem %s4, %s1002
      $region48: #{_lambda_.4} parent=43 // pred_fallthru
        _
    $region44: #{_lambda_.4} parent=5 // pred_fallthru
      _
  $region6: #{_lambda_.4} parent=0 // loop_footer
    %s14 = sadd.s32 1, %s10
  $region7: #{_lambda_.4} parent=0 // loop_footer_branch
    %9 = sbr.rel target = $region3
  $region8: #{_lambda_.4} parent=0 // loop_exit
    _

// kernel: _lambda_.5
$region0: #{_lambda_.5}
  #allocation0 [shape = 'u32[]', space=smem, size = 0x4, offset = 0x4, fixed_abs, tag = 'smem constant byte address 0x4 - core index']
  #allocation1 [shape = 'u32[144,128]{1,0:T(1,128)}', space=vmem, size = 0x12000, scoped, tag = 'internal scratch']
  %s0 = inlined_call_operand.vmem [shape: f32[2,60,272], index: 0, kind: input, shape index: {}]
  %s1 = inlined_call_operand.vmem [shape: f32[25,32,60], index: 1, kind: input, shape index: {}]
  %s2 = inlined_call_operand.vmem [shape: f32[32,1], index: 2, kind: input, shape index: {}]
  %s3 = inlined_call_operand.vmem [shape: f32[2,32,96], index: 3, kind: output, shape index: {}]
  %s4 = sld [smem:[#allocation0]]
  $region45: #{_lambda_.5} parent=0
    _
  %s6 = ssub.s32 1, %s4
  %s7 = scalar_select 0, %s6, %s4
  loop: start=0, step=1, limit=4
  $region2: #{_lambda_.5} parent=0 // loop_pre_header
    _
  $region3: #{_lambda_.5} parent=0 // loop_header
    %s9 = sphi 0, %s13
    %p10 = scmp.ge.s32.totalorder %s9, 4
    %s19 = sphi 0, %s21
    %s22 = sphi 0, %s19
    %s23 = sphi 0, %s22
    %s39 = sphi 0, %s23
    %s43 = sphi 0, %s43
    %s45 = sphi 0, %s43
    %s46 = sphi 0, %s45
    %s60 = sphi 0, %s46
    %s64 = sphi 0, %s64
    %s66 = sphi 0, %s64
    %s67 = sphi 0, %s66
    %s81 = sphi 0, %s67
    %s87 = sphi 0, %s89
    %s90 = sphi 0, %s87
    %s91 = sphi 0, %s90
    %s107 = sphi 0, %s91
  $region4: #{_lambda_.5} parent=0 // loop_header_branch
    %12 = sbr.rel (%p10) target = $region8
  $region5: #{_lambda_.5} parent=0 // loop_body
    %s14 = ssub.s32 %s9, 1
    %s15 = ssub.s32 %s9, 2
    %s16 = sadd.s32 %s9, 1
    %s17 = ssub.s32 %s9, %s16
    %p18 = scmp.eq.s32.totalorder %s17, 0
    %s20 = sadd.s32 %s19, 1
    %s21 = scalar_select %p18, %s19, %s20
    %p24 = pneg %p18
    %p25 = scmp.eq.s32.totalorder %s9, 1
    %p26 = por %p24, %p25
    %p27 = scmp.ne.s32.totalorder %s19, %s22
    %p28 = scmp.eq.s32.totalorder %s9, 0
    %p29 = por %p27, %p28
    %p30 = scmp.ne.s32.totalorder %s19, %s22
    %p31 = scmp.eq.s32.totalorder %s14, 1
    %p32 = por %p30, %p31
    %p33 = scmp.ne.s32.totalorder %s22, %s23
    %p34 = scmp.eq.s32.totalorder %s14, 0
    %p35 = por %p33, %p34
    %p36 = scmp.ne.s32.totalorder %s22, %s23
    %p37 = scmp.eq.s32.totalorder %s15, 1
    %p38 = por %p36, %p37
    %p40 = scmp.ne.s32.totalorder %s23, %s39
    %p41 = scmp.eq.s32.totalorder %s15, 0
    %p42 = por %p40, %p41
    %s44 = sadd.s32 %s43, 1
    %p47 = scmp.eq.s32.totalorder %s9, 1
    %p48 = scmp.ne.s32.totalorder %s43, %s45
    %p49 = scmp.eq.s32.totalorder %s9, 0
    %p50 = por %p48, %p49
    %p51 = scmp.ne.s32.totalorder %s43, %s45
    %p52 = scmp.eq.s32.totalorder %s14, 1
    %p53 = por %p51, %p52
    %p54 = scmp.ne.s32.totalorder %s45, %s46
    %p55 = scmp.eq.s32.totalorder %s14, 0
    %p56 = por %p54, %p55
    %p57 = scmp.ne.s32.totalorder %s45, %s46
    %p58 = scmp.eq.s32.totalorder %s15, 1
    %p59 = por %p57, %p58
    %p61 = scmp.ne.s32.totalorder %s46, %s60
    %p62 = scmp.eq.s32.totalorder %s15, 0
    %p63 = por %p61, %p62
    %s65 = sadd.s32 %s64, 1
    %p68 = scmp.eq.s32.totalorder %s9, 1
    %p69 = scmp.ne.s32.totalorder %s64, %s66
    %p70 = scmp.eq.s32.totalorder %s9, 0
    %p71 = por %p69, %p70
    %p72 = scmp.ne.s32.totalorder %s64, %s66
    %p73 = scmp.eq.s32.totalorder %s14, 1
    %p74 = por %p72, %p73
    %p75 = scmp.ne.s32.totalorder %s66, %s67
    %p76 = scmp.eq.s32.totalorder %s14, 0
    %p77 = por %p75, %p76
    %p78 = scmp.ne.s32.totalorder %s66, %s67
    %p79 = scmp.eq.s32.totalorder %s15, 1
    %p80 = por %p78, %p79
    %p82 = scmp.ne.s32.totalorder %s67, %s81
    %p83 = scmp.eq.s32.totalorder %s15, 0
    %p84 = por %p82, %p83
    %s85 = ssub.s32 %s9, %s16
    %p86 = scmp.eq.s32.totalorder %s85, 0
    %s88 = sadd.s32 %s87, 1
    %s89 = scalar_select %p86, %s87, %s88
    %p92 = pneg %p86
    %p93 = scmp.eq.s32.totalorder %s9, 1
    %p94 = por %p92, %p93
    %p95 = scmp.ne.s32.totalorder %s87, %s90
    %p96 = scmp.eq.s32.totalorder %s9, 0
    %p97 = por %p95, %p96
    %p98 = scmp.ne.s32.totalorder %s87, %s90
    %p99 = scmp.eq.s32.totalorder %s14, 1
    %p100 = por %p98, %p99
    %p101 = scmp.ne.s32.totalorder %s90, %s91
    %p102 = scmp.eq.s32.totalorder %s14, 0
    %p103 = por %p101, %p102
    %p104 = scmp.ne.s32.totalorder %s90, %s91
    %p105 = scmp.eq.s32.totalorder %s15, 1
    %p106 = por %p104, %p105
    %p108 = scmp.ne.s32.totalorder %s91, %s107
    %p109 = scmp.eq.s32.totalorder %s15, 0
    %p110 = por %p108, %p109
    %p111 = scmp.le.s32.totalorder 1, %s9
    %p112 = scmp.lt.s32.totalorder %s9, 3
    %p113 = pnand %p111, %p112
    %p114 = pneg %p113
    // Predicated region
    $region9: #{_lambda_.5} parent=5 // pred_check
      _
    $region10: #{_lambda_.5} parent=5 // pred_check_branch
      %116 = sbr.rel (%p113) target = $region12
    $region11: #{_lambda_.5} parent=5 // pred_region
      %s117 = ssub.s32 %s9, 1
      // Predicated region
      $region13: #{_lambda_.5} parent=11 // pred_check
        %p118 = pneg %p56
      $region14: #{_lambda_.5} parent=11 // pred_check_branch
        %120 = sbr.rel (%p118) target = $region16
      $region15: #{_lambda_.5} parent=11 // pred_region
        _
      $region16: #{_lambda_.5} parent=11 // pred_fallthru
        _
      // Predicated region
      $region17: #{_lambda_.5} parent=11 // pred_check
        %p121 = pneg %p77
      $region18: #{_lambda_.5} parent=11 // pred_check_branch
        %123 = sbr.rel (%p121) target = $region20
      $region19: #{_lambda_.5} parent=11 // pred_region
        _
      $region20: #{_lambda_.5} parent=11 // pred_fallthru
        _
    $region12: #{_lambda_.5} parent=5 // pred_fallthru
      _
    %p124 = scmp.lt.s32.totalorder %s9, 2
    // Predicated region
    $region21: #{_lambda_.5} parent=5 // pred_check
      %p125 = pneg %p124
    $region22: #{_lambda_.5} parent=5 // pred_check_branch
      %127 = sbr.rel (%p125) target = $region24
    $region23: #{_lambda_.5} parent=5 // pred_region
      // Predicated region
      $region25: #{_lambda_.5} parent=23 // pred_check
        %p128 = pneg %p29
      $region26: #{_lambda_.5} parent=23 // pred_check_branch
        %130 = sbr.rel (%p128) target = $region28
      $region27: #{_lambda_.5} parent=23 // pred_region
        %p131 = scmp.lt.s32.totalorder %s9, 1
        %s132 = scalar_select %p131, %s9, 1
        %s133 = smul.addr %s132, 24
        %s134 = smul.addr %s133, 8
        %s135 = scalar_lea.vmem %s0, %s134
      $region28: #{_lambda_.5} parent=23 // pred_fallthru
        _
    $region24: #{_lambda_.5} parent=5 // pred_fallthru
      _
    %p136 = scmp.le.s32.totalorder 1, %s9
    %p137 = scmp.lt.s32.totalorder %s9, 3
    %p138 = pnand %p136, %p137
    %p139 = pneg %p138
    // Predicated region
    $region29: #{_lambda_.5} parent=5 // pred_check
      _
    $region30: #{_lambda_.5} parent=5 // pred_check_branch
      %141 = sbr.rel (%p138) target = $region32
    $region31: #{_lambda_.5} parent=5 // pred_region
      %s142 = ssub.s32 %s9, 1
      %p143 = scmp.lt.s32.totalorder %s14, 1
      %s144 = scalar_select %p143, %s14, 1
      %s145 = smul.addr %s144, 24
      %s146 = smul.addr %s145, 8
      %s147 = scalar_lea.vmem %s0, %s146
      %p148 = pneg %p35
      %p149 = pneg %p32
      %p150 = pneg %p56
      %p151 = pneg %p53
      %p152 = pneg %p77
      %p153 = pneg %p74
      %p154 = pneg %p103
      %p155 = pneg %p100
      %p156 = scmp.lt.s32.totalorder %s14, 1
      %s157 = scalar_select %p156, %s14, 1
      %s158 = smul.addr %s157, 4
      %s159 = smul.addr %s158, 8
      %s160 = scalar_lea.vmem %s3, %s159
      %p161 = scmp.lt.s32.totalorder %s14, 1
      %s162 = scalar_select %p161, %s14, 1
      %s163 = smul.addr %s162, 24
      %s164 = smul.addr %s163, 8
      %s165 = scalar_lea.vmem %s0, %s164
      %p166 = scmp.lt.s32.totalorder %s14, 1
      %s167 = scalar_select %p166, %s14, 1
      %s168 = smul.addr %s167, 4
      %s169 = smul.addr %s168, 8
      %s170 = scalar_lea.vmem %s3, %s169
      %v171 = vld [vmem:[%s1] sm:$0xff]
      %v172 = vld [vmem:[%s1 + $0x8] sm:$0xff]
      %v173 = vld [vmem:[%s1 + $0x10] sm:$0xff]
      %v174 = vld [vmem:[%s1 + $0x18] sm:$0xff]
      %v175 = vld [vmem:[%s165] sm:$0xff]
      %v176 = vld [vmem:[%s165 + $0x18] sm:$0xff]
      %v177 = vld [vmem:[%s165 + $0x30] sm:$0xff]
      %v178 = vld [vmem:[%s165 + $0x48] sm:$0xff]
      %v179 = vld [vmem:[%s165 + $0x60] sm:$0xff]
      %v180 = vld [vmem:[%s165 + $0x78] sm:$0xff]
      %v181 = vld [vmem:[%s165 + $0x90] sm:$0xff]
      %v182 = vld [vmem:[%s165 + $0xa8] sm:$0xf]
      %s183 = scalar_lea.vmem %s1, 32
      %v184 = vld [vmem:[%s183] sm:$0xff]
      %v185 = vld [vmem:[%s183 + $0x8] sm:$0xff]
      %v186 = vld [vmem:[%s183 + $0x10] sm:$0xff]
      %v187 = vld [vmem:[%s183 + $0x18] sm:$0xff]
      %196 = vrot.lane.b32.xlu0 %v175, 127
      %v197 = vpop.permute.xlu0 %196
      %198 = vrot.lane.b32.xlu0 %v176, 127
      %v199 = vpop.permute.xlu0 %198
      %200 = vrot.lane.b32.xlu0 %v177, 127
      %v201 = vpop.permute.xlu0 %200
      %202 = vrot.lane.b32.xlu0 %v178, 127
      %v203 = vpop.permute.xlu0 %202
      %204 = vrot.lane.b32.xlu0 %v179, 127
      %v205 = vpop.permute.xlu0 %204
      %206 = vrot.lane.b32.xlu0 %v180, 127
      %v207 = vpop.permute.xlu0 %206
      %208 = vrot.lane.b32.xlu0 %v181, 127
      %v209 = vpop.permute.xlu0 %208
      %210 = vrot.lane.b32.xlu0 %v182, 127
      %v211 = vpop.permute.xlu0 %210
      %vm219 = vcmask 490496
      %v221 = vsel %vm219, %v184, 0
      %v224 = vsel %vm219, %v185, 0
      %v227 = vsel %vm219, %v186, 0
      %v230 = vsel %vm219, %v187, 0
      %vm232 = vcmask 1043456
      %v233 = vsel %vm232, %v211, 0
      %235 = vmatprep.subr.mxu0 0.0
      %236 = vmatpush1.msra.mxu0 %v197
      %237 = vmatprep.subr.mxu0 0.0
      %238 = vmatpush1.msra.mxu0 %v199
      %239 = vmatprep.subr.mxu0 0.0
      %240 = vmatpush1.msra.mxu0 %v201
      %241 = vmatprep.subr.mxu0 0.0
      %242 = vmatpush1.msra.mxu0 %v203
      %243 = vmatprep.subr.mxu0 0.0
      %244 = vmatpush1.msra.mxu0 %v205
      %245 = vmatprep.subr.mxu0 0.0
      %246 = vmatpush1.msra.mxu0 %v207
      %247 = vmatprep.subr.mxu0 0.0
      %248 = vmatpush1.msra.mxu0 %v209
      %249 = vmatprep.subr.mxu0 0.0
      %250 = vmatpush1.msra.mxu0 %v233
      %251 = vmatprep.subr.mxu0 0.0
      %252 = vmatpush1.msra.mxu0 0.0
      %253 = vmatprep.subr.mxu0 0.0
      %254 = vmatpush1.msra.mxu0 0.0
      %255 = vmatprep.subr.mxu0 0.0
      %256 = vmatpush1.msra.mxu0 0.0
      %257 = vmatprep.subr.mxu0 0.0
      %258 = vmatpush1.msra.mxu0 0.0
      %259 = vmatprep.subr.mxu0 0.0
      %260 = vmatpush1.msra.mxu0 0.0
      %261 = vmatprep.subr.mxu0 0.0
      %262 = vmatpush1.msra.mxu0 0.0
      %263 = vmatprep.subr.mxu0 0.0
      %264 = vmatpush1.msra.mxu0 0.0
      %265 = vmatprep.subr.mxu0 0.0
      %266 = vmatpush1.msra.mxu0 0.0
      %267 = vmatprep.subr.mxu0 0.0
      %268 = vmatpush1.msra.mxu0 0.0
      %269 = vmatprep.subr.mxu0 0.0
      %270 = vmatpush1.msra.mxu0 0.0
      %271 = vmatprep.subr.mxu0 0.0
      %272 = vmatpush1.msra.mxu0 0.0
      %273 = vmatprep.subr.mxu0 0.0
      %274 = vmatpush1.msra.mxu0 0.0
      %275 = vmatprep.subr.mxu0 0.0
      %276 = vmatpush1.msra.mxu0 0.0
      %277 = vmatprep.subr.mxu0 0.0
      %278 = vmatpush1.msra.mxu0 0.0
      %279 = vmatprep.subr.mxu0 0.0
      %280 = vmatpush1.msra.mxu0 0.0
      %281 = vmatprep.subr.mxu0 0.0
      %282 = vmatpush1.msra.mxu0 0.0
      %283 = vmatprep.subr.mxu0 0.0
      %284 = vmatpush1.msra.mxu0 0.0
      %285 = vmatprep.subr.mxu0 0.0
      %286 = vmatpush1.msra.mxu0 0.0
      %287 = vmatprep.subr.mxu0 0.0
      %288 = vmatpush1.msra.mxu0 0.0
      %289 = vmatprep.subr.mxu0 0.0
      %290 = vmatpush1.msra.mxu0 0.0
      %291 = vmatprep.subr.mxu0 0.0
      %292 = vmatpush1.msra.mxu0 0.0
      %293 = vmatprep.subr.mxu0 0.0
      %294 = vmatpush1.msra.mxu0 0.0
      %295 = vmatprep.subr.mxu0 0.0
      %296 = vmatpush1.msra.mxu0 0.0
      %297 = vmatprep.subr.mxu0 0.0
      %298 = vmatpush1.msra.mxu0 0.0
      %299 = vmatprep.mubr.f32.mxu0 0.0
      %300 = vmatmul.mubr.f32.gmra.mrb[0].mxu0 %v221
      %v301 = vpop.f32.mrb[0].mxu0
      %v302 = vadd.f32 0.0, %v301
      %v303 = vpop.f32.mrb[0].mxu0
      %304 = vmatprep.mubr.f32.mxu0 0.0
      %305 = vmatmul.mubr.f32.gmra.mrb[0].mxu0 %v224
      %v306 = vpop.f32.mrb[0].mxu0
      %v307 = vadd.f32 0.0, %v306
      %v308 = vpop.f32.mrb[0].mxu0
      %309 = vmatprep.mubr.f32.mxu0 0.0
      %310 = vmatmul.mubr.f32.gmra.mrb[0].mxu0 %v227
      %v311 = vpop.f32.mrb[0].mxu0
      %v312 = vadd.f32 0.0, %v311
      %v313 = vpop.f32.mrb[0].mxu0
      %314 = vmatprep.mubr.f32.mxu0 0.0
      %315 = vmatmul.mubr.f32.gmra.mrb[0].mxu0 %v230
      %v316 = vpop.f32.mrb[0].mxu0
      %v317 = vadd.f32 0.0, %v316
      %v318 = vpop.f32.mrb[0].mxu0
      %319 = vdwg.mxu0
      %v321 = vsel %vm219, %v171, 0
      %v324 = vsel %vm219, %v172, 0
      %v327 = vsel %vm219, %v173, 0
      %v330 = vsel %vm219, %v174, 0
      %v332 = vsel %vm232, %v182, 0
      %334 = vmatprep.subr.mxu0 0.0
      %335 = vmatpush1.msra.mxu0 %v175
      %336 = vmatprep.subr.mxu0 0.0
      %337 = vmatpush1.msra.mxu0 %v176
      %338 = vmatprep.subr.mxu0 0.0
      %339 = vmatpush1.msra.mxu0 %v177
      %340 = vmatprep.subr.mxu0 0.0
      %341 = vmatpush1.msra.mxu0 %v178
      %342 = vmatprep.subr.mxu0 0.0
      %343 = vmatpush1.msra.mxu0 %v179
      %344 = vmatprep.subr.mxu0 0.0
      %345 = vmatpush1.msra.mxu0 %v180
      %346 = vmatprep.subr.mxu0 0.0
      %347 = vmatpush1.msra.mxu0 %v181
      %348 = vmatprep.subr.mxu0 0.0
      %349 = vmatpush1.msra.mxu0 %v332
      %350 = vmatprep.subr.mxu0 0.0
      %351 = vmatpush1.msra.mxu0 0.0
      %352 = vmatprep.subr.mxu0 0.0
      %353 = vmatpush1.msra.mxu0 0.0
      %354 = vmatprep.subr.mxu0 0.0
      %355 = vmatpush1.msra.mxu0 0.0
      %356 = vmatprep.subr.mxu0 0.0
      %357 = vmatpush1.msra.mxu0 0.0
      %358 = vmatprep.subr.mxu0 0.0
      %359 = vmatpush1.msra.mxu0 0.0
      %360 = vmatprep.subr.mxu0 0.0
      %361 = vmatpush1.msra.mxu0 0.0
      %362 = vmatprep.subr.mxu0 0.0
      %363 = vmatpush1.msra.mxu0 0.0
      %364 = vmatprep.subr.mxu0 0.0
      %365 = vmatpush1.msra.mxu0 0.0
      %366 = vmatprep.subr.mxu0 0.0
      %367 = vmatpush1.msra.mxu0 0.0
      %368 = vmatprep.subr.mxu0 0.0
      %369 = vmatpush1.msra.mxu0 0.0
      %370 = vmatprep.subr.mxu0 0.0
      %371 = vmatpush1.msra.mxu0 0.0
      %372 = vmatprep.subr.mxu0 0.0
      %373 = vmatpush1.msra.mxu0 0.0
      %374 = vmatprep.subr.mxu0 0.0
      %375 = vmatpush1.msra.mxu0 0.0
      %376 = vmatprep.subr.mxu0 0.0
      %377 = vmatpush1.msra.mxu0 0.0
      %378 = vmatprep.subr.mxu0 0.0
      %379 = vmatpush1.msra.mxu0 0.0
      %380 = vmatprep.subr.mxu0 0.0
      %381 = vmatpush1.msra.mxu0 0.0
      %382 = vmatprep.subr.mxu0 0.0
      %383 = vmatpush1.msra.mxu0 0.0
      %384 = vmatprep.subr.mxu0 0.0
      %385 = vmatpush1.msra.mxu0 0.0
      %386 = vmatprep.subr.mxu0 0.0
      %387 = vmatpush1.msra.mxu0 0.0
      %388 = vmatprep.subr.mxu0 0.0
      %389 = vmatpush1.msra.mxu0 0.0
      %390 = vmatprep.subr.mxu0 0.0
      %391 = vmatpush1.msra.mxu0 0.0
      %392 = vmatprep.subr.mxu0 0.0
      %393 = vmatpush1.msra.mxu0 0.0
      %394 = vmatprep.subr.mxu0 0.0
      %395 = vmatpush1.msra.mxu0 0.0
      %396 = vmatprep.subr.mxu0 0.0
      %397 = vmatpush1.msra.mxu0 0.0
      %398 = vmatprep.mubr.f32.mxu0 0.0
      %399 = vmatmul.mubr.f32.gmra.mrb[0].mxu0 %v321
      %v400 = vpop.f32.mrb[0].mxu0
      %v401 = vadd.f32 %v302, %v400
      %v402 = vpop.f32.mrb[0].mxu0
      %403 = vmatprep.mubr.f32.mxu0 0.0
      %404 = vmatmul.mubr.f32.gmra.mrb[0].mxu0 %v324
      %v405 = vpop.f32.mrb[0].mxu0
      %v406 = vadd.f32 %v307, %v405
      %v407 = vpop.f32.mrb[0].mxu0
      %408 = vmatprep.mubr.f32.mxu0 0.0
      %409 = vmatmul.mubr.f32.gmra.mrb[0].mxu0 %v327
      %v410 = vpop.f32.mrb[0].mxu0
      %v411 = vadd.f32 %v312, %v410
      %v412 = vpop.f32.mrb[0].mxu0
      %413 = vmatprep.mubr.f32.mxu0 0.0
      %414 = vmatmul.mubr.f32.gmra.mrb[0].mxu0 %v330
      %v415 = vpop.f32.mrb[0].mxu0
      %v416 = vadd.f32 %v317, %v415
      %v417 = vpop.f32.mrb[0].mxu0
      %418 = vdwg.mxu0
      %s419 = scalar_lea.vmem %s1, 64
      %v420 = vld [vmem:[%s419] sm:$0xff]
      %v421 = vld [vmem:[%s419 + $0x8] sm:$0xff]
      %v422 = vld [vmem:[%s419 + $0x10] sm:$0xff]
      %v423 = vld [vmem:[%s419 + $0x18] sm:$0xff]
      %424 = vrot.lane.b32.xlu0 %v175, 126
      %v425 = vpop.permute.xlu0 %424
      %426 = vrot.lane.b32.xlu0 %v176, 126
      %v427 = vpop.permute.xlu0 %426
      %428 = vrot.lane.b32.xlu0 %v177, 126
      %v429 = vpop.permute.xlu0 %428
      %430 = vrot.lane.b32.xlu0 %v178, 126
      %v431 = vpop.permute.xlu0 %430
      %432 = vrot.lane.b32.xlu0 %v179, 126
      %v433 = vpop.permute.xlu0 %432
      %434 = vrot.lane.b32.xlu0 %v180, 126
      %v435 = vpop.permute.xlu0 %434
      %436 = vrot.lane.b32.xlu0 %v181, 126
      %v437 = vpop.permute.xlu0 %436
      %438 = vrot.lane.b32.xlu0 %v182, 126
      %v439 = vpop.permute.xlu0 %438
      %v448 = vsel %vm219, %v420, 0
      %v451 = vsel %vm219, %v421, 0
      %v454 = vsel %vm219, %v422, 0
      %v457 = vsel %vm219, %v423, 0
      %v459 = vsel %vm232, %v439, 0
      %461 = vmatprep.subr.mxu0 0.0
      %462 = vmatpush1.msra.mxu0 %v425
      %463 = vmatprep.subr.mxu0 0.0
      %464 = vmatpush1.msra.mxu0 %v427
      %465 = vmatprep.subr.mxu0 0.0
      %466 = vmatpush1.msra.mxu0 %v429
      %467 = vmatprep.subr.mxu0 0.0
      %468 = vmatpush1.msra.mxu0 %v431
      %469 = vmatprep.subr.mxu0 0.0
      %470 = vmatpush1.msra.mxu0 %v433
      %471 = vmatprep.subr.mxu0 0.0
      %472 = vmatpush1.msra.mxu0 %v435
      %473 = vmatprep.subr.mxu0 0.0
      %474 = vmatpush1.msra.mxu0 %v437
      %475 = vmatprep.subr.mxu0 0.0
      %476 = vmatpush1.msra.mxu0 %v459
      %477 = vmatprep.subr.mxu0 0.0
      %478 = vmatpush1.msra.mxu0 0.0
      %479 = vmatprep.subr.mxu0 0.0
      %480 = vmatpush1.msra.mxu0 0.0
      %481 = vmatprep.subr.mxu0 0.0
      %482 = vmatpush1.msra.mxu0 0.0
      %483 = vmatprep.subr.mxu0 0.0
      %484 = vmatpush1.msra.mxu0 0.0
      %485 = vmatprep.subr.mxu0 0.0
      %486 = vmatpush1.msra.mxu0 0.0
      %487 = vmatprep.subr.mxu0 0.0
      %488 = vmatpush1.msra.mxu0 0.0
      %489 = vmatprep.subr.mxu0 0.0
      %490 = vmatpush1.msra.mxu0 0.0
      %491 = vmatprep.subr.mxu0 0.0
      %492 = vmatpush1.msra.mxu0 0.0
      %493 = vmatprep.subr.mxu0 0.0
      %494 = vmatpush1.msra.mxu0 0.0
      %495 = vmatprep.subr.mxu0 0.0
      %496 = vmatpush1.msra.mxu0 0.0
      %497 = vmatprep.subr.mxu0 0.0
      %498 = vmatpush1.msra.mxu0 0.0
      %499 = vmatprep.subr.mxu0 0.0
      %500 = vmatpush1.msra.mxu0 0.0
      %501 = vmatprep.subr.mxu0 0.0
      %502 = vmatpush1.msra.mxu0 0.0
      %503 = vmatprep.subr.mxu0 0.0
      %504 = vmatpush1.msra.mxu0 0.0
      %505 = vmatprep.subr.mxu0 0.0
      %506 = vmatpush1.msra.mxu0 0.0
      %507 = vmatprep.subr.mxu0 0.0
      %508 = vmatpush1.msra.mxu0 0.0
      %509 = vmatprep.subr.mxu0 0.0
      %510 = vmatpush1.msra.mxu0 0.0
      %511 = vmatprep.subr.mxu0 0.0
      %512 = vmatpush1.msra.mxu0 0.0
      %513 = vmatprep.subr.mxu0 0.0
      %514 = vmatpush1.msra.mxu0 0.0
      %515 = vmatprep.subr.mxu0 0.0
      %516 = vmatpush1.msra.mxu0 0.0
      %517 = vmatprep.subr.mxu0 0.0
      %518 = vmatpush1.msra.mxu0 0.0
      %519 = vmatprep.subr.mxu0 0.0
      %520 = vmatpush1.msra.mxu0 0.0
      %521 = vmatprep.subr.mxu0 0.0
      %522 = vmatpush1.msra.mxu0 0.0
      %523 = vmatprep.subr.mxu0 0.0
      %524 = vmatpush1.msra.mxu0 0.0
      %525 = vmatprep.mubr.f32.mxu0 0.0
      %526 = vmatmul.mubr.f32.gmra.mrb[0].mxu0 %v448
      %v527 = vpop.f32.mrb[0].mxu0
      %v528 = vadd.f32 0.0, %v527
      %v529 = vpop.f32.mrb[0].mxu0
      %530 = vmatprep.mubr.f32.mxu0 0.0
      %531 = vmatmul.mubr.f32.gmra.mrb[0].mxu0 %v451
      %v532 = vpop.f32.mrb[0].mxu0
      %v533 = vadd.f32 0.0, %v532
      %v534 = vpop.f32.mrb[0].mxu0
      %535 = vmatprep.mubr.f32.mxu0 0.0
      %536 = vmatmul.mubr.f32.gmra.mrb[0].mxu0 %v454
      %v537 = vpop.f32.mrb[0].mxu0
      %v538 = vadd.f32 0.0, %v537
      %v539 = vpop.f32.mrb[0].mxu0
      %540 = vmatprep.mubr.f32.mxu0 0.0
      %541 = vmatmul.mubr.f32.gmra.mrb[0].mxu0 %v457
      %v542 = vpop.f32.mrb[0].mxu0
      %v543 = vadd.f32 0.0, %v542
      %v544 = vpop.f32.mrb[0].mxu0
      %545 = vdwg.mxu0
      %v546 = vadd.f32 %v401, %v528
      %v547 = vadd.f32 %v406, %v533
      %v548 = vadd.f32 %v411, %v538
      %v549 = vadd.f32 %v416, %v543
      %s550 = scalar_lea.vmem %s1, 96
      %v551 = vld [vmem:[%s550] sm:$0xff]
      %v552 = vld [vmem:[%s550 + $0x8] sm:$0xff]
      %v553 = vld [vmem:[%s550 + $0x10] sm:$0xff]
      %v554 = vld [vmem:[%s550 + $0x18] sm:$0xff]
      %555 = vrot.lane.b32.xlu0 %v175, 125
      %v556 = vpop.permute.xlu0 %555
      %557 = vrot.lane.b32.xlu0 %v176, 125
      %v558 = vpop.permute.xlu0 %557
      %559 = vrot.lane.b32.xlu0 %v177, 125
      %v560 = vpop.permute.xlu0 %559
      %561 = vrot.lane.b32.xlu0 %v178, 125
      %v562 = vpop.permute.xlu0 %561
      %563 = vrot.lane.b32.xlu0 %v179, 125
      %v564 = vpop.permute.xlu0 %563
      %565 = vrot.lane.b32.xlu0 %v180, 125
      %v566 = vpop.permute.xlu0 %565
      %567 = vrot.lane.b32.xlu0 %v181, 125
      %v568 = vpop.permute.xlu0 %567
      %569 = vrot.lane.b32.xlu0 %v182, 125
      %v570 = vpop.permute.xlu0 %569
      %v579 = vsel %vm219, %v551, 0
      %v582 = vsel %vm219, %v552, 0
      %v585 = vsel %vm219, %v553, 0
      %v588 = vsel %vm219, %v554, 0
      %v590 = vsel %vm232, %v570, 0
      %592 = vmatprep.subr.mxu0 0.0
      %593 = vmatpush1.msra.mxu0 %v556
      %594 = vmatprep.subr.mxu0 0.0
      %595 = vmatpush1.msra.mxu0 %v558
      %596 = vmatprep.subr.mxu0 0.0
      %597 = vmatpush1.msra.mxu0 %v560
      %598 = vmatprep.subr.mxu0 0.0
      %599 = vmatpush1.msra.mxu0 %v562
      %600 = vmatprep.subr.mxu0 0.0
      %601 = vmatpush1.msra.mxu0 %v564
      %602 = vmatprep.subr.mxu0 0.0
      %603 = vmatpush1.msra.mxu0 %v566
      %604 = vmatprep.subr.mxu0 0.0
      %605 = vmatpush1.msra.mxu0 %v568
      %606 = vmatprep.subr.mxu0 0.0
      %607 = vmatpush1.msra.mxu0 %v590
      %608 = vmatprep.subr.mxu0 0.0
      %609 = vmatpush1.msra.mxu0 0.0
      %610 = vmatprep.subr.mxu0 0.0
      %611 = vmatpush1.msra.mxu0 0.0
      %612 = vmatprep.subr.mxu0 0.0
      %613 = vmatpush1.msra.mxu0 0.0
      %614 = vmatprep.subr.mxu0 0.0
      %615 = vmatpush1.msra.mxu0 0.0
      %616 = vmatprep.subr.mxu0 0.0
      %617 = vmatpush1.msra.mxu0 0.0
      %618 = vmatprep.subr.mxu0 0.0
      %619 = vmatpush1.msra.mxu0 0.0
      %620 = vmatprep.subr.mxu0 0.0
      %621 = vmatpush1.msra.mxu0 0.0
      %622 = vmatprep.subr.mxu0 0.0
      %623 = vmatpush1.msra.mxu0 0.0
      %624 = vmatprep.subr.mxu0 0.0
      %625 = vmatpush1.msra.mxu0 0.0
      %626 = vmatprep.subr.mxu0 0.0
      %627 = vmatpush1.msra.mxu0 0.0
      %628 = vmatprep.subr.mxu0 0.0
      %629 = vmatpush1.msra.mxu0 0.0
      %630 = vmatprep.subr.mxu0 0.0
      %631 = vmatpush1.msra.mxu0 0.0
      %632 = vmatprep.subr.mxu0 0.0
      %633 = vmatpush1.msra.mxu0 0.0
      %634 = vmatprep.subr.mxu0 0.0
      %635 = vmatpush1.msra.mxu0 0.0
      %636 = vmatprep.subr.mxu0 0.0
      %637 = vmatpush1.msra.mxu0 0.0
      %638 = vmatprep.subr.mxu0 0.0
      %639 = vmatpush1.msra.mxu0 0.0
      %640 = vmatprep.subr.mxu0 0.0
      %641 = vmatpush1.msra.mxu0 0.0
      %642 = vmatprep.subr.mxu0 0.0
      %643 = vmatpush1.msra.mxu0 0.0
      %644 = vmatprep.subr.mxu0 0.0
      %645 = vmatpush1.msra.mxu0 0.0
      %646 = vmatprep.subr.mxu0 0.0
      %647 = vmatpush1.msra.mxu0 0.0
      %648 = vmatprep.subr.mxu0 0.0
      %649 = vmatpush1.msra.mxu0 0.0
      %650 = vmatprep.subr.mxu0 0.0
      %651 = vmatpush1.msra.mxu0 0.0
      %652 = vmatprep.subr.mxu0 0.0
      %653 = vmatpush1.msra.mxu0 0.0
      %654 = vmatprep.subr.mxu0 0.0
      %655 = vmatpush1.msra.mxu0 0.0
      %656 = vmatprep.mubr.f32.mxu0 0.0
      %657 = vmatmul.mubr.f32.gmra.mrb[0].mxu0 %v579
      %v658 = vpop.f32.mrb[0].mxu0
      %v659 = vadd.f32 0.0, %v658
      %v660 = vpop.f32.mrb[0].mxu0
      %661 = vmatprep.mubr.f32.mxu0 0.0
      %662 = vmatmul.mubr.f32.gmra.mrb[0].mxu0 %v582
      %v663 = vpop.f32.mrb[0].mxu0
      %v664 = vadd.f32 0.0, %v663
      %v665 = vpop.f32.mrb[0].mxu0
      %666 = vmatprep.mubr.f32.mxu0 0.0
      %667 = vmatmul.mubr.f32.gmra.mrb[0].mxu0 %v585
      %v668 = vpop.f32.mrb[0].mxu0
      %v669 = vadd.f32 0.0, %v668
      %v670 = vpop.f32.mrb[0].mxu0
      %671 = vmatprep.mubr.f32.mxu0 0.0
      %672 = vmatmul.mubr.f32.gmra.mrb[0].mxu0 %v588
      %v673 = vpop.f32.mrb[0].mxu0
      %v674 = vadd.f32 0.0, %v673
      %v675 = vpop.f32.mrb[0].mxu0
      %676 = vdwg.mxu0
      %v677 = vadd.f32 %v546, %v659
      %v678 = vadd.f32 %v547, %v664
      %v679 = vadd.f32 %v548, %v669
      %v680 = vadd.f32 %v549, %v674
      %s681 = scalar_lea.vmem %s1, 128
      %v682 = vld [vmem:[%s681] sm:$0xff]
      %v683 = vld [vmem:[%s681 + $0x8] sm:$0xff]
      %v684 = vld [vmem:[%s681 + $0x10] sm:$0xff]
      %v685 = vld [vmem:[%s681 + $0x18] sm:$0xff]
      %686 = vrot.lane.b32.xlu0 %v175, 124
      %v687 = vpop.permute.xlu0 %686
      %688 = vrot.lane.b32.xlu0 %v176, 124
      %v689 = vpop.permute.xlu0 %688
      %690 = vrot.lane.b32.xlu0 %v177, 124
      %v691 = vpop.permute.xlu0 %690
      %692 = vrot.lane.b32.xlu0 %v178, 124
      %v693 = vpop.permute.xlu0 %692
      %694 = vrot.lane.b32.xlu0 %v179, 124
      %v695 = vpop.permute.xlu0 %694
      %696 = vrot.lane.b32.xlu0 %v180, 124
      %v697 = vpop.permute.xlu0 %696
      %698 = vrot.lane.b32.xlu0 %v181, 124
      %v699 = vpop.permute.xlu0 %698
      %700 = vrot.lane.b32.xlu0 %v182, 124
      %v701 = vpop.permute.xlu0 %700
      %v710 = vsel %vm219, %v682, 0
      %v713 = vsel %vm219, %v683, 0
      %v716 = vsel %vm219, %v684, 0
      %v719 = vsel %vm219, %v685, 0
      %v721 = vsel %vm232, %v701, 0
      %723 = vmatprep.subr.mxu0 0.0
      %724 = vmatpush1.msra.mxu0 %v687
      %725 = vmatprep.subr.mxu0 0.0
      %726 = vmatpush1.msra.mxu0 %v689
      %727 = vmatprep.subr.mxu0 0.0
      %728 = vmatpush1.msra.mxu0 %v691
      %729 = vmatprep.subr.mxu0 0.0
      %730 = vmatpush1.msra.mxu0 %v693
      %731 = vmatprep.subr.mxu0 0.0
      %732 = vmatpush1.msra.mxu0 %v695
      %733 = vmatprep.subr.mxu0 0.0
      %734 = vmatpush1.msra.mxu0 %v697
      %735 = vmatprep.subr.mxu0 0.0
      %736 = vmatpush1.msra.mxu0 %v699
      %737 = vmatprep.subr.mxu0 0.0
      %738 = vmatpush1.msra.mxu0 %v721
      %739 = vmatprep.subr.mxu0 0.0
      %740 = vmatpush1.msra.mxu0 0.0
      %741 = vmatprep.subr.mxu0 0.0
      %742 = vmatpush1.msra.mxu0 0.0
      %743 = vmatprep.subr.mxu0 0.0
      %744 = vmatpush1.msra.mxu0 0.0
      %745 = vmatprep.subr.mxu0 0.0
      %746 = vmatpush1.msra.mxu0 0.0
      %747 = vmatprep.subr.mxu0 0.0
      %748 = vmatpush1.msra.mxu0 0.0
      %749 = vmatprep.subr.mxu0 0.0
      %750 = vmatpush1.msra.mxu0 0.0
      %751 = vmatprep.subr.mxu0 0.0
      %752 = vmatpush1.msra.mxu0 0.0
      %753 = vmatprep.subr.mxu0 0.0
      %754 = vmatpush1.msra.mxu0 0.0
      %755 = vmatprep.subr.mxu0 0.0
      %756 = vmatpush1.msra.mxu0 0.0
      %757 = vmatprep.subr.mxu0 0.0
      %758 = vmatpush1.msra.mxu0 0.0
      %759 = vmatprep.subr.mxu0 0.0
      %760 = vmatpush1.msra.mxu0 0.0
      %761 = vmatprep.subr.mxu0 0.0
      %762 = vmatpush1.msra.mxu0 0.0
      %763 = vmatprep.subr.mxu0 0.0
      %764 = vmatpush1.msra.mxu0 0.0
      %765 = vmatprep.subr.mxu0 0.0
      %766 = vmatpush1.msra.mxu0 0.0
      %767 = vmatprep.subr.mxu0 0.0
      %768 = vmatpush1.msra.mxu0 0.0
      %769 = vmatprep.subr.mxu0 0.0
      %770 = vmatpush1.msra.mxu0 0.0
      %771 = vmatprep.subr.mxu0 0.0
      %772 = vmatpush1.msra.mxu0 0.0
      %773 = vmatprep.subr.mxu0 0.0
      %774 = vmatpush1.msra.mxu0 0.0
      %775 = vmatprep.subr.mxu0 0.0
      %776 = vmatpush1.msra.mxu0 0.0
      %777 = vmatprep.subr.mxu0 0.0
      %778 = vmatpush1.msra.mxu0 0.0
      %779 = vmatprep.subr.mxu0 0.0
      %780 = vmatpush1.msra.mxu0 0.0
      %781 = vmatprep.subr.mxu0 0.0
      %782 = vmatpush1.msra.mxu0 0.0
      %783 = vmatprep.subr.mxu0 0.0
      %784 = vmatpush1.msra.mxu0 0.0
      %785 = vmatprep.subr.mxu0 0.0
      %786 = vmatpush1.msra.mxu0 0.0
      %787 = vmatprep.mubr.f32.mxu0 0.0
      %788 = vmatmul.mubr.f32.gmra.mrb[0].mxu0 %v710
      %v789 = vpop.f32.mrb[0].mxu0
      %v790 = vadd.f32 0.0, %v789
      %v791 = vpop.f32.mrb[0].mxu0
      %792 = vmatprep.mubr.f32.mxu0 0.0
      %793 = vmatmul.mubr.f32.gmra.mrb[0].mxu0 %v713
      %v794 = vpop.f32.mrb[0].mxu0
      %v795 = vadd.f32 0.0, %v794
      %v796 = vpop.f32.mrb[0].mxu0
      %797 = vmatprep.mubr.f32.mxu0 0.0
      %798 = vmatmul.mubr.f32.gmra.mrb[0].mxu0 %v716
      %v799 = vpop.f32.mrb[0].mxu0
      %v800 = vadd.f32 0.0, %v799
      %v801 = vpop.f32.mrb[0].mxu0
      %802 = vmatprep.mubr.f32.mxu0 0.0
      %803 = vmatmul.mubr.f32.gmra.mrb[0].mxu0 %v719
      %v804 = vpop.f32.mrb[0].mxu0
      %v805 = vadd.f32 0.0, %v804
      %v806 = vpop.f32.mrb[0].mxu0
      %807 = vdwg.mxu0
      %v808 = vadd.f32 %v677, %v790
      %v809 = vadd.f32 %v678, %v795
      %v810 = vadd.f32 %v679, %v800
      %v811 = vadd.f32 %v680, %v805
      %s812 = scalar_lea.vmem %s1, 160
      %v813 = vld [vmem:[%s812] sm:$0xff]
      %v814 = vld [vmem:[%s812 + $0x8] sm:$0xff]
      %v815 = vld [vmem:[%s812 + $0x10] sm:$0xff]
      %v816 = vld [vmem:[%s812 + $0x18] sm:$0xff]
      %817 = vrot.lane.b32.xlu0 %v175, 116
      %v818 = vpop.permute.xlu0 %817
      %819 = vrot.lane.b32.xlu0 %v176, 116
      %v820 = vpop.permute.xlu0 %819
      %821 = vrot.lane.b32.xlu0 %v177, 116
      %v822 = vpop.permute.xlu0 %821
      %823 = vrot.lane.b32.xlu0 %v178, 116
      %v824 = vpop.permute.xlu0 %823
      %825 = vrot.lane.b32.xlu0 %v179, 116
      %v826 = vpop.permute.xlu0 %825
      %827 = vrot.lane.b32.xlu0 %v180, 116
      %v828 = vpop.permute.xlu0 %827
      %829 = vrot.lane.b32.xlu0 %v181, 116
      %v830 = vpop.permute.xlu0 %829
      %831 = vrot.lane.b32.xlu0 %v182, 116
      %v832 = vpop.permute.xlu0 %831
      %v841 = vsel %vm219, %v813, 0
      %v844 = vsel %vm219, %v814, 0
      %v847 = vsel %vm219, %v815, 0
      %v850 = vsel %vm219, %v816, 0
      %v852 = vsel %vm232, %v832, 0
      %854 = vmatprep.subr.mxu0 0.0
      %855 = vmatpush1.msra.mxu0 %v818
      %856 = vmatprep.subr.mxu0 0.0
      %857 = vmatpush1.msra.mxu0 %v820
      %858 = vmatprep.subr.mxu0 0.0
      %859 = vmatpush1.msra.mxu0 %v822
      %860 = vmatprep.subr.mxu0 0.0
      %861 = vmatpush1.msra.mxu0 %v824
      %862 = vmatprep.subr.mxu0 0.0
      %863 = vmatpush1.msra.mxu0 %v826
      %864 = vmatprep.subr.mxu0 0.0
      %865 = vmatpush1.msra.mxu0 %v828
      %866 = vmatprep.subr.mxu0 0.0
      %867 = vmatpush1.msra.mxu0 %v830
      %868 = vmatprep.subr.mxu0 0.0
      %869 = vmatpush1.msra.mxu0 %v852
      %870 = vmatprep.subr.mxu0 0.0
      %871 = vmatpush1.msra.mxu0 0.0
      %872 = vmatprep.subr.mxu0 0.0
      %873 = vmatpush1.msra.mxu0 0.0
      %874 = vmatprep.subr.mxu0 0.0
      %875 = vmatpush1.msra.mxu0 0.0
      %876 = vmatprep.subr.mxu0 0.0
      %877 = vmatpush1.msra.mxu0 0.0
      %878 = vmatprep.subr.mxu0 0.0
      %879 = vmatpush1.msra.mxu0 0.0
      %880 = vmatprep.subr.mxu0 0.0
      %881 = vmatpush1.msra.mxu0 0.0
      %882 = vmatprep.subr.mxu0 0.0
      %883 = vmatpush1.msra.mxu0 0.0
      %884 = vmatprep.subr.mxu0 0.0
      %885 = vmatpush1.msra.mxu0 0.0
      %886 = vmatprep.subr.mxu0 0.0
      %887 = vmatpush1.msra.mxu0 0.0
      %888 = vmatprep.subr.mxu0 0.0
      %889 = vmatpush1.msra.mxu0 0.0
      %890 = vmatprep.subr.mxu0 0.0
      %891 = vmatpush1.msra.mxu0 0.0
      %892 = vmatprep.subr.mxu0 0.0
      %893 = vmatpush1.msra.mxu0 0.0
      %894 = vmatprep.subr.mxu0 0.0
      %895 = vmatpush1.msra.mxu0 0.0
      %896 = vmatprep.subr.mxu0 0.0
      %897 = vmatpush1.msra.mxu0 0.0
      %898 = vmatprep.subr.mxu0 0.0
      %899 = vmatpush1.msra.mxu0 0.0
      %900 = vmatprep.subr.mxu0 0.0
      %901 = vmatpush1.msra.mxu0 0.0
      %902 = vmatprep.subr.mxu0 0.0
      %903 = vmatpush1.msra.mxu0 0.0
      %904 = vmatprep.subr.mxu0 0.0
      %905 = vmatpush1.msra.mxu0 0.0
      %906 = vmatprep.subr.mxu0 0.0
      %907 = vmatpush1.msra.mxu0 0.0
      %908 = vmatprep.subr.mxu0 0.0
      %909 = vmatpush1.msra.mxu0 0.0
      %910 = vmatprep.subr.mxu0 0.0
      %911 = vmatpush1.msra.mxu0 0.0
      %912 = vmatprep.subr.mxu0 0.0
      %913 = vmatpush1.msra.mxu0 0.0
      %914 = vmatprep.subr.mxu0 0.0
      %915 = vmatpush1.msra.mxu0 0.0
      %916 = vmatprep.subr.mxu0 0.0
      %917 = vmatpush1.msra.mxu0 0.0
      %918 = vmatprep.mubr.f32.mxu0 0.0
      %919 = vmatmul.mubr.f32.gmra.mrb[0].mxu0 %v841
      %v920 = vpop.f32.mrb[0].mxu0
      %v921 = vadd.f32 0.0, %v920
      %v922 = vpop.f32.mrb[0].mxu0
      %923 = vmatprep.mubr.f32.mxu0 0.0
      %924 = vmatmul.mubr.f32.gmra.mrb[0].mxu0 %v844
      %v925 = vpop.f32.mrb[0].mxu0
      %v926 = vadd.f32 0.0, %v925
      %v927 = vpop.f32.mrb[0].mxu0
      %928 = vmatprep.mubr.f32.mxu0 0.0
      %929 = vmatmul.mubr.f32.gmra.mrb[0].mxu0 %v847
      %v930 = vpop.f32.mrb[0].mxu0
      %v931 = vadd.f32 0.0, %v930
      %v932 = vpop.f32.mrb[0].mxu0
      %933 = vmatprep.mubr.f32.mxu0 0.0
      %934 = vmatmul.mubr.f32.gmra.mrb[0].mxu0 %v850
      %v935 = vpop.f32.mrb[0].mxu0
      %v936 = vadd.f32 0.0, %v935
      %v937 = vpop.f32.mrb[0].mxu0
      %938 = vdwg.mxu0
      %v939 = vadd.f32 %v808, %v921
      %v940 = vadd.f32 %v809, %v926
      %v941 = vadd.f32 %v810, %v931
      %v942 = vadd.f32 %v811, %v936
      %s943 = scalar_lea.vmem %s1, 192
      %v944 = vld [vmem:[%s943] sm:$0xff]
      %v945 = vld [vmem:[%s943 + $0x8] sm:$0xff]
      %v946 = vld [vmem:[%s943 + $0x10] sm:$0xff]
      %v947 = vld [vmem:[%s943 + $0x18] sm:$0xff]
      %948 = vrot.lane.b32.xlu0 %v175, 115
      %v949 = vpop.permute.xlu0 %948
      %950 = vrot.lane.b32.xlu0 %v176, 115
      %v951 = vpop.permute.xlu0 %950
      %952 = vrot.lane.b32.xlu0 %v177, 115
      %v953 = vpop.permute.xlu0 %952
      %954 = vrot.lane.b32.xlu0 %v178, 115
      %v955 = vpop.permute.xlu0 %954
      %956 = vrot.lane.b32.xlu0 %v179, 115
      %v957 = vpop.permute.xlu0 %956
      %958 = vrot.lane.b32.xlu0 %v180, 115
      %v959 = vpop.permute.xlu0 %958
      %960 = vrot.lane.b32.xlu0 %v181, 115
      %v961 = vpop.permute.xlu0 %960
      %962 = vrot.lane.b32.xlu0 %v182, 115
      %v963 = vpop.permute.xlu0 %962
      %v972 = vsel %vm219, %v944, 0
      %v975 = vsel %vm219, %v945, 0
      %v978 = vsel %vm219, %v946, 0
      %v981 = vsel %vm219, %v947, 0
      %v983 = vsel %vm232, %v963, 0
      %985 = vmatprep.subr.mxu0 0.0
      %986 = vmatpush1.msra.mxu0 %v949
      %987 = vmatprep.subr.mxu0 0.0
      %988 = vmatpush1.msra.mxu0 %v951
      %989 = vmatprep.subr.mxu0 0.0
      %990 = vmatpush1.msra.mxu0 %v953
      %991 = vmatprep.subr.mxu0 0.0
      %992 = vmatpush1.msra.mxu0 %v955
      %993 = vmatprep.subr.mxu0 0.0
      %994 = vmatpush1.msra.mxu0 %v957
      %995 = vmatprep.subr.mxu0 0.0
      %996 = vmatpush1.msra.mxu0 %v959
      %997 = vmatprep.subr.mxu0 0.0
      %998 = vmatpush1.msra.mxu0 %v961
      %999 = vmatprep.subr.mxu0 0.0
      %1000 = vmatpush1.msra.mxu0 %v983
      %1001 = vmatprep.subr.mxu0 0.0
      %1002 = vmatpush1.msra.mxu0 0.0
      %1003 = vmatprep.subr.mxu0 0.0
      %1004 = vmatpush1.msra.mxu0 0.0
      %1005 = vmatprep.subr.mxu0 0.0
      %1006 = vmatpush1.msra.mxu0 0.0
      %1007 = vmatprep.subr.mxu0 0.0
      %1008 = vmatpush1.msra.mxu0 0.0
      %1009 = vmatprep.subr.mxu0 0.0
      %1010 = vmatpush1.msra.mxu0 0.0
      %1011 = vmatprep.subr.mxu0 0.0
      %1012 = vmatpush1.msra.mxu0 0.0
      %1013 = vmatprep.subr.mxu0 0.0
      %1014 = vmatpush1.msra.mxu0 0.0
      %1015 = vmatprep.subr.mxu0 0.0
      %1016 = vmatpush1.msra.mxu0 0.0
      %1017 = vmatprep.subr.mxu0 0.0
      %1018 = vmatpush1.msra.mxu0 0.0
      %1019 = vmatprep.subr.mxu0 0.0
      %1020 = vmatpush1.msra.mxu0 0.0
      %1021 = vmatprep.subr.mxu0 0.0
      %1022 = vmatpush1.msra.mxu0 0.0
      %1023 = vmatprep.subr.mxu0 0.0
      %1024 = vmatpush1.msra.mxu0 0.0
      %1025 = vmatprep.subr.mxu0 0.0
      %1026 = vmatpush1.msra.mxu0 0.0
      %1027 = vmatprep.subr.mxu0 0.0
      %1028 = vmatpush1.msra.mxu0 0.0
      %1029 = vmatprep.subr.mxu0 0.0
      %1030 = vmatpush1.msra.mxu0 0.0
      %1031 = vmatprep.subr.mxu0 0.0
      %1032 = vmatpush1.msra.mxu0 0.0
      %1033 = vmatprep.subr.mxu0 0.0
      %1034 = vmatpush1.msra.mxu0 0.0
      %1035 = vmatprep.subr.mxu0 0.0
      %1036 = vmatpush1.msra.mxu0 0.0
      %1037 = vmatprep.subr.mxu0 0.0
      %1038 = vmatpush1.msra.mxu0 0.0
      %1039 = vmatprep.subr.mxu0 0.0
      %1040 = vmatpush1.msra.mxu0 0.0
      %1041 = vmatprep.subr.mxu0 0.0
      %1042 = vmatpush1.msra.mxu0 0.0
      %1043 = vmatprep.subr.mxu0 0.0
      %1044 = vmatpush1.msra.mxu0 0.0
      %1045 = vmatprep.subr.mxu0 0.0
      %1046 = vmatpush1.msra.mxu0 0.0
      %1047 = vmatprep.subr.mxu0 0.0
      %1048 = vmatpush1.msra.mxu0 0.0
      %1049 = vmatprep.mubr.f32.mxu0 0.0
      %1050 = vmatmul.mubr.f32.gmra.mrb[0].mxu0 %v972
      %v1051 = vpop.f32.mrb[0].mxu0
      %v1052 = vadd.f32 0.0, %v1051
      %v1053 = vpop.f32.mrb[0].mxu0
      %1054 = vmatprep.mubr.f32.mxu0 0.0
      %1055 = vmatmul.mubr.f32.gmra.mrb[0].mxu0 %v975
      %v1056 = vpop.f32.mrb[0].mxu0
      %v1057 = vadd.f32 0.0, %v1056
      %v1058 = vpop.f32.mrb[0].mxu0
      %1059 = vmatprep.mubr.f32.mxu0 0.0
      %1060 = vmatmul.mubr.f32.gmra.mrb[0].mxu0 %v978
      %v1061 = vpop.f32.mrb[0].mxu0
      %v1062 = vadd.f32 0.0, %v1061
      %v1063 = vpop.f32.mrb[0].mxu0
      %1064 = vmatprep.mubr.f32.mxu0 0.0
      %1065 = vmatmul.mubr.f32.gmra.mrb[0].mxu0 %v981
      %v1066 = vpop.f32.mrb[0].mxu0
      %v1067 = vadd.f32 0.0, %v1066
      %v1068 = vpop.f32.mrb[0].mxu0
      %1069 = vdwg.mxu0
      %v1070 = vadd.f32 %v939, %v1052
      %v1071 = vadd.f32 %v940, %v1057
      %v1072 = vadd.f32 %v941, %v1062
      %v1073 = vadd.f32 %v942, %v1067
      %s1074 = scalar_lea.vmem %s1, 224
      %v1075 = vld [vmem:[%s1074] sm:$0xff]
      %v1076 = vld [vmem:[%s1074 + $0x8] sm:$0xff]
      %v1077 = vld [vmem:[%s1074 + $0x10] sm:$0xff]
      %v1078 = vld [vmem:[%s1074 + $0x18] sm:$0xff]
      %1079 = vrot.lane.b32.xlu0 %v175, 114
      %v1080 = vpop.permute.xlu0 %1079
      %1081 = vrot.lane.b32.xlu0 %v176, 114
      %v1082 = vpop.permute.xlu0 %1081
      %1083 = vrot.lane.b32.xlu0 %v177, 114
      %v1084 = vpop.permute.xlu0 %1083
      %1085 = vrot.lane.b32.xlu0 %v178, 114
      %v1086 = vpop.permute.xlu0 %1085
      %1087 = vrot.lane.b32.xlu0 %v179, 114
      %v1088 = vpop.permute.xlu0 %1087
      %1089 = vrot.lane.b32.xlu0 %v180, 114
      %v1090 = vpop.permute.xlu0 %1089
      %1091 = vrot.lane.b32.xlu0 %v181, 114
      %v1092 = vpop.permute.xlu0 %1091
      %1093 = vrot.lane.b32.xlu0 %v182, 114
      %v1094 = vpop.permute.xlu0 %1093
      %v1103 = vsel %vm219, %v1075, 0
      %v1106 = vsel %vm219, %v1076, 0
      %v1109 = vsel %vm219, %v1077, 0
      %v1112 = vsel %vm219, %v1078, 0
      %v1114 = vsel %vm232, %v1094, 0
      %1116 = vmatprep.subr.mxu0 0.0
      %1117 = vmatpush1.msra.mxu0 %v1080
      %1118 = vmatprep.subr.mxu0 0.0
      %1119 = vmatpush1.msra.mxu0 %v1082
      %1120 = vmatprep.subr.mxu0 0.0
      %1121 = vmatpush1.msra.mxu0 %v1084
      %1122 = vmatprep.subr.mxu0 0.0
      %1123 = vmatpush1.msra.mxu0 %v1086
      %1124 = vmatprep.subr.mxu0 0.0
      %1125 = vmatpush1.msra.mxu0 %v1088
      %1126 = vmatprep.subr.mxu0 0.0
      %1127 = vmatpush1.msra.mxu0 %v1090
      %1128 = vmatprep.subr.mxu0 0.0
      %1129 = vmatpush1.msra.mxu0 %v1092
      %1130 = vmatprep.subr.mxu0 0.0
      %1131 = vmatpush1.msra.mxu0 %v1114
      %1132 = vmatprep.subr.mxu0 0.0
      %1133 = vmatpush1.msra.mxu0 0.0
      %1134 = vmatprep.subr.mxu0 0.0
      %1135 = vmatpush1.msra.mxu0 0.0
      %1136 = vmatprep.subr.mxu0 0.0
      %1137 = vmatpush1.msra.mxu0 0.0
      %1138 = vmatprep.subr.mxu0 0.0
      %1139 = vmatpush1.msra.mxu0 0.0
      %1140 = vmatprep.subr.mxu0 0.0
      %1141 = vmatpush1.msra.mxu0 0.0
      %1142 = vmatprep.subr.mxu0 0.0
      %1143 = vmatpush1.msra.mxu0 0.0
      %1144 = vmatprep.subr.mxu0 0.0
      %1145 = vmatpush1.msra.mxu0 0.0
      %1146 = vmatprep.subr.mxu0 0.0
      %1147 = vmatpush1.msra.mxu0 0.0
      %1148 = vmatprep.subr.mxu0 0.0
      %1149 = vmatpush1.msra.mxu0 0.0
      %1150 = vmatprep.subr.mxu0 0.0
      %1151 = vmatpush1.msra.mxu0 0.0
      %1152 = vmatprep.subr.mxu0 0.0
      %1153 = vmatpush1.msra.mxu0 0.0
      %1154 = vmatprep.subr.mxu0 0.0
      %1155 = vmatpush1.msra.mxu0 0.0
      %1156 = vmatprep.subr.mxu0 0.0
      %1157 = vmatpush1.msra.mxu0 0.0
      %1158 = vmatprep.subr.mxu0 0.0
      %1159 = vmatpush1.msra.mxu0 0.0
      %1160 = vmatprep.subr.mxu0 0.0
      %1161 = vmatpush1.msra.mxu0 0.0
      %1162 = vmatprep.subr.mxu0 0.0
      %1163 = vmatpush1.msra.mxu0 0.0
      %1164 = vmatprep.subr.mxu0 0.0
      %1165 = vmatpush1.msra.mxu0 0.0
      %1166 = vmatprep.subr.mxu0 0.0
      %1167 = vmatpush1.msra.mxu0 0.0
      %1168 = vmatprep.subr.mxu0 0.0
      %1169 = vmatpush1.msra.mxu0 0.0
      %1170 = vmatprep.subr.mxu0 0.0
      %1171 = vmatpush1.msra.mxu0 0.0
      %1172 = vmatprep.subr.mxu0 0.0
      %1173 = vmatpush1.msra.mxu0 0.0
      %1174 = vmatprep.subr.mxu0 0.0
      %1175 = vmatpush1.msra.mxu0 0.0
      %1176 = vmatprep.subr.mxu0 0.0
      %1177 = vmatpush1.msra.mxu0 0.0
      %1178 = vmatprep.subr.mxu0 0.0
      %1179 = vmatpush1.msra.mxu0 0.0
      %1180 = vmatprep.mubr.f32.mxu0 0.0
      %1181 = vmatmul.mubr.f32.gmra.mrb[0].mxu0 %v1103
      %v1182 = vpop.f32.mrb[0].mxu0
      %v1183 = vadd.f32 0.0, %v1182
      %v1184 = vpop.f32.mrb[0].mxu0
      %1185 = vmatprep.mubr.f32.mxu0 0.0
      %1186 = vmatmul.mubr.f32.gmra.mrb[0].mxu0 %v1106
      %v1187 = vpop.f32.mrb[0].mxu0
      %v1188 = vadd.f32 0.0, %v1187
      %v1189 = vpop.f32.mrb[0].mxu0
      %1190 = vmatprep.mubr.f32.mxu0 0.0
      %1191 = vmatmul.mubr.f32.gmra.mrb[0].mxu0 %v1109
      %v1192 = vpop.f32.mrb[0].mxu0
      %v1193 = vadd.f32 0.0, %v1192
      %v1194 = vpop.f32.mrb[0].mxu0
      %1195 = vmatprep.mubr.f32.mxu0 0.0
      %1196 = vmatmul.mubr.f32.gmra.mrb[0].mxu0 %v1112
      %v1197 = vpop.f32.mrb[0].mxu0
      %v1198 = vadd.f32 0.0, %v1197
      %v1199 = vpop.f32.mrb[0].mxu0
      %1200 = vdwg.mxu0
      %v1201 = vadd.f32 %v1070, %v1183
      %v1202 = vadd.f32 %v1071, %v1188
      %v1203 = vadd.f32 %v1072, %v1193
      %v1204 = vadd.f32 %v1073, %v1198
      %s1205 = scalar_lea.vmem %s1, 256
      %v1206 = vld [vmem:[%s1205] sm:$0xff]
      %v1207 = vld [vmem:[%s1205 + $0x8] sm:$0xff]
      %v1208 = vld [vmem:[%s1205 + $0x10] sm:$0xff]
      %v1209 = vld [vmem:[%s1205 + $0x18] sm:$0xff]
      %1210 = vrot.lane.b32.xlu0 %v175, 113
      %v1211 = vpop.permute.xlu0 %1210
      %1212 = vrot.lane.b32.xlu0 %v176, 113
      %v1213 = vpop.permute.xlu0 %1212
      %1214 = vrot.lane.b32.xlu0 %v177, 113
      %v1215 = vpop.permute.xlu0 %1214
      %1216 = vrot.lane.b32.xlu0 %v178, 113
      %v1217 = vpop.permute.xlu0 %1216
      %1218 = vrot.lane.b32.xlu0 %v179, 113
      %v1219 = vpop.permute.xlu0 %1218
      %1220 = vrot.lane.b32.xlu0 %v180, 113
      %v1221 = vpop.permute.xlu0 %1220
      %1222 = vrot.lane.b32.xlu0 %v181, 113
      %v1223 = vpop.permute.xlu0 %1222
      %1224 = vrot.lane.b32.xlu0 %v182, 113
      %v1225 = vpop.permute.xlu0 %1224
      %v1234 = vsel %vm219, %v1206, 0
      %v1237 = vsel %vm219, %v1207, 0
      %v1240 = vsel %vm219, %v1208, 0
      %v1243 = vsel %vm219, %v1209, 0
      %v1245 = vsel %vm232, %v1225, 0
      %1247 = vmatprep.subr.mxu0 0.0
      %1248 = vmatpush1.msra.mxu0 %v1211
      %1249 = vmatprep.subr.mxu0 0.0
      %1250 = vmatpush1.msra.mxu0 %v1213
      %1251 = vmatprep.subr.mxu0 0.0
      %1252 = vmatpush1.msra.mxu0 %v1215
      %1253 = vmatprep.subr.mxu0 0.0
      %1254 = vmatpush1.msra.mxu0 %v1217
      %1255 = vmatprep.subr.mxu0 0.0
      %1256 = vmatpush1.msra.mxu0 %v1219
      %1257 = vmatprep.subr.mxu0 0.0
      %1258 = vmatpush1.msra.mxu0 %v1221
      %1259 = vmatprep.subr.mxu0 0.0
      %1260 = vmatpush1.msra.mxu0 %v1223
      %1261 = vmatprep.subr.mxu0 0.0
      %1262 = vmatpush1.msra.mxu0 %v1245
      %1263 = vmatprep.subr.mxu0 0.0
      %1264 = vmatpush1.msra.mxu0 0.0
      %1265 = vmatprep.subr.mxu0 0.0
      %1266 = vmatpush1.msra.mxu0 0.0
      %1267 = vmatprep.subr.mxu0 0.0
      %1268 = vmatpush1.msra.mxu0 0.0
      %1269 = vmatprep.subr.mxu0 0.0
      %1270 = vmatpush1.msra.mxu0 0.0
      %1271 = vmatprep.subr.mxu0 0.0
      %1272 = vmatpush1.msra.mxu0 0.0
      %1273 = vmatprep.subr.mxu0 0.0
      %1274 = vmatpush1.msra.mxu0 0.0
      %1275 = vmatprep.subr.mxu0 0.0
      %1276 = vmatpush1.msra.mxu0 0.0
      %1277 = vmatprep.subr.mxu0 0.0
      %1278 = vmatpush1.msra.mxu0 0.0
      %1279 = vmatprep.subr.mxu0 0.0
      %1280 = vmatpush1.msra.mxu0 0.0
      %1281 = vmatprep.subr.mxu0 0.0
      %1282 = vmatpush1.msra.mxu0 0.0
      %1283 = vmatprep.subr.mxu0 0.0
      %1284 = vmatpush1.msra.mxu0 0.0
      %1285 = vmatprep.subr.mxu0 0.0
      %1286 = vmatpush1.msra.mxu0 0.0
      %1287 = vmatprep.subr.mxu0 0.0
      %1288 = vmatpush1.msra.mxu0 0.0
      %1289 = vmatprep.subr.mxu0 0.0
      %1290 = vmatpush1.msra.mxu0 0.0
      %1291 = vmatprep.subr.mxu0 0.0
      %1292 = vmatpush1.msra.mxu0 0.0
      %1293 = vmatprep.subr.mxu0 0.0
      %1294 = vmatpush1.msra.mxu0 0.0
      %1295 = vmatprep.subr.mxu0 0.0
      %1296 = vmatpush1.msra.mxu0 0.0
      %1297 = vmatprep.subr.mxu0 0.0
      %1298 = vmatpush1.msra.mxu0 0.0
      %1299 = vmatprep.subr.mxu0 0.0
      %1300 = vmatpush1.msra.mxu0 0.0
      %1301 = vmatprep.subr.mxu0 0.0
      %1302 = vmatpush1.msra.mxu0 0.0
      %1303 = vmatprep.subr.mxu0 0.0
      %1304 = vmatpush1.msra.mxu0 0.0
      %1305 = vmatprep.subr.mxu0 0.0
      %1306 = vmatpush1.msra.mxu0 0.0
      %1307 = vmatprep.subr.mxu0 0.0
      %1308 = vmatpush1.msra.mxu0 0.0
      %1309 = vmatprep.subr.mxu0 0.0
      %1310 = vmatpush1.msra.mxu0 0.0
      %1311 = vmatprep.mubr.f32.mxu0 0.0
      %1312 = vmatmul.mubr.f32.gmra.mrb[0].mxu0 %v1234
      %v1313 = vpop.f32.mrb[0].mxu0
      %v1314 = vadd.f32 0.0, %v1313
      %v1315 = vpop.f32.mrb[0].mxu0
      %1316 = vmatprep.mubr.f32.mxu0 0.0
      %1317 = vmatmul.mubr.f32.gmra.mrb[0].mxu0 %v1237
      %v1318 = vpop.f32.mrb[0].mxu0
      %v1319 = vadd.f32 0.0, %v1318
      %v1320 = vpop.f32.mrb[0].mxu0
      %1321 = vmatprep.mubr.f32.mxu0 0.0
      %1322 = vmatmul.mubr.f32.gmra.mrb[0].mxu0 %v1240
      %v1323 = vpop.f32.mrb[0].mxu0
      %v1324 = vadd.f32 0.0, %v1323
      %v1325 = vpop.f32.mrb[0].mxu0
      %1326 = vmatprep.mubr.f32.mxu0 0.0
      %1327 = vmatmul.mubr.f32.gmra.mrb[0].mxu0 %v1243
      %v1328 = vpop.f32.mrb[0].mxu0
      %v1329 = vadd.f32 0.0, %v1328
      %v1330 = vpop.f32.mrb[0].mxu0
      %1331 = vdwg.mxu0
      %v1332 = vadd.f32 %v1201, %v1314
      %v1333 = vadd.f32 %v1202, %v1319
      %v1334 = vadd.f32 %v1203, %v1324
      %v1335 = vadd.f32 %v1204, %v1329
      %s1336 = scalar_lea.vmem %s1, 288
      %v1337 = vld [vmem:[%s1336] sm:$0xff]
      %v1338 = vld [vmem:[%s1336 + $0x8] sm:$0xff]
      %v1339 = vld [vmem:[%s1336 + $0x10] sm:$0xff]
      %v1340 = vld [vmem:[%s1336 + $0x18] sm:$0xff]
      %1341 = vrot.lane.b32.xlu0 %v175, 112
      %v1342 = vpop.permute.xlu0 %1341
      %1343 = vrot.lane.b32.xlu0 %v176, 112
      %v1344 = vpop.permute.xlu0 %1343
      %1345 = vrot.lane.b32.xlu0 %v177, 112
      %v1346 = vpop.permute.xlu0 %1345
      %1347 = vrot.lane.b32.xlu0 %v178, 112
      %v1348 = vpop.permute.xlu0 %1347
      %1349 = vrot.lane.b32.xlu0 %v179, 112
      %v1350 = vpop.permute.xlu0 %1349
      %1351 = vrot.lane.b32.xlu0 %v180, 112
      %v1352 = vpop.permute.xlu0 %1351
      %1353 = vrot.lane.b32.xlu0 %v181, 112
      %v1354 = vpop.permute.xlu0 %1353
      %1355 = vrot.lane.b32.xlu0 %v182, 112
      %v1356 = vpop.permute.xlu0 %1355
      %v1365 = vsel %vm219, %v1337, 0
      %v1368 = vsel %vm219, %v1338, 0
      %v1371 = vsel %vm219, %v1339, 0
      %v1374 = vsel %vm219, %v1340, 0
      %v1376 = vsel %vm232, %v1356, 0
      %1378 = vmatprep.subr.mxu0 0.0
      %1379 = vmatpush1.msra.mxu0 %v1342
      %1380 = vmatprep.subr.mxu0 0.0
      %1381 = vmatpush1.msra.mxu0 %v1344
      %1382 = vmatprep.subr.mxu0 0.0
      %1383 = vmatpush1.msra.mxu0 %v1346
      %1384 = vmatprep.subr.mxu0 0.0
      %1385 = vmatpush1.msra.mxu0 %v1348
      %1386 = vmatprep.subr.mxu0 0.0
      %1387 = vmatpush1.msra.mxu0 %v1350
      %1388 = vmatprep.subr.mxu0 0.0
      %1389 = vmatpush1.msra.mxu0 %v1352
      %1390 = vmatprep.subr.mxu0 0.0
      %1391 = vmatpush1.msra.mxu0 %v1354
      %1392 = vmatprep.subr.mxu0 0.0
      %1393 = vmatpush1.msra.mxu0 %v1376
      %1394 = vmatprep.subr.mxu0 0.0
      %1395 = vmatpush1.msra.mxu0 0.0
      %1396 = vmatprep.subr.mxu0 0.0
      %1397 = vmatpush1.msra.mxu0 0.0
      %1398 = vmatprep.subr.mxu0 0.0
      %1399 = vmatpush1.msra.mxu0 0.0
      %1400 = vmatprep.subr.mxu0 0.0
      %1401 = vmatpush1.msra.mxu0 0.0
      %1402 = vmatprep.subr.mxu0 0.0
      %1403 = vmatpush1.msra.mxu0 0.0
      %1404 = vmatprep.subr.mxu0 0.0
      %1405 = vmatpush1.msra.mxu0 0.0
      %1406 = vmatprep.subr.mxu0 0.0
      %1407 = vmatpush1.msra.mxu0 0.0
      %1408 = vmatprep.subr.mxu0 0.0
      %1409 = vmatpush1.msra.mxu0 0.0
      %1410 = vmatprep.subr.mxu0 0.0
      %1411 = vmatpush1.msra.mxu0 0.0
      %1412 = vmatprep.subr.mxu0 0.0
      %1413 = vmatpush1.msra.mxu0 0.0
      %1414 = vmatprep.subr.mxu0 0.0
      %1415 = vmatpush1.msra.mxu0 0.0
      %1416 = vmatprep.subr.mxu0 0.0
      %1417 = vmatpush1.msra.mxu0 0.0
      %1418 = vmatprep.subr.mxu0 0.0
      %1419 = vmatpush1.msra.mxu0 0.0
      %1420 = vmatprep.subr.mxu0 0.0
      %1421 = vmatpush1.msra.mxu0 0.0
      %1422 = vmatprep.subr.mxu0 0.0
      %1423 = vmatpush1.msra.mxu0 0.0
      %1424 = vmatprep.subr.mxu0 0.0
      %1425 = vmatpush1.msra.mxu0 0.0
      %1426 = vmatprep.subr.mxu0 0.0
      %1427 = vmatpush1.msra.mxu0 0.0
      %1428 = vmatprep.subr.mxu0 0.0
      %1429 = vmatpush1.msra.mxu0 0.0
      %1430 = vmatprep.subr.mxu0 0.0
      %1431 = vmatpush1.msra.mxu0 0.0
      %1432 = vmatprep.subr.mxu0 0.0
      %1433 = vmatpush1.msra.mxu0 0.0
      %1434 = vmatprep.subr.mxu0 0.0
      %1435 = vmatpush1.msra.mxu0 0.0
      %1436 = vmatprep.subr.mxu0 0.0
      %1437 = vmatpush1.msra.mxu0 0.0
      %1438 = vmatprep.subr.mxu0 0.0
      %1439 = vmatpush1.msra.mxu0 0.0
      %1440 = vmatprep.subr.mxu0 0.0
      %1441 = vmatpush1.msra.mxu0 0.0
      %1442 = vmatprep.mubr.f32.mxu0 0.0
      %1443 = vmatmul.mubr.f32.gmra.mrb[0].mxu0 %v1365
      %v1444 = vpop.f32.mrb[0].mxu0
      %v1445 = vadd.f32 0.0, %v1444
      %v1446 = vpop.f32.mrb[0].mxu0
      %1447 = vmatprep.mubr.f32.mxu0 0.0
      %1448 = vmatmul.mubr.f32.gmra.mrb[0].mxu0 %v1368
      %v1449 = vpop.f32.mrb[0].mxu0
      %v1450 = vadd.f32 0.0, %v1449
      %v1451 = vpop.f32.mrb[0].mxu0
      %1452 = vmatprep.mubr.f32.mxu0 0.0
      %1453 = vmatmul.mubr.f32.gmra.mrb[0].mxu0 %v1371
      %v1454 = vpop.f32.mrb[0].mxu0
      %v1455 = vadd.f32 0.0, %v1454
      %v1456 = vpop.f32.mrb[0].mxu0
      %1457 = vmatprep.mubr.f32.mxu0 0.0
      %1458 = vmatmul.mubr.f32.gmra.mrb[0].mxu0 %v1374
      %v1459 = vpop.f32.mrb[0].mxu0
      %v1460 = vadd.f32 0.0, %v1459
      %v1461 = vpop.f32.mrb[0].mxu0
      %1462 = vdwg.mxu0
      %v1463 = vadd.f32 %v1332, %v1445
      %v1464 = vadd.f32 %v1333, %v1450
      %v1465 = vadd.f32 %v1334, %v1455
      %v1466 = vadd.f32 %v1335, %v1460
      %s1467 = scalar_lea.vmem %s1, 320
      %v1468 = vld [vmem:[%s1467] sm:$0xff]
      %v1469 = vld [vmem:[%s1467 + $0x8] sm:$0xff]
      %v1470 = vld [vmem:[%s1467 + $0x10] sm:$0xff]
      %v1471 = vld [vmem:[%s1467 + $0x18] sm:$0xff]
      %1472 = vrot.lane.b32.xlu0 %v175, 104
      %v1473 = vpop.permute.xlu0 %1472
      %1474 = vrot.lane.b32.xlu0 %v176, 104
      %v1475 = vpop.permute.xlu0 %1474
      %1476 = vrot.lane.b32.xlu0 %v177, 104
      %v1477 = vpop.permute.xlu0 %1476
      %1478 = vrot.lane.b32.xlu0 %v178, 104
      %v1479 = vpop.permute.xlu0 %1478
      %1480 = vrot.lane.b32.xlu0 %v179, 104
      %v1481 = vpop.permute.xlu0 %1480
      %1482 = vrot.lane.b32.xlu0 %v180, 104
      %v1483 = vpop.permute.xlu0 %1482
      %1484 = vrot.lane.b32.xlu0 %v181, 104
      %v1485 = vpop.permute.xlu0 %1484
      %1486 = vrot.lane.b32.xlu0 %v182, 104
      %v1487 = vpop.permute.xlu0 %1486
      %v1496 = vsel %vm219, %v1468, 0
      %v1499 = vsel %vm219, %v1469, 0
      %v1502 = vsel %vm219, %v1470, 0
      %v1505 = vsel %vm219, %v1471, 0
      %v1507 = vsel %vm232, %v1487, 0
      %1509 = vmatprep.subr.mxu0 0.0
      %1510 = vmatpush1.msra.mxu0 %v1473
      %1511 = vmatprep.subr.mxu0 0.0
      %1512 = vmatpush1.msra.mxu0 %v1475
      %1513 = vmatprep.subr.mxu0 0.0
      %1514 = vmatpush1.msra.mxu0 %v1477
      %1515 = vmatprep.subr.mxu0 0.0
      %1516 = vmatpush1.msra.mxu0 %v1479
      %1517 = vmatprep.subr.mxu0 0.0
      %1518 = vmatpush1.msra.mxu0 %v1481
      %1519 = vmatprep.subr.mxu0 0.0
      %1520 = vmatpush1.msra.mxu0 %v1483
      %1521 = vmatprep.subr.mxu0 0.0
      %1522 = vmatpush1.msra.mxu0 %v1485
      %1523 = vmatprep.subr.mxu0 0.0
      %1524 = vmatpush1.msra.mxu0 %v1507
      %1525 = vmatprep.subr.mxu0 0.0
      %1526 = vmatpush1.msra.mxu0 0.0
      %1527 = vmatprep.subr.mxu0 0.0
      %1528 = vmatpush1.msra.mxu0 0.0
      %1529 = vmatprep.subr.mxu0 0.0
      %1530 = vmatpush1.msra.mxu0 0.0
      %1531 = vmatprep.subr.mxu0 0.0
      %1532 = vmatpush1.msra.mxu0 0.0
      %1533 = vmatprep.subr.mxu0 0.0
      %1534 = vmatpush1.msra.mxu0 0.0
      %1535 = vmatprep.subr.mxu0 0.0
      %1536 = vmatpush1.msra.mxu0 0.0
      %1537 = vmatprep.subr.mxu0 0.0
      %1538 = vmatpush1.msra.mxu0 0.0
      %1539 = vmatprep.subr.mxu0 0.0
      %1540 = vmatpush1.msra.mxu0 0.0
      %1541 = vmatprep.subr.mxu0 0.0
      %1542 = vmatpush1.msra.mxu0 0.0
      %1543 = vmatprep.subr.mxu0 0.0
      %1544 = vmatpush1.msra.mxu0 0.0
      %1545 = vmatprep.subr.mxu0 0.0
      %1546 = vmatpush1.msra.mxu0 0.0
      %1547 = vmatprep.subr.mxu0 0.0
      %1548 = vmatpush1.msra.mxu0 0.0
      %1549 = vmatprep.subr.mxu0 0.0
      %1550 = vmatpush1.msra.mxu0 0.0
      %1551 = vmatprep.subr.mxu0 0.0
      %1552 = vmatpush1.msra.mxu0 0.0
      %1553 = vmatprep.subr.mxu0 0.0
      %1554 = vmatpush1.msra.mxu0 0.0
      %1555 = vmatprep.subr.mxu0 0.0
      %1556 = vmatpush1.msra.mxu0 0.0
      %1557 = vmatprep.subr.mxu0 0.0
      %1558 = vmatpush1.msra.mxu0 0.0
      %1559 = vmatprep.subr.mxu0 0.0
      %1560 = vmatpush1.msra.mxu0 0.0
      %1561 = vmatprep.subr.mxu0 0.0
      %1562 = vmatpush1.msra.mxu0 0.0
      %1563 = vmatprep.subr.mxu0 0.0
      %1564 = vmatpush1.msra.mxu0 0.0
      %1565 = vmatprep.subr.mxu0 0.0
      %1566 = vmatpush1.msra.mxu0 0.0
      %1567 = vmatprep.subr.mxu0 0.0
      %1568 = vmatpush1.msra.mxu0 0.0
      %1569 = vmatprep.subr.mxu0 0.0
      %1570 = vmatpush1.msra.mxu0 0.0
      %1571 = vmatprep.subr.mxu0 0.0
      %1572 = vmatpush1.msra.mxu0 0.0
      %1573 = vmatprep.mubr.f32.mxu0 0.0
      %1574 = vmatmul.mubr.f32.gmra.mrb[0].mxu0 %v1496
      %v1575 = vpop.f32.mrb[0].mxu0
      %v1576 = vadd.f32 0.0, %v1575
      %v1577 = vpop.f32.mrb[0].mxu0
      %1578 = vmatprep.mubr.f32.mxu0 0.0
      %1579 = vmatmul.mubr.f32.gmra.mrb[0].mxu0 %v1499
      %v1580 = vpop.f32.mrb[0].mxu0
      %v1581 = vadd.f32 0.0, %v1580
      %v1582 = vpop.f32.mrb[0].mxu0
      %1583 = vmatprep.mubr.f32.mxu0 0.0
      %1584 = vmatmul.mubr.f32.gmra.mrb[0].mxu0 %v1502
      %v1585 = vpop.f32.mrb[0].mxu0
      %v1586 = vadd.f32 0.0, %v1585
      %v1587 = vpop.f32.mrb[0].mxu0
      %1588 = vmatprep.mubr.f32.mxu0 0.0
      %1589 = vmatmul.mubr.f32.gmra.mrb[0].mxu0 %v1505
      %v1590 = vpop.f32.mrb[0].mxu0
      %v1591 = vadd.f32 0.0, %v1590
      %v1592 = vpop.f32.mrb[0].mxu0
      %1593 = vdwg.mxu0
      %v1594 = vadd.f32 %v1463, %v1576
      %v1595 = vadd.f32 %v1464, %v1581
      %v1596 = vadd.f32 %v1465, %v1586
      %v1597 = vadd.f32 %v1466, %v1591
      %s1598 = scalar_lea.vmem %s1, 352
      %v1599 = vld [vmem:[%s1598] sm:$0xff]
      %v1600 = vld [vmem:[%s1598 + $0x8] sm:$0xff]
      %v1601 = vld [vmem:[%s1598 + $0x10] sm:$0xff]
      %v1602 = vld [vmem:[%s1598 + $0x18] sm:$0xff]
      %1603 = vrot.lane.b32.xlu0 %v175, 103
      %v1604 = vpop.permute.xlu0 %1603
      %1605 = vrot.lane.b32.xlu0 %v176, 103
      %v1606 = vpop.permute.xlu0 %1605
      %1607 = vrot.lane.b32.xlu0 %v177, 103
      %v1608 = vpop.permute.xlu0 %1607
      %1609 = vrot.lane.b32.xlu0 %v178, 103
      %v1610 = vpop.permute.xlu0 %1609
      %1611 = vrot.lane.b32.xlu0 %v179, 103
      %v1612 = vpop.permute.xlu0 %1611
      %1613 = vrot.lane.b32.xlu0 %v180, 103
      %v1614 = vpop.permute.xlu0 %1613
      %1615 = vrot.lane.b32.xlu0 %v181, 103
      %v1616 = vpop.permute.xlu0 %1615
      %1617 = vrot.lane.b32.xlu0 %v182, 103
      %v1618 = vpop.permute.xlu0 %1617
      %v1627 = vsel %vm219, %v1599, 0
      %v1630 = vsel %vm219, %v1600, 0
      %v1633 = vsel %vm219, %v1601, 0
      %v1636 = vsel %vm219, %v1602, 0
      %v1638 = vsel %vm232, %v1618, 0
      %1640 = vmatprep.subr.mxu0 0.0
      %1641 = vmatpush1.msra.mxu0 %v1604
      %1642 = vmatprep.subr.mxu0 0.0
      %1643 = vmatpush1.msra.mxu0 %v1606
      %1644 = vmatprep.subr.mxu0 0.0
      %1645 = vmatpush1.msra.mxu0 %v1608
      %1646 = vmatprep.subr.mxu0 0.0
      %1647 = vmatpush1.msra.mxu0 %v1610
      %1648 = vmatprep.subr.mxu0 0.0
      %1649 = vmatpush1.msra.mxu0 %v1612
      %1650 = vmatprep.subr.mxu0 0.0
      %1651 = vmatpush1.msra.mxu0 %v1614
      %1652 = vmatprep.subr.mxu0 0.0
      %1653 = vmatpush1.msra.mxu0 %v1616
      %1654 = vmatprep.subr.mxu0 0.0
      %1655 = vmatpush1.msra.mxu0 %v1638
      %1656 = vmatprep.subr.mxu0 0.0
      %1657 = vmatpush1.msra.mxu0 0.0
      %1658 = vmatprep.subr.mxu0 0.0
      %1659 = vmatpush1.msra.mxu0 0.0
      %1660 = vmatprep.subr.mxu0 0.0
      %1661 = vmatpush1.msra.mxu0 0.0
      %1662 = vmatprep.subr.mxu0 0.0
      %1663 = vmatpush1.msra.mxu0 0.0
      %1664 = vmatprep.subr.mxu0 0.0
      %1665 = vmatpush1.msra.mxu0 0.0
      %1666 = vmatprep.subr.mxu0 0.0
      %1667 = vmatpush1.msra.mxu0 0.0
      %1668 = vmatprep.subr.mxu0 0.0
      %1669 = vmatpush1.msra.mxu0 0.0
      %1670 = vmatprep.subr.mxu0 0.0
      %1671 = vmatpush1.msra.mxu0 0.0
      %1672 = vmatprep.subr.mxu0 0.0
      %1673 = vmatpush1.msra.mxu0 0.0
      %1674 = vmatprep.subr.mxu0 0.0
      %1675 = vmatpush1.msra.mxu0 0.0
      %1676 = vmatprep.subr.mxu0 0.0
      %1677 = vmatpush1.msra.mxu0 0.0
      %1678 = vmatprep.subr.mxu0 0.0
      %1679 = vmatpush1.msra.mxu0 0.0
      %1680 = vmatprep.subr.mxu0 0.0
      %1681 = vmatpush1.msra.mxu0 0.0
      %1682 = vmatprep.subr.mxu0 0.0
      %1683 = vmatpush1.msra.mxu0 0.0
      %1684 = vmatprep.subr.mxu0 0.0
      %1685 = vmatpush1.msra.mxu0 0.0
      %1686 = vmatprep.subr.mxu0 0.0
      %1687 = vmatpush1.msra.mxu0 0.0
      %1688 = vmatprep.subr.mxu0 0.0
      %1689 = vmatpush1.msra.mxu0 0.0
      %1690 = vmatprep.subr.mxu0 0.0
      %1691 = vmatpush1.msra.mxu0 0.0
      %1692 = vmatprep.subr.mxu0 0.0
      %1693 = vmatpush1.msra.mxu0 0.0
      %1694 = vmatprep.subr.mxu0 0.0
      %1695 = vmatpush1.msra.mxu0 0.0
      %1696 = vmatprep.subr.mxu0 0.0
      %1697 = vmatpush1.msra.mxu0 0.0
      %1698 = vmatprep.subr.mxu0 0.0
      %1699 = vmatpush1.msra.mxu0 0.0
      %1700 = vmatprep.subr.mxu0 0.0
      %1701 = vmatpush1.msra.mxu0 0.0
      %1702 = vmatprep.subr.mxu0 0.0
      %1703 = vmatpush1.msra.mxu0 0.0
      %1704 = vmatprep.mubr.f32.mxu0 0.0
      %1705 = vmatmul.mubr.f32.gmra.mrb[0].mxu0 %v1627
      %v1706 = vpop.f32.mrb[0].mxu0
      %v1707 = vadd.f32 0.0, %v1706
      %v1708 = vpop.f32.mrb[0].mxu0
      %1709 = vmatprep.mubr.f32.mxu0 0.0
      %1710 = vmatmul.mubr.f32.gmra.mrb[0].mxu0 %v1630
      %v1711 = vpop.f32.mrb[0].mxu0
      %v1712 = vadd.f32 0.0, %v1711
      %v1713 = vpop.f32.mrb[0].mxu0
      %1714 = vmatprep.mubr.f32.mxu0 0.0
      %1715 = vmatmul.mubr.f32.gmra.mrb[0].mxu0 %v1633
      %v1716 = vpop.f32.mrb[0].mxu0
      %v1717 = vadd.f32 0.0, %v1716
      %v1718 = vpop.f32.mrb[0].mxu0
      %1719 = vmatprep.mubr.f32.mxu0 0.0
      %1720 = vmatmul.mubr.f32.gmra.mrb[0].mxu0 %v1636
      %v1721 = vpop.f32.mrb[0].mxu0
      %v1722 = vadd.f32 0.0, %v1721
      %v1723 = vpop.f32.mrb[0].mxu0
      %1724 = vdwg.mxu0
      %v1725 = vadd.f32 %v1594, %v1707
      %v1726 = vadd.f32 %v1595, %v1712
      %v1727 = vadd.f32 %v1596, %v1717
      %v1728 = vadd.f32 %v1597, %v1722
      %s1729 = scalar_lea.vmem %s1, 384
      %v1730 = vld [vmem:[%s1729] sm:$0xff]
      %v1731 = vld [vmem:[%s1729 + $0x8] sm:$0xff]
      %v1732 = vld [vmem:[%s1729 + $0x10] sm:$0xff]
      %v1733 = vld [vmem:[%s1729 + $0x18] sm:$0xff]
      %1734 = vrot.lane.b32.xlu0 %v175, 102
      %v1735 = vpop.permute.xlu0 %1734
      %1736 = vrot.lane.b32.xlu0 %v176, 102
      %v1737 = vpop.permute.xlu0 %1736
      %1738 = vrot.lane.b32.xlu0 %v177, 102
      %v1739 = vpop.permute.xlu0 %1738
      %1740 = vrot.lane.b32.xlu0 %v178, 102
      %v1741 = vpop.permute.xlu0 %1740
      %1742 = vrot.lane.b32.xlu0 %v179, 102
      %v1743 = vpop.permute.xlu0 %1742
      %1744 = vrot.lane.b32.xlu0 %v180, 102
      %v1745 = vpop.permute.xlu0 %1744
      %1746 = vrot.lane.b32.xlu0 %v181, 102
      %v1747 = vpop.permute.xlu0 %1746
      %1748 = vrot.lane.b32.xlu0 %v182, 102
      %v1749 = vpop.permute.xlu0 %1748
      %v1758 = vsel %vm219, %v1730, 0
      %v1761 = vsel %vm219, %v1731, 0
      %v1764 = vsel %vm219, %v1732, 0
      %v1767 = vsel %vm219, %v1733, 0
      %v1769 = vsel %vm232, %v1749, 0
      %1771 = vmatprep.subr.mxu0 0.0
      %1772 = vmatpush1.msra.mxu0 %v1735
      %1773 = vmatprep.subr.mxu0 0.0
      %1774 = vmatpush1.msra.mxu0 %v1737
      %1775 = vmatprep.subr.mxu0 0.0
      %1776 = vmatpush1.msra.mxu0 %v1739
      %1777 = vmatprep.subr.mxu0 0.0
      %1778 = vmatpush1.msra.mxu0 %v1741
      %1779 = vmatprep.subr.mxu0 0.0
      %1780 = vmatpush1.msra.mxu0 %v1743
      %1781 = vmatprep.subr.mxu0 0.0
      %1782 = vmatpush1.msra.mxu0 %v1745
      %1783 = vmatprep.subr.mxu0 0.0
      %1784 = vmatpush1.msra.mxu0 %v1747
      %1785 = vmatprep.subr.mxu0 0.0
      %1786 = vmatpush1.msra.mxu0 %v1769
      %1787 = vmatprep.subr.mxu0 0.0
      %1788 = vmatpush1.msra.mxu0 0.0
      %1789 = vmatprep.subr.mxu0 0.0
      %1790 = vmatpush1.msra.mxu0 0.0
      %1791 = vmatprep.subr.mxu0 0.0
      %1792 = vmatpush1.msra.mxu0 0.0
      %1793 = vmatprep.subr.mxu0 0.0
      %1794 = vmatpush1.msra.mxu0 0.0
      %1795 = vmatprep.subr.mxu0 0.0
      %1796 = vmatpush1.msra.mxu0 0.0
      %1797 = vmatprep.subr.mxu0 0.0
      %1798 = vmatpush1.msra.mxu0 0.0
      %1799 = vmatprep.subr.mxu0 0.0
      %1800 = vmatpush1.msra.mxu0 0.0
      %1801 = vmatprep.subr.mxu0 0.0
      %1802 = vmatpush1.msra.mxu0 0.0
      %1803 = vmatprep.subr.mxu0 0.0
      %1804 = vmatpush1.msra.mxu0 0.0
      %1805 = vmatprep.subr.mxu0 0.0
      %1806 = vmatpush1.msra.mxu0 0.0
      %1807 = vmatprep.subr.mxu0 0.0
      %1808 = vmatpush1.msra.mxu0 0.0
      %1809 = vmatprep.subr.mxu0 0.0
      %1810 = vmatpush1.msra.mxu0 0.0
      %1811 = vmatprep.subr.mxu0 0.0
      %1812 = vmatpush1.msra.mxu0 0.0
      %1813 = vmatprep.subr.mxu0 0.0
      %1814 = vmatpush1.msra.mxu0 0.0
      %1815 = vmatprep.subr.mxu0 0.0
      %1816 = vmatpush1.msra.mxu0 0.0
      %1817 = vmatprep.subr.mxu0 0.0
      %1818 = vmatpush1.msra.mxu0 0.0
      %1819 = vmatprep.subr.mxu0 0.0
      %1820 = vmatpush1.msra.mxu0 0.0
      %1821 = vmatprep.subr.mxu0 0.0
      %1822 = vmatpush1.msra.mxu0 0.0
      %1823 = vmatprep.subr.mxu0 0.0
      %1824 = vmatpush1.msra.mxu0 0.0
      %1825 = vmatprep.subr.mxu0 0.0
      %1826 = vmatpush1.msra.mxu0 0.0
      %1827 = vmatprep.subr.mxu0 0.0
      %1828 = vmatpush1.msra.mxu0 0.0
      %1829 = vmatprep.subr.mxu0 0.0
      %1830 = vmatpush1.msra.mxu0 0.0
      %1831 = vmatprep.subr.mxu0 0.0
      %1832 = vmatpush1.msra.mxu0 0.0
      %1833 = vmatprep.subr.mxu0 0.0
      %1834 = vmatpush1.msra.mxu0 0.0
      %1835 = vmatprep.mubr.f32.mxu0 0.0
      %1836 = vmatmul.mubr.f32.gmra.mrb[0].mxu0 %v1758
      %v1837 = vpop.f32.mrb[0].mxu0
      %v1838 = vadd.f32 0.0, %v1837
      %v1839 = vpop.f32.mrb[0].mxu0
      %1840 = vmatprep.mubr.f32.mxu0 0.0
      %1841 = vmatmul.mubr.f32.gmra.mrb[0].mxu0 %v1761
      %v1842 = vpop.f32.mrb[0].mxu0
      %v1843 = vadd.f32 0.0, %v1842
      %v1844 = vpop.f32.mrb[0].mxu0
      %1845 = vmatprep.mubr.f32.mxu0 0.0
      %1846 = vmatmul.mubr.f32.gmra.mrb[0].mxu0 %v1764
      %v1847 = vpop.f32.mrb[0].mxu0
      %v1848 = vadd.f32 0.0, %v1847
      %v1849 = vpop.f32.mrb[0].mxu0
      %1850 = vmatprep.mubr.f32.mxu0 0.0
      %1851 = vmatmul.mubr.f32.gmra.mrb[0].mxu0 %v1767
      %v1852 = vpop.f32.mrb[0].mxu0
      %v1853 = vadd.f32 0.0, %v1852
      %v1854 = vpop.f32.mrb[0].mxu0
      %1855 = vdwg.mxu0
      %v1856 = vadd.f32 %v1725, %v1838
      %v1857 = vadd.f32 %v1726, %v1843
      %v1858 = vadd.f32 %v1727, %v1848
      %v1859 = vadd.f32 %v1728, %v1853
      %s1860 = scalar_lea.vmem %s1, 416
      %v1861 = vld [vmem:[%s1860] sm:$0xff]
      %v1862 = vld [vmem:[%s1860 + $0x8] sm:$0xff]
      %v1863 = vld [vmem:[%s1860 + $0x10] sm:$0xff]
      %v1864 = vld [vmem:[%s1860 + $0x18] sm:$0xff]
      %1865 = vrot.lane.b32.xlu0 %v175, 101
      %v1866 = vpop.permute.xlu0 %1865
      %1867 = vrot.lane.b32.xlu0 %v176, 101
      %v1868 = vpop.permute.xlu0 %1867
      %1869 = vrot.lane.b32.xlu0 %v177, 101
      %v1870 = vpop.permute.xlu0 %1869
      %1871 = vrot.lane.b32.xlu0 %v178, 101
      %v1872 = vpop.permute.xlu0 %1871
      %1873 = vrot.lane.b32.xlu0 %v179, 101
      %v1874 = vpop.permute.xlu0 %1873
      %1875 = vrot.lane.b32.xlu0 %v180, 101
      %v1876 = vpop.permute.xlu0 %1875
      %1877 = vrot.lane.b32.xlu0 %v181, 101
      %v1878 = vpop.permute.xlu0 %1877
      %1879 = vrot.lane.b32.xlu0 %v182, 101
      %v1880 = vpop.permute.xlu0 %1879
      %v1889 = vsel %vm219, %v1861, 0
      %v1892 = vsel %vm219, %v1862, 0
      %v1895 = vsel %vm219, %v1863, 0
      %v1898 = vsel %vm219, %v1864, 0
      %v1900 = vsel %vm232, %v1880, 0
      %1902 = vmatprep.subr.mxu0 0.0
      %1903 = vmatpush1.msra.mxu0 %v1866
      %1904 = vmatprep.subr.mxu0 0.0
      %1905 = vmatpush1.msra.mxu0 %v1868
      %1906 = vmatprep.subr.mxu0 0.0
      %1907 = vmatpush1.msra.mxu0 %v1870
      %1908 = vmatprep.subr.mxu0 0.0
      %1909 = vmatpush1.msra.mxu0 %v1872
      %1910 = vmatprep.subr.mxu0 0.0
      %1911 = vmatpush1.msra.mxu0 %v1874
      %1912 = vmatprep.subr.mxu0 0.0
      %1913 = vmatpush1.msra.mxu0 %v1876
      %1914 = vmatprep.subr.mxu0 0.0
      %1915 = vmatpush1.msra.mxu0 %v1878
      %1916 = vmatprep.subr.mxu0 0.0
      %1917 = vmatpush1.msra.mxu0 %v1900
      %1918 = vmatprep.subr.mxu0 0.0
      %1919 = vmatpush1.msra.mxu0 0.0
      %1920 = vmatprep.subr.mxu0 0.0
      %1921 = vmatpush1.msra.mxu0 0.0
      %1922 = vmatprep.subr.mxu0 0.0
      %1923 = vmatpush1.msra.mxu0 0.0
      %1924 = vmatprep.subr.mxu0 0.0
      %1925 = vmatpush1.msra.mxu0 0.0
      %1926 = vmatprep.subr.mxu0 0.0
      %1927 = vmatpush1.msra.mxu0 0.0
      %1928 = vmatprep.subr.mxu0 0.0
      %1929 = vmatpush1.msra.mxu0 0.0
      %1930 = vmatprep.subr.mxu0 0.0
      %1931 = vmatpush1.msra.mxu0 0.0
      %1932 = vmatprep.subr.mxu0 0.0
      %1933 = vmatpush1.msra.mxu0 0.0
      %1934 = vmatprep.subr.mxu0 0.0
      %1935 = vmatpush1.msra.mxu0 0.0
      %1936 = vmatprep.subr.mxu0 0.0
      %1937 = vmatpush1.msra.mxu0 0.0
      %1938 = vmatprep.subr.mxu0 0.0
      %1939 = vmatpush1.msra.mxu0 0.0
      %1940 = vmatprep.subr.mxu0 0.0
      %1941 = vmatpush1.msra.mxu0 0.0
      %1942 = vmatprep.subr.mxu0 0.0
      %1943 = vmatpush1.msra.mxu0 0.0
      %1944 = vmatprep.subr.mxu0 0.0
      %1945 = vmatpush1.msra.mxu0 0.0
      %1946 = vmatprep.subr.mxu0 0.0
      %1947 = vmatpush1.msra.mxu0 0.0
      %1948 = vmatprep.subr.mxu0 0.0
      %1949 = vmatpush1.msra.mxu0 0.0
      %1950 = vmatprep.subr.mxu0 0.0
      %1951 = vmatpush1.msra.mxu0 0.0
      %1952 = vmatprep.subr.mxu0 0.0
      %1953 = vmatpush1.msra.mxu0 0.0
      %1954 = vmatprep.subr.mxu0 0.0
      %1955 = vmatpush1.msra.mxu0 0.0
      %1956 = vmatprep.subr.mxu0 0.0
      %1957 = vmatpush1.msra.mxu0 0.0
      %1958 = vmatprep.subr.mxu0 0.0
      %1959 = vmatpush1.msra.mxu0 0.0
      %1960 = vmatprep.subr.mxu0 0.0
      %1961 = vmatpush1.msra.mxu0 0.0
      %1962 = vmatprep.subr.mxu0 0.0
      %1963 = vmatpush1.msra.mxu0 0.0
      %1964 = vmatprep.subr.mxu0 0.0
      %1965 = vmatpush1.msra.mxu0 0.0
      %1966 = vmatprep.mubr.f32.mxu0 0.0
      %1967 = vmatmul.mubr.f32.gmra.mrb[0].mxu0 %v1889
      %v1968 = vpop.f32.mrb[0].mxu0
      %v1969 = vadd.f32 0.0, %v1968
      %v1970 = vpop.f32.mrb[0].mxu0
      %1971 = vmatprep.mubr.f32.mxu0 0.0
      %1972 = vmatmul.mubr.f32.gmra.mrb[0].mxu0 %v1892
      %v1973 = vpop.f32.mrb[0].mxu0
      %v1974 = vadd.f32 0.0, %v1973
      %v1975 = vpop.f32.mrb[0].mxu0
      %1976 = vmatprep.mubr.f32.mxu0 0.0
      %1977 = vmatmul.mubr.f32.gmra.mrb[0].mxu0 %v1895
      %v1978 = vpop.f32.mrb[0].mxu0
      %v1979 = vadd.f32 0.0, %v1978
      %v1980 = vpop.f32.mrb[0].mxu0
      %1981 = vmatprep.mubr.f32.mxu0 0.0
      %1982 = vmatmul.mubr.f32.gmra.mrb[0].mxu0 %v1898
      %v1983 = vpop.f32.mrb[0].mxu0
      %v1984 = vadd.f32 0.0, %v1983
      %v1985 = vpop.f32.mrb[0].mxu0
      %1986 = vdwg.mxu0
      %v1987 = vadd.f32 %v1856, %v1969
      %v1988 = vadd.f32 %v1857, %v1974
      %v1989 = vadd.f32 %v1858, %v1979
      %v1990 = vadd.f32 %v1859, %v1984
      %s1991 = scalar_lea.vmem %s1, 448
      %v1992 = vld [vmem:[%s1991] sm:$0xff]
      %v1993 = vld [vmem:[%s1991 + $0x8] sm:$0xff]
      %v1994 = vld [vmem:[%s1991 + $0x10] sm:$0xff]
      %v1995 = vld [vmem:[%s1991 + $0x18] sm:$0xff]
      %1996 = vrot.lane.b32.xlu0 %v175, 100
      %v1997 = vpop.permute.xlu0 %1996
      %1998 = vrot.lane.b32.xlu0 %v176, 100
      %v1999 = vpop.permute.xlu0 %1998
      %2000 = vrot.lane.b32.xlu0 %v177, 100
      %v2001 = vpop.permute.xlu0 %2000
      %2002 = vrot.lane.b32.xlu0 %v178, 100
      %v2003 = vpop.permute.xlu0 %2002
      %2004 = vrot.lane.b32.xlu0 %v179, 100
      %v2005 = vpop.permute.xlu0 %2004
      %2006 = vrot.lane.b32.xlu0 %v180, 100
      %v2007 = vpop.permute.xlu0 %2006
      %2008 = vrot.lane.b32.xlu0 %v181, 100
      %v2009 = vpop.permute.xlu0 %2008
      %2010 = vrot.lane.b32.xlu0 %v182, 100
      %v2011 = vpop.permute.xlu0 %2010
      %v2020 = vsel %vm219, %v1992, 0
      %v2023 = vsel %vm219, %v1993, 0
      %v2026 = vsel %vm219, %v1994, 0
      %v2029 = vsel %vm219, %v1995, 0
      %v2031 = vsel %vm232, %v2011, 0
      %2033 = vmatprep.subr.mxu0 0.0
      %2034 = vmatpush1.msra.mxu0 %v1997
      %2035 = vmatprep.subr.mxu0 0.0
      %2036 = vmatpush1.msra.mxu0 %v1999
      %2037 = vmatprep.subr.mxu0 0.0
      %2038 = vmatpush1.msra.mxu0 %v2001
      %2039 = vmatprep.subr.mxu0 0.0
      %2040 = vmatpush1.msra.mxu0 %v2003
      %2041 = vmatprep.subr.mxu0 0.0
      %2042 = vmatpush1.msra.mxu0 %v2005
      %2043 = vmatprep.subr.mxu0 0.0
      %2044 = vmatpush1.msra.mxu0 %v2007
      %2045 = vmatprep.subr.mxu0 0.0
      %2046 = vmatpush1.msra.mxu0 %v2009
      %2047 = vmatprep.subr.mxu0 0.0
      %2048 = vmatpush1.msra.mxu0 %v2031
      %2049 = vmatprep.subr.mxu0 0.0
      %2050 = vmatpush1.msra.mxu0 0.0
      %2051 = vmatprep.subr.mxu0 0.0
      %2052 = vmatpush1.msra.mxu0 0.0
      %2053 = vmatprep.subr.mxu0 0.0
      %2054 = vmatpush1.msra.mxu0 0.0
      %2055 = vmatprep.subr.mxu0 0.0
      %2056 = vmatpush1.msra.mxu0 0.0
      %2057 = vmatprep.subr.mxu0 0.0
      %2058 = vmatpush1.msra.mxu0 0.0
      %2059 = vmatprep.subr.mxu0 0.0
      %2060 = vmatpush1.msra.mxu0 0.0
      %2061 = vmatprep.subr.mxu0 0.0
      %2062 = vmatpush1.msra.mxu0 0.0
      %2063 = vmatprep.subr.mxu0 0.0
      %2064 = vmatpush1.msra.mxu0 0.0
      %2065 = vmatprep.subr.mxu0 0.0
      %2066 = vmatpush1.msra.mxu0 0.0
      %2067 = vmatprep.subr.mxu0 0.0
      %2068 = vmatpush1.msra.mxu0 0.0
      %2069 = vmatprep.subr.mxu0 0.0
      %2070 = vmatpush1.msra.mxu0 0.0
      %2071 = vmatprep.subr.mxu0 0.0
      %2072 = vmatpush1.msra.mxu0 0.0
      %2073 = vmatprep.subr.mxu0 0.0
      %2074 = vmatpush1.msra.mxu0 0.0
      %2075 = vmatprep.subr.mxu0 0.0
      %2076 = vmatpush1.msra.mxu0 0.0
      %2077 = vmatprep.subr.mxu0 0.0
      %2078 = vmatpush1.msra.mxu0 0.0
      %2079 = vmatprep.subr.mxu0 0.0
      %2080 = vmatpush1.msra.mxu0 0.0
      %2081 = vmatprep.subr.mxu0 0.0
      %2082 = vmatpush1.msra.mxu0 0.0
      %2083 = vmatprep.subr.mxu0 0.0
      %2084 = vmatpush1.msra.mxu0 0.0
      %2085 = vmatprep.subr.mxu0 0.0
      %2086 = vmatpush1.msra.mxu0 0.0
      %2087 = vmatprep.subr.mxu0 0.0
      %2088 = vmatpush1.msra.mxu0 0.0
      %2089 = vmatprep.subr.mxu0 0.0
      %2090 = vmatpush1.msra.mxu0 0.0
      %2091 = vmatprep.subr.mxu0 0.0
      %2092 = vmatpush1.msra.mxu0 0.0
      %2093 = vmatprep.subr.mxu0 0.0
      %2094 = vmatpush1.msra.mxu0 0.0
      %2095 = vmatprep.subr.mxu0 0.0
      %2096 = vmatpush1.msra.mxu0 0.0
      %2097 = vmatprep.mubr.f32.mxu0 0.0
      %2098 = vmatmul.mubr.f32.gmra.mrb[0].mxu0 %v2020
      %v2099 = vpop.f32.mrb[0].mxu0
      %v2100 = vadd.f32 0.0, %v2099
      %v2101 = vpop.f32.mrb[0].mxu0
      %2102 = vmatprep.mubr.f32.mxu0 0.0
      %2103 = vmatmul.mubr.f32.gmra.mrb[0].mxu0 %v2023
      %v2104 = vpop.f32.mrb[0].mxu0
      %v2105 = vadd.f32 0.0, %v2104
      %v2106 = vpop.f32.mrb[0].mxu0
      %2107 = vmatprep.mubr.f32.mxu0 0.0
      %2108 = vmatmul.mubr.f32.gmra.mrb[0].mxu0 %v2026
      %v2109 = vpop.f32.mrb[0].mxu0
      %v2110 = vadd.f32 0.0, %v2109
      %v2111 = vpop.f32.mrb[0].mxu0
      %2112 = vmatprep.mubr.f32.mxu0 0.0
      %2113 = vmatmul.mubr.f32.gmra.mrb[0].mxu0 %v2029
      %v2114 = vpop.f32.mrb[0].mxu0
      %v2115 = vadd.f32 0.0, %v2114
      %v2116 = vpop.f32.mrb[0].mxu0
      %2117 = vdwg.mxu0
      %v2118 = vadd.f32 %v1987, %v2100
      %v2119 = vadd.f32 %v1988, %v2105
      %v2120 = vadd.f32 %v1989, %v2110
      %v2121 = vadd.f32 %v1990, %v2115
      %s2122 = scalar_lea.vmem %s1, 480
      %v2123 = vld [vmem:[%s2122] sm:$0xff]
      %v2124 = vld [vmem:[%s2122 + $0x8] sm:$0xff]
      %v2125 = vld [vmem:[%s2122 + $0x10] sm:$0xff]
      %v2126 = vld [vmem:[%s2122 + $0x18] sm:$0xff]
      %v2127 = vld [vmem:[%s165] sm:$0xff]
      %v2128 = vld [vmem:[%s165 + $0x8] sm:$0xff]
      %v2129 = vld [vmem:[%s165 + $0x18] sm:$0xff]
      %v2130 = vld [vmem:[%s165 + $0x20] sm:$0xff]
      %v2131 = vld [vmem:[%s165 + $0x30] sm:$0xff]
      %v2132 = vld [vmem:[%s165 + $0x38] sm:$0xff]
      %v2133 = vld [vmem:[%s165 + $0x48] sm:$0xff]
      %v2134 = vld [vmem:[%s165 + $0x50] sm:$0xff]
      %v2135 = vld [vmem:[%s165 + $0x60] sm:$0xff]
      %v2136 = vld [vmem:[%s165 + $0x68] sm:$0xff]
      %v2137 = vld [vmem:[%s165 + $0x78] sm:$0xff]
      %v2138 = vld [vmem:[%s165 + $0x80] sm:$0xff]
      %v2139 = vld [vmem:[%s165 + $0x90] sm:$0xff]
      %v2140 = vld [vmem:[%s165 + $0x98] sm:$0xff]
      %v2141 = vld [vmem:[%s165 + $0xa8] sm:$0xf]
      %v2142 = vld [vmem:[%s165 + $0xb0] sm:$0xf]
      %2159 = vrot.lane.b32.xlu0 %v2127, 92
      %v2160 = vpop.permute.xlu0 %2159
      %2161 = vrot.lane.b32.xlu0 %v2128, 92
      %v2162 = vpop.permute.xlu0 %2161
      %2163 = vrot.lane.b32.xlu0 %v2129, 92
      %v2164 = vpop.permute.xlu0 %2163
      %2165 = vrot.lane.b32.xlu0 %v2130, 92
      %v2166 = vpop.permute.xlu0 %2165
      %2167 = vrot.lane.b32.xlu0 %v2131, 92
      %v2168 = vpop.permute.xlu0 %2167
      %2169 = vrot.lane.b32.xlu0 %v2132, 92
      %v2170 = vpop.permute.xlu0 %2169
      %2171 = vrot.lane.b32.xlu0 %v2133, 92
      %v2172 = vpop.permute.xlu0 %2171
      %2173 = vrot.lane.b32.xlu0 %v2134, 92
      %v2174 = vpop.permute.xlu0 %2173
      %2175 = vrot.lane.b32.xlu0 %v2135, 92
      %v2176 = vpop.permute.xlu0 %2175
      %2177 = vrot.lane.b32.xlu0 %v2136, 92
      %v2178 = vpop.permute.xlu0 %2177
      %2179 = vrot.lane.b32.xlu0 %v2137, 92
      %v2180 = vpop.permute.xlu0 %2179
      %2181 = vrot.lane.b32.xlu0 %v2138, 92
      %v2182 = vpop.permute.xlu0 %2181
      %2183 = vrot.lane.b32.xlu0 %v2139, 92
      %v2184 = vpop.permute.xlu0 %2183
      %2185 = vrot.lane.b32.xlu0 %v2140, 92
      %v2186 = vpop.permute.xlu0 %2185
      %2187 = vrot.lane.b32.xlu0 %v2141, 92
      %v2188 = vpop.permute.xlu0 %2187
      %2189 = vrot.lane.b32.xlu0 %v2142, 92
      %v2190 = vpop.permute.xlu0 %2189
      %vm2191 = vcmask 752640
      %v2192 = vsel %vm2191, %v2160, %v2162
      %v2193 = vsel %vm2191, %v2164, %v2166
      %v2194 = vsel %vm2191, %v2168, %v2170
      %v2195 = vsel %vm2191, %v2172, %v2174
      %v2196 = vsel %vm2191, %v2176, %v2178
      %v2197 = vsel %vm2191, %v2180, %v2182
      %v2198 = vsel %vm2191, %v2184, %v2186
      %v2199 = vsel %vm2191, %v2188, %v2190
      %v2208 = vsel %vm219, %v2123, 0
      %v2211 = vsel %vm219, %v2124, 0
      %v2214 = vsel %vm219, %v2125, 0
      %v2217 = vsel %vm219, %v2126, 0
      %v2219 = vsel %vm232, %v2199, 0
      %2221 = vmatprep.subr.mxu0 0.0
      %2222 = vmatpush1.msra.mxu0 %v2192
      %2223 = vmatprep.subr.mxu0 0.0
      %2224 = vmatpush1.msra.mxu0 %v2193
      %2225 = vmatprep.subr.mxu0 0.0
      %2226 = vmatpush1.msra.mxu0 %v2194
      %2227 = vmatprep.subr.mxu0 0.0
      %2228 = vmatpush1.msra.mxu0 %v2195
      %2229 = vmatprep.subr.mxu0 0.0
      %2230 = vmatpush1.msra.mxu0 %v2196
      %2231 = vmatprep.subr.mxu0 0.0
      %2232 = vmatpush1.msra.mxu0 %v2197
      %2233 = vmatprep.subr.mxu0 0.0
      %2234 = vmatpush1.msra.mxu0 %v2198
      %2235 = vmatprep.subr.mxu0 0.0
      %2236 = vmatpush1.msra.mxu0 %v2219
      %2237 = vmatprep.subr.mxu0 0.0
      %2238 = vmatpush1.msra.mxu0 0.0
      %2239 = vmatprep.subr.mxu0 0.0
      %2240 = vmatpush1.msra.mxu0 0.0
      %2241 = vmatprep.subr.mxu0 0.0
      %2242 = vmatpush1.msra.mxu0 0.0
      %2243 = vmatprep.subr.mxu0 0.0
      %2244 = vmatpush1.msra.mxu0 0.0
      %2245 = vmatprep.subr.mxu0 0.0
      %2246 = vmatpush1.msra.mxu0 0.0
      %2247 = vmatprep.subr.mxu0 0.0
      %2248 = vmatpush1.msra.mxu0 0.0
      %2249 = vmatprep.subr.mxu0 0.0
      %2250 = vmatpush1.msra.mxu0 0.0
      %2251 = vmatprep.subr.mxu0 0.0
      %2252 = vmatpush1.msra.mxu0 0.0
      %2253 = vmatprep.subr.mxu0 0.0
      %2254 = vmatpush1.msra.mxu0 0.0
      %2255 = vmatprep.subr.mxu0 0.0
      %2256 = vmatpush1.msra.mxu0 0.0
      %2257 = vmatprep.subr.mxu0 0.0
      %2258 = vmatpush1.msra.mxu0 0.0
      %2259 = vmatprep.subr.mxu0 0.0
      %2260 = vmatpush1.msra.mxu0 0.0
      %2261 = vmatprep.subr.mxu0 0.0
      %2262 = vmatpush1.msra.mxu0 0.0
      %2263 = vmatprep.subr.mxu0 0.0
      %2264 = vmatpush1.msra.mxu0 0.0
      %2265 = vmatprep.subr.mxu0 0.0
      %2266 = vmatpush1.msra.mxu0 0.0
      %2267 = vmatprep.subr.mxu0 0.0
      %2268 = vmatpush1.msra.mxu0 0.0
      %2269 = vmatprep.subr.mxu0 0.0
      %2270 = vmatpush1.msra.mxu0 0.0
      %2271 = vmatprep.subr.mxu0 0.0
      %2272 = vmatpush1.msra.mxu0 0.0
      %2273 = vmatprep.subr.mxu0 0.0
      %2274 = vmatpush1.msra.mxu0 0.0
      %2275 = vmatprep.subr.mxu0 0.0
      %2276 = vmatpush1.msra.mxu0 0.0
      %2277 = vmatprep.subr.mxu0 0.0
      %2278 = vmatpush1.msra.mxu0 0.0
      %2279 = vmatprep.subr.mxu0 0.0
      %2280 = vmatpush1.msra.mxu0 0.0
      %2281 = vmatprep.subr.mxu0 0.0
      %2282 = vmatpush1.msra.mxu0 0.0
      %2283 = vmatprep.subr.mxu0 0.0
      %2284 = vmatpush1.msra.mxu0 0.0
      %2285 = vmatprep.mubr.f32.mxu0 0.0
      %2286 = vmatmul.mubr.f32.gmra.mrb[0].mxu0 %v2208
      %v2287 = vpop.f32.mrb[0].mxu0
      %v2288 = vadd.f32 0.0, %v2287
      %v2289 = vpop.f32.mrb[0].mxu0
      %2290 = vmatprep.mubr.f32.mxu0 0.0
      %2291 = vmatmul.mubr.f32.gmra.mrb[0].mxu0 %v2211
      %v2292 = vpop.f32.mrb[0].mxu0
      %v2293 = vadd.f32 0.0, %v2292
      %v2294 = vpop.f32.mrb[0].mxu0
      %2295 = vmatprep.mubr.f32.mxu0 0.0
      %2296 = vmatmul.mubr.f32.gmra.mrb[0].mxu0 %v2214
      %v2297 = vpop.f32.mrb[0].mxu0
      %v2298 = vadd.f32 0.0, %v2297
      %v2299 = vpop.f32.mrb[0].mxu0
      %2300 = vmatprep.mubr.f32.mxu0 0.0
      %2301 = vmatmul.mubr.f32.gmra.mrb[0].mxu0 %v2217
      %v2302 = vpop.f32.mrb[0].mxu0
      %v2303 = vadd.f32 0.0, %v2302
      %v2304 = vpop.f32.mrb[0].mxu0
      %2305 = vdwg.mxu0
      %v2306 = vadd.f32 %v2118, %v2288
      %v2307 = vadd.f32 %v2119, %v2293
      %v2308 = vadd.f32 %v2120, %v2298
      %v2309 = vadd.f32 %v2121, %v2303
      %s2310 = scalar_lea.vmem %s1, 512
      %v2311 = vld [vmem:[%s2310] sm:$0xff]
      %v2312 = vld [vmem:[%s2310 + $0x8] sm:$0xff]
      %v2313 = vld [vmem:[%s2310 + $0x10] sm:$0xff]
      %v2314 = vld [vmem:[%s2310 + $0x18] sm:$0xff]
      %2315 = vrot.lane.b32.xlu0 %v2127, 91
      %v2316 = vpop.permute.xlu0 %2315
      %2317 = vrot.lane.b32.xlu0 %v2128, 91
      %v2318 = vpop.permute.xlu0 %2317
      %2319 = vrot.lane.b32.xlu0 %v2129, 91
      %v2320 = vpop.permute.xlu0 %2319
      %2321 = vrot.lane.b32.xlu0 %v2130, 91
      %v2322 = vpop.permute.xlu0 %2321
      %2323 = vrot.lane.b32.xlu0 %v2131, 91
      %v2324 = vpop.permute.xlu0 %2323
      %2325 = vrot.lane.b32.xlu0 %v2132, 91
      %v2326 = vpop.permute.xlu0 %2325
      %2327 = vrot.lane.b32.xlu0 %v2133, 91
      %v2328 = vpop.permute.xlu0 %2327
      %2329 = vrot.lane.b32.xlu0 %v2134, 91
      %v2330 = vpop.permute.xlu0 %2329
      %2331 = vrot.lane.b32.xlu0 %v2135, 91
      %v2332 = vpop.permute.xlu0 %2331
      %2333 = vrot.lane.b32.xlu0 %v2136, 91
      %v2334 = vpop.permute.xlu0 %2333
      %2335 = vrot.lane.b32.xlu0 %v2137, 91
      %v2336 = vpop.permute.xlu0 %2335
      %2337 = vrot.lane.b32.xlu0 %v2138, 91
      %v2338 = vpop.permute.xlu0 %2337
      %2339 = vrot.lane.b32.xlu0 %v2139, 91
      %v2340 = vpop.permute.xlu0 %2339
      %2341 = vrot.lane.b32.xlu0 %v2140, 91
      %v2342 = vpop.permute.xlu0 %2341
      %2343 = vrot.lane.b32.xlu0 %v2141, 91
      %v2344 = vpop.permute.xlu0 %2343
      %2345 = vrot.lane.b32.xlu0 %v2142, 91
      %v2346 = vpop.permute.xlu0 %2345
      %vm2347 = vcmask 744448
      %v2348 = vsel %vm2347, %v2316, %v2318
      %v2349 = vsel %vm2347, %v2320, %v2322
      %v2350 = vsel %vm2347, %v2324, %v2326
      %v2351 = vsel %vm2347, %v2328, %v2330
      %v2352 = vsel %vm2347, %v2332, %v2334
      %v2353 = vsel %vm2347, %v2336, %v2338
      %v2354 = vsel %vm2347, %v2340, %v2342
      %v2355 = vsel %vm2347, %v2344, %v2346
      %v2364 = vsel %vm219, %v2311, 0
      %v2367 = vsel %vm219, %v2312, 0
      %v2370 = vsel %vm219, %v2313, 0
      %v2373 = vsel %vm219, %v2314, 0
      %v2375 = vsel %vm232, %v2355, 0
      %2377 = vmatprep.subr.mxu0 0.0
      %2378 = vmatpush1.msra.mxu0 %v2348
      %2379 = vmatprep.subr.mxu0 0.0
      %2380 = vmatpush1.msra.mxu0 %v2349
      %2381 = vmatprep.subr.mxu0 0.0
      %2382 = vmatpush1.msra.mxu0 %v2350
      %2383 = vmatprep.subr.mxu0 0.0
      %2384 = vmatpush1.msra.mxu0 %v2351
      %2385 = vmatprep.subr.mxu0 0.0
      %2386 = vmatpush1.msra.mxu0 %v2352
      %2387 = vmatprep.subr.mxu0 0.0
      %2388 = vmatpush1.msra.mxu0 %v2353
      %2389 = vmatprep.subr.mxu0 0.0
      %2390 = vmatpush1.msra.mxu0 %v2354
      %2391 = vmatprep.subr.mxu0 0.0
      %2392 = vmatpush1.msra.mxu0 %v2375
      %2393 = vmatprep.subr.mxu0 0.0
      %2394 = vmatpush1.msra.mxu0 0.0
      %2395 = vmatprep.subr.mxu0 0.0
      %2396 = vmatpush1.msra.mxu0 0.0
      %2397 = vmatprep.subr.mxu0 0.0
      %2398 = vmatpush1.msra.mxu0 0.0
      %2399 = vmatprep.subr.mxu0 0.0
      %2400 = vmatpush1.msra.mxu0 0.0
      %2401 = vmatprep.subr.mxu0 0.0
      %2402 = vmatpush1.msra.mxu0 0.0
      %2403 = vmatprep.subr.mxu0 0.0
      %2404 = vmatpush1.msra.mxu0 0.0
      %2405 = vmatprep.subr.mxu0 0.0
      %2406 = vmatpush1.msra.mxu0 0.0
      %2407 = vmatprep.subr.mxu0 0.0
      %2408 = vmatpush1.msra.mxu0 0.0
      %2409 = vmatprep.subr.mxu0 0.0
      %2410 = vmatpush1.msra.mxu0 0.0
      %2411 = vmatprep.subr.mxu0 0.0
      %2412 = vmatpush1.msra.mxu0 0.0
      %2413 = vmatprep.subr.mxu0 0.0
      %2414 = vmatpush1.msra.mxu0 0.0
      %2415 = vmatprep.subr.mxu0 0.0
      %2416 = vmatpush1.msra.mxu0 0.0
      %2417 = vmatprep.subr.mxu0 0.0
      %2418 = vmatpush1.msra.mxu0 0.0
      %2419 = vmatprep.subr.mxu0 0.0
      %2420 = vmatpush1.msra.mxu0 0.0
      %2421 = vmatprep.subr.mxu0 0.0
      %2422 = vmatpush1.msra.mxu0 0.0
      %2423 = vmatprep.subr.mxu0 0.0
      %2424 = vmatpush1.msra.mxu0 0.0
      %2425 = vmatprep.subr.mxu0 0.0
      %2426 = vmatpush1.msra.mxu0 0.0
      %2427 = vmatprep.subr.mxu0 0.0
      %2428 = vmatpush1.msra.mxu0 0.0
      %2429 = vmatprep.subr.mxu0 0.0
      %2430 = vmatpush1.msra.mxu0 0.0
      %2431 = vmatprep.subr.mxu0 0.0
      %2432 = vmatpush1.msra.mxu0 0.0
      %2433 = vmatprep.subr.mxu0 0.0
      %2434 = vmatpush1.msra.mxu0 0.0
      %2435 = vmatprep.subr.mxu0 0.0
      %2436 = vmatpush1.msra.mxu0 0.0
      %2437 = vmatprep.subr.mxu0 0.0
      %2438 = vmatpush1.msra.mxu0 0.0
      %2439 = vmatprep.subr.mxu0 0.0
      %2440 = vmatpush1.msra.mxu0 0.0
      %2441 = vmatprep.mubr.f32.mxu0 0.0
      %2442 = vmatmul.mubr.f32.gmra.mrb[0].mxu0 %v2364
      %v2443 = vpop.f32.mrb[0].mxu0
      %v2444 = vadd.f32 0.0, %v2443
      %v2445 = vpop.f32.mrb[0].mxu0
      %2446 = vmatprep.mubr.f32.mxu0 0.0
      %2447 = vmatmul.mubr.f32.gmra.mrb[0].mxu0 %v2367
      %v2448 = vpop.f32.mrb[0].mxu0
      %v2449 = vadd.f32 0.0, %v2448
      %v2450 = vpop.f32.mrb[0].mxu0
      %2451 = vmatprep.mubr.f32.mxu0 0.0
      %2452 = vmatmul.mubr.f32.gmra.mrb[0].mxu0 %v2370
      %v2453 = vpop.f32.mrb[0].mxu0
      %v2454 = vadd.f32 0.0, %v2453
      %v2455 = vpop.f32.mrb[0].mxu0
      %2456 = vmatprep.mubr.f32.mxu0 0.0
      %2457 = vmatmul.mubr.f32.gmra.mrb[0].mxu0 %v2373
      %v2458 = vpop.f32.mrb[0].mxu0
      %v2459 = vadd.f32 0.0, %v2458
      %v2460 = vpop.f32.mrb[0].mxu0
      %2461 = vdwg.mxu0
      %v2462 = vadd.f32 %v2306, %v2444
      %v2463 = vadd.f32 %v2307, %v2449
      %v2464 = vadd.f32 %v2308, %v2454
      %v2465 = vadd.f32 %v2309, %v2459
      %s2466 = scalar_lea.vmem %s1, 544
      %v2467 = vld [vmem:[%s2466] sm:$0xff]
      %v2468 = vld [vmem:[%s2466 + $0x8] sm:$0xff]
      %v2469 = vld [vmem:[%s2466 + $0x10] sm:$0xff]
      %v2470 = vld [vmem:[%s2466 + $0x18] sm:$0xff]
      %2471 = vrot.lane.b32.xlu0 %v2127, 90
      %v2472 = vpop.permute.xlu0 %2471
      %2473 = vrot.lane.b32.xlu0 %v2128, 90
      %v2474 = vpop.permute.xlu0 %2473
      %2475 = vrot.lane.b32.xlu0 %v2129, 90
      %v2476 = vpop.permute.xlu0 %2475
      %2477 = vrot.lane.b32.xlu0 %v2130, 90
      %v2478 = vpop.permute.xlu0 %2477
      %2479 = vrot.lane.b32.xlu0 %v2131, 90
      %v2480 = vpop.permute.xlu0 %2479
      %2481 = vrot.lane.b32.xlu0 %v2132, 90
      %v2482 = vpop.permute.xlu0 %2481
      %2483 = vrot.lane.b32.xlu0 %v2133, 90
      %v2484 = vpop.permute.xlu0 %2483
      %2485 = vrot.lane.b32.xlu0 %v2134, 90
      %v2486 = vpop.permute.xlu0 %2485
      %2487 = vrot.lane.b32.xlu0 %v2135, 90
      %v2488 = vpop.permute.xlu0 %2487
      %2489 = vrot.lane.b32.xlu0 %v2136, 90
      %v2490 = vpop.permute.xlu0 %2489
      %2491 = vrot.lane.b32.xlu0 %v2137, 90
      %v2492 = vpop.permute.xlu0 %2491
      %2493 = vrot.lane.b32.xlu0 %v2138, 90
      %v2494 = vpop.permute.xlu0 %2493
      %2495 = vrot.lane.b32.xlu0 %v2139, 90
      %v2496 = vpop.permute.xlu0 %2495
      %2497 = vrot.lane.b32.xlu0 %v2140, 90
      %v2498 = vpop.permute.xlu0 %2497
      %2499 = vrot.lane.b32.xlu0 %v2141, 90
      %v2500 = vpop.permute.xlu0 %2499
      %2501 = vrot.lane.b32.xlu0 %v2142, 90
      %v2502 = vpop.permute.xlu0 %2501
      %vm2503 = vcmask 736256
      %v2504 = vsel %vm2503, %v2472, %v2474
      %v2505 = vsel %vm2503, %v2476, %v2478
      %v2506 = vsel %vm2503, %v2480, %v2482
      %v2507 = vsel %vm2503, %v2484, %v2486
      %v2508 = vsel %vm2503, %v2488, %v2490
      %v2509 = vsel %vm2503, %v2492, %v2494
      %v2510 = vsel %vm2503, %v2496, %v2498
      %v2511 = vsel %vm2503, %v2500, %v2502
      %v2520 = vsel %vm219, %v2467, 0
      %v2523 = vsel %vm219, %v2468, 0
      %v2526 = vsel %vm219, %v2469, 0
      %v2529 = vsel %vm219, %v2470, 0
      %v2531 = vsel %vm232, %v2511, 0
      %2533 = vmatprep.subr.mxu0 0.0
      %2534 = vmatpush1.msra.mxu0 %v2504
      %2535 = vmatprep.subr.mxu0 0.0
      %2536 = vmatpush1.msra.mxu0 %v2505
      %2537 = vmatprep.subr.mxu0 0.0
      %2538 = vmatpush1.msra.mxu0 %v2506
      %2539 = vmatprep.subr.mxu0 0.0
      %2540 = vmatpush1.msra.mxu0 %v2507
      %2541 = vmatprep.subr.mxu0 0.0
      %2542 = vmatpush1.msra.mxu0 %v2508
      %2543 = vmatprep.subr.mxu0 0.0
      %2544 = vmatpush1.msra.mxu0 %v2509
      %2545 = vmatprep.subr.mxu0 0.0
      %2546 = vmatpush1.msra.mxu0 %v2510
      %2547 = vmatprep.subr.mxu0 0.0
      %2548 = vmatpush1.msra.mxu0 %v2531
      %2549 = vmatprep.subr.mxu0 0.0
      %2550 = vmatpush1.msra.mxu0 0.0
      %2551 = vmatprep.subr.mxu0 0.0
      %2552 = vmatpush1.msra.mxu0 0.0
      %2553 = vmatprep.subr.mxu0 0.0
      %2554 = vmatpush1.msra.mxu0 0.0
      %2555 = vmatprep.subr.mxu0 0.0
      %2556 = vmatpush1.msra.mxu0 0.0
      %2557 = vmatprep.subr.mxu0 0.0
      %2558 = vmatpush1.msra.mxu0 0.0
      %2559 = vmatprep.subr.mxu0 0.0
      %2560 = vmatpush1.msra.mxu0 0.0
      %2561 = vmatprep.subr.mxu0 0.0
      %2562 = vmatpush1.msra.mxu0 0.0
      %2563 = vmatprep.subr.mxu0 0.0
      %2564 = vmatpush1.msra.mxu0 0.0
      %2565 = vmatprep.subr.mxu0 0.0
      %2566 = vmatpush1.msra.mxu0 0.0
      %2567 = vmatprep.subr.mxu0 0.0
      %2568 = vmatpush1.msra.mxu0 0.0
      %2569 = vmatprep.subr.mxu0 0.0
      %2570 = vmatpush1.msra.mxu0 0.0
      %2571 = vmatprep.subr.mxu0 0.0
      %2572 = vmatpush1.msra.mxu0 0.0
      %2573 = vmatprep.subr.mxu0 0.0
      %2574 = vmatpush1.msra.mxu0 0.0
      %2575 = vmatprep.subr.mxu0 0.0
      %2576 = vmatpush1.msra.mxu0 0.0
      %2577 = vmatprep.subr.mxu0 0.0
      %2578 = vmatpush1.msra.mxu0 0.0
      %2579 = vmatprep.subr.mxu0 0.0
      %2580 = vmatpush1.msra.mxu0 0.0
      %2581 = vmatprep.subr.mxu0 0.0
      %2582 = vmatpush1.msra.mxu0 0.0
      %2583 = vmatprep.subr.mxu0 0.0
      %2584 = vmatpush1.msra.mxu0 0.0
      %2585 = vmatprep.subr.mxu0 0.0
      %2586 = vmatpush1.msra.mxu0 0.0
      %2587 = vmatprep.subr.mxu0 0.0
      %2588 = vmatpush1.msra.mxu0 0.0
      %2589 = vmatprep.subr.mxu0 0.0
      %2590 = vmatpush1.msra.mxu0 0.0
      %2591 = vmatprep.subr.mxu0 0.0
      %2592 = vmatpush1.msra.mxu0 0.0
      %2593 = vmatprep.subr.mxu0 0.0
      %2594 = vmatpush1.msra.mxu0 0.0
      %2595 = vmatprep.subr.mxu0 0.0
      %2596 = vmatpush1.msra.mxu0 0.0
      %2597 = vmatprep.mubr.f32.mxu0 0.0
      %2598 = vmatmul.mubr.f32.gmra.mrb[0].mxu0 %v2520
      %v2599 = vpop.f32.mrb[0].mxu0
      %v2600 = vadd.f32 0.0, %v2599
      %v2601 = vpop.f32.mrb[0].mxu0
      %2602 = vmatprep.mubr.f32.mxu0 0.0
      %2603 = vmatmul.mubr.f32.gmra.mrb[0].mxu0 %v2523
      %v2604 = vpop.f32.mrb[0].mxu0
      %v2605 = vadd.f32 0.0, %v2604
      %v2606 = vpop.f32.mrb[0].mxu0
      %2607 = vmatprep.mubr.f32.mxu0 0.0
      %2608 = vmatmul.mubr.f32.gmra.mrb[0].mxu0 %v2526
      %v2609 = vpop.f32.mrb[0].mxu0
      %v2610 = vadd.f32 0.0, %v2609
      %v2611 = vpop.f32.mrb[0].mxu0
      %2612 = vmatprep.mubr.f32.mxu0 0.0
      %2613 = vmatmul.mubr.f32.gmra.mrb[0].mxu0 %v2529
      %v2614 = vpop.f32.mrb[0].mxu0
      %v2615 = vadd.f32 0.0, %v2614
      %v2616 = vpop.f32.mrb[0].mxu0
      %2617 = vdwg.mxu0
      %v2618 = vadd.f32 %v2462, %v2600
      %v2619 = vadd.f32 %v2463, %v2605
      %v2620 = vadd.f32 %v2464, %v2610
      %v2621 = vadd.f32 %v2465, %v2615
      %s2622 = scalar_lea.vmem %s1, 576
      %v2623 = vld [vmem:[%s2622] sm:$0xff]
      %v2624 = vld [vmem:[%s2622 + $0x8] sm:$0xff]
      %v2625 = vld [vmem:[%s2622 + $0x10] sm:$0xff]
      %v2626 = vld [vmem:[%s2622 + $0x18] sm:$0xff]
      %2627 = vrot.lane.b32.xlu0 %v2127, 89
      %v2628 = vpop.permute.xlu0 %2627
      %2629 = vrot.lane.b32.xlu0 %v2128, 89
      %v2630 = vpop.permute.xlu0 %2629
      %2631 = vrot.lane.b32.xlu0 %v2129, 89
      %v2632 = vpop.permute.xlu0 %2631
      %2633 = vrot.lane.b32.xlu0 %v2130, 89
      %v2634 = vpop.permute.xlu0 %2633
      %2635 = vrot.lane.b32.xlu0 %v2131, 89
      %v2636 = vpop.permute.xlu0 %2635
      %2637 = vrot.lane.b32.xlu0 %v2132, 89
      %v2638 = vpop.permute.xlu0 %2637
      %2639 = vrot.lane.b32.xlu0 %v2133, 89
      %v2640 = vpop.permute.xlu0 %2639
      %2641 = vrot.lane.b32.xlu0 %v2134, 89
      %v2642 = vpop.permute.xlu0 %2641
      %2643 = vrot.lane.b32.xlu0 %v2135, 89
      %v2644 = vpop.permute.xlu0 %2643
      %2645 = vrot.lane.b32.xlu0 %v2136, 89
      %v2646 = vpop.permute.xlu0 %2645
      %2647 = vrot.lane.b32.xlu0 %v2137, 89
      %v2648 = vpop.permute.xlu0 %2647
      %2649 = vrot.lane.b32.xlu0 %v2138, 89
      %v2650 = vpop.permute.xlu0 %2649
      %2651 = vrot.lane.b32.xlu0 %v2139, 89
      %v2652 = vpop.permute.xlu0 %2651
      %2653 = vrot.lane.b32.xlu0 %v2140, 89
      %v2654 = vpop.permute.xlu0 %2653
      %2655 = vrot.lane.b32.xlu0 %v2141, 89
      %v2656 = vpop.permute.xlu0 %2655
      %2657 = vrot.lane.b32.xlu0 %v2142, 89
      %v2658 = vpop.permute.xlu0 %2657
      %vm2659 = vcmask 728064
      %v2660 = vsel %vm2659, %v2628, %v2630
      %v2661 = vsel %vm2659, %v2632, %v2634
      %v2662 = vsel %vm2659, %v2636, %v2638
      %v2663 = vsel %vm2659, %v2640, %v2642
      %v2664 = vsel %vm2659, %v2644, %v2646
      %v2665 = vsel %vm2659, %v2648, %v2650
      %v2666 = vsel %vm2659, %v2652, %v2654
      %v2667 = vsel %vm2659, %v2656, %v2658
      %v2676 = vsel %vm219, %v2623, 0
      %v2679 = vsel %vm219, %v2624, 0
      %v2682 = vsel %vm219, %v2625, 0
      %v2685 = vsel %vm219, %v2626, 0
      %v2687 = vsel %vm232, %v2667, 0
      %2689 = vmatprep.subr.mxu0 0.0
      %2690 = vmatpush1.msra.mxu0 %v2660
      %2691 = vmatprep.subr.mxu0 0.0
      %2692 = vmatpush1.msra.mxu0 %v2661
      %2693 = vmatprep.subr.mxu0 0.0
      %2694 = vmatpush1.msra.mxu0 %v2662
      %2695 = vmatprep.subr.mxu0 0.0
      %2696 = vmatpush1.msra.mxu0 %v2663
      %2697 = vmatprep.subr.mxu0 0.0
      %2698 = vmatpush1.msra.mxu0 %v2664
      %2699 = vmatprep.subr.mxu0 0.0
      %2700 = vmatpush1.msra.mxu0 %v2665
      %2701 = vmatprep.subr.mxu0 0.0
      %2702 = vmatpush1.msra.mxu0 %v2666
      %2703 = vmatprep.subr.mxu0 0.0
      %2704 = vmatpush1.msra.mxu0 %v2687
      %2705 = vmatprep.subr.mxu0 0.0
      %2706 = vmatpush1.msra.mxu0 0.0
      %2707 = vmatprep.subr.mxu0 0.0
      %2708 = vmatpush1.msra.mxu0 0.0
      %2709 = vmatprep.subr.mxu0 0.0
      %2710 = vmatpush1.msra.mxu0 0.0
      %2711 = vmatprep.subr.mxu0 0.0
      %2712 = vmatpush1.msra.mxu0 0.0
      %2713 = vmatprep.subr.mxu0 0.0
      %2714 = vmatpush1.msra.mxu0 0.0
      %2715 = vmatprep.subr.mxu0 0.0
      %2716 = vmatpush1.msra.mxu0 0.0
      %2717 = vmatprep.subr.mxu0 0.0
      %2718 = vmatpush1.msra.mxu0 0.0
      %2719 = vmatprep.subr.mxu0 0.0
      %2720 = vmatpush1.msra.mxu0 0.0
      %2721 = vmatprep.subr.mxu0 0.0
      %2722 = vmatpush1.msra.mxu0 0.0
      %2723 = vmatprep.subr.mxu0 0.0
      %2724 = vmatpush1.msra.mxu0 0.0
      %2725 = vmatprep.subr.mxu0 0.0
      %2726 = vmatpush1.msra.mxu0 0.0
      %2727 = vmatprep.subr.mxu0 0.0
      %2728 = vmatpush1.msra.mxu0 0.0
      %2729 = vmatprep.subr.mxu0 0.0
      %2730 = vmatpush1.msra.mxu0 0.0
      %2731 = vmatprep.subr.mxu0 0.0
      %2732 = vmatpush1.msra.mxu0 0.0
      %2733 = vmatprep.subr.mxu0 0.0
      %2734 = vmatpush1.msra.mxu0 0.0
      %2735 = vmatprep.subr.mxu0 0.0
      %2736 = vmatpush1.msra.mxu0 0.0
      %2737 = vmatprep.subr.mxu0 0.0
      %2738 = vmatpush1.msra.mxu0 0.0
      %2739 = vmatprep.subr.mxu0 0.0
      %2740 = vmatpush1.msra.mxu0 0.0
      %2741 = vmatprep.subr.mxu0 0.0
      %2742 = vmatpush1.msra.mxu0 0.0
      %2743 = vmatprep.subr.mxu0 0.0
      %2744 = vmatpush1.msra.mxu0 0.0
      %2745 = vmatprep.subr.mxu0 0.0
      %2746 = vmatpush1.msra.mxu0 0.0
      %2747 = vmatprep.subr.mxu0 0.0
      %2748 = vmatpush1.msra.mxu0 0.0
      %2749 = vmatprep.subr.mxu0 0.0
      %2750 = vmatpush1.msra.mxu0 0.0
      %2751 = vmatprep.subr.mxu0 0.0
      %2752 = vmatpush1.msra.mxu0 0.0
      %2753 = vmatprep.mubr.f32.mxu0 0.0
      %2754 = vmatmul.mubr.f32.gmra.mrb[0].mxu0 %v2676
      %v2755 = vpop.f32.mrb[0].mxu0
      %v2756 = vadd.f32 0.0, %v2755
      %v2757 = vpop.f32.mrb[0].mxu0
      %2758 = vmatprep.mubr.f32.mxu0 0.0
      %2759 = vmatmul.mubr.f32.gmra.mrb[0].mxu0 %v2679
      %v2760 = vpop.f32.mrb[0].mxu0
      %v2761 = vadd.f32 0.0, %v2760
      %v2762 = vpop.f32.mrb[0].mxu0
      %2763 = vmatprep.mubr.f32.mxu0 0.0
      %2764 = vmatmul.mubr.f32.gmra.mrb[0].mxu0 %v2682
      %v2765 = vpop.f32.mrb[0].mxu0
      %v2766 = vadd.f32 0.0, %v2765
      %v2767 = vpop.f32.mrb[0].mxu0
      %2768 = vmatprep.mubr.f32.mxu0 0.0
      %2769 = vmatmul.mubr.f32.gmra.mrb[0].mxu0 %v2685
      %v2770 = vpop.f32.mrb[0].mxu0
      %v2771 = vadd.f32 0.0, %v2770
      %v2772 = vpop.f32.mrb[0].mxu0
      %2773 = vdwg.mxu0
      %v2774 = vadd.f32 %v2618, %v2756
      %v2775 = vadd.f32 %v2619, %v2761
      %v2776 = vadd.f32 %v2620, %v2766
      %v2777 = vadd.f32 %v2621, %v2771
      %s2778 = scalar_lea.vmem %s1, 608
      %v2779 = vld [vmem:[%s2778] sm:$0xff]
      %v2780 = vld [vmem:[%s2778 + $0x8] sm:$0xff]
      %v2781 = vld [vmem:[%s2778 + $0x10] sm:$0xff]
      %v2782 = vld [vmem:[%s2778 + $0x18] sm:$0xff]
      %2783 = vrot.lane.b32.xlu0 %v2127, 88
      %v2784 = vpop.permute.xlu0 %2783
      %2785 = vrot.lane.b32.xlu0 %v2128, 88
      %v2786 = vpop.permute.xlu0 %2785
      %2787 = vrot.lane.b32.xlu0 %v2129, 88
      %v2788 = vpop.permute.xlu0 %2787
      %2789 = vrot.lane.b32.xlu0 %v2130, 88
      %v2790 = vpop.permute.xlu0 %2789
      %2791 = vrot.lane.b32.xlu0 %v2131, 88
      %v2792 = vpop.permute.xlu0 %2791
      %2793 = vrot.lane.b32.xlu0 %v2132, 88
      %v2794 = vpop.permute.xlu0 %2793
      %2795 = vrot.lane.b32.xlu0 %v2133, 88
      %v2796 = vpop.permute.xlu0 %2795
      %2797 = vrot.lane.b32.xlu0 %v2134, 88
      %v2798 = vpop.permute.xlu0 %2797
      %2799 = vrot.lane.b32.xlu0 %v2135, 88
      %v2800 = vpop.permute.xlu0 %2799
      %2801 = vrot.lane.b32.xlu0 %v2136, 88
      %v2802 = vpop.permute.xlu0 %2801
      %2803 = vrot.lane.b32.xlu0 %v2137, 88
      %v2804 = vpop.permute.xlu0 %2803
      %2805 = vrot.lane.b32.xlu0 %v2138, 88
      %v2806 = vpop.permute.xlu0 %2805
      %2807 = vrot.lane.b32.xlu0 %v2139, 88
      %v2808 = vpop.permute.xlu0 %2807
      %2809 = vrot.lane.b32.xlu0 %v2140, 88
      %v2810 = vpop.permute.xlu0 %2809
      %2811 = vrot.lane.b32.xlu0 %v2141, 88
      %v2812 = vpop.permute.xlu0 %2811
      %2813 = vrot.lane.b32.xlu0 %v2142, 88
      %v2814 = vpop.permute.xlu0 %2813
      %vm2815 = vcmask 719872
      %v2816 = vsel %vm2815, %v2784, %v2786
      %v2817 = vsel %vm2815, %v2788, %v2790
      %v2818 = vsel %vm2815, %v2792, %v2794
      %v2819 = vsel %vm2815, %v2796, %v2798
      %v2820 = vsel %vm2815, %v2800, %v2802
      %v2821 = vsel %vm2815, %v2804, %v2806
      %v2822 = vsel %vm2815, %v2808, %v2810
      %v2823 = vsel %vm2815, %v2812, %v2814
      %v2832 = vsel %vm219, %v2779, 0
      %v2835 = vsel %vm219, %v2780, 0
      %v2838 = vsel %vm219, %v2781, 0
      %v2841 = vsel %vm219, %v2782, 0
      %v2843 = vsel %vm232, %v2823, 0
      %2845 = vmatprep.subr.mxu0 0.0
      %2846 = vmatpush1.msra.mxu0 %v2816
      %2847 = vmatprep.subr.mxu0 0.0
      %2848 = vmatpush1.msra.mxu0 %v2817
      %2849 = vmatprep.subr.mxu0 0.0
      %2850 = vmatpush1.msra.mxu0 %v2818
      %2851 = vmatprep.subr.mxu0 0.0
      %2852 = vmatpush1.msra.mxu0 %v2819
      %2853 = vmatprep.subr.mxu0 0.0
      %2854 = vmatpush1.msra.mxu0 %v2820
      %2855 = vmatprep.subr.mxu0 0.0
      %2856 = vmatpush1.msra.mxu0 %v2821
      %2857 = vmatprep.subr.mxu0 0.0
      %2858 = vmatpush1.msra.mxu0 %v2822
      %2859 = vmatprep.subr.mxu0 0.0
      %2860 = vmatpush1.msra.mxu0 %v2843
      %2861 = vmatprep.subr.mxu0 0.0
      %2862 = vmatpush1.msra.mxu0 0.0
      %2863 = vmatprep.subr.mxu0 0.0
      %2864 = vmatpush1.msra.mxu0 0.0
      %2865 = vmatprep.subr.mxu0 0.0
      %2866 = vmatpush1.msra.mxu0 0.0
      %2867 = vmatprep.subr.mxu0 0.0
      %2868 = vmatpush1.msra.mxu0 0.0
      %2869 = vmatprep.subr.mxu0 0.0
      %2870 = vmatpush1.msra.mxu0 0.0
      %2871 = vmatprep.subr.mxu0 0.0
      %2872 = vmatpush1.msra.mxu0 0.0
      %2873 = vmatprep.subr.mxu0 0.0
      %2874 = vmatpush1.msra.mxu0 0.0
      %2875 = vmatprep.subr.mxu0 0.0
      %2876 = vmatpush1.msra.mxu0 0.0
      %2877 = vmatprep.subr.mxu0 0.0
      %2878 = vmatpush1.msra.mxu0 0.0
      %2879 = vmatprep.subr.mxu0 0.0
      %2880 = vmatpush1.msra.mxu0 0.0
      %2881 = vmatprep.subr.mxu0 0.0
      %2882 = vmatpush1.msra.mxu0 0.0
      %2883 = vmatprep.subr.mxu0 0.0
      %2884 = vmatpush1.msra.mxu0 0.0
      %2885 = vmatprep.subr.mxu0 0.0
      %2886 = vmatpush1.msra.mxu0 0.0
      %2887 = vmatprep.subr.mxu0 0.0
      %2888 = vmatpush1.msra.mxu0 0.0
      %2889 = vmatprep.subr.mxu0 0.0
      %2890 = vmatpush1.msra.mxu0 0.0
      %2891 = vmatprep.subr.mxu0 0.0
      %2892 = vmatpush1.msra.mxu0 0.0
      %2893 = vmatprep.subr.mxu0 0.0
      %2894 = vmatpush1.msra.mxu0 0.0
      %2895 = vmatprep.subr.mxu0 0.0
      %2896 = vmatpush1.msra.mxu0 0.0
      %2897 = vmatprep.subr.mxu0 0.0
      %2898 = vmatpush1.msra.mxu0 0.0
      %2899 = vmatprep.subr.mxu0 0.0
      %2900 = vmatpush1.msra.mxu0 0.0
      %2901 = vmatprep.subr.mxu0 0.0
      %2902 = vmatpush1.msra.mxu0 0.0
      %2903 = vmatprep.subr.mxu0 0.0
      %2904 = vmatpush1.msra.mxu0 0.0
      %2905 = vmatprep.subr.mxu0 0.0
      %2906 = vmatpush1.msra.mxu0 0.0
      %2907 = vmatprep.subr.mxu0 0.0
      %2908 = vmatpush1.msra.mxu0 0.0
      %2909 = vmatprep.mubr.f32.mxu0 0.0
      %2910 = vmatmul.mubr.f32.gmra.mrb[0].mxu0 %v2832
      %v2911 = vpop.f32.mrb[0].mxu0
      %v2912 = vadd.f32 0.0, %v2911
      %v2913 = vpop.f32.mrb[0].mxu0
      %2914 = vmatprep.mubr.f32.mxu0 0.0
      %2915 = vmatmul.mubr.f32.gmra.mrb[0].mxu0 %v2835
      %v2916 = vpop.f32.mrb[0].mxu0
      %v2917 = vadd.f32 0.0, %v2916
      %v2918 = vpop.f32.mrb[0].mxu0
      %2919 = vmatprep.mubr.f32.mxu0 0.0
      %2920 = vmatmul.mubr.f32.gmra.mrb[0].mxu0 %v2838
      %v2921 = vpop.f32.mrb[0].mxu0
      %v2922 = vadd.f32 0.0, %v2921
      %v2923 = vpop.f32.mrb[0].mxu0
      %2924 = vmatprep.mubr.f32.mxu0 0.0
      %2925 = vmatmul.mubr.f32.gmra.mrb[0].mxu0 %v2841
      %v2926 = vpop.f32.mrb[0].mxu0
      %v2927 = vadd.f32 0.0, %v2926
      %v2928 = vpop.f32.mrb[0].mxu0
      %2929 = vdwg.mxu0
      %v2930 = vadd.f32 %v2774, %v2912
      %v2931 = vadd.f32 %v2775, %v2917
      %v2932 = vadd.f32 %v2776, %v2922
      %v2933 = vadd.f32 %v2777, %v2927
      %s2934 = scalar_lea.vmem %s1, 640
      %v2935 = vld [vmem:[%s2934] sm:$0xff]
      %v2936 = vld [vmem:[%s2934 + $0x8] sm:$0xff]
      %v2937 = vld [vmem:[%s2934 + $0x10] sm:$0xff]
      %v2938 = vld [vmem:[%s2934 + $0x18] sm:$0xff]
      %2939 = vrot.lane.b32.xlu0 %v2127, 80
      %v2940 = vpop.permute.xlu0 %2939
      %2941 = vrot.lane.b32.xlu0 %v2128, 80
      %v2942 = vpop.permute.xlu0 %2941
      %2943 = vrot.lane.b32.xlu0 %v2129, 80
      %v2944 = vpop.permute.xlu0 %2943
      %2945 = vrot.lane.b32.xlu0 %v2130, 80
      %v2946 = vpop.permute.xlu0 %2945
      %2947 = vrot.lane.b32.xlu0 %v2131, 80
      %v2948 = vpop.permute.xlu0 %2947
      %2949 = vrot.lane.b32.xlu0 %v2132, 80
      %v2950 = vpop.permute.xlu0 %2949
      %2951 = vrot.lane.b32.xlu0 %v2133, 80
      %v2952 = vpop.permute.xlu0 %2951
      %2953 = vrot.lane.b32.xlu0 %v2134, 80
      %v2954 = vpop.permute.xlu0 %2953
      %2955 = vrot.lane.b32.xlu0 %v2135, 80
      %v2956 = vpop.permute.xlu0 %2955
      %2957 = vrot.lane.b32.xlu0 %v2136, 80
      %v2958 = vpop.permute.xlu0 %2957
      %2959 = vrot.lane.b32.xlu0 %v2137, 80
      %v2960 = vpop.permute.xlu0 %2959
      %2961 = vrot.lane.b32.xlu0 %v2138, 80
      %v2962 = vpop.permute.xlu0 %2961
      %2963 = vrot.lane.b32.xlu0 %v2139, 80
      %v2964 = vpop.permute.xlu0 %2963
      %2965 = vrot.lane.b32.xlu0 %v2140, 80
      %v2966 = vpop.permute.xlu0 %2965
      %2967 = vrot.lane.b32.xlu0 %v2141, 80
      %v2968 = vpop.permute.xlu0 %2967
      %2969 = vrot.lane.b32.xlu0 %v2142, 80
      %v2970 = vpop.permute.xlu0 %2969
      %vm2971 = vcmask 654336
      %v2972 = vsel %vm2971, %v2940, %v2942
      %v2973 = vsel %vm2971, %v2944, %v2946
      %v2974 = vsel %vm2971, %v2948, %v2950
      %v2975 = vsel %vm2971, %v2952, %v2954
      %v2976 = vsel %vm2971, %v2956, %v2958
      %v2977 = vsel %vm2971, %v2960, %v2962
      %v2978 = vsel %vm2971, %v2964, %v2966
      %v2979 = vsel %vm2971, %v2968, %v2970
      %v2988 = vsel %vm219, %v2935, 0
      %v2991 = vsel %vm219, %v2936, 0
      %v2994 = vsel %vm219, %v2937, 0
      %v2997 = vsel %vm219, %v2938, 0
      %v2999 = vsel %vm232, %v2979, 0
      %3001 = vmatprep.subr.mxu0 0.0
      %3002 = vmatpush1.msra.mxu0 %v2972
      %3003 = vmatprep.subr.mxu0 0.0
      %3004 = vmatpush1.msra.mxu0 %v2973
      %3005 = vmatprep.subr.mxu0 0.0
      %3006 = vmatpush1.msra.mxu0 %v2974
      %3007 = vmatprep.subr.mxu0 0.0
      %3008 = vmatpush1.msra.mxu0 %v2975
      %3009 = vmatprep.subr.mxu0 0.0
      %3010 = vmatpush1.msra.mxu0 %v2976
      %3011 = vmatprep.subr.mxu0 0.0
      %3012 = vmatpush1.msra.mxu0 %v2977
      %3013 = vmatprep.subr.mxu0 0.0
      %3014 = vmatpush1.msra.mxu0 %v2978
      %3015 = vmatprep.subr.mxu0 0.0
      %3016 = vmatpush1.msra.mxu0 %v2999
      %3017 = vmatprep.subr.mxu0 0.0
      %3018 = vmatpush1.msra.mxu0 0.0
      %3019 = vmatprep.subr.mxu0 0.0
      %3020 = vmatpush1.msra.mxu0 0.0
      %3021 = vmatprep.subr.mxu0 0.0
      %3022 = vmatpush1.msra.mxu0 0.0
      %3023 = vmatprep.subr.mxu0 0.0
      %3024 = vmatpush1.msra.mxu0 0.0
      %3025 = vmatprep.subr.mxu0 0.0
      %3026 = vmatpush1.msra.mxu0 0.0
      %3027 = vmatprep.subr.mxu0 0.0
      %3028 = vmatpush1.msra.mxu0 0.0
      %3029 = vmatprep.subr.mxu0 0.0
      %3030 = vmatpush1.msra.mxu0 0.0
      %3031 = vmatprep.subr.mxu0 0.0
      %3032 = vmatpush1.msra.mxu0 0.0
      %3033 = vmatprep.subr.mxu0 0.0
      %3034 = vmatpush1.msra.mxu0 0.0
      %3035 = vmatprep.subr.mxu0 0.0
      %3036 = vmatpush1.msra.mxu0 0.0
      %3037 = vmatprep.subr.mxu0 0.0
      %3038 = vmatpush1.msra.mxu0 0.0
      %3039 = vmatprep.subr.mxu0 0.0
      %3040 = vmatpush1.msra.mxu0 0.0
      %3041 = vmatprep.subr.mxu0 0.0
      %3042 = vmatpush1.msra.mxu0 0.0
      %3043 = vmatprep.subr.mxu0 0.0
      %3044 = vmatpush1.msra.mxu0 0.0
      %3045 = vmatprep.subr.mxu0 0.0
      %3046 = vmatpush1.msra.mxu0 0.0
      %3047 = vmatprep.subr.mxu0 0.0
      %3048 = vmatpush1.msra.mxu0 0.0
      %3049 = vmatprep.subr.mxu0 0.0
      %3050 = vmatpush1.msra.mxu0 0.0
      %3051 = vmatprep.subr.mxu0 0.0
      %3052 = vmatpush1.msra.mxu0 0.0
      %3053 = vmatprep.subr.mxu0 0.0
      %3054 = vmatpush1.msra.mxu0 0.0
      %3055 = vmatprep.subr.mxu0 0.0
      %3056 = vmatpush1.msra.mxu0 0.0
      %3057 = vmatprep.subr.mxu0 0.0
      %3058 = vmatpush1.msra.mxu0 0.0
      %3059 = vmatprep.subr.mxu0 0.0
      %3060 = vmatpush1.msra.mxu0 0.0
      %3061 = vmatprep.subr.mxu0 0.0
      %3062 = vmatpush1.msra.mxu0 0.0
      %3063 = vmatprep.subr.mxu0 0.0
      %3064 = vmatpush1.msra.mxu0 0.0
      %3065 = vmatprep.mubr.f32.mxu0 0.0
      %3066 = vmatmul.mubr.f32.gmra.mrb[0].mxu0 %v2988
      %v3067 = vpop.f32.mrb[0].mxu0
      %v3068 = vadd.f32 0.0, %v3067
      %v3069 = vpop.f32.mrb[0].mxu0
      %3070 = vmatprep.mubr.f32.mxu0 0.0
      %3071 = vmatmul.mubr.f32.gmra.mrb[0].mxu0 %v2991
      %v3072 = vpop.f32.mrb[0].mxu0
      %v3073 = vadd.f32 0.0, %v3072
      %v3074 = vpop.f32.mrb[0].mxu0
      %3075 = vmatprep.mubr.f32.mxu0 0.0
      %3076 = vmatmul.mubr.f32.gmra.mrb[0].mxu0 %v2994
      %v3077 = vpop.f32.mrb[0].mxu0
      %v3078 = vadd.f32 0.0, %v3077
      %v3079 = vpop.f32.mrb[0].mxu0
      %3080 = vmatprep.mubr.f32.mxu0 0.0
      %3081 = vmatmul.mubr.f32.gmra.mrb[0].mxu0 %v2997
      %v3082 = vpop.f32.mrb[0].mxu0
      %v3083 = vadd.f32 0.0, %v3082
      %v3084 = vpop.f32.mrb[0].mxu0
      %3085 = vdwg.mxu0
      %v3086 = vadd.f32 %v2930, %v3068
      %v3087 = vadd.f32 %v2931, %v3073
      %v3088 = vadd.f32 %v2932, %v3078
      %v3089 = vadd.f32 %v2933, %v3083
      %s3090 = scalar_lea.vmem %s1, 672
      %v3091 = vld [vmem:[%s3090] sm:$0xff]
      %v3092 = vld [vmem:[%s3090 + $0x8] sm:$0xff]
      %v3093 = vld [vmem:[%s3090 + $0x10] sm:$0xff]
      %v3094 = vld [vmem:[%s3090 + $0x18] sm:$0xff]
      %3095 = vrot.lane.b32.xlu0 %v2127, 79
      %v3096 = vpop.permute.xlu0 %3095
      %3097 = vrot.lane.b32.xlu0 %v2128, 79
      %v3098 = vpop.permute.xlu0 %3097
      %3099 = vrot.lane.b32.xlu0 %v2129, 79
      %v3100 = vpop.permute.xlu0 %3099
      %3101 = vrot.lane.b32.xlu0 %v2130, 79
      %v3102 = vpop.permute.xlu0 %3101
      %3103 = vrot.lane.b32.xlu0 %v2131, 79
      %v3104 = vpop.permute.xlu0 %3103
      %3105 = vrot.lane.b32.xlu0 %v2132, 79
      %v3106 = vpop.permute.xlu0 %3105
      %3107 = vrot.lane.b32.xlu0 %v2133, 79
      %v3108 = vpop.permute.xlu0 %3107
      %3109 = vrot.lane.b32.xlu0 %v2134, 79
      %v3110 = vpop.permute.xlu0 %3109
      %3111 = vrot.lane.b32.xlu0 %v2135, 79
      %v3112 = vpop.permute.xlu0 %3111
      %3113 = vrot.lane.b32.xlu0 %v2136, 79
      %v3114 = vpop.permute.xlu0 %3113
      %3115 = vrot.lane.b32.xlu0 %v2137, 79
      %v3116 = vpop.permute.xlu0 %3115
      %3117 = vrot.lane.b32.xlu0 %v2138, 79
      %v3118 = vpop.permute.xlu0 %3117
      %3119 = vrot.lane.b32.xlu0 %v2139, 79
      %v3120 = vpop.permute.xlu0 %3119
      %3121 = vrot.lane.b32.xlu0 %v2140, 79
      %v3122 = vpop.permute.xlu0 %3121
      %3123 = vrot.lane.b32.xlu0 %v2141, 79
      %v3124 = vpop.permute.xlu0 %3123
      %3125 = vrot.lane.b32.xlu0 %v2142, 79
      %v3126 = vpop.permute.xlu0 %3125
      %vm3127 = vcmask 646144
      %v3128 = vsel %vm3127, %v3096, %v3098
      %v3129 = vsel %vm3127, %v3100, %v3102
      %v3130 = vsel %vm3127, %v3104, %v3106
      %v3131 = vsel %vm3127, %v3108, %v3110
      %v3132 = vsel %vm3127, %v3112, %v3114
      %v3133 = vsel %vm3127, %v3116, %v3118
      %v3134 = vsel %vm3127, %v3120, %v3122
      %v3135 = vsel %vm3127, %v3124, %v3126
      %v3144 = vsel %vm219, %v3091, 0
      %v3147 = vsel %vm219, %v3092, 0
      %v3150 = vsel %vm219, %v3093, 0
      %v3153 = vsel %vm219, %v3094, 0
      %v3155 = vsel %vm232, %v3135, 0
      %3157 = vmatprep.subr.mxu0 0.0
      %3158 = vmatpush1.msra.mxu0 %v3128
      %3159 = vmatprep.subr.mxu0 0.0
      %3160 = vmatpush1.msra.mxu0 %v3129
      %3161 = vmatprep.subr.mxu0 0.0
      %3162 = vmatpush1.msra.mxu0 %v3130
      %3163 = vmatprep.subr.mxu0 0.0
      %3164 = vmatpush1.msra.mxu0 %v3131
      %3165 = vmatprep.subr.mxu0 0.0
      %3166 = vmatpush1.msra.mxu0 %v3132
      %3167 = vmatprep.subr.mxu0 0.0
      %3168 = vmatpush1.msra.mxu0 %v3133
      %3169 = vmatprep.subr.mxu0 0.0
      %3170 = vmatpush1.msra.mxu0 %v3134
      %3171 = vmatprep.subr.mxu0 0.0
      %3172 = vmatpush1.msra.mxu0 %v3155
      %3173 = vmatprep.subr.mxu0 0.0
      %3174 = vmatpush1.msra.mxu0 0.0
      %3175 = vmatprep.subr.mxu0 0.0
      %3176 = vmatpush1.msra.mxu0 0.0
      %3177 = vmatprep.subr.mxu0 0.0
      %3178 = vmatpush1.msra.mxu0 0.0
      %3179 = vmatprep.subr.mxu0 0.0
      %3180 = vmatpush1.msra.mxu0 0.0
      %3181 = vmatprep.subr.mxu0 0.0
      %3182 = vmatpush1.msra.mxu0 0.0
      %3183 = vmatprep.subr.mxu0 0.0
      %3184 = vmatpush1.msra.mxu0 0.0
      %3185 = vmatprep.subr.mxu0 0.0
      %3186 = vmatpush1.msra.mxu0 0.0
      %3187 = vmatprep.subr.mxu0 0.0
      %3188 = vmatpush1.msra.mxu0 0.0
      %3189 = vmatprep.subr.mxu0 0.0
      %3190 = vmatpush1.msra.mxu0 0.0
      %3191 = vmatprep.subr.mxu0 0.0
      %3192 = vmatpush1.msra.mxu0 0.0
      %3193 = vmatprep.subr.mxu0 0.0
      %3194 = vmatpush1.msra.mxu0 0.0
      %3195 = vmatprep.subr.mxu0 0.0
      %3196 = vmatpush1.msra.mxu0 0.0
      %3197 = vmatprep.subr.mxu0 0.0
      %3198 = vmatpush1.msra.mxu0 0.0
      %3199 = vmatprep.subr.mxu0 0.0
      %3200 = vmatpush1.msra.mxu0 0.0
      %3201 = vmatprep.subr.mxu0 0.0
      %3202 = vmatpush1.msra.mxu0 0.0
      %3203 = vmatprep.subr.mxu0 0.0
      %3204 = vmatpush1.msra.mxu0 0.0
      %3205 = vmatprep.subr.mxu0 0.0
      %3206 = vmatpush1.msra.mxu0 0.0
      %3207 = vmatprep.subr.mxu0 0.0
      %3208 = vmatpush1.msra.mxu0 0.0
      %3209 = vmatprep.subr.mxu0 0.0
      %3210 = vmatpush1.msra.mxu0 0.0
      %3211 = vmatprep.subr.mxu0 0.0
      %3212 = vmatpush1.msra.mxu0 0.0
      %3213 = vmatprep.subr.mxu0 0.0
      %3214 = vmatpush1.msra.mxu0 0.0
      %3215 = vmatprep.subr.mxu0 0.0
      %3216 = vmatpush1.msra.mxu0 0.0
      %3217 = vmatprep.subr.mxu0 0.0
      %3218 = vmatpush1.msra.mxu0 0.0
      %3219 = vmatprep.subr.mxu0 0.0
      %3220 = vmatpush1.msra.mxu0 0.0
      %3221 = vmatprep.mubr.f32.mxu0 0.0
      %3222 = vmatmul.mubr.f32.gmra.mrb[0].mxu0 %v3144
      %v3223 = vpop.f32.mrb[0].mxu0
      %v3224 = vadd.f32 0.0, %v3223
      %v3225 = vpop.f32.mrb[0].mxu0
      %3226 = vmatprep.mubr.f32.mxu0 0.0
      %3227 = vmatmul.mubr.f32.gmra.mrb[0].mxu0 %v3147
      %v3228 = vpop.f32.mrb[0].mxu0
      %v3229 = vadd.f32 0.0, %v3228
      %v3230 = vpop.f32.mrb[0].mxu0
      %3231 = vmatprep.mubr.f32.mxu0 0.0
      %3232 = vmatmul.mubr.f32.gmra.mrb[0].mxu0 %v3150
      %v3233 = vpop.f32.mrb[0].mxu0
      %v3234 = vadd.f32 0.0, %v3233
      %v3235 = vpop.f32.mrb[0].mxu0
      %3236 = vmatprep.mubr.f32.mxu0 0.0
      %3237 = vmatmul.mubr.f32.gmra.mrb[0].mxu0 %v3153
      %v3238 = vpop.f32.mrb[0].mxu0
      %v3239 = vadd.f32 0.0, %v3238
      %v3240 = vpop.f32.mrb[0].mxu0
      %3241 = vdwg.mxu0
      %v3242 = vadd.f32 %v3086, %v3224
      %v3243 = vadd.f32 %v3087, %v3229
      %v3244 = vadd.f32 %v3088, %v3234
      %v3245 = vadd.f32 %v3089, %v3239
      %s3246 = scalar_lea.vmem %s1, 704
      %v3247 = vld [vmem:[%s3246] sm:$0xff]
      %v3248 = vld [vmem:[%s3246 + $0x8] sm:$0xff]
      %v3249 = vld [vmem:[%s3246 + $0x10] sm:$0xff]
      %v3250 = vld [vmem:[%s3246 + $0x18] sm:$0xff]
      %3251 = vrot.lane.b32.xlu0 %v2127, 78
      %v3252 = vpop.permute.xlu0 %3251
      %3253 = vrot.lane.b32.xlu0 %v2128, 78
      %v3254 = vpop.permute.xlu0 %3253
      %3255 = vrot.lane.b32.xlu0 %v2129, 78
      %v3256 = vpop.permute.xlu0 %3255
      %3257 = vrot.lane.b32.xlu0 %v2130, 78
      %v3258 = vpop.permute.xlu0 %3257
      %3259 = vrot.lane.b32.xlu0 %v2131, 78
      %v3260 = vpop.permute.xlu0 %3259
      %3261 = vrot.lane.b32.xlu0 %v2132, 78
      %v3262 = vpop.permute.xlu0 %3261
      %3263 = vrot.lane.b32.xlu0 %v2133, 78
      %v3264 = vpop.permute.xlu0 %3263
      %3265 = vrot.lane.b32.xlu0 %v2134, 78
      %v3266 = vpop.permute.xlu0 %3265
      %3267 = vrot.lane.b32.xlu0 %v2135, 78
      %v3268 = vpop.permute.xlu0 %3267
      %3269 = vrot.lane.b32.xlu0 %v2136, 78
      %v3270 = vpop.permute.xlu0 %3269
      %3271 = vrot.lane.b32.xlu0 %v2137, 78
      %v3272 = vpop.permute.xlu0 %3271
      %3273 = vrot.lane.b32.xlu0 %v2138, 78
      %v3274 = vpop.permute.xlu0 %3273
      %3275 = vrot.lane.b32.xlu0 %v2139, 78
      %v3276 = vpop.permute.xlu0 %3275
      %3277 = vrot.lane.b32.xlu0 %v2140, 78
      %v3278 = vpop.permute.xlu0 %3277
      %3279 = vrot.lane.b32.xlu0 %v2141, 78
      %v3280 = vpop.permute.xlu0 %3279
      %3281 = vrot.lane.b32.xlu0 %v2142, 78
      %v3282 = vpop.permute.xlu0 %3281
      %vm3283 = vcmask 637952
      %v3284 = vsel %vm3283, %v3252, %v3254
      %v3285 = vsel %vm3283, %v3256, %v3258
      %v3286 = vsel %vm3283, %v3260, %v3262
      %v3287 = vsel %vm3283, %v3264, %v3266
      %v3288 = vsel %vm3283, %v3268, %v3270
      %v3289 = vsel %vm3283, %v3272, %v3274
      %v3290 = vsel %vm3283, %v3276, %v3278
      %v3291 = vsel %vm3283, %v3280, %v3282
      %v3300 = vsel %vm219, %v3247, 0
      %v3303 = vsel %vm219, %v3248, 0
      %v3306 = vsel %vm219, %v3249, 0
      %v3309 = vsel %vm219, %v3250, 0
      %v3311 = vsel %vm232, %v3291, 0
      %3313 = vmatprep.subr.mxu0 0.0
      %3314 = vmatpush1.msra.mxu0 %v3284
      %3315 = vmatprep.subr.mxu0 0.0
      %3316 = vmatpush1.msra.mxu0 %v3285
      %3317 = vmatprep.subr.mxu0 0.0
      %3318 = vmatpush1.msra.mxu0 %v3286
      %3319 = vmatprep.subr.mxu0 0.0
      %3320 = vmatpush1.msra.mxu0 %v3287
      %3321 = vmatprep.subr.mxu0 0.0
      %3322 = vmatpush1.msra.mxu0 %v3288
      %3323 = vmatprep.subr.mxu0 0.0
      %3324 = vmatpush1.msra.mxu0 %v3289
      %3325 = vmatprep.subr.mxu0 0.0
      %3326 = vmatpush1.msra.mxu0 %v3290
      %3327 = vmatprep.subr.mxu0 0.0
      %3328 = vmatpush1.msra.mxu0 %v3311
      %3329 = vmatprep.subr.mxu0 0.0
      %3330 = vmatpush1.msra.mxu0 0.0
      %3331 = vmatprep.subr.mxu0 0.0
      %3332 = vmatpush1.msra.mxu0 0.0
      %3333 = vmatprep.subr.mxu0 0.0
      %3334 = vmatpush1.msra.mxu0 0.0
      %3335 = vmatprep.subr.mxu0 0.0
      %3336 = vmatpush1.msra.mxu0 0.0
      %3337 = vmatprep.subr.mxu0 0.0
      %3338 = vmatpush1.msra.mxu0 0.0
      %3339 = vmatprep.subr.mxu0 0.0
      %3340 = vmatpush1.msra.mxu0 0.0
      %3341 = vmatprep.subr.mxu0 0.0
      %3342 = vmatpush1.msra.mxu0 0.0
      %3343 = vmatprep.subr.mxu0 0.0
      %3344 = vmatpush1.msra.mxu0 0.0
      %3345 = vmatprep.subr.mxu0 0.0
      %3346 = vmatpush1.msra.mxu0 0.0
      %3347 = vmatprep.subr.mxu0 0.0
      %3348 = vmatpush1.msra.mxu0 0.0
      %3349 = vmatprep.subr.mxu0 0.0
      %3350 = vmatpush1.msra.mxu0 0.0
      %3351 = vmatprep.subr.mxu0 0.0
      %3352 = vmatpush1.msra.mxu0 0.0
      %3353 = vmatprep.subr.mxu0 0.0
      %3354 = vmatpush1.msra.mxu0 0.0
      %3355 = vmatprep.subr.mxu0 0.0
      %3356 = vmatpush1.msra.mxu0 0.0
      %3357 = vmatprep.subr.mxu0 0.0
      %3358 = vmatpush1.msra.mxu0 0.0
      %3359 = vmatprep.subr.mxu0 0.0
      %3360 = vmatpush1.msra.mxu0 0.0
      %3361 = vmatprep.subr.mxu0 0.0
      %3362 = vmatpush1.msra.mxu0 0.0
      %3363 = vmatprep.subr.mxu0 0.0
      %3364 = vmatpush1.msra.mxu0 0.0
      %3365 = vmatprep.subr.mxu0 0.0
      %3366 = vmatpush1.msra.mxu0 0.0
      %3367 = vmatprep.subr.mxu0 0.0
      %3368 = vmatpush1.msra.mxu0 0.0
      %3369 = vmatprep.subr.mxu0 0.0
      %3370 = vmatpush1.msra.mxu0 0.0
      %3371 = vmatprep.subr.mxu0 0.0
      %3372 = vmatpush1.msra.mxu0 0.0
      %3373 = vmatprep.subr.mxu0 0.0
      %3374 = vmatpush1.msra.mxu0 0.0
      %3375 = vmatprep.subr.mxu0 0.0
      %3376 = vmatpush1.msra.mxu0 0.0
      %3377 = vmatprep.mubr.f32.mxu0 0.0
      %3378 = vmatmul.mubr.f32.gmra.mrb[0].mxu0 %v3300
      %v3379 = vpop.f32.mrb[0].mxu0
      %v3380 = vadd.f32 0.0, %v3379
      %v3381 = vpop.f32.mrb[0].mxu0
      %3382 = vmatprep.mubr.f32.mxu0 0.0
      %3383 = vmatmul.mubr.f32.gmra.mrb[0].mxu0 %v3303
      %v3384 = vpop.f32.mrb[0].mxu0
      %v3385 = vadd.f32 0.0, %v3384
      %v3386 = vpop.f32.mrb[0].mxu0
      %3387 = vmatprep.mubr.f32.mxu0 0.0
      %3388 = vmatmul.mubr.f32.gmra.mrb[0].mxu0 %v3306
      %v3389 = vpop.f32.mrb[0].mxu0
      %v3390 = vadd.f32 0.0, %v3389
      %v3391 = vpop.f32.mrb[0].mxu0
      %3392 = vmatprep.mubr.f32.mxu0 0.0
      %3393 = vmatmul.mubr.f32.gmra.mrb[0].mxu0 %v3309
      %v3394 = vpop.f32.mrb[0].mxu0
      %v3395 = vadd.f32 0.0, %v3394
      %v3396 = vpop.f32.mrb[0].mxu0
      %3397 = vdwg.mxu0
      %v3398 = vadd.f32 %v3242, %v3380
      %v3399 = vadd.f32 %v3243, %v3385
      %v3400 = vadd.f32 %v3244, %v3390
      %v3401 = vadd.f32 %v3245, %v3395
      %s3402 = scalar_lea.vmem %s1, 736
      %v3403 = vld [vmem:[%s3402] sm:$0xff]
      %v3404 = vld [vmem:[%s3402 + $0x8] sm:$0xff]
      %v3405 = vld [vmem:[%s3402 + $0x10] sm:$0xff]
      %v3406 = vld [vmem:[%s3402 + $0x18] sm:$0xff]
      %3407 = vrot.lane.b32.xlu0 %v2127, 77
      %v3408 = vpop.permute.xlu0 %3407
      %3409 = vrot.lane.b32.xlu0 %v2128, 77
      %v3410 = vpop.permute.xlu0 %3409
      %3411 = vrot.lane.b32.xlu0 %v2129, 77
      %v3412 = vpop.permute.xlu0 %3411
      %3413 = vrot.lane.b32.xlu0 %v2130, 77
      %v3414 = vpop.permute.xlu0 %3413
      %3415 = vrot.lane.b32.xlu0 %v2131, 77
      %v3416 = vpop.permute.xlu0 %3415
      %3417 = vrot.lane.b32.xlu0 %v2132, 77
      %v3418 = vpop.permute.xlu0 %3417
      %3419 = vrot.lane.b32.xlu0 %v2133, 77
      %v3420 = vpop.permute.xlu0 %3419
      %3421 = vrot.lane.b32.xlu0 %v2134, 77
      %v3422 = vpop.permute.xlu0 %3421
      %3423 = vrot.lane.b32.xlu0 %v2135, 77
      %v3424 = vpop.permute.xlu0 %3423
      %3425 = vrot.lane.b32.xlu0 %v2136, 77
      %v3426 = vpop.permute.xlu0 %3425
      %3427 = vrot.lane.b32.xlu0 %v2137, 77
      %v3428 = vpop.permute.xlu0 %3427
      %3429 = vrot.lane.b32.xlu0 %v2138, 77
      %v3430 = vpop.permute.xlu0 %3429
      %3431 = vrot.lane.b32.xlu0 %v2139, 77
      %v3432 = vpop.permute.xlu0 %3431
      %3433 = vrot.lane.b32.xlu0 %v2140, 77
      %v3434 = vpop.permute.xlu0 %3433
      %3435 = vrot.lane.b32.xlu0 %v2141, 77
      %v3436 = vpop.permute.xlu0 %3435
      %3437 = vrot.lane.b32.xlu0 %v2142, 77
      %v3438 = vpop.permute.xlu0 %3437
      %vm3439 = vcmask 629760
      %v3440 = vsel %vm3439, %v3408, %v3410
      %v3441 = vsel %vm3439, %v3412, %v3414
      %v3442 = vsel %vm3439, %v3416, %v3418
      %v3443 = vsel %vm3439, %v3420, %v3422
      %v3444 = vsel %vm3439, %v3424, %v3426
      %v3445 = vsel %vm3439, %v3428, %v3430
      %v3446 = vsel %vm3439, %v3432, %v3434
      %v3447 = vsel %vm3439, %v3436, %v3438
      %v3456 = vsel %vm219, %v3403, 0
      %v3459 = vsel %vm219, %v3404, 0
      %v3462 = vsel %vm219, %v3405, 0
      %v3465 = vsel %vm219, %v3406, 0
      %v3467 = vsel %vm232, %v3447, 0
      %3469 = vmatprep.subr.mxu0 0.0
      %3470 = vmatpush1.msra.mxu0 %v3440
      %3471 = vmatprep.subr.mxu0 0.0
      %3472 = vmatpush1.msra.mxu0 %v3441
      %3473 = vmatprep.subr.mxu0 0.0
      %3474 = vmatpush1.msra.mxu0 %v3442
      %3475 = vmatprep.subr.mxu0 0.0
      %3476 = vmatpush1.msra.mxu0 %v3443
      %3477 = vmatprep.subr.mxu0 0.0
      %3478 = vmatpush1.msra.mxu0 %v3444
      %3479 = vmatprep.subr.mxu0 0.0
      %3480 = vmatpush1.msra.mxu0 %v3445
      %3481 = vmatprep.subr.mxu0 0.0
      %3482 = vmatpush1.msra.mxu0 %v3446
      %3483 = vmatprep.subr.mxu0 0.0
      %3484 = vmatpush1.msra.mxu0 %v3467
      %3485 = vmatprep.subr.mxu0 0.0
      %3486 = vmatpush1.msra.mxu0 0.0
      %3487 = vmatprep.subr.mxu0 0.0
      %3488 = vmatpush1.msra.mxu0 0.0
      %3489 = vmatprep.subr.mxu0 0.0
      %3490 = vmatpush1.msra.mxu0 0.0
      %3491 = vmatprep.subr.mxu0 0.0
      %3492 = vmatpush1.msra.mxu0 0.0
      %3493 = vmatprep.subr.mxu0 0.0
      %3494 = vmatpush1.msra.mxu0 0.0
      %3495 = vmatprep.subr.mxu0 0.0
      %3496 = vmatpush1.msra.mxu0 0.0
      %3497 = vmatprep.subr.mxu0 0.0
      %3498 = vmatpush1.msra.mxu0 0.0
      %3499 = vmatprep.subr.mxu0 0.0
      %3500 = vmatpush1.msra.mxu0 0.0
      %3501 = vmatprep.subr.mxu0 0.0
      %3502 = vmatpush1.msra.mxu0 0.0
      %3503 = vmatprep.subr.mxu0 0.0
      %3504 = vmatpush1.msra.mxu0 0.0
      %3505 = vmatprep.subr.mxu0 0.0
      %3506 = vmatpush1.msra.mxu0 0.0
      %3507 = vmatprep.subr.mxu0 0.0
      %3508 = vmatpush1.msra.mxu0 0.0
      %3509 = vmatprep.subr.mxu0 0.0
      %3510 = vmatpush1.msra.mxu0 0.0
      %3511 = vmatprep.subr.mxu0 0.0
      %3512 = vmatpush1.msra.mxu0 0.0
      %3513 = vmatprep.subr.mxu0 0.0
      %3514 = vmatpush1.msra.mxu0 0.0
      %3515 = vmatprep.subr.mxu0 0.0
      %3516 = vmatpush1.msra.mxu0 0.0
      %3517 = vmatprep.subr.mxu0 0.0
      %3518 = vmatpush1.msra.mxu0 0.0
      %3519 = vmatprep.subr.mxu0 0.0
      %3520 = vmatpush1.msra.mxu0 0.0
      %3521 = vmatprep.subr.mxu0 0.0
      %3522 = vmatpush1.msra.mxu0 0.0
      %3523 = vmatprep.subr.mxu0 0.0
      %3524 = vmatpush1.msra.mxu0 0.0
      %3525 = vmatprep.subr.mxu0 0.0
      %3526 = vmatpush1.msra.mxu0 0.0
      %3527 = vmatprep.subr.mxu0 0.0
      %3528 = vmatpush1.msra.mxu0 0.0
      %3529 = vmatprep.subr.mxu0 0.0
      %3530 = vmatpush1.msra.mxu0 0.0
      %3531 = vmatprep.subr.mxu0 0.0
      %3532 = vmatpush1.msra.mxu0 0.0
      %3533 = vmatprep.mubr.f32.mxu0 0.0
      %3534 = vmatmul.mubr.f32.gmra.mrb[0].mxu0 %v3456
      %v3535 = vpop.f32.mrb[0].mxu0
      %v3536 = vadd.f32 0.0, %v3535
      %v3537 = vpop.f32.mrb[0].mxu0
      %3538 = vmatprep.mubr.f32.mxu0 0.0
      %3539 = vmatmul.mubr.f32.gmra.mrb[0].mxu0 %v3459
      %v3540 = vpop.f32.mrb[0].mxu0
      %v3541 = vadd.f32 0.0, %v3540
      %v3542 = vpop.f32.mrb[0].mxu0
      %3543 = vmatprep.mubr.f32.mxu0 0.0
      %3544 = vmatmul.mubr.f32.gmra.mrb[0].mxu0 %v3462
      %v3545 = vpop.f32.mrb[0].mxu0
      %v3546 = vadd.f32 0.0, %v3545
      %v3547 = vpop.f32.mrb[0].mxu0
      %3548 = vmatprep.mubr.f32.mxu0 0.0
      %3549 = vmatmul.mubr.f32.gmra.mrb[0].mxu0 %v3465
      %v3550 = vpop.f32.mrb[0].mxu0
      %v3551 = vadd.f32 0.0, %v3550
      %v3552 = vpop.f32.mrb[0].mxu0
      %3553 = vdwg.mxu0
      %v3554 = vadd.f32 %v3398, %v3536
      %v3555 = vadd.f32 %v3399, %v3541
      %v3556 = vadd.f32 %v3400, %v3546
      %v3557 = vadd.f32 %v3401, %v3551
      %s3558 = scalar_lea.vmem %s1, 768
      %v3559 = vld [vmem:[%s3558] sm:$0xff]
      %v3560 = vld [vmem:[%s3558 + $0x8] sm:$0xff]
      %v3561 = vld [vmem:[%s3558 + $0x10] sm:$0xff]
      %v3562 = vld [vmem:[%s3558 + $0x18] sm:$0xff]
      %3563 = vrot.lane.b32.xlu0 %v2127, 76
      %v3564 = vpop.permute.xlu0 %3563
      %3565 = vrot.lane.b32.xlu0 %v2128, 76
      %v3566 = vpop.permute.xlu0 %3565
      %3567 = vrot.lane.b32.xlu0 %v2129, 76
      %v3568 = vpop.permute.xlu0 %3567
      %3569 = vrot.lane.b32.xlu0 %v2130, 76
      %v3570 = vpop.permute.xlu0 %3569
      %3571 = vrot.lane.b32.xlu0 %v2131, 76
      %v3572 = vpop.permute.xlu0 %3571
      %3573 = vrot.lane.b32.xlu0 %v2132, 76
      %v3574 = vpop.permute.xlu0 %3573
      %3575 = vrot.lane.b32.xlu0 %v2133, 76
      %v3576 = vpop.permute.xlu0 %3575
      %3577 = vrot.lane.b32.xlu0 %v2134, 76
      %v3578 = vpop.permute.xlu0 %3577
      %3579 = vrot.lane.b32.xlu0 %v2135, 76
      %v3580 = vpop.permute.xlu0 %3579
      %3581 = vrot.lane.b32.xlu0 %v2136, 76
      %v3582 = vpop.permute.xlu0 %3581
      %3583 = vrot.lane.b32.xlu0 %v2137, 76
      %v3584 = vpop.permute.xlu0 %3583
      %3585 = vrot.lane.b32.xlu0 %v2138, 76
      %v3586 = vpop.permute.xlu0 %3585
      %3587 = vrot.lane.b32.xlu0 %v2139, 76
      %v3588 = vpop.permute.xlu0 %3587
      %3589 = vrot.lane.b32.xlu0 %v2140, 76
      %v3590 = vpop.permute.xlu0 %3589
      %3591 = vrot.lane.b32.xlu0 %v2141, 76
      %v3592 = vpop.permute.xlu0 %3591
      %3593 = vrot.lane.b32.xlu0 %v2142, 76
      %v3594 = vpop.permute.xlu0 %3593
      %vm3595 = vcmask 621568
      %v3596 = vsel %vm3595, %v3564, %v3566
      %v3597 = vsel %vm3595, %v3568, %v3570
      %v3598 = vsel %vm3595, %v3572, %v3574
      %v3599 = vsel %vm3595, %v3576, %v3578
      %v3600 = vsel %vm3595, %v3580, %v3582
      %v3601 = vsel %vm3595, %v3584, %v3586
      %v3602 = vsel %vm3595, %v3588, %v3590
      %v3603 = vsel %vm3595, %v3592, %v3594
      %v3612 = vsel %vm219, %v3559, 0
      %v3615 = vsel %vm219, %v3560, 0
      %v3618 = vsel %vm219, %v3561, 0
      %v3621 = vsel %vm219, %v3562, 0
      %v3623 = vsel %vm232, %v3603, 0
      %3625 = vmatprep.subr.mxu0 0.0
      %3626 = vmatpush1.msra.mxu0 %v3596
      %3627 = vmatprep.subr.mxu0 0.0
      %3628 = vmatpush1.msra.mxu0 %v3597
      %3629 = vmatprep.subr.mxu0 0.0
      %3630 = vmatpush1.msra.mxu0 %v3598
      %3631 = vmatprep.subr.mxu0 0.0
      %3632 = vmatpush1.msra.mxu0 %v3599
      %3633 = vmatprep.subr.mxu0 0.0
      %3634 = vmatpush1.msra.mxu0 %v3600
      %3635 = vmatprep.subr.mxu0 0.0
      %3636 = vmatpush1.msra.mxu0 %v3601
      %3637 = vmatprep.subr.mxu0 0.0
      %3638 = vmatpush1.msra.mxu0 %v3602
      %3639 = vmatprep.subr.mxu0 0.0
      %3640 = vmatpush1.msra.mxu0 %v3623
      %3641 = vmatprep.subr.mxu0 0.0
      %3642 = vmatpush1.msra.mxu0 0.0
      %3643 = vmatprep.subr.mxu0 0.0
      %3644 = vmatpush1.msra.mxu0 0.0
      %3645 = vmatprep.subr.mxu0 0.0
      %3646 = vmatpush1.msra.mxu0 0.0
      %3647 = vmatprep.subr.mxu0 0.0
      %3648 = vmatpush1.msra.mxu0 0.0
      %3649 = vmatprep.subr.mxu0 0.0
      %3650 = vmatpush1.msra.mxu0 0.0
      %3651 = vmatprep.subr.mxu0 0.0
      %3652 = vmatpush1.msra.mxu0 0.0
      %3653 = vmatprep.subr.mxu0 0.0
      %3654 = vmatpush1.msra.mxu0 0.0
      %3655 = vmatprep.subr.mxu0 0.0
      %3656 = vmatpush1.msra.mxu0 0.0
      %3657 = vmatprep.subr.mxu0 0.0
      %3658 = vmatpush1.msra.mxu0 0.0
      %3659 = vmatprep.subr.mxu0 0.0
      %3660 = vmatpush1.msra.mxu0 0.0
      %3661 = vmatprep.subr.mxu0 0.0
      %3662 = vmatpush1.msra.mxu0 0.0
      %3663 = vmatprep.subr.mxu0 0.0
      %3664 = vmatpush1.msra.mxu0 0.0
      %3665 = vmatprep.subr.mxu0 0.0
      %3666 = vmatpush1.msra.mxu0 0.0
      %3667 = vmatprep.subr.mxu0 0.0
      %3668 = vmatpush1.msra.mxu0 0.0
      %3669 = vmatprep.subr.mxu0 0.0
      %3670 = vmatpush1.msra.mxu0 0.0
      %3671 = vmatprep.subr.mxu0 0.0
      %3672 = vmatpush1.msra.mxu0 0.0
      %3673 = vmatprep.subr.mxu0 0.0
      %3674 = vmatpush1.msra.mxu0 0.0
      %3675 = vmatprep.subr.mxu0 0.0
      %3676 = vmatpush1.msra.mxu0 0.0
      %3677 = vmatprep.subr.mxu0 0.0
      %3678 = vmatpush1.msra.mxu0 0.0
      %3679 = vmatprep.subr.mxu0 0.0
      %3680 = vmatpush1.msra.mxu0 0.0
      %3681 = vmatprep.subr.mxu0 0.0
      %3682 = vmatpush1.msra.mxu0 0.0
      %3683 = vmatprep.subr.mxu0 0.0
      %3684 = vmatpush1.msra.mxu0 0.0
      %3685 = vmatprep.subr.mxu0 0.0
      %3686 = vmatpush1.msra.mxu0 0.0
      %3687 = vmatprep.subr.mxu0 0.0
      %3688 = vmatpush1.msra.mxu0 0.0
      %3689 = vmatprep.mubr.f32.mxu0 0.0
      %3690 = vmatmul.mubr.f32.gmra.mrb[0].mxu0 %v3612
      %v3691 = vpop.f32.mrb[0].mxu0
      %v3692 = vadd.f32 0.0, %v3691
      %v3693 = vpop.f32.mrb[0].mxu0
      %3694 = vmatprep.mubr.f32.mxu0 0.0
      %3695 = vmatmul.mubr.f32.gmra.mrb[0].mxu0 %v3615
      %v3696 = vpop.f32.mrb[0].mxu0
      %v3697 = vadd.f32 0.0, %v3696
      %v3698 = vpop.f32.mrb[0].mxu0
      %3699 = vmatprep.mubr.f32.mxu0 0.0
      %3700 = vmatmul.mubr.f32.gmra.mrb[0].mxu0 %v3618
      %v3701 = vpop.f32.mrb[0].mxu0
      %v3702 = vadd.f32 0.0, %v3701
      %v3703 = vpop.f32.mrb[0].mxu0
      %3704 = vmatprep.mubr.f32.mxu0 0.0
      %3705 = vmatmul.mubr.f32.gmra.mrb[0].mxu0 %v3621
      %v3706 = vpop.f32.mrb[0].mxu0
      %v3707 = vadd.f32 0.0, %v3706
      %v3708 = vpop.f32.mrb[0].mxu0
      %3709 = vdwg.mxu0
      %v3710 = vadd.f32 %v3554, %v3692
      %v3711 = vadd.f32 %v3555, %v3697
      %v3712 = vadd.f32 %v3556, %v3702
      %v3713 = vadd.f32 %v3557, %v3707
      %v3714 = vld [vmem:[%s2] sm:$0xff]
      %v3715 = vld [vmem:[%s2 + $0x8] sm:$0xff]
      %v3716 = vld [vmem:[%s2 + $0x10] sm:$0xff]
      %v3717 = vld [vmem:[%s2 + $0x18] sm:$0xff]
      %3719 = vset.pattern.permute.xlu0 0
      %3720 = vperm.xlu0 %3719, %v3714
      %v3721 = vpop.permute.xlu0 %3720
      %3724 = vset.pattern.permute.xlu0 0
      %3725 = vperm.xlu0 %3724, %v3715
      %v3726 = vpop.permute.xlu0 %3725
      %3729 = vset.pattern.permute.xlu0 0
      %3730 = vperm.xlu0 %3729, %v3716
      %v3731 = vpop.permute.xlu0 %3730
      %3734 = vset.pattern.permute.xlu0 0
      %3735 = vperm.xlu0 %3734, %v3717
      %v3736 = vpop.permute.xlu0 %3735
      %v3738 = vadd.f32 %v3710, %v3721
      %v3739 = vadd.f32 %v3711, %v3726
      %v3740 = vadd.f32 %v3712, %v3731
      %v3741 = vadd.f32 %v3713, %v3736
      %vm3742 = vcmask 785408
      %3743 = vst.msk [vmem:[%s170] sm:$0xff] %vm3742, %v3738
      %3744 = vst.msk [vmem:[%s170 + $0x8] sm:$0xff] %vm3742, %v3739
      %3745 = vst.msk [vmem:[%s170 + $0x10] sm:$0xff] %vm3742, %v3740
      %3746 = vst.msk [vmem:[%s170 + $0x18] sm:$0xff] %vm3742, %v3741
      %p3747 = scmp.lt.s32.totalorder %s14, 1
      %s3748 = scalar_select %p3747, %s14, 1
      %s3749 = smul.addr %s3748, 4
      %s3750 = smul.addr %s3749, 8
      %s3751 = scalar_lea.vmem %s3, %s3750
      // Predicated region
      $region33: #{_lambda_.5} parent=31 // pred_check
        %p3752 = pneg %p100
      $region34: #{_lambda_.5} parent=31 // pred_check_branch
        %3754 = sbr.rel (%p3752) target = $region36
      $region35: #{_lambda_.5} parent=31 // pred_region
        _
      $region36: #{_lambda_.5} parent=31 // pred_fallthru
        _
    $region32: #{_lambda_.5} parent=5 // pred_fallthru
      _
    %p3755 = scmp.le.s32.totalorder 2, %s9
    // Predicated region
    $region37: #{_lambda_.5} parent=5 // pred_check
      %p3756 = pneg %p3755
    $region38: #{_lambda_.5} parent=5 // pred_check_branch
      %3758 = sbr.rel (%p3756) target = $region40
    $region39: #{_lambda_.5} parent=5 // pred_region
      %s3759 = ssub.s32 %s9, 2
      // Predicated region
      $region41: #{_lambda_.5} parent=39 // pred_check
        %p3760 = pneg %p106
      $region42: #{_lambda_.5} parent=39 // pred_check_branch
        %3762 = sbr.rel (%p3760) target = $region44
      $region43: #{_lambda_.5} parent=39 // pred_region
        %p3763 = scmp.lt.s32.totalorder %s15, 1
        %s3764 = scalar_select %p3763, %s15, 1
        %s3765 = smul.addr %s3764, 4
        %s3766 = smul.addr %s3765, 8
        %s3767 = scalar_lea.vmem %s3, %s3766
      $region44: #{_lambda_.5} parent=39 // pred_fallthru
        _
    $region40: #{_lambda_.5} parent=5 // pred_fallthru
      _
  $region6: #{_lambda_.5} parent=0 // loop_footer
    %s13 = sadd.s32 1, %s9
  $region7: #{_lambda_.5} parent=0 // loop_footer_branch
    %8 = sbr.rel target = $region3
  $region8: #{_lambda_.5} parent=0 // loop_exit
    _

</llo_original>
